<compile_context>
chip_gen: v7x
topology: tpu7x:2x2x1
jax: 0.10.0
libtpu: 0.0.40
codegen_flags: <defaults>
</compile_context>

<pallas_src>
import functools

import jax
import jax.numpy as jnp
from jax.experimental import pallas as pl
from jax.experimental.pallas import tpu as pltpu


def _dnn_kernel(x_ref, w_in_ref, b_in_ref, w_hid_ref, b_hid_ref,
                w_out_ref, b_out_ref, o_ref, *,
                num_hiddens, input_dim, num_subtiles):
    # x_ref:     [input_dim, bm]   (batch on lanes)
    # w_in_ref:  [H, input_dim]    (PyTorch [out, in] layout)
    # b_in_ref:  [H, 1]
    # w_hid_ref: [2L, H, H]
    # b_hid_ref: [2L, H, 1]
    # w_out_ref: [out_dim, H]
    # b_out_ref: [out_dim, 1]
    # o_ref:     [out_dim, bm]
    x = x_ref[...]
    w_in = w_in_ref[...]
    b_in = b_in_ref[...]
    w_hid = w_hid_ref[...]          # ~24 KiB total; loaded once per grid step
    b_hid = b_hid_ref[...]
    w_out = w_out_ref[...]
    b_out = b_out_ref[...]

    bm = x.shape[1]
    sm = bm // num_subtiles

    # --- input layer: K = input_dim (=2) is tiny -> VPU rank-1 accumulation,
    #     not an MXU pass.  [H,1] * [1,bm] broadcasts to [H,bm].
    acc = w_in[:, 0:1] * x[0:1, :]
    for k in range(1, input_dim):
        acc = acc + w_in[:, k:k + 1] * x[k:k + 1, :]
    h_full = jnp.sin(acc + b_in)                                   # [H, bm]

    # --- split the tile into independent lane sub-tiles: their residual-block
    #     matmul->sin chains carry no data dependence on each other, so the LLO
    #     scheduler can overlap one chain's MXU pass with the other's sin work.
    subs = [h_full[:, s * sm:(s + 1) * sm] for s in range(num_subtiles)]

    # --- residual blocks (num_hiddens is a static Python int -> unrolled at trace time)
    for i in range(num_hiddens):
        r = [jnp.sin(jnp.dot(w_hid[2 * i], subs[s],
                             preferred_element_type=jnp.float32) + b_hid[2 * i])
             for s in range(num_subtiles)]
        r = [jnp.sin(jnp.dot(w_hid[2 * i + 1], r[s],
                             preferred_element_type=jnp.float32) + b_hid[2 * i + 1])
             for s in range(num_subtiles)]
        subs = [subs[s] + r[s] for s in range(num_subtiles)]

    # --- output layer: for out_dim == 1 an M=1 MXU pass is wasted latency at the chain
    #     tail; do VPU multiply + cross-sublane (XLU) reduction instead.  Stores stay
    #     lane-dense (sm is a multiple of 128).
    out_dim = o_ref.shape[0]
    for s in range(num_subtiles):
        if out_dim == 1:
            o_s = jnp.sum(w_out.T * subs[s], axis=0, keepdims=True) + b_out
        else:
            o_s = jnp.dot(w_out, subs[s], preferred_element_type=jnp.float32) + b_out
        o_ref[:, s * sm:(s + 1) * sm] = o_s.astype(o_ref.dtype)


def _round_up(a, m):
    return ((a + m - 1) // m) * m


def _pick_block_m(n, requested):
    """Lane-aligned tile size; cap at ~N/2 so the parallel grid has >= 2 steps
    (keeps both v7x TensorCores busy) whenever N allows."""
    requested = max(128, (requested // 128) * 128)
    if n <= 128:
        return 128
    half = _round_up((n + 1) // 2, 128)
    return max(128, min(requested, half))


def dnn_forward_t(x_t, params, *, num_hiddens, block_m=512, num_subtiles=2):
    """Feature-major entry point: x_t is [input_dim, N]; returns [output_dim, N].

    Keeping collocation points feature-major across a training loop removes a
    standalone XLA transpose (extra HBM round-trip) per forward call."""
    input_dim, N = x_t.shape
    w_in, b_in = params["w_in"], params["b_in"]          # [H, in],   [H, 1]
    w_hid, b_hid = params["w_hid"], params["b_hid"]      # [2L, H, H], [2L, H, 1]
    w_out, b_out = params["w_out"], params["b_out"]      # [out, H],  [out, 1]
    hidden_dim = w_in.shape[0]
    output_dim = w_out.shape[0]
    L2 = w_hid.shape[0]

    bm = _pick_block_m(N, block_m)
    # Sub-tiles must stay lane-tile aligned (multiples of 128); otherwise fall back to 1.
    ns = num_subtiles if (num_subtiles >= 1 and bm % (num_subtiles * 128) == 0) else 1

    n_pad = _round_up(N, bm)
    if n_pad != N:
        x_t = jnp.pad(x_t, ((0, 0), (0, n_pad - N)))

    grid = (n_pad // bm,)
    kernel = functools.partial(_dnn_kernel, num_hiddens=num_hiddens,
                               input_dim=input_dim, num_subtiles=ns)

    flops = 2 * n_pad * (input_dim * hidden_dim
                         + 2 * num_hiddens * hidden_dim * hidden_dim
                         + hidden_dim * output_dim)
    transc = n_pad * hidden_dim * (1 + 2 * num_hiddens)
    bytes_acc = 4 * (x_t.size + n_pad * output_dim
                     + w_in.size + b_in.size + w_hid.size + b_hid.size
                     + w_out.size + b_out.size)

    out_t = pl.pallas_call(
        kernel,
        out_shape=jax.ShapeDtypeStruct((output_dim, n_pad), jnp.float32),
        grid_spec=pltpu.PrefetchScalarGridSpec(
            num_scalar_prefetch=0,
            grid=grid,
            in_specs=[
                pl.BlockSpec((input_dim, bm), lambda i: (0, i)),
                pl.BlockSpec((hidden_dim, input_dim), lambda i: (0, 0)),
                pl.BlockSpec((hidden_dim, 1), lambda i: (0, 0)),
                pl.BlockSpec((L2, hidden_dim, hidden_dim), lambda i: (0, 0, 0)),
                pl.BlockSpec((L2, hidden_dim, 1), lambda i: (0, 0, 0)),
                pl.BlockSpec((output_dim, hidden_dim), lambda i: (0, 0)),
                pl.BlockSpec((output_dim, 1), lambda i: (0, 0)),
            ],
            out_specs=pl.BlockSpec((output_dim, bm), lambda i: (0, i)),
        ),
        compiler_params=pltpu.CompilerParams(
            dimension_semantics=("parallel",),
            vmem_limit_bytes=32 * 1024 * 1024,
        ),
        cost_estimate=pl.CostEstimate(flops=flops, transcendentals=transc,
                                      bytes_accessed=bytes_acc),
    )(x_t, w_in, b_in, w_hid, b_hid, w_out, b_out)

    return out_t[:, :N]                                  # [output_dim, N]


def dnn_forward(x, params, *, num_hiddens, block_m=512, num_subtiles=2):
    """Batch-major convenience wrapper: x is [N, input_dim]; returns [N, output_dim]."""
    out_t = dnn_forward_t(x.T, params, num_hiddens=num_hiddens,
                          block_m=block_m, num_subtiles=num_subtiles)
    return out_t.T


def init_params(key, input_dim, hidden_dim, output_dim, num_hiddens):
    """Deterministic init mirroring init_weights(): xavier_normal_(gain=0.1), bias=0.001.

    Weights kept in the native PyTorch [out_features, in_features] layout;
    biases stored as column vectors [out_features, 1] for the transposed kernel."""
    def xavier_normal(k, fan_out, fan_in, gain=0.1):
        std = gain * jnp.sqrt(2.0 / (fan_in + fan_out))
        return std * jax.random.normal(k, (fan_out, fan_in), dtype=jnp.float32)

    keys = jax.random.split(key, 2 * num_hiddens + 2)
    w_in = xavier_normal(keys[0], hidden_dim, input_dim)
    b_in = jnp.full((hidden_dim, 1), 0.001, dtype=jnp.float32)

    w_hid = jnp.stack(
        [xavier_normal(keys[1 + j], hidden_dim, hidden_dim)
         for j in range(2 * num_hiddens)],
        axis=0,
    )  # [2L, H, H]
    b_hid = jnp.full((2 * num_hiddens, hidden_dim, 1), 0.001, dtype=jnp.float32)

    w_out = xavier_normal(keys[-1], output_dim, hidden_dim)
    b_out = jnp.full((output_dim, 1), 0.001, dtype=jnp.float32)

    return dict(w_in=w_in, b_in=b_in, w_hid=w_hid, b_hid=b_hid,
                w_out=w_out, b_out=b_out)


def dnn_reference(x, params, *, num_hiddens):
    """Pure-JAX reference for correctness check (batch-major math)."""
    h = jnp.sin(x @ params["w_in"].T + params["b_in"][:, 0])
    for i in range(num_hiddens):
        r = jnp.sin(h @ params["w_hid"][2 * i].T + params["b_hid"][2 * i][:, 0])
        r = jnp.sin(r @ params["w_hid"][2 * i + 1].T + params["b_hid"][2 * i + 1][:, 0])
        h = h + r
    return h @ params["w_out"].T + params["b_out"][:, 0]


if __name__ == "__main__":
    # PINN-like shapes: 2-D coordinate input, scalar output, 32-wide hidden layers.
    input_dim, hidden_dim, output_dim, num_hiddens = 2, 32, 1, 3
    N = 512  # collocation points -> adaptive tile (256) gives a 2-step parallel grid

    key = jax.random.PRNGKey(0)
    k_x, k_p = jax.random.split(key)
    x = jax.random.uniform(k_x, (N, input_dim), dtype=jnp.float32)
    params = init_params(k_p, input_dim, hidden_dim, output_dim, num_hiddens)

    out = dnn_forward(x, params, num_hiddens=num_hiddens, block_m=512, num_subtiles=2)
    out = jax.block_until_ready(out)

    ref = dnn_reference(x, params, num_hiddens=num_hiddens)
    assert out.shape == (N, output_dim)
    assert jnp.allclose(out, ref, atol=1e-5, rtol=1e-5), "mismatch vs JAX reference"

    # Exercise the ragged-batch / single-step / single-subtile fallback path too.
    out_small = jax.block_until_ready(
        dnn_forward(x[:8], params, num_hiddens=num_hiddens, block_m=512, num_subtiles=2))
    assert out_small.shape == (8, output_dim)
    assert jnp.allclose(out_small, ref[:8], atol=1e-5, rtol=1e-5), "padded-path mismatch"

    # Exercise the feature-major entry point (what a training loop should use).
    out_t = jax.block_until_ready(
        dnn_forward_t(x.T, params, num_hiddens=num_hiddens, block_m=512))
    assert out_t.shape == (output_dim, N)
    assert jnp.allclose(out_t.T, ref, atol=1e-5, rtol=1e-5), "feature-major mismatch"

    print("KERNEL_OK")
</pallas_src>

<mosaic_0001>
module attributes {stable_mosaic.version = 11 : i64} {
  func.func @_dnn_kernel(%arg0: i32, %arg1: memref<2x256xf32, #tpu.memory_space<vmem>>, %arg2: memref<32x2xf32, #tpu.memory_space<vmem>>, %arg3: memref<32x1xf32, #tpu.memory_space<vmem>>, %arg4: memref<6x32x32xf32, #tpu.memory_space<vmem>>, %arg5: memref<6x32x1xf32, #tpu.memory_space<vmem>>, %arg6: memref<1x32xf32, #tpu.memory_space<vmem>>, %arg7: memref<1x1xf32, #tpu.memory_space<vmem>>, %arg8: memref<1x256xf32, #tpu.memory_space<vmem>>) attributes {dimension_semantics = [#tpu.dimension_semantics<parallel>], iteration_bounds = array<i64: 2>, scalar_prefetch = 0 : i64, scratch_operands = 0 : i64, tpu.core_type = #tpu.core_type<tc>, window_params = [{transform_indices = @transform_0, window_bounds = array<i64: 2, 256>}, {pipeline_mode = #tpu.pipeline_mode<synchronous>, transform_indices = @transform_1, window_bounds = array<i64: 32, 2>}, {pipeline_mode = #tpu.pipeline_mode<synchronous>, transform_indices = @transform_2, window_bounds = array<i64: 32, 1>}, {pipeline_mode = #tpu.pipeline_mode<synchronous>, transform_indices = @transform_3, window_bounds = array<i64: 6, 32, 32>}, {pipeline_mode = #tpu.pipeline_mode<synchronous>, transform_indices = @transform_4, window_bounds = array<i64: 6, 32, 1>}, {pipeline_mode = #tpu.pipeline_mode<synchronous>, transform_indices = @transform_5, window_bounds = array<i64: 1, 32>}, {pipeline_mode = #tpu.pipeline_mode<synchronous>, transform_indices = @transform_6, window_bounds = array<i64: 1, 1>}, {transform_indices = @transform_7, window_bounds = array<i64: 1, 256>}]} {
    %c0 = arith.constant 0 : index
    %c0_0 = arith.constant 0 : index
    %0 = vector.load %arg1[%c0, %c0_0] : memref<2x256xf32, #tpu.memory_space<vmem>>, vector<2x256xf32>
    %c0_1 = arith.constant 0 : index
    %c0_2 = arith.constant 0 : index
    %1 = vector.load %arg2[%c0_1, %c0_2] : memref<32x2xf32, #tpu.memory_space<vmem>>, vector<32x2xf32>
    %c0_3 = arith.constant 0 : index
    %c0_4 = arith.constant 0 : index
    %2 = vector.load %arg3[%c0_3, %c0_4] : memref<32x1xf32, #tpu.memory_space<vmem>>, vector<32x1xf32>
    %c0_5 = arith.constant 0 : index
    %c0_6 = arith.constant 0 : index
    %c0_7 = arith.constant 0 : index
    %3 = vector.load %arg4[%c0_5, %c0_6, %c0_7] : memref<6x32x32xf32, #tpu.memory_space<vmem>>, vector<6x32x32xf32>
    %c0_8 = arith.constant 0 : index
    %c0_9 = arith.constant 0 : index
    %c0_10 = arith.constant 0 : index
    %4 = vector.load %arg5[%c0_8, %c0_9, %c0_10] : memref<6x32x1xf32, #tpu.memory_space<vmem>>, vector<6x32x1xf32>
    %c0_11 = arith.constant 0 : index
    %c0_12 = arith.constant 0 : index
    %5 = vector.load %arg6[%c0_11, %c0_12] : memref<1x32xf32, #tpu.memory_space<vmem>>, vector<1x32xf32>
    %c0_13 = arith.constant 0 : index
    %c0_14 = arith.constant 0 : index
    %6 = vector.load %arg7[%c0_13, %c0_14] : memref<1x1xf32, #tpu.memory_space<vmem>>, vector<1x1xf32>
    %7 = vector.extract_strided_slice %1 {offsets = [0, 0], sizes = [32, 1], strides = [1, 1]} : vector<32x2xf32> to vector<32x1xf32>
    %8 = vector.extract_strided_slice %0 {offsets = [0, 0], sizes = [1, 256], strides = [1, 1]} : vector<2x256xf32> to vector<1x256xf32>
    %9 = vector.broadcast %7 : vector<32x1xf32> to vector<32x256xf32>
    %10 = vector.broadcast %8 : vector<1x256xf32> to vector<32x256xf32>
    %11 = arith.mulf %9, %10 : vector<32x256xf32>
    %12 = vector.extract_strided_slice %1 {offsets = [0, 1], sizes = [32, 1], strides = [1, 1]} : vector<32x2xf32> to vector<32x1xf32>
    %13 = vector.extract_strided_slice %0 {offsets = [1, 0], sizes = [1, 256], strides = [1, 1]} : vector<2x256xf32> to vector<1x256xf32>
    %14 = vector.broadcast %12 : vector<32x1xf32> to vector<32x256xf32>
    %15 = vector.broadcast %13 : vector<1x256xf32> to vector<32x256xf32>
    %16 = arith.mulf %14, %15 : vector<32x256xf32>
    %17 = arith.addf %11, %16 : vector<32x256xf32>
    %18 = vector.broadcast %2 : vector<32x1xf32> to vector<32x256xf32>
    %19 = arith.addf %17, %18 : vector<32x256xf32>
    %20 = math.sin %19 : vector<32x256xf32>
    %21 = vector.extract_strided_slice %20 {offsets = [0, 0], sizes = [32, 128], strides = [1, 1]} : vector<32x256xf32> to vector<32x128xf32>
    %22 = vector.extract_strided_slice %20 {offsets = [0, 128], sizes = [32, 128], strides = [1, 1]} : vector<32x256xf32> to vector<32x128xf32>
    %23 = vector.extract_strided_slice %3 {offsets = [0, 0, 0], sizes = [1, 32, 32], strides = [1, 1, 1]} : vector<6x32x32xf32> to vector<1x32x32xf32>
    %24 = vector.shape_cast %23 : vector<1x32x32xf32> to vector<32x32xf32>
    %cst = arith.constant dense<0.000000e+00> : vector<32x128xf32>
    %25 = tpu.matmul %24, %21, %cst {dimension_numbers = #tpu.dot_dimension_numbers<[1], [0], [0], [1], [0, 0, 1, 1], [], []>} : vector<32x32xf32>, vector<32x128xf32>, vector<32x128xf32> -> vector<32x128xf32>
    %26 = vector.extract_strided_slice %4 {offsets = [0, 0, 0], sizes = [1, 32, 1], strides = [1, 1, 1]} : vector<6x32x1xf32> to vector<1x32x1xf32>
    %27 = vector.shape_cast %26 : vector<1x32x1xf32> to vector<32x1xf32>
    %28 = vector.broadcast %27 : vector<32x1xf32> to vector<32x128xf32>
    %29 = arith.addf %25, %28 : vector<32x128xf32>
    %30 = math.sin %29 : vector<32x128xf32>
    %31 = vector.extract_strided_slice %3 {offsets = [0, 0, 0], sizes = [1, 32, 32], strides = [1, 1, 1]} : vector<6x32x32xf32> to vector<1x32x32xf32>
    %32 = vector.shape_cast %31 : vector<1x32x32xf32> to vector<32x32xf32>
    %cst_15 = arith.constant dense<0.000000e+00> : vector<32x128xf32>
    %33 = tpu.matmul %32, %22, %cst_15 {dimension_numbers = #tpu.dot_dimension_numbers<[1], [0], [0], [1], [0, 0, 1, 1], [], []>} : vector<32x32xf32>, vector<32x128xf32>, vector<32x128xf32> -> vector<32x128xf32>
    %34 = vector.extract_strided_slice %4 {offsets = [0, 0, 0], sizes = [1, 32, 1], strides = [1, 1, 1]} : vector<6x32x1xf32> to vector<1x32x1xf32>
    %35 = vector.shape_cast %34 : vector<1x32x1xf32> to vector<32x1xf32>
    %36 = vector.broadcast %35 : vector<32x1xf32> to vector<32x128xf32>
    %37 = arith.addf %33, %36 : vector<32x128xf32>
    %38 = math.sin %37 : vector<32x128xf32>
    %39 = vector.extract_strided_slice %3 {offsets = [1, 0, 0], sizes = [1, 32, 32], strides = [1, 1, 1]} : vector<6x32x32xf32> to vector<1x32x32xf32>
    %40 = vector.shape_cast %39 : vector<1x32x32xf32> to vector<32x32xf32>
    %cst_16 = arith.constant dense<0.000000e+00> : vector<32x128xf32>
    %41 = tpu.matmul %40, %30, %cst_16 {dimension_numbers = #tpu.dot_dimension_numbers<[1], [0], [0], [1], [0, 0, 1, 1], [], []>} : vector<32x32xf32>, vector<32x128xf32>, vector<32x128xf32> -> vector<32x128xf32>
    %42 = vector.extract_strided_slice %4 {offsets = [1, 0, 0], sizes = [1, 32, 1], strides = [1, 1, 1]} : vector<6x32x1xf32> to vector<1x32x1xf32>
    %43 = vector.shape_cast %42 : vector<1x32x1xf32> to vector<32x1xf32>
    %44 = vector.broadcast %43 : vector<32x1xf32> to vector<32x128xf32>
    %45 = arith.addf %41, %44 : vector<32x128xf32>
    %46 = math.sin %45 : vector<32x128xf32>
    %47 = vector.extract_strided_slice %3 {offsets = [1, 0, 0], sizes = [1, 32, 32], strides = [1, 1, 1]} : vector<6x32x32xf32> to vector<1x32x32xf32>
    %48 = vector.shape_cast %47 : vector<1x32x32xf32> to vector<32x32xf32>
    %cst_17 = arith.constant dense<0.000000e+00> : vector<32x128xf32>
    %49 = tpu.matmul %48, %38, %cst_17 {dimension_numbers = #tpu.dot_dimension_numbers<[1], [0], [0], [1], [0, 0, 1, 1], [], []>} : vector<32x32xf32>, vector<32x128xf32>, vector<32x128xf32> -> vector<32x128xf32>
    %50 = vector.extract_strided_slice %4 {offsets = [1, 0, 0], sizes = [1, 32, 1], strides = [1, 1, 1]} : vector<6x32x1xf32> to vector<1x32x1xf32>
    %51 = vector.shape_cast %50 : vector<1x32x1xf32> to vector<32x1xf32>
    %52 = vector.broadcast %51 : vector<32x1xf32> to vector<32x128xf32>
    %53 = arith.addf %49, %52 : vector<32x128xf32>
    %54 = math.sin %53 : vector<32x128xf32>
    %55 = arith.addf %21, %46 : vector<32x128xf32>
    %56 = arith.addf %22, %54 : vector<32x128xf32>
    %57 = vector.extract_strided_slice %3 {offsets = [2, 0, 0], sizes = [1, 32, 32], strides = [1, 1, 1]} : vector<6x32x32xf32> to vector<1x32x32xf32>
    %58 = vector.shape_cast %57 : vector<1x32x32xf32> to vector<32x32xf32>
    %cst_18 = arith.constant dense<0.000000e+00> : vector<32x128xf32>
    %59 = tpu.matmul %58, %55, %cst_18 {dimension_numbers = #tpu.dot_dimension_numbers<[1], [0], [0], [1], [0, 0, 1, 1], [], []>} : vector<32x32xf32>, vector<32x128xf32>, vector<32x128xf32> -> vector<32x128xf32>
    %60 = vector.extract_strided_slice %4 {offsets = [2, 0, 0], sizes = [1, 32, 1], strides = [1, 1, 1]} : vector<6x32x1xf32> to vector<1x32x1xf32>
    %61 = vector.shape_cast %60 : vector<1x32x1xf32> to vector<32x1xf32>
    %62 = vector.broadcast %61 : vector<32x1xf32> to vector<32x128xf32>
    %63 = arith.addf %59, %62 : vector<32x128xf32>
    %64 = math.sin %63 : vector<32x128xf32>
    %65 = vector.extract_strided_slice %3 {offsets = [2, 0, 0], sizes = [1, 32, 32], strides = [1, 1, 1]} : vector<6x32x32xf32> to vector<1x32x32xf32>
    %66 = vector.shape_cast %65 : vector<1x32x32xf32> to vector<32x32xf32>
    %cst_19 = arith.constant dense<0.000000e+00> : vector<32x128xf32>
    %67 = tpu.matmul %66, %56, %cst_19 {dimension_numbers = #tpu.dot_dimension_numbers<[1], [0], [0], [1], [0, 0, 1, 1], [], []>} : vector<32x32xf32>, vector<32x128xf32>, vector<32x128xf32> -> vector<32x128xf32>
    %68 = vector.extract_strided_slice %4 {offsets = [2, 0, 0], sizes = [1, 32, 1], strides = [1, 1, 1]} : vector<6x32x1xf32> to vector<1x32x1xf32>
    %69 = vector.shape_cast %68 : vector<1x32x1xf32> to vector<32x1xf32>
    %70 = vector.broadcast %69 : vector<32x1xf32> to vector<32x128xf32>
    %71 = arith.addf %67, %70 : vector<32x128xf32>
    %72 = math.sin %71 : vector<32x128xf32>
    %73 = vector.extract_strided_slice %3 {offsets = [3, 0, 0], sizes = [1, 32, 32], strides = [1, 1, 1]} : vector<6x32x32xf32> to vector<1x32x32xf32>
    %74 = vector.shape_cast %73 : vector<1x32x32xf32> to vector<32x32xf32>
    %cst_20 = arith.constant dense<0.000000e+00> : vector<32x128xf32>
    %75 = tpu.matmul %74, %64, %cst_20 {dimension_numbers = #tpu.dot_dimension_numbers<[1], [0], [0], [1], [0, 0, 1, 1], [], []>} : vector<32x32xf32>, vector<32x128xf32>, vector<32x128xf32> -> vector<32x128xf32>
    %76 = vector.extract_strided_slice %4 {offsets = [3, 0, 0], sizes = [1, 32, 1], strides = [1, 1, 1]} : vector<6x32x1xf32> to vector<1x32x1xf32>
    %77 = vector.shape_cast %76 : vector<1x32x1xf32> to vector<32x1xf32>
    %78 = vector.broadcast %77 : vector<32x1xf32> to vector<32x128xf32>
    %79 = arith.addf %75, %78 : vector<32x128xf32>
    %80 = math.sin %79 : vector<32x128xf32>
    %81 = vector.extract_strided_slice %3 {offsets = [3, 0, 0], sizes = [1, 32, 32], strides = [1, 1, 1]} : vector<6x32x32xf32> to vector<1x32x32xf32>
    %82 = vector.shape_cast %81 : vector<1x32x32xf32> to vector<32x32xf32>
    %cst_21 = arith.constant dense<0.000000e+00> : vector<32x128xf32>
    %83 = tpu.matmul %82, %72, %cst_21 {dimension_numbers = #tpu.dot_dimension_numbers<[1], [0], [0], [1], [0, 0, 1, 1], [], []>} : vector<32x32xf32>, vector<32x128xf32>, vector<32x128xf32> -> vector<32x128xf32>
    %84 = vector.extract_strided_slice %4 {offsets = [3, 0, 0], sizes = [1, 32, 1], strides = [1, 1, 1]} : vector<6x32x1xf32> to vector<1x32x1xf32>
    %85 = vector.shape_cast %84 : vector<1x32x1xf32> to vector<32x1xf32>
    %86 = vector.broadcast %85 : vector<32x1xf32> to vector<32x128xf32>
    %87 = arith.addf %83, %86 : vector<32x128xf32>
    %88 = math.sin %87 : vector<32x128xf32>
    %89 = arith.addf %55, %80 : vector<32x128xf32>
    %90 = arith.addf %56, %88 : vector<32x128xf32>
    %91 = vector.extract_strided_slice %3 {offsets = [4, 0, 0], sizes = [1, 32, 32], strides = [1, 1, 1]} : vector<6x32x32xf32> to vector<1x32x32xf32>
    %92 = vector.shape_cast %91 : vector<1x32x32xf32> to vector<32x32xf32>
    %cst_22 = arith.constant dense<0.000000e+00> : vector<32x128xf32>
    %93 = tpu.matmul %92, %89, %cst_22 {dimension_numbers = #tpu.dot_dimension_numbers<[1], [0], [0], [1], [0, 0, 1, 1], [], []>} : vector<32x32xf32>, vector<32x128xf32>, vector<32x128xf32> -> vector<32x128xf32>
    %94 = vector.extract_strided_slice %4 {offsets = [4, 0, 0], sizes = [1, 32, 1], strides = [1, 1, 1]} : vector<6x32x1xf32> to vector<1x32x1xf32>
    %95 = vector.shape_cast %94 : vector<1x32x1xf32> to vector<32x1xf32>
    %96 = vector.broadcast %95 : vector<32x1xf32> to vector<32x128xf32>
    %97 = arith.addf %93, %96 : vector<32x128xf32>
    %98 = math.sin %97 : vector<32x128xf32>
    %99 = vector.extract_strided_slice %3 {offsets = [4, 0, 0], sizes = [1, 32, 32], strides = [1, 1, 1]} : vector<6x32x32xf32> to vector<1x32x32xf32>
    %100 = vector.shape_cast %99 : vector<1x32x32xf32> to vector<32x32xf32>
    %cst_23 = arith.constant dense<0.000000e+00> : vector<32x128xf32>
    %101 = tpu.matmul %100, %90, %cst_23 {dimension_numbers = #tpu.dot_dimension_numbers<[1], [0], [0], [1], [0, 0, 1, 1], [], []>} : vector<32x32xf32>, vector<32x128xf32>, vector<32x128xf32> -> vector<32x128xf32>
    %102 = vector.extract_strided_slice %4 {offsets = [4, 0, 0], sizes = [1, 32, 1], strides = [1, 1, 1]} : vector<6x32x1xf32> to vector<1x32x1xf32>
    %103 = vector.shape_cast %102 : vector<1x32x1xf32> to vector<32x1xf32>
    %104 = vector.broadcast %103 : vector<32x1xf32> to vector<32x128xf32>
    %105 = arith.addf %101, %104 : vector<32x128xf32>
    %106 = math.sin %105 : vector<32x128xf32>
    %107 = vector.extract_strided_slice %3 {offsets = [5, 0, 0], sizes = [1, 32, 32], strides = [1, 1, 1]} : vector<6x32x32xf32> to vector<1x32x32xf32>
    %108 = vector.shape_cast %107 : vector<1x32x32xf32> to vector<32x32xf32>
    %cst_24 = arith.constant dense<0.000000e+00> : vector<32x128xf32>
    %109 = tpu.matmul %108, %98, %cst_24 {dimension_numbers = #tpu.dot_dimension_numbers<[1], [0], [0], [1], [0, 0, 1, 1], [], []>} : vector<32x32xf32>, vector<32x128xf32>, vector<32x128xf32> -> vector<32x128xf32>
    %110 = vector.extract_strided_slice %4 {offsets = [5, 0, 0], sizes = [1, 32, 1], strides = [1, 1, 1]} : vector<6x32x1xf32> to vector<1x32x1xf32>
    %111 = vector.shape_cast %110 : vector<1x32x1xf32> to vector<32x1xf32>
    %112 = vector.broadcast %111 : vector<32x1xf32> to vector<32x128xf32>
    %113 = arith.addf %109, %112 : vector<32x128xf32>
    %114 = math.sin %113 : vector<32x128xf32>
    %115 = vector.extract_strided_slice %3 {offsets = [5, 0, 0], sizes = [1, 32, 32], strides = [1, 1, 1]} : vector<6x32x32xf32> to vector<1x32x32xf32>
    %116 = vector.shape_cast %115 : vector<1x32x32xf32> to vector<32x32xf32>
    %cst_25 = arith.constant dense<0.000000e+00> : vector<32x128xf32>
    %117 = tpu.matmul %116, %106, %cst_25 {dimension_numbers = #tpu.dot_dimension_numbers<[1], [0], [0], [1], [0, 0, 1, 1], [], []>} : vector<32x32xf32>, vector<32x128xf32>, vector<32x128xf32> -> vector<32x128xf32>
    %118 = vector.extract_strided_slice %4 {offsets = [5, 0, 0], sizes = [1, 32, 1], strides = [1, 1, 1]} : vector<6x32x1xf32> to vector<1x32x1xf32>
    %119 = vector.shape_cast %118 : vector<1x32x1xf32> to vector<32x1xf32>
    %120 = vector.broadcast %119 : vector<32x1xf32> to vector<32x128xf32>
    %121 = arith.addf %117, %120 : vector<32x128xf32>
    %122 = math.sin %121 : vector<32x128xf32>
    %123 = arith.addf %89, %114 : vector<32x128xf32>
    %124 = arith.addf %90, %122 : vector<32x128xf32>
    %125 = tpu.transpose %5, [1, 0] : vector<1x32xf32> -> vector<32x1xf32>
    %126 = vector.broadcast %125 : vector<32x1xf32> to vector<32x128xf32>
    %127 = arith.mulf %126, %123 : vector<32x128xf32>
    %cst_26 = arith.constant dense<0.000000e+00> : vector<128xf32>
    %128 = vector.multi_reduction <add>, %127, %cst_26 [0] : vector<32x128xf32> to vector<128xf32>
    %129 = vector.shape_cast %128 : vector<128xf32> to vector<1x128xf32>
    %130 = vector.broadcast %6 : vector<1x1xf32> to vector<1x128xf32>
    %131 = arith.addf %129, %130 : vector<1x128xf32>
    %c0_27 = arith.constant 0 : index
    %c0_28 = arith.constant 0 : index
    %132 = vector.load %arg8[%c0_27, %c0_28] : memref<1x256xf32, #tpu.memory_space<vmem>>, vector<1x128xf32>
    tpu.vector_store %arg8[%c0_27, %c0_28], %131 {strides = array<i32>} : memref<1x256xf32, #tpu.memory_space<vmem>>, vector<1x128xf32>,
    %133 = tpu.transpose %5, [1, 0] : vector<1x32xf32> -> vector<32x1xf32>
    %134 = vector.broadcast %133 : vector<32x1xf32> to vector<32x128xf32>
    %135 = arith.mulf %134, %124 : vector<32x128xf32>
    %cst_29 = arith.constant dense<0.000000e+00> : vector<128xf32>
    %136 = vector.multi_reduction <add>, %135, %cst_29 [0] : vector<32x128xf32> to vector<128xf32>
    %137 = vector.shape_cast %136 : vector<128xf32> to vector<1x128xf32>
    %138 = vector.broadcast %6 : vector<1x1xf32> to vector<1x128xf32>
    %139 = arith.addf %137, %138 : vector<1x128xf32>
    %c0_30 = arith.constant 0 : index
    %c128 = arith.constant 128 : index
    %140 = vector.load %arg8[%c0_30, %c128] : memref<1x256xf32, #tpu.memory_space<vmem>>, vector<1x128xf32>
    tpu.vector_store %arg8[%c0_30, %c128], %139 {strides = array<i32>} : memref<1x256xf32, #tpu.memory_space<vmem>>, vector<1x128xf32>,
    return
  }
  func.func @transform_0(%arg0: i32) -> (i32, i32) {
    %c0_i32 = arith.constant 0 : i32
    %c0_i32_0 = arith.constant 0 : i32
    return %c0_i32, %arg0 : i32, i32
  }
  func.func @transform_1(%arg0: i32) -> (i32, i32) {
    %c0_i32 = arith.constant 0 : i32
    %c0_i32_0 = arith.constant 0 : i32
    %c0_i32_1 = arith.constant 0 : i32
    return %c0_i32, %c0_i32_0 : i32, i32
  }
  func.func @transform_2(%arg0: i32) -> (i32, i32) {
    %c0_i32 = arith.constant 0 : i32
    %c0_i32_0 = arith.constant 0 : i32
    %c0_i32_1 = arith.constant 0 : i32
    return %c0_i32, %c0_i32_0 : i32, i32
  }
  func.func @transform_3(%arg0: i32) -> (i32, i32, i32) {
    %c0_i32 = arith.constant 0 : i32
    %c0_i32_0 = arith.constant 0 : i32
    %c0_i32_1 = arith.constant 0 : i32
    %c0_i32_2 = arith.constant 0 : i32
    return %c0_i32, %c0_i32_0, %c0_i32_1 : i32, i32, i32
  }
  func.func @transform_4(%arg0: i32) -> (i32, i32, i32) {
    %c0_i32 = arith.constant 0 : i32
    %c0_i32_0 = arith.constant 0 : i32
    %c0_i32_1 = arith.constant 0 : i32
    %c0_i32_2 = arith.constant 0 : i32
    return %c0_i32, %c0_i32_0, %c0_i32_1 : i32, i32, i32
  }
  func.func @transform_5(%arg0: i32) -> (i32, i32) {
    %c0_i32 = arith.constant 0 : i32
    %c0_i32_0 = arith.constant 0 : i32
    %c0_i32_1 = arith.constant 0 : i32
    return %c0_i32, %c0_i32_0 : i32, i32
  }
  func.func @transform_6(%arg0: i32) -> (i32, i32) {
    %c0_i32 = arith.constant 0 : i32
    %c0_i32_0 = arith.constant 0 : i32
    %c0_i32_1 = arith.constant 0 : i32
    return %c0_i32, %c0_i32_0 : i32, i32
  }
  func.func @transform_7(%arg0: i32) -> (i32, i32) {
    %c0_i32 = arith.constant 0 : i32
    %c0_i32_0 = arith.constant 0 : i32
    return %c0_i32, %arg0 : i32, i32
  }
}

</mosaic_0001>

<llo_original>
// kernel: tpu_custom_call.1
$region0: #{tpu_custom_call.1}
  #allocation0 [shape = 'u32[]', space=smem, size = 0x4, offset = 0x4, fixed_abs, tag = 'smem constant byte address 0x4 - core index']
  #allocation1 [shape = 'u32[144,128]{1,0:T(1,128)}', space=vmem, size = 0x12000, scoped, tag = 'internal scratch']
  #allocation2 [shape = 'f32[1,1]{1,0:T(1,128)S(1)}', space=vmem, size = 0x200, scoped, tag = 'scoped memory for tpu_custom_call.1']
  %s0 = inlined_call_operand.vmem [shape: f32[2,512], index: 0, kind: input, shape index: {}]
  %s1 = inlined_call_operand.vmem [shape: f32[32,2], index: 1, kind: input, shape index: {}]
  %s2 = inlined_call_operand.vmem [shape: f32[32,1], index: 2, kind: input, shape index: {}]
  %s3 = inlined_call_operand.vmem [shape: f32[6,32,32], index: 3, kind: input, shape index: {}]
  %s4 = inlined_call_operand.vmem [shape: f32[6,32,1], index: 4, kind: input, shape index: {}]
  %s5 = inlined_call_operand.vmem [shape: f32[1,32], index: 5, kind: input, shape index: {}]
  %s6 = inlined_call_operand.<no memory space> [shape: f32[1,1], index: 6, kind: input, shape index: {}]
  %s7 = inlined_call_operand.hbm [shape: f32[1,512], index: 7, kind: output, shape index: {}]
  %s8 = sld [smem:[#allocation0]]
  $region61: #{tpu_custom_call.1} parent=0
    _
  %s10 = ssub.s32 1, %s8
  %s11 = scalar_select 0, %s10, %s8
  %v12 = vstv %s6
  %13 = vst [vmem:[#allocation2] sm:$0x1] %v12
  $region1: #{tpu_custom_call.1} parent=0
    #allocation3 [shape = 'u8[2048]{0}', space=vmem, size = 0x800, scoped, tag = 'output window, operand 0']
    #allocation4 [shape = 's32[2]{0}', space=sflag, size = 0x8, scoped, tag = 'scoped memory for tpu_custom_call.1']
    %14 = vsyncpa [#allocation4], 0
    %s15 = scalar_lea.sflag [#allocation4], 1
    %16 = vsyncpa %s15, 0
    loop: start=0, step=1, limit=4
    $region2: #{tpu_custom_call.1} parent=1 // loop_pre_header
      _
    $region3: #{tpu_custom_call.1} parent=1 // loop_header
      %s18 = sphi 0, %s22
      %p19 = scmp.ge.s32.totalorder %s18, 4
      %s28 = sphi 0, %s30
      %s31 = sphi 0, %s28
      %s32 = sphi 0, %s31
      %s48 = sphi 0, %s32
      %s52 = sphi 0, %s52
      %s54 = sphi 0, %s52
      %s55 = sphi 0, %s54
      %s69 = sphi 0, %s55
      %s73 = sphi 0, %s73
      %s75 = sphi 0, %s73
      %s76 = sphi 0, %s75
      %s90 = sphi 0, %s76
      %s94 = sphi 0, %s94
      %s96 = sphi 0, %s94
      %s97 = sphi 0, %s96
      %s111 = sphi 0, %s97
      %s115 = sphi 0, %s115
      %s117 = sphi 0, %s115
      %s118 = sphi 0, %s117
      %s132 = sphi 0, %s118
      %s136 = sphi 0, %s136
      %s138 = sphi 0, %s136
      %s139 = sphi 0, %s138
      %s153 = sphi 0, %s139
      %s157 = sphi 0, %s157
      %s159 = sphi 0, %s157
      %s160 = sphi 0, %s159
      %s174 = sphi 0, %s160
      %s180 = sphi 0, %s182
      %s183 = sphi 0, %s180
      %s184 = sphi 0, %s183
      %s200 = sphi 0, %s184
    $region4: #{tpu_custom_call.1} parent=1 // loop_header_branch
      %21 = sbr.rel (%p19) target = $region8
    $region5: #{tpu_custom_call.1} parent=1 // loop_body
      %s23 = ssub.s32 %s18, 1
      %s24 = ssub.s32 %s18, 2
      %s25 = sadd.s32 %s18, 1
      %s26 = ssub.s32 %s18, %s25
      %p27 = scmp.eq.s32.totalorder %s26, 0
      %s29 = sadd.s32 %s28, 1
      %s30 = scalar_select %p27, %s28, %s29
      %p33 = pneg %p27
      %p34 = scmp.eq.s32.totalorder %s18, 1
      %p35 = por %p33, %p34
      %p36 = scmp.ne.s32.totalorder %s28, %s31
      %p37 = scmp.eq.s32.totalorder %s18, 0
      %p38 = por %p36, %p37
      %p39 = scmp.ne.s32.totalorder %s28, %s31
      %p40 = scmp.eq.s32.totalorder %s23, 1
      %p41 = por %p39, %p40
      %p42 = scmp.ne.s32.totalorder %s31, %s32
      %p43 = scmp.eq.s32.totalorder %s23, 0
      %p44 = por %p42, %p43
      %p45 = scmp.ne.s32.totalorder %s31, %s32
      %p46 = scmp.eq.s32.totalorder %s24, 1
      %p47 = por %p45, %p46
      %p49 = scmp.ne.s32.totalorder %s32, %s48
      %p50 = scmp.eq.s32.totalorder %s24, 0
      %p51 = por %p49, %p50
      %s53 = sadd.s32 %s52, 1
      %p56 = scmp.eq.s32.totalorder %s18, 1
      %p57 = scmp.ne.s32.totalorder %s52, %s54
      %p58 = scmp.eq.s32.totalorder %s18, 0
      %p59 = por %p57, %p58
      %p60 = scmp.ne.s32.totalorder %s52, %s54
      %p61 = scmp.eq.s32.totalorder %s23, 1
      %p62 = por %p60, %p61
      %p63 = scmp.ne.s32.totalorder %s54, %s55
      %p64 = scmp.eq.s32.totalorder %s23, 0
      %p65 = por %p63, %p64
      %p66 = scmp.ne.s32.totalorder %s54, %s55
      %p67 = scmp.eq.s32.totalorder %s24, 1
      %p68 = por %p66, %p67
      %p70 = scmp.ne.s32.totalorder %s55, %s69
      %p71 = scmp.eq.s32.totalorder %s24, 0
      %p72 = por %p70, %p71
      %s74 = sadd.s32 %s73, 1
      %p77 = scmp.eq.s32.totalorder %s18, 1
      %p78 = scmp.ne.s32.totalorder %s73, %s75
      %p79 = scmp.eq.s32.totalorder %s18, 0
      %p80 = por %p78, %p79
      %p81 = scmp.ne.s32.totalorder %s73, %s75
      %p82 = scmp.eq.s32.totalorder %s23, 1
      %p83 = por %p81, %p82
      %p84 = scmp.ne.s32.totalorder %s75, %s76
      %p85 = scmp.eq.s32.totalorder %s23, 0
      %p86 = por %p84, %p85
      %p87 = scmp.ne.s32.totalorder %s75, %s76
      %p88 = scmp.eq.s32.totalorder %s24, 1
      %p89 = por %p87, %p88
      %p91 = scmp.ne.s32.totalorder %s76, %s90
      %p92 = scmp.eq.s32.totalorder %s24, 0
      %p93 = por %p91, %p92
      %s95 = sadd.s32 %s94, 1
      %p98 = scmp.eq.s32.totalorder %s18, 1
      %p99 = scmp.ne.s32.totalorder %s94, %s96
      %p100 = scmp.eq.s32.totalorder %s18, 0
      %p101 = por %p99, %p100
      %p102 = scmp.ne.s32.totalorder %s94, %s96
      %p103 = scmp.eq.s32.totalorder %s23, 1
      %p104 = por %p102, %p103
      %p105 = scmp.ne.s32.totalorder %s96, %s97
      %p106 = scmp.eq.s32.totalorder %s23, 0
      %p107 = por %p105, %p106
      %p108 = scmp.ne.s32.totalorder %s96, %s97
      %p109 = scmp.eq.s32.totalorder %s24, 1
      %p110 = por %p108, %p109
      %p112 = scmp.ne.s32.totalorder %s97, %s111
      %p113 = scmp.eq.s32.totalorder %s24, 0
      %p114 = por %p112, %p113
      %s116 = sadd.s32 %s115, 1
      %p119 = scmp.eq.s32.totalorder %s18, 1
      %p120 = scmp.ne.s32.totalorder %s115, %s117
      %p121 = scmp.eq.s32.totalorder %s18, 0
      %p122 = por %p120, %p121
      %p123 = scmp.ne.s32.totalorder %s115, %s117
      %p124 = scmp.eq.s32.totalorder %s23, 1
      %p125 = por %p123, %p124
      %p126 = scmp.ne.s32.totalorder %s117, %s118
      %p127 = scmp.eq.s32.totalorder %s23, 0
      %p128 = por %p126, %p127
      %p129 = scmp.ne.s32.totalorder %s117, %s118
      %p130 = scmp.eq.s32.totalorder %s24, 1
      %p131 = por %p129, %p130
      %p133 = scmp.ne.s32.totalorder %s118, %s132
      %p134 = scmp.eq.s32.totalorder %s24, 0
      %p135 = por %p133, %p134
      %s137 = sadd.s32 %s136, 1
      %p140 = scmp.eq.s32.totalorder %s18, 1
      %p141 = scmp.ne.s32.totalorder %s136, %s138
      %p142 = scmp.eq.s32.totalorder %s18, 0
      %p143 = por %p141, %p142
      %p144 = scmp.ne.s32.totalorder %s136, %s138
      %p145 = scmp.eq.s32.totalorder %s23, 1
      %p146 = por %p144, %p145
      %p147 = scmp.ne.s32.totalorder %s138, %s139
      %p148 = scmp.eq.s32.totalorder %s23, 0
      %p149 = por %p147, %p148
      %p150 = scmp.ne.s32.totalorder %s138, %s139
      %p151 = scmp.eq.s32.totalorder %s24, 1
      %p152 = por %p150, %p151
      %p154 = scmp.ne.s32.totalorder %s139, %s153
      %p155 = scmp.eq.s32.totalorder %s24, 0
      %p156 = por %p154, %p155
      %s158 = sadd.s32 %s157, 1
      %p161 = scmp.eq.s32.totalorder %s18, 1
      %p162 = scmp.ne.s32.totalorder %s157, %s159
      %p163 = scmp.eq.s32.totalorder %s18, 0
      %p164 = por %p162, %p163
      %p165 = scmp.ne.s32.totalorder %s157, %s159
      %p166 = scmp.eq.s32.totalorder %s23, 1
      %p167 = por %p165, %p166
      %p168 = scmp.ne.s32.totalorder %s159, %s160
      %p169 = scmp.eq.s32.totalorder %s23, 0
      %p170 = por %p168, %p169
      %p171 = scmp.ne.s32.totalorder %s159, %s160
      %p172 = scmp.eq.s32.totalorder %s24, 1
      %p173 = por %p171, %p172
      %p175 = scmp.ne.s32.totalorder %s160, %s174
      %p176 = scmp.eq.s32.totalorder %s24, 0
      %p177 = por %p175, %p176
      %s178 = ssub.s32 %s18, %s25
      %p179 = scmp.eq.s32.totalorder %s178, 0
      %s181 = sadd.s32 %s180, 1
      %s182 = scalar_select %p179, %s180, %s181
      %p185 = pneg %p179
      %p186 = scmp.eq.s32.totalorder %s18, 1
      %p187 = por %p185, %p186
      %p188 = scmp.ne.s32.totalorder %s180, %s183
      %p189 = scmp.eq.s32.totalorder %s18, 0
      %p190 = por %p188, %p189
      %p191 = scmp.ne.s32.totalorder %s180, %s183
      %p192 = scmp.eq.s32.totalorder %s23, 1
      %p193 = por %p191, %p192
      %p194 = scmp.ne.s32.totalorder %s183, %s184
      %p195 = scmp.eq.s32.totalorder %s23, 0
      %p196 = por %p194, %p195
      %p197 = scmp.ne.s32.totalorder %s183, %s184
      %p198 = scmp.eq.s32.totalorder %s24, 1
      %p199 = por %p197, %p198
      %p201 = scmp.ne.s32.totalorder %s184, %s200
      %p202 = scmp.eq.s32.totalorder %s24, 0
      %p203 = por %p201, %p202
      %p204 = scmp.le.s32.totalorder 1, %s18
      %p205 = scmp.lt.s32.totalorder %s18, 3
      %p206 = pnand %p204, %p205
      %p207 = pneg %p206
      // Predicated region
      $region9: #{tpu_custom_call.1} parent=5 // pred_check
        _
      $region10: #{tpu_custom_call.1} parent=5 // pred_check_branch
        %209 = sbr.rel (%p206) target = $region12
      $region11: #{tpu_custom_call.1} parent=5 // pred_region
        %s210 = ssub.s32 %s18, 1
        // Predicated region
        $region13: #{tpu_custom_call.1} parent=11 // pred_check
          %p211 = pneg %p65
        $region14: #{tpu_custom_call.1} parent=11 // pred_check_branch
          %213 = sbr.rel (%p211) target = $region16
        $region15: #{tpu_custom_call.1} parent=11 // pred_region
          _
        $region16: #{tpu_custom_call.1} parent=11 // pred_fallthru
          _
        // Predicated region
        $region17: #{tpu_custom_call.1} parent=11 // pred_check
          %p214 = pneg %p86
        $region18: #{tpu_custom_call.1} parent=11 // pred_check_branch
          %216 = sbr.rel (%p214) target = $region20
        $region19: #{tpu_custom_call.1} parent=11 // pred_region
          _
        $region20: #{tpu_custom_call.1} parent=11 // pred_fallthru
          _
        // Predicated region
        $region21: #{tpu_custom_call.1} parent=11 // pred_check
          %p217 = pneg %p107
        $region22: #{tpu_custom_call.1} parent=11 // pred_check_branch
          %219 = sbr.rel (%p217) target = $region24
        $region23: #{tpu_custom_call.1} parent=11 // pred_region
          _
        $region24: #{tpu_custom_call.1} parent=11 // pred_fallthru
          _
        // Predicated region
        $region25: #{tpu_custom_call.1} parent=11 // pred_check
          %p220 = pneg %p128
        $region26: #{tpu_custom_call.1} parent=11 // pred_check_branch
          %222 = sbr.rel (%p220) target = $region28
        $region27: #{tpu_custom_call.1} parent=11 // pred_region
          _
        $region28: #{tpu_custom_call.1} parent=11 // pred_fallthru
          _
        // Predicated region
        $region29: #{tpu_custom_call.1} parent=11 // pred_check
          %p223 = pneg %p149
        $region30: #{tpu_custom_call.1} parent=11 // pred_check_branch
          %225 = sbr.rel (%p223) target = $region32
        $region31: #{tpu_custom_call.1} parent=11 // pred_region
          _
        $region32: #{tpu_custom_call.1} parent=11 // pred_fallthru
          _
        // Predicated region
        $region33: #{tpu_custom_call.1} parent=11 // pred_check
          %p226 = pneg %p170
        $region34: #{tpu_custom_call.1} parent=11 // pred_check_branch
          %228 = sbr.rel (%p226) target = $region36
        $region35: #{tpu_custom_call.1} parent=11 // pred_region
          _
        $region36: #{tpu_custom_call.1} parent=11 // pred_fallthru
          _
      $region12: #{tpu_custom_call.1} parent=5 // pred_fallthru
        _
      %p229 = scmp.lt.s32.totalorder %s18, 2
      // Predicated region
      $region37: #{tpu_custom_call.1} parent=5 // pred_check
        %p230 = pneg %p229
      $region38: #{tpu_custom_call.1} parent=5 // pred_check_branch
        %232 = sbr.rel (%p230) target = $region40
      $region39: #{tpu_custom_call.1} parent=5 // pred_region
        // Predicated region
        $region41: #{tpu_custom_call.1} parent=39 // pred_check
          %p233 = pneg %p38
        $region42: #{tpu_custom_call.1} parent=39 // pred_check_branch
          %235 = sbr.rel (%p233) target = $region44
        $region43: #{tpu_custom_call.1} parent=39 // pred_region
          %s236 = smul.u32 2, %s18
          %p237 = scmp.lt.s32.totalorder %s236, 3
          %s238 = scalar_select %p237, %s236, 3
          %s239 = smul.addr %s238, 2
          %s240 = scalar_lea.vmem %s0, %s239
          %s241 = smul.u32 2, %s18
        $region44: #{tpu_custom_call.1} parent=39 // pred_fallthru
          _
      $region40: #{tpu_custom_call.1} parent=5 // pred_fallthru
        _
      %p242 = scmp.le.s32.totalorder 1, %s18
      %p243 = scmp.lt.s32.totalorder %s18, 3
      %p244 = pnand %p242, %p243
      %p245 = pneg %p244
      // Predicated region
      $region45: #{tpu_custom_call.1} parent=5 // pred_check
        _
      $region46: #{tpu_custom_call.1} parent=5 // pred_check_branch
        %247 = sbr.rel (%p244) target = $region48
      $region47: #{tpu_custom_call.1} parent=5 // pred_region
        %s248 = ssub.s32 %s18, 1
        %s249 = smul.u32 2, %s23
        %p250 = scmp.lt.s32.totalorder %s249, 3
        %s251 = scalar_select %p250, %s249, 3
        %s252 = smul.addr %s251, 2
        %s253 = scalar_lea.vmem %s0, %s252
        %p254 = pneg %p44
        %p255 = pneg %p41
        %p256 = pneg %p65
        %p257 = pneg %p62
        %p258 = pneg %p86
        %p259 = pneg %p83
        %p260 = pneg %p107
        %p261 = pneg %p104
        %p262 = pneg %p128
        %p263 = pneg %p125
        %p264 = pneg %p149
        %p265 = pneg %p146
        %p266 = pneg %p170
        %p267 = pneg %p167
        %p268 = pneg %p196
        %p269 = pneg %p193
        %s270 = sand.u32 %s183, 1
        %s271 = scalar_lea.sflag [#allocation4], %s270
        %s272 = sand.u32 %s183, 1
        %s273 = smul.addr %s272, 2
        %s274 = scalar_lea.vmem [#allocation3], %s273
        %s275 = smul.u32 2, %s23
        %p276 = scmp.lt.s32.totalorder %s275, 3
        %s277 = scalar_select %p276, %s275, 3
        %s278 = smul.addr %s277, 2
        %s279 = scalar_lea.vmem %s0, %s278
        %s280 = smul.u32 2, %s23
        %s281 = smul.u32 2, %s23
        %v282 = vld [vmem:[%s279] sm:$0xf]
        %v283 = vld [vmem:[%s1] sm:$0xff]
        %v284 = vld [vmem:[%s1 + $0x8] sm:$0xff]
        %v285 = vld [vmem:[%s1 + $0x10] sm:$0xff]
        %v286 = vld [vmem:[%s1 + $0x18] sm:$0xff]
        %v287 = vld [vmem:[%s2] sm:$0xff]
        %v288 = vld [vmem:[%s2 + $0x8] sm:$0xff]
        %v289 = vld [vmem:[%s2 + $0x10] sm:$0xff]
        %v290 = vld [vmem:[%s2 + $0x18] sm:$0xff]
        %v291 = vld [vmem:[%s3] sm:$0xff]
        %v292 = vld [vmem:[%s3 + $0x8] sm:$0xff]
        %v293 = vld [vmem:[%s3 + $0x10] sm:$0xff]
        %v294 = vld [vmem:[%s3 + $0x18] sm:$0xff]
        %v295 = vld [vmem:[%s3 + $0x20] sm:$0xff]
        %v296 = vld [vmem:[%s3 + $0x28] sm:$0xff]
        %v297 = vld [vmem:[%s3 + $0x30] sm:$0xff]
        %v298 = vld [vmem:[%s3 + $0x38] sm:$0xff]
        %v299 = vld [vmem:[%s3 + $0x40] sm:$0xff]
        %v300 = vld [vmem:[%s3 + $0x48] sm:$0xff]
        %v301 = vld [vmem:[%s3 + $0x50] sm:$0xff]
        %v302 = vld [vmem:[%s3 + $0x58] sm:$0xff]
        %v303 = vld [vmem:[%s3 + $0x60] sm:$0xff]
        %v304 = vld [vmem:[%s3 + $0x68] sm:$0xff]
        %v305 = vld [vmem:[%s3 + $0x70] sm:$0xff]
        %v306 = vld [vmem:[%s3 + $0x78] sm:$0xff]
        %v307 = vld [vmem:[%s3 + $0x80] sm:$0xff]
        %v308 = vld [vmem:[%s3 + $0x88] sm:$0xff]
        %v309 = vld [vmem:[%s3 + $0x90] sm:$0xff]
        %v310 = vld [vmem:[%s3 + $0x98] sm:$0xff]
        %v311 = vld [vmem:[%s3 + $0xa0] sm:$0xff]
        %v312 = vld [vmem:[%s3 + $0xa8] sm:$0xff]
        %v313 = vld [vmem:[%s3 + $0xb0] sm:$0xff]
        %v314 = vld [vmem:[%s3 + $0xb8] sm:$0xff]
        %v315 = vld [vmem:[%s4] sm:$0xff]
        %v316 = vld [vmem:[%s4 + $0x8] sm:$0xff]
        %v317 = vld [vmem:[%s4 + $0x10] sm:$0xff]
        %v318 = vld [vmem:[%s4 + $0x18] sm:$0xff]
        %v319 = vld [vmem:[%s4 + $0x20] sm:$0xff]
        %v320 = vld [vmem:[%s4 + $0x28] sm:$0xff]
        %v321 = vld [vmem:[%s4 + $0x30] sm:$0xff]
        %v322 = vld [vmem:[%s4 + $0x38] sm:$0xff]
        %v323 = vld [vmem:[%s4 + $0x40] sm:$0xff]
        %v324 = vld [vmem:[%s4 + $0x48] sm:$0xff]
        %v325 = vld [vmem:[%s4 + $0x50] sm:$0xff]
        %v326 = vld [vmem:[%s4 + $0x58] sm:$0xff]
        %v327 = vld [vmem:[%s4 + $0x60] sm:$0xff]
        %v328 = vld [vmem:[%s4 + $0x68] sm:$0xff]
        %v329 = vld [vmem:[%s4 + $0x70] sm:$0xff]
        %v330 = vld [vmem:[%s4 + $0x78] sm:$0xff]
        %v331 = vld [vmem:[%s4 + $0x80] sm:$0xff]
        %v332 = vld [vmem:[%s4 + $0x88] sm:$0xff]
        %v333 = vld [vmem:[%s4 + $0x90] sm:$0xff]
        %v334 = vld [vmem:[%s4 + $0x98] sm:$0xff]
        %v335 = vld [vmem:[%s4 + $0xa0] sm:$0xff]
        %v336 = vld [vmem:[%s4 + $0xa8] sm:$0xff]
        %v337 = vld [vmem:[%s4 + $0xb0] sm:$0xff]
        %v338 = vld [vmem:[%s4 + $0xb8] sm:$0xff]
        %v339 = vld [vmem:[%s5] sm:$0x1]
        %v340 = vld [vmem:[#allocation2] sm:$0x1]
        %342 = vset.pattern.permute.xlu0 0
        %343 = vperm.xlu0 %342, %v283
        %v344 = vpop.permute.xlu0 %343
        %347 = vset.pattern.permute.xlu0 0
        %348 = vperm.xlu0 %347, %v284
        %v349 = vpop.permute.xlu0 %348
        %352 = vset.pattern.permute.xlu0 0
        %353 = vperm.xlu0 %352, %v285
        %v354 = vpop.permute.xlu0 %353
        %357 = vset.pattern.permute.xlu0 0
        %358 = vperm.xlu0 %357, %v286
        %v359 = vpop.permute.xlu0 %358
        %v362 = vlaneseq
        %v363 = vshrl.u32 %v362, 7
        %v364 = vsub.s32 0, %v363
        %v365 = vrot.slane %v282, %v364
        %v366 = vlaneseq
        %v367 = vshrl.u32 %v366, 7
        %v368 = vsub.s32 2, %v367
        %v369 = vrot.slane %v282, %v368
        %v372 = vlaneseq
        %v373 = vshrl.u32 %v372, 7
        %v374 = vsub.s32 0, %v373
        %v375 = vrot.slane %v365, %v374
        %v376 = vlaneseq
        %v377 = vshrl.u32 %v376, 7
        %v378 = vsub.s32 0, %v377
        %v379 = vrot.slane %v369, %v378
        %v380 = vmul.f32 %v344, %v375
        %v381 = vmul.f32 %v344, %v379
        %v382 = vmul.f32 %v349, %v375
        %v383 = vmul.f32 %v349, %v379
        %v384 = vmul.f32 %v354, %v375
        %v385 = vmul.f32 %v354, %v379
        %v386 = vmul.f32 %v359, %v375
        %v387 = vmul.f32 %v359, %v379
        %388 = vset.pattern.permute.xlu0 1
        %389 = vperm.xlu0 %388, %v283
        %v390 = vpop.permute.xlu0 %389
        %392 = vset.pattern.permute.xlu0 1
        %393 = vperm.xlu0 %392, %v284
        %v394 = vpop.permute.xlu0 %393
        %396 = vset.pattern.permute.xlu0 1
        %397 = vperm.xlu0 %396, %v285
        %v398 = vpop.permute.xlu0 %397
        %400 = vset.pattern.permute.xlu0 1
        %401 = vperm.xlu0 %400, %v286
        %v402 = vpop.permute.xlu0 %401
        %v404 = vlaneseq
        %v405 = vshrl.u32 %v404, 7
        %v406 = vsub.s32 1, %v405
        %v407 = vrot.slane %v282, %v406
        %v408 = vlaneseq
        %v409 = vshrl.u32 %v408, 7
        %v410 = vsub.s32 3, %v409
        %v411 = vrot.slane %v282, %v410
        %v414 = vlaneseq
        %v415 = vshrl.u32 %v414, 7
        %v416 = vsub.s32 1, %v415
        %v417 = vrot.slane %v407, %v416
        %v418 = vlaneseq
        %v419 = vshrl.u32 %v418, 7
        %v420 = vsub.s32 1, %v419
        %v421 = vrot.slane %v411, %v420
        %v422 = vmul.f32 %v390, %v417
        %v423 = vmul.f32 %v390, %v421
        %v424 = vmul.f32 %v394, %v417
        %v425 = vmul.f32 %v394, %v421
        %v426 = vmul.f32 %v398, %v417
        %v427 = vmul.f32 %v398, %v421
        %v428 = vmul.f32 %v402, %v417
        %v429 = vmul.f32 %v402, %v421
        %v430 = vadd.f32 %v380, %v422
        %v431 = vadd.f32 %v381, %v423
        %v432 = vadd.f32 %v382, %v424
        %v433 = vadd.f32 %v383, %v425
        %v434 = vadd.f32 %v384, %v426
        %v435 = vadd.f32 %v385, %v427
        %v436 = vadd.f32 %v386, %v428
        %v437 = vadd.f32 %v387, %v429
        %439 = vset.pattern.permute.xlu0 0
        %440 = vperm.xlu0 %439, %v287
        %v441 = vpop.permute.xlu0 %440
        %444 = vset.pattern.permute.xlu0 0
        %445 = vperm.xlu0 %444, %v288
        %v446 = vpop.permute.xlu0 %445
        %449 = vset.pattern.permute.xlu0 0
        %450 = vperm.xlu0 %449, %v289
        %v451 = vpop.permute.xlu0 %450
        %454 = vset.pattern.permute.xlu0 0
        %455 = vperm.xlu0 %454, %v290
        %v456 = vpop.permute.xlu0 %455
        %v458 = vadd.f32 %v430, %v441
        %v459 = vadd.f32 %v431, %v441
        %v460 = vadd.f32 %v432, %v446
        %v461 = vadd.f32 %v433, %v446
        %v462 = vadd.f32 %v434, %v451
        %v463 = vadd.f32 %v435, %v451
        %v464 = vadd.f32 %v436, %v456
        %v465 = vadd.f32 %v437, %v456
        %v466 = vand.u32 2147483647, %v458
        %vm467 = vcmp.le.f32.partialorder %v466, 0.7853982
        %vm468 = vcmp.lt.s32.totalorder %v458, 0
        %v469 = vand.u32 %v458, 2139095040
        %v470 = vshrl.u32 %v469, 23
        %v471 = vsub.s32 %v470, 127
        %v472 = vand.u32 2147483647, %v458
        %v473 = vand.u32 %v472, 8388607
        %v474 = vor.u32 %v473, 8388608
        %v475 = vsub.s32 0, %v474
        %v476 = vadd.s32 %v471, 1
        %vm477 = vcmp.gt.s32.totalorder %v476, 0
        %v478 = vsel %vm477, %v476, 0
        %v479 = vshrl.u32 %v478, 5
        %v480 = vand.u32 %v478, 31
        %v481 = vsub.s32 32, %v480
        %v482 = vshrl.u32 683565275, %v481
        %v483 = vshll.u32 683565275, %v480
        %v484 = vshrl.u32 2475754826, %v481
        %v485 = vor.u32 %v483, %v484
        %v486 = vshll.u32 2475754826, %v480
        %v487 = vshrl.u32 2131351028, %v481
        %v488 = vor.u32 %v486, %v487
        %v489 = vshll.u32 2131351028, %v480
        %v490 = vshrl.u32 2102212464, %v481
        %v491 = vor.u32 %v489, %v490
        %v492 = vshll.u32 2102212464, %v480
        %v493 = vshrl.u32 920167782, %v481
        %v494 = vor.u32 %v492, %v493
        %v495 = vshll.u32 920167782, %v480
        %v496 = vshrl.u32 1326507024, %v481
        %v497 = vor.u32 %v495, %v496
        %vm498 = vcmp.lt.s32.totalorder %v479, 1
        %vm499 = vcmp.lt.s32.totalorder %v479, 2
        %vm500 = vcmp.lt.s32.totalorder %v479, 3
        %vm501 = vcmp.lt.s32.totalorder %v479, 4
        %v502 = vsel %vm498, %v482, %v485
        %v503 = vsel %vm501, %v491, 2102212464
        %v504 = vsel %vm500, %v488, %v503
        %v505 = vsel %vm499, %v502, %v504
        %v506 = vsel %vm498, %v485, %v488
        %v507 = vsel %vm501, %v494, 920167782
        %v508 = vsel %vm500, %v491, %v507
        %v509 = vsel %vm499, %v506, %v508
        %v510 = vsel %vm498, %v488, %v491
        %v511 = vsel %vm501, %v497, 1326507024
        %v512 = vsel %vm500, %v494, %v511
        %v513 = vsel %vm499, %v510, %v512
        %v514 = vshll.u32 %v474, 8
        %v515 = vmul.u32.u64.compose %v514, %v513
        %v516 = vextract.low.u32 %v515
        %v517 = vextract.high.u32 %v515
        %v518 = vmul.u32.u64.compose %v514, %v509
        %v519 = vextract.low.u32 %v518
        %v520 = vextract.high.u32 %v518
        %v521 = vmul.u32 %v514, %v505
        %v522 = vadd.s32 %v517, %v519
        %vm523 = vc.u32 %v517, %v519
        %v524 = vadd.s32 %v520, 1
        %v525 = vsel %vm523, %v524, %v520
        %v526 = vadd.s32 %v521, %v525
        %v527 = vadd.s32 %v526, 536870912
        %v528 = vshrl.u32 %v527, 30
        %v529 = vshll.u32 %v528, 30
        %v530 = vsub.s32 %v526, %v529
        %vm531 = vcmp.lt.s32.totalorder %v530, 0
        %v532 = vsub.s32 0, %v530
        %v533 = vsel %vm531, %v532, %v530
        %v534 = vclz %v533
        %v535 = vsub.s32 %v534, 2
        %vm536 = vcmp.gt.s32.totalorder 0, %v535
        %v537 = vsel %vm536, 0, %v535
        %v538 = vsub.s32 32, %v537
        %v539 = vshll.u32 %v530, %v537
        %v540 = vshrl.u32 %v522, %v538
        %v541 = vor.u32 %v539, %v540
        %v542 = vsub.s32 4294967266, %v537
        %v543 = vadd.s32 %v542, 127
        %v544 = vshll.u32 %v543, 23
        %v545 = vor.u32 4788187, %v544
        %v546 = vand.u32 2147483647, %v545
        %v548 = vcvt.s32.f32 %v541
        %v549 = vmul.f32 %v548, %v546
        %v550 = vxor.u32 %v549, 2147483648
        %v551 = vsel %vm468, %v550, %v549
        %v552 = vsub.s32 4, %v528
        %v553 = vsel %vm468, %v552, %v528
        %v554 = vsel %vm467, %v458, %v551
        %v555 = vsel %vm467, 0, %v553
        %v556 = vcosq.f32.pop %v554
        %v557 = vsinq.f32.pop %v554
        %vm558 = vweird.f32 %v458
        %v559 = vadd.s32 %v555, 3
        %v560 = vand.u32 %v559, 3
        %vm561 = vcmp.lt.s32.totalorder %v560, 2
        %vm562 = vcmp.eq.s32.totalorder %v560, 0
        %v563 = vxor.u32 %v557, 2147483648
        %v564 = vsel %vm562, %v556, %v563
        %vm565 = vcmp.eq.s32.totalorder %v560, 2
        %v566 = vxor.u32 %v556, 2147483648
        %v567 = vsel %vm565, %v566, %v557
        %v568 = vsel %vm561, %v564, %v567
        %v569 = vsel %vm558, nan, %v568
        %v570 = vand.u32 2147483647, %v459
        %vm571 = vcmp.le.f32.partialorder %v570, 0.7853982
        %vm572 = vcmp.lt.s32.totalorder %v459, 0
        %v573 = vand.u32 %v459, 2139095040
        %v574 = vshrl.u32 %v573, 23
        %v575 = vsub.s32 %v574, 127
        %v576 = vand.u32 2147483647, %v459
        %v577 = vand.u32 %v576, 8388607
        %v578 = vor.u32 %v577, 8388608
        %v579 = vsub.s32 0, %v578
        %v580 = vadd.s32 %v575, 1
        %vm581 = vcmp.gt.s32.totalorder %v580, 0
        %v582 = vsel %vm581, %v580, 0
        %v583 = vshrl.u32 %v582, 5
        %v584 = vand.u32 %v582, 31
        %v585 = vsub.s32 32, %v584
        %v586 = vshrl.u32 683565275, %v585
        %v587 = vshll.u32 683565275, %v584
        %v588 = vshrl.u32 2475754826, %v585
        %v589 = vor.u32 %v587, %v588
        %v590 = vshll.u32 2475754826, %v584
        %v591 = vshrl.u32 2131351028, %v585
        %v592 = vor.u32 %v590, %v591
        %v593 = vshll.u32 2131351028, %v584
        %v594 = vshrl.u32 2102212464, %v585
        %v595 = vor.u32 %v593, %v594
        %v596 = vshll.u32 2102212464, %v584
        %v597 = vshrl.u32 920167782, %v585
        %v598 = vor.u32 %v596, %v597
        %v599 = vshll.u32 920167782, %v584
        %v600 = vshrl.u32 1326507024, %v585
        %v601 = vor.u32 %v599, %v600
        %vm602 = vcmp.lt.s32.totalorder %v583, 1
        %vm603 = vcmp.lt.s32.totalorder %v583, 2
        %vm604 = vcmp.lt.s32.totalorder %v583, 3
        %vm605 = vcmp.lt.s32.totalorder %v583, 4
        %v606 = vsel %vm602, %v586, %v589
        %v607 = vsel %vm605, %v595, 2102212464
        %v608 = vsel %vm604, %v592, %v607
        %v609 = vsel %vm603, %v606, %v608
        %v610 = vsel %vm602, %v589, %v592
        %v611 = vsel %vm605, %v598, 920167782
        %v612 = vsel %vm604, %v595, %v611
        %v613 = vsel %vm603, %v610, %v612
        %v614 = vsel %vm602, %v592, %v595
        %v615 = vsel %vm605, %v601, 1326507024
        %v616 = vsel %vm604, %v598, %v615
        %v617 = vsel %vm603, %v614, %v616
        %v618 = vshll.u32 %v578, 8
        %v619 = vmul.u32.u64.compose %v618, %v617
        %v620 = vextract.low.u32 %v619
        %v621 = vextract.high.u32 %v619
        %v622 = vmul.u32.u64.compose %v618, %v613
        %v623 = vextract.low.u32 %v622
        %v624 = vextract.high.u32 %v622
        %v625 = vmul.u32 %v618, %v609
        %v626 = vadd.s32 %v621, %v623
        %vm627 = vc.u32 %v621, %v623
        %v628 = vadd.s32 %v624, 1
        %v629 = vsel %vm627, %v628, %v624
        %v630 = vadd.s32 %v625, %v629
        %v631 = vadd.s32 %v630, 536870912
        %v632 = vshrl.u32 %v631, 30
        %v633 = vshll.u32 %v632, 30
        %v634 = vsub.s32 %v630, %v633
        %vm635 = vcmp.lt.s32.totalorder %v634, 0
        %v636 = vsub.s32 0, %v634
        %v637 = vsel %vm635, %v636, %v634
        %v638 = vclz %v637
        %v639 = vsub.s32 %v638, 2
        %vm640 = vcmp.gt.s32.totalorder 0, %v639
        %v641 = vsel %vm640, 0, %v639
        %v642 = vsub.s32 32, %v641
        %v643 = vshll.u32 %v634, %v641
        %v644 = vshrl.u32 %v626, %v642
        %v645 = vor.u32 %v643, %v644
        %v646 = vsub.s32 4294967266, %v641
        %v647 = vadd.s32 %v646, 127
        %v648 = vshll.u32 %v647, 23
        %v649 = vor.u32 4788187, %v648
        %v650 = vand.u32 2147483647, %v649
        %v652 = vcvt.s32.f32 %v645
        %v653 = vmul.f32 %v652, %v650
        %v654 = vxor.u32 %v653, 2147483648
        %v655 = vsel %vm572, %v654, %v653
        %v656 = vsub.s32 4, %v632
        %v657 = vsel %vm572, %v656, %v632
        %v658 = vsel %vm571, %v459, %v655
        %v659 = vsel %vm571, 0, %v657
        %v660 = vcosq.f32.pop %v658
        %v661 = vsinq.f32.pop %v658
        %vm662 = vweird.f32 %v459
        %v663 = vadd.s32 %v659, 3
        %v664 = vand.u32 %v663, 3
        %vm665 = vcmp.lt.s32.totalorder %v664, 2
        %vm666 = vcmp.eq.s32.totalorder %v664, 0
        %v667 = vxor.u32 %v661, 2147483648
        %v668 = vsel %vm666, %v660, %v667
        %vm669 = vcmp.eq.s32.totalorder %v664, 2
        %v670 = vxor.u32 %v660, 2147483648
        %v671 = vsel %vm669, %v670, %v661
        %v672 = vsel %vm665, %v668, %v671
        %v673 = vsel %vm662, nan, %v672
        %v674 = vand.u32 2147483647, %v460
        %vm675 = vcmp.le.f32.partialorder %v674, 0.7853982
        %vm676 = vcmp.lt.s32.totalorder %v460, 0
        %v677 = vand.u32 %v460, 2139095040
        %v678 = vshrl.u32 %v677, 23
        %v679 = vsub.s32 %v678, 127
        %v680 = vand.u32 2147483647, %v460
        %v681 = vand.u32 %v680, 8388607
        %v682 = vor.u32 %v681, 8388608
        %v683 = vsub.s32 0, %v682
        %v684 = vadd.s32 %v679, 1
        %vm685 = vcmp.gt.s32.totalorder %v684, 0
        %v686 = vsel %vm685, %v684, 0
        %v687 = vshrl.u32 %v686, 5
        %v688 = vand.u32 %v686, 31
        %v689 = vsub.s32 32, %v688
        %v690 = vshrl.u32 683565275, %v689
        %v691 = vshll.u32 683565275, %v688
        %v692 = vshrl.u32 2475754826, %v689
        %v693 = vor.u32 %v691, %v692
        %v694 = vshll.u32 2475754826, %v688
        %v695 = vshrl.u32 2131351028, %v689
        %v696 = vor.u32 %v694, %v695
        %v697 = vshll.u32 2131351028, %v688
        %v698 = vshrl.u32 2102212464, %v689
        %v699 = vor.u32 %v697, %v698
        %v700 = vshll.u32 2102212464, %v688
        %v701 = vshrl.u32 920167782, %v689
        %v702 = vor.u32 %v700, %v701
        %v703 = vshll.u32 920167782, %v688
        %v704 = vshrl.u32 1326507024, %v689
        %v705 = vor.u32 %v703, %v704
        %vm706 = vcmp.lt.s32.totalorder %v687, 1
        %vm707 = vcmp.lt.s32.totalorder %v687, 2
        %vm708 = vcmp.lt.s32.totalorder %v687, 3
        %vm709 = vcmp.lt.s32.totalorder %v687, 4
        %v710 = vsel %vm706, %v690, %v693
        %v711 = vsel %vm709, %v699, 2102212464
        %v712 = vsel %vm708, %v696, %v711
        %v713 = vsel %vm707, %v710, %v712
        %v714 = vsel %vm706, %v693, %v696
        %v715 = vsel %vm709, %v702, 920167782
        %v716 = vsel %vm708, %v699, %v715
        %v717 = vsel %vm707, %v714, %v716
        %v718 = vsel %vm706, %v696, %v699
        %v719 = vsel %vm709, %v705, 1326507024
        %v720 = vsel %vm708, %v702, %v719
        %v721 = vsel %vm707, %v718, %v720
        %v722 = vshll.u32 %v682, 8
        %v723 = vmul.u32.u64.compose %v722, %v721
        %v724 = vextract.low.u32 %v723
        %v725 = vextract.high.u32 %v723
        %v726 = vmul.u32.u64.compose %v722, %v717
        %v727 = vextract.low.u32 %v726
        %v728 = vextract.high.u32 %v726
        %v729 = vmul.u32 %v722, %v713
        %v730 = vadd.s32 %v725, %v727
        %vm731 = vc.u32 %v725, %v727
        %v732 = vadd.s32 %v728, 1
        %v733 = vsel %vm731, %v732, %v728
        %v734 = vadd.s32 %v729, %v733
        %v735 = vadd.s32 %v734, 536870912
        %v736 = vshrl.u32 %v735, 30
        %v737 = vshll.u32 %v736, 30
        %v738 = vsub.s32 %v734, %v737
        %vm739 = vcmp.lt.s32.totalorder %v738, 0
        %v740 = vsub.s32 0, %v738
        %v741 = vsel %vm739, %v740, %v738
        %v742 = vclz %v741
        %v743 = vsub.s32 %v742, 2
        %vm744 = vcmp.gt.s32.totalorder 0, %v743
        %v745 = vsel %vm744, 0, %v743
        %v746 = vsub.s32 32, %v745
        %v747 = vshll.u32 %v738, %v745
        %v748 = vshrl.u32 %v730, %v746
        %v749 = vor.u32 %v747, %v748
        %v750 = vsub.s32 4294967266, %v745
        %v751 = vadd.s32 %v750, 127
        %v752 = vshll.u32 %v751, 23
        %v753 = vor.u32 4788187, %v752
        %v754 = vand.u32 2147483647, %v753
        %v756 = vcvt.s32.f32 %v749
        %v757 = vmul.f32 %v756, %v754
        %v758 = vxor.u32 %v757, 2147483648
        %v759 = vsel %vm676, %v758, %v757
        %v760 = vsub.s32 4, %v736
        %v761 = vsel %vm676, %v760, %v736
        %v762 = vsel %vm675, %v460, %v759
        %v763 = vsel %vm675, 0, %v761
        %v764 = vcosq.f32.pop %v762
        %v765 = vsinq.f32.pop %v762
        %vm766 = vweird.f32 %v460
        %v767 = vadd.s32 %v763, 3
        %v768 = vand.u32 %v767, 3
        %vm769 = vcmp.lt.s32.totalorder %v768, 2
        %vm770 = vcmp.eq.s32.totalorder %v768, 0
        %v771 = vxor.u32 %v765, 2147483648
        %v772 = vsel %vm770, %v764, %v771
        %vm773 = vcmp.eq.s32.totalorder %v768, 2
        %v774 = vxor.u32 %v764, 2147483648
        %v775 = vsel %vm773, %v774, %v765
        %v776 = vsel %vm769, %v772, %v775
        %v777 = vsel %vm766, nan, %v776
        %v778 = vand.u32 2147483647, %v461
        %vm779 = vcmp.le.f32.partialorder %v778, 0.7853982
        %vm780 = vcmp.lt.s32.totalorder %v461, 0
        %v781 = vand.u32 %v461, 2139095040
        %v782 = vshrl.u32 %v781, 23
        %v783 = vsub.s32 %v782, 127
        %v784 = vand.u32 2147483647, %v461
        %v785 = vand.u32 %v784, 8388607
        %v786 = vor.u32 %v785, 8388608
        %v787 = vsub.s32 0, %v786
        %v788 = vadd.s32 %v783, 1
        %vm789 = vcmp.gt.s32.totalorder %v788, 0
        %v790 = vsel %vm789, %v788, 0
        %v791 = vshrl.u32 %v790, 5
        %v792 = vand.u32 %v790, 31
        %v793 = vsub.s32 32, %v792
        %v794 = vshrl.u32 683565275, %v793
        %v795 = vshll.u32 683565275, %v792
        %v796 = vshrl.u32 2475754826, %v793
        %v797 = vor.u32 %v795, %v796
        %v798 = vshll.u32 2475754826, %v792
        %v799 = vshrl.u32 2131351028, %v793
        %v800 = vor.u32 %v798, %v799
        %v801 = vshll.u32 2131351028, %v792
        %v802 = vshrl.u32 2102212464, %v793
        %v803 = vor.u32 %v801, %v802
        %v804 = vshll.u32 2102212464, %v792
        %v805 = vshrl.u32 920167782, %v793
        %v806 = vor.u32 %v804, %v805
        %v807 = vshll.u32 920167782, %v792
        %v808 = vshrl.u32 1326507024, %v793
        %v809 = vor.u32 %v807, %v808
        %vm810 = vcmp.lt.s32.totalorder %v791, 1
        %vm811 = vcmp.lt.s32.totalorder %v791, 2
        %vm812 = vcmp.lt.s32.totalorder %v791, 3
        %vm813 = vcmp.lt.s32.totalorder %v791, 4
        %v814 = vsel %vm810, %v794, %v797
        %v815 = vsel %vm813, %v803, 2102212464
        %v816 = vsel %vm812, %v800, %v815
        %v817 = vsel %vm811, %v814, %v816
        %v818 = vsel %vm810, %v797, %v800
        %v819 = vsel %vm813, %v806, 920167782
        %v820 = vsel %vm812, %v803, %v819
        %v821 = vsel %vm811, %v818, %v820
        %v822 = vsel %vm810, %v800, %v803
        %v823 = vsel %vm813, %v809, 1326507024
        %v824 = vsel %vm812, %v806, %v823
        %v825 = vsel %vm811, %v822, %v824
        %v826 = vshll.u32 %v786, 8
        %v827 = vmul.u32.u64.compose %v826, %v825
        %v828 = vextract.low.u32 %v827
        %v829 = vextract.high.u32 %v827
        %v830 = vmul.u32.u64.compose %v826, %v821
        %v831 = vextract.low.u32 %v830
        %v832 = vextract.high.u32 %v830
        %v833 = vmul.u32 %v826, %v817
        %v834 = vadd.s32 %v829, %v831
        %vm835 = vc.u32 %v829, %v831
        %v836 = vadd.s32 %v832, 1
        %v837 = vsel %vm835, %v836, %v832
        %v838 = vadd.s32 %v833, %v837
        %v839 = vadd.s32 %v838, 536870912
        %v840 = vshrl.u32 %v839, 30
        %v841 = vshll.u32 %v840, 30
        %v842 = vsub.s32 %v838, %v841
        %vm843 = vcmp.lt.s32.totalorder %v842, 0
        %v844 = vsub.s32 0, %v842
        %v845 = vsel %vm843, %v844, %v842
        %v846 = vclz %v845
        %v847 = vsub.s32 %v846, 2
        %vm848 = vcmp.gt.s32.totalorder 0, %v847
        %v849 = vsel %vm848, 0, %v847
        %v850 = vsub.s32 32, %v849
        %v851 = vshll.u32 %v842, %v849
        %v852 = vshrl.u32 %v834, %v850
        %v853 = vor.u32 %v851, %v852
        %v854 = vsub.s32 4294967266, %v849
        %v855 = vadd.s32 %v854, 127
        %v856 = vshll.u32 %v855, 23
        %v857 = vor.u32 4788187, %v856
        %v858 = vand.u32 2147483647, %v857
        %v860 = vcvt.s32.f32 %v853
        %v861 = vmul.f32 %v860, %v858
        %v862 = vxor.u32 %v861, 2147483648
        %v863 = vsel %vm780, %v862, %v861
        %v864 = vsub.s32 4, %v840
        %v865 = vsel %vm780, %v864, %v840
        %v866 = vsel %vm779, %v461, %v863
        %v867 = vsel %vm779, 0, %v865
        %v868 = vcosq.f32.pop %v866
        %v869 = vsinq.f32.pop %v866
        %vm870 = vweird.f32 %v461
        %v871 = vadd.s32 %v867, 3
        %v872 = vand.u32 %v871, 3
        %vm873 = vcmp.lt.s32.totalorder %v872, 2
        %vm874 = vcmp.eq.s32.totalorder %v872, 0
        %v875 = vxor.u32 %v869, 2147483648
        %v876 = vsel %vm874, %v868, %v875
        %vm877 = vcmp.eq.s32.totalorder %v872, 2
        %v878 = vxor.u32 %v868, 2147483648
        %v879 = vsel %vm877, %v878, %v869
        %v880 = vsel %vm873, %v876, %v879
        %v881 = vsel %vm870, nan, %v880
        %v882 = vand.u32 2147483647, %v462
        %vm883 = vcmp.le.f32.partialorder %v882, 0.7853982
        %vm884 = vcmp.lt.s32.totalorder %v462, 0
        %v885 = vand.u32 %v462, 2139095040
        %v886 = vshrl.u32 %v885, 23
        %v887 = vsub.s32 %v886, 127
        %v888 = vand.u32 2147483647, %v462
        %v889 = vand.u32 %v888, 8388607
        %v890 = vor.u32 %v889, 8388608
        %v891 = vsub.s32 0, %v890
        %v892 = vadd.s32 %v887, 1
        %vm893 = vcmp.gt.s32.totalorder %v892, 0
        %v894 = vsel %vm893, %v892, 0
        %v895 = vshrl.u32 %v894, 5
        %v896 = vand.u32 %v894, 31
        %v897 = vsub.s32 32, %v896
        %v898 = vshrl.u32 683565275, %v897
        %v899 = vshll.u32 683565275, %v896
        %v900 = vshrl.u32 2475754826, %v897
        %v901 = vor.u32 %v899, %v900
        %v902 = vshll.u32 2475754826, %v896
        %v903 = vshrl.u32 2131351028, %v897
        %v904 = vor.u32 %v902, %v903
        %v905 = vshll.u32 2131351028, %v896
        %v906 = vshrl.u32 2102212464, %v897
        %v907 = vor.u32 %v905, %v906
        %v908 = vshll.u32 2102212464, %v896
        %v909 = vshrl.u32 920167782, %v897
        %v910 = vor.u32 %v908, %v909
        %v911 = vshll.u32 920167782, %v896
        %v912 = vshrl.u32 1326507024, %v897
        %v913 = vor.u32 %v911, %v912
        %vm914 = vcmp.lt.s32.totalorder %v895, 1
        %vm915 = vcmp.lt.s32.totalorder %v895, 2
        %vm916 = vcmp.lt.s32.totalorder %v895, 3
        %vm917 = vcmp.lt.s32.totalorder %v895, 4
        %v918 = vsel %vm914, %v898, %v901
        %v919 = vsel %vm917, %v907, 2102212464
        %v920 = vsel %vm916, %v904, %v919
        %v921 = vsel %vm915, %v918, %v920
        %v922 = vsel %vm914, %v901, %v904
        %v923 = vsel %vm917, %v910, 920167782
        %v924 = vsel %vm916, %v907, %v923
        %v925 = vsel %vm915, %v922, %v924
        %v926 = vsel %vm914, %v904, %v907
        %v927 = vsel %vm917, %v913, 1326507024
        %v928 = vsel %vm916, %v910, %v927
        %v929 = vsel %vm915, %v926, %v928
        %v930 = vshll.u32 %v890, 8
        %v931 = vmul.u32.u64.compose %v930, %v929
        %v932 = vextract.low.u32 %v931
        %v933 = vextract.high.u32 %v931
        %v934 = vmul.u32.u64.compose %v930, %v925
        %v935 = vextract.low.u32 %v934
        %v936 = vextract.high.u32 %v934
        %v937 = vmul.u32 %v930, %v921
        %v938 = vadd.s32 %v933, %v935
        %vm939 = vc.u32 %v933, %v935
        %v940 = vadd.s32 %v936, 1
        %v941 = vsel %vm939, %v940, %v936
        %v942 = vadd.s32 %v937, %v941
        %v943 = vadd.s32 %v942, 536870912
        %v944 = vshrl.u32 %v943, 30
        %v945 = vshll.u32 %v944, 30
        %v946 = vsub.s32 %v942, %v945
        %vm947 = vcmp.lt.s32.totalorder %v946, 0
        %v948 = vsub.s32 0, %v946
        %v949 = vsel %vm947, %v948, %v946
        %v950 = vclz %v949
        %v951 = vsub.s32 %v950, 2
        %vm952 = vcmp.gt.s32.totalorder 0, %v951
        %v953 = vsel %vm952, 0, %v951
        %v954 = vsub.s32 32, %v953
        %v955 = vshll.u32 %v946, %v953
        %v956 = vshrl.u32 %v938, %v954
        %v957 = vor.u32 %v955, %v956
        %v958 = vsub.s32 4294967266, %v953
        %v959 = vadd.s32 %v958, 127
        %v960 = vshll.u32 %v959, 23
        %v961 = vor.u32 4788187, %v960
        %v962 = vand.u32 2147483647, %v961
        %v964 = vcvt.s32.f32 %v957
        %v965 = vmul.f32 %v964, %v962
        %v966 = vxor.u32 %v965, 2147483648
        %v967 = vsel %vm884, %v966, %v965
        %v968 = vsub.s32 4, %v944
        %v969 = vsel %vm884, %v968, %v944
        %v970 = vsel %vm883, %v462, %v967
        %v971 = vsel %vm883, 0, %v969
        %v972 = vcosq.f32.pop %v970
        %v973 = vsinq.f32.pop %v970
        %vm974 = vweird.f32 %v462
        %v975 = vadd.s32 %v971, 3
        %v976 = vand.u32 %v975, 3
        %vm977 = vcmp.lt.s32.totalorder %v976, 2
        %vm978 = vcmp.eq.s32.totalorder %v976, 0
        %v979 = vxor.u32 %v973, 2147483648
        %v980 = vsel %vm978, %v972, %v979
        %vm981 = vcmp.eq.s32.totalorder %v976, 2
        %v982 = vxor.u32 %v972, 2147483648
        %v983 = vsel %vm981, %v982, %v973
        %v984 = vsel %vm977, %v980, %v983
        %v985 = vsel %vm974, nan, %v984
        %v986 = vand.u32 2147483647, %v463
        %vm987 = vcmp.le.f32.partialorder %v986, 0.7853982
        %vm988 = vcmp.lt.s32.totalorder %v463, 0
        %v989 = vand.u32 %v463, 2139095040
        %v990 = vshrl.u32 %v989, 23
        %v991 = vsub.s32 %v990, 127
        %v992 = vand.u32 2147483647, %v463
        %v993 = vand.u32 %v992, 8388607
        %v994 = vor.u32 %v993, 8388608
        %v995 = vsub.s32 0, %v994
        %v996 = vadd.s32 %v991, 1
        %vm997 = vcmp.gt.s32.totalorder %v996, 0
        %v998 = vsel %vm997, %v996, 0
        %v999 = vshrl.u32 %v998, 5
        %v1000 = vand.u32 %v998, 31
        %v1001 = vsub.s32 32, %v1000
        %v1002 = vshrl.u32 683565275, %v1001
        %v1003 = vshll.u32 683565275, %v1000
        %v1004 = vshrl.u32 2475754826, %v1001
        %v1005 = vor.u32 %v1003, %v1004
        %v1006 = vshll.u32 2475754826, %v1000
        %v1007 = vshrl.u32 2131351028, %v1001
        %v1008 = vor.u32 %v1006, %v1007
        %v1009 = vshll.u32 2131351028, %v1000
        %v1010 = vshrl.u32 2102212464, %v1001
        %v1011 = vor.u32 %v1009, %v1010
        %v1012 = vshll.u32 2102212464, %v1000
        %v1013 = vshrl.u32 920167782, %v1001
        %v1014 = vor.u32 %v1012, %v1013
        %v1015 = vshll.u32 920167782, %v1000
        %v1016 = vshrl.u32 1326507024, %v1001
        %v1017 = vor.u32 %v1015, %v1016
        %vm1018 = vcmp.lt.s32.totalorder %v999, 1
        %vm1019 = vcmp.lt.s32.totalorder %v999, 2
        %vm1020 = vcmp.lt.s32.totalorder %v999, 3
        %vm1021 = vcmp.lt.s32.totalorder %v999, 4
        %v1022 = vsel %vm1018, %v1002, %v1005
        %v1023 = vsel %vm1021, %v1011, 2102212464
        %v1024 = vsel %vm1020, %v1008, %v1023
        %v1025 = vsel %vm1019, %v1022, %v1024
        %v1026 = vsel %vm1018, %v1005, %v1008
        %v1027 = vsel %vm1021, %v1014, 920167782
        %v1028 = vsel %vm1020, %v1011, %v1027
        %v1029 = vsel %vm1019, %v1026, %v1028
        %v1030 = vsel %vm1018, %v1008, %v1011
        %v1031 = vsel %vm1021, %v1017, 1326507024
        %v1032 = vsel %vm1020, %v1014, %v1031
        %v1033 = vsel %vm1019, %v1030, %v1032
        %v1034 = vshll.u32 %v994, 8
        %v1035 = vmul.u32.u64.compose %v1034, %v1033
        %v1036 = vextract.low.u32 %v1035
        %v1037 = vextract.high.u32 %v1035
        %v1038 = vmul.u32.u64.compose %v1034, %v1029
        %v1039 = vextract.low.u32 %v1038
        %v1040 = vextract.high.u32 %v1038
        %v1041 = vmul.u32 %v1034, %v1025
        %v1042 = vadd.s32 %v1037, %v1039
        %vm1043 = vc.u32 %v1037, %v1039
        %v1044 = vadd.s32 %v1040, 1
        %v1045 = vsel %vm1043, %v1044, %v1040
        %v1046 = vadd.s32 %v1041, %v1045
        %v1047 = vadd.s32 %v1046, 536870912
        %v1048 = vshrl.u32 %v1047, 30
        %v1049 = vshll.u32 %v1048, 30
        %v1050 = vsub.s32 %v1046, %v1049
        %vm1051 = vcmp.lt.s32.totalorder %v1050, 0
        %v1052 = vsub.s32 0, %v1050
        %v1053 = vsel %vm1051, %v1052, %v1050
        %v1054 = vclz %v1053
        %v1055 = vsub.s32 %v1054, 2
        %vm1056 = vcmp.gt.s32.totalorder 0, %v1055
        %v1057 = vsel %vm1056, 0, %v1055
        %v1058 = vsub.s32 32, %v1057
        %v1059 = vshll.u32 %v1050, %v1057
        %v1060 = vshrl.u32 %v1042, %v1058
        %v1061 = vor.u32 %v1059, %v1060
        %v1062 = vsub.s32 4294967266, %v1057
        %v1063 = vadd.s32 %v1062, 127
        %v1064 = vshll.u32 %v1063, 23
        %v1065 = vor.u32 4788187, %v1064
        %v1066 = vand.u32 2147483647, %v1065
        %v1068 = vcvt.s32.f32 %v1061
        %v1069 = vmul.f32 %v1068, %v1066
        %v1070 = vxor.u32 %v1069, 2147483648
        %v1071 = vsel %vm988, %v1070, %v1069
        %v1072 = vsub.s32 4, %v1048
        %v1073 = vsel %vm988, %v1072, %v1048
        %v1074 = vsel %vm987, %v463, %v1071
        %v1075 = vsel %vm987, 0, %v1073
        %v1076 = vcosq.f32.pop %v1074
        %v1077 = vsinq.f32.pop %v1074
        %vm1078 = vweird.f32 %v463
        %v1079 = vadd.s32 %v1075, 3
        %v1080 = vand.u32 %v1079, 3
        %vm1081 = vcmp.lt.s32.totalorder %v1080, 2
        %vm1082 = vcmp.eq.s32.totalorder %v1080, 0
        %v1083 = vxor.u32 %v1077, 2147483648
        %v1084 = vsel %vm1082, %v1076, %v1083
        %vm1085 = vcmp.eq.s32.totalorder %v1080, 2
        %v1086 = vxor.u32 %v1076, 2147483648
        %v1087 = vsel %vm1085, %v1086, %v1077
        %v1088 = vsel %vm1081, %v1084, %v1087
        %v1089 = vsel %vm1078, nan, %v1088
        %v1090 = vand.u32 2147483647, %v464
        %vm1091 = vcmp.le.f32.partialorder %v1090, 0.7853982
        %vm1092 = vcmp.lt.s32.totalorder %v464, 0
        %v1093 = vand.u32 %v464, 2139095040
        %v1094 = vshrl.u32 %v1093, 23
        %v1095 = vsub.s32 %v1094, 127
        %v1096 = vand.u32 2147483647, %v464
        %v1097 = vand.u32 %v1096, 8388607
        %v1098 = vor.u32 %v1097, 8388608
        %v1099 = vsub.s32 0, %v1098
        %v1100 = vadd.s32 %v1095, 1
        %vm1101 = vcmp.gt.s32.totalorder %v1100, 0
        %v1102 = vsel %vm1101, %v1100, 0
        %v1103 = vshrl.u32 %v1102, 5
        %v1104 = vand.u32 %v1102, 31
        %v1105 = vsub.s32 32, %v1104
        %v1106 = vshrl.u32 683565275, %v1105
        %v1107 = vshll.u32 683565275, %v1104
        %v1108 = vshrl.u32 2475754826, %v1105
        %v1109 = vor.u32 %v1107, %v1108
        %v1110 = vshll.u32 2475754826, %v1104
        %v1111 = vshrl.u32 2131351028, %v1105
        %v1112 = vor.u32 %v1110, %v1111
        %v1113 = vshll.u32 2131351028, %v1104
        %v1114 = vshrl.u32 2102212464, %v1105
        %v1115 = vor.u32 %v1113, %v1114
        %v1116 = vshll.u32 2102212464, %v1104
        %v1117 = vshrl.u32 920167782, %v1105
        %v1118 = vor.u32 %v1116, %v1117
        %v1119 = vshll.u32 920167782, %v1104
        %v1120 = vshrl.u32 1326507024, %v1105
        %v1121 = vor.u32 %v1119, %v1120
        %vm1122 = vcmp.lt.s32.totalorder %v1103, 1
        %vm1123 = vcmp.lt.s32.totalorder %v1103, 2
        %vm1124 = vcmp.lt.s32.totalorder %v1103, 3
        %vm1125 = vcmp.lt.s32.totalorder %v1103, 4
        %v1126 = vsel %vm1122, %v1106, %v1109
        %v1127 = vsel %vm1125, %v1115, 2102212464
        %v1128 = vsel %vm1124, %v1112, %v1127
        %v1129 = vsel %vm1123, %v1126, %v1128
        %v1130 = vsel %vm1122, %v1109, %v1112
        %v1131 = vsel %vm1125, %v1118, 920167782
        %v1132 = vsel %vm1124, %v1115, %v1131
        %v1133 = vsel %vm1123, %v1130, %v1132
        %v1134 = vsel %vm1122, %v1112, %v1115
        %v1135 = vsel %vm1125, %v1121, 1326507024
        %v1136 = vsel %vm1124, %v1118, %v1135
        %v1137 = vsel %vm1123, %v1134, %v1136
        %v1138 = vshll.u32 %v1098, 8
        %v1139 = vmul.u32.u64.compose %v1138, %v1137
        %v1140 = vextract.low.u32 %v1139
        %v1141 = vextract.high.u32 %v1139
        %v1142 = vmul.u32.u64.compose %v1138, %v1133
        %v1143 = vextract.low.u32 %v1142
        %v1144 = vextract.high.u32 %v1142
        %v1145 = vmul.u32 %v1138, %v1129
        %v1146 = vadd.s32 %v1141, %v1143
        %vm1147 = vc.u32 %v1141, %v1143
        %v1148 = vadd.s32 %v1144, 1
        %v1149 = vsel %vm1147, %v1148, %v1144
        %v1150 = vadd.s32 %v1145, %v1149
        %v1151 = vadd.s32 %v1150, 536870912
        %v1152 = vshrl.u32 %v1151, 30
        %v1153 = vshll.u32 %v1152, 30
        %v1154 = vsub.s32 %v1150, %v1153
        %vm1155 = vcmp.lt.s32.totalorder %v1154, 0
        %v1156 = vsub.s32 0, %v1154
        %v1157 = vsel %vm1155, %v1156, %v1154
        %v1158 = vclz %v1157
        %v1159 = vsub.s32 %v1158, 2
        %vm1160 = vcmp.gt.s32.totalorder 0, %v1159
        %v1161 = vsel %vm1160, 0, %v1159
        %v1162 = vsub.s32 32, %v1161
        %v1163 = vshll.u32 %v1154, %v1161
        %v1164 = vshrl.u32 %v1146, %v1162
        %v1165 = vor.u32 %v1163, %v1164
        %v1166 = vsub.s32 4294967266, %v1161
        %v1167 = vadd.s32 %v1166, 127
        %v1168 = vshll.u32 %v1167, 23
        %v1169 = vor.u32 4788187, %v1168
        %v1170 = vand.u32 2147483647, %v1169
        %v1172 = vcvt.s32.f32 %v1165
        %v1173 = vmul.f32 %v1172, %v1170
        %v1174 = vxor.u32 %v1173, 2147483648
        %v1175 = vsel %vm1092, %v1174, %v1173
        %v1176 = vsub.s32 4, %v1152
        %v1177 = vsel %vm1092, %v1176, %v1152
        %v1178 = vsel %vm1091, %v464, %v1175
        %v1179 = vsel %vm1091, 0, %v1177
        %v1180 = vcosq.f32.pop %v1178
        %v1181 = vsinq.f32.pop %v1178
        %vm1182 = vweird.f32 %v464
        %v1183 = vadd.s32 %v1179, 3
        %v1184 = vand.u32 %v1183, 3
        %vm1185 = vcmp.lt.s32.totalorder %v1184, 2
        %vm1186 = vcmp.eq.s32.totalorder %v1184, 0
        %v1187 = vxor.u32 %v1181, 2147483648
        %v1188 = vsel %vm1186, %v1180, %v1187
        %vm1189 = vcmp.eq.s32.totalorder %v1184, 2
        %v1190 = vxor.u32 %v1180, 2147483648
        %v1191 = vsel %vm1189, %v1190, %v1181
        %v1192 = vsel %vm1185, %v1188, %v1191
        %v1193 = vsel %vm1182, nan, %v1192
        %v1194 = vand.u32 2147483647, %v465
        %vm1195 = vcmp.le.f32.partialorder %v1194, 0.7853982
        %vm1196 = vcmp.lt.s32.totalorder %v465, 0
        %v1197 = vand.u32 %v465, 2139095040
        %v1198 = vshrl.u32 %v1197, 23
        %v1199 = vsub.s32 %v1198, 127
        %v1200 = vand.u32 2147483647, %v465
        %v1201 = vand.u32 %v1200, 8388607
        %v1202 = vor.u32 %v1201, 8388608
        %v1203 = vsub.s32 0, %v1202
        %v1204 = vadd.s32 %v1199, 1
        %vm1205 = vcmp.gt.s32.totalorder %v1204, 0
        %v1206 = vsel %vm1205, %v1204, 0
        %v1207 = vshrl.u32 %v1206, 5
        %v1208 = vand.u32 %v1206, 31
        %v1209 = vsub.s32 32, %v1208
        %v1210 = vshrl.u32 683565275, %v1209
        %v1211 = vshll.u32 683565275, %v1208
        %v1212 = vshrl.u32 2475754826, %v1209
        %v1213 = vor.u32 %v1211, %v1212
        %v1214 = vshll.u32 2475754826, %v1208
        %v1215 = vshrl.u32 2131351028, %v1209
        %v1216 = vor.u32 %v1214, %v1215
        %v1217 = vshll.u32 2131351028, %v1208
        %v1218 = vshrl.u32 2102212464, %v1209
        %v1219 = vor.u32 %v1217, %v1218
        %v1220 = vshll.u32 2102212464, %v1208
        %v1221 = vshrl.u32 920167782, %v1209
        %v1222 = vor.u32 %v1220, %v1221
        %v1223 = vshll.u32 920167782, %v1208
        %v1224 = vshrl.u32 1326507024, %v1209
        %v1225 = vor.u32 %v1223, %v1224
        %vm1226 = vcmp.lt.s32.totalorder %v1207, 1
        %vm1227 = vcmp.lt.s32.totalorder %v1207, 2
        %vm1228 = vcmp.lt.s32.totalorder %v1207, 3
        %vm1229 = vcmp.lt.s32.totalorder %v1207, 4
        %v1230 = vsel %vm1226, %v1210, %v1213
        %v1231 = vsel %vm1229, %v1219, 2102212464
        %v1232 = vsel %vm1228, %v1216, %v1231
        %v1233 = vsel %vm1227, %v1230, %v1232
        %v1234 = vsel %vm1226, %v1213, %v1216
        %v1235 = vsel %vm1229, %v1222, 920167782
        %v1236 = vsel %vm1228, %v1219, %v1235
        %v1237 = vsel %vm1227, %v1234, %v1236
        %v1238 = vsel %vm1226, %v1216, %v1219
        %v1239 = vsel %vm1229, %v1225, 1326507024
        %v1240 = vsel %vm1228, %v1222, %v1239
        %v1241 = vsel %vm1227, %v1238, %v1240
        %v1242 = vshll.u32 %v1202, 8
        %v1243 = vmul.u32.u64.compose %v1242, %v1241
        %v1244 = vextract.low.u32 %v1243
        %v1245 = vextract.high.u32 %v1243
        %v1246 = vmul.u32.u64.compose %v1242, %v1237
        %v1247 = vextract.low.u32 %v1246
        %v1248 = vextract.high.u32 %v1246
        %v1249 = vmul.u32 %v1242, %v1233
        %v1250 = vadd.s32 %v1245, %v1247
        %vm1251 = vc.u32 %v1245, %v1247
        %v1252 = vadd.s32 %v1248, 1
        %v1253 = vsel %vm1251, %v1252, %v1248
        %v1254 = vadd.s32 %v1249, %v1253
        %v1255 = vadd.s32 %v1254, 536870912
        %v1256 = vshrl.u32 %v1255, 30
        %v1257 = vshll.u32 %v1256, 30
        %v1258 = vsub.s32 %v1254, %v1257
        %vm1259 = vcmp.lt.s32.totalorder %v1258, 0
        %v1260 = vsub.s32 0, %v1258
        %v1261 = vsel %vm1259, %v1260, %v1258
        %v1262 = vclz %v1261
        %v1263 = vsub.s32 %v1262, 2
        %vm1264 = vcmp.gt.s32.totalorder 0, %v1263
        %v1265 = vsel %vm1264, 0, %v1263
        %v1266 = vsub.s32 32, %v1265
        %v1267 = vshll.u32 %v1258, %v1265
        %v1268 = vshrl.u32 %v1250, %v1266
        %v1269 = vor.u32 %v1267, %v1268
        %v1270 = vsub.s32 4294967266, %v1265
        %v1271 = vadd.s32 %v1270, 127
        %v1272 = vshll.u32 %v1271, 23
        %v1273 = vor.u32 4788187, %v1272
        %v1274 = vand.u32 2147483647, %v1273
        %v1276 = vcvt.s32.f32 %v1269
        %v1277 = vmul.f32 %v1276, %v1274
        %v1278 = vxor.u32 %v1277, 2147483648
        %v1279 = vsel %vm1196, %v1278, %v1277
        %v1280 = vsub.s32 4, %v1256
        %v1281 = vsel %vm1196, %v1280, %v1256
        %v1282 = vsel %vm1195, %v465, %v1279
        %v1283 = vsel %vm1195, 0, %v1281
        %v1284 = vcosq.f32.pop %v1282
        %v1285 = vsinq.f32.pop %v1282
        %vm1286 = vweird.f32 %v465
        %v1287 = vadd.s32 %v1283, 3
        %v1288 = vand.u32 %v1287, 3
        %vm1289 = vcmp.lt.s32.totalorder %v1288, 2
        %vm1290 = vcmp.eq.s32.totalorder %v1288, 0
        %v1291 = vxor.u32 %v1285, 2147483648
        %v1292 = vsel %vm1290, %v1284, %v1291
        %vm1293 = vcmp.eq.s32.totalorder %v1288, 2
        %v1294 = vxor.u32 %v1284, 2147483648
        %v1295 = vsel %vm1293, %v1294, %v1285
        %v1296 = vsel %vm1289, %v1292, %v1295
        %v1297 = vsel %vm1286, nan, %v1296
        %1299 = vset.pattern.permute.xlu0 0
        %1300 = vperm.xlu0 %1299, %v315
        %v1301 = vpop.permute.xlu0 %1300
        %1304 = vset.pattern.permute.xlu0 0
        %1305 = vperm.xlu0 %1304, %v316
        %v1306 = vpop.permute.xlu0 %1305
        %1309 = vset.pattern.permute.xlu0 0
        %1310 = vperm.xlu0 %1309, %v317
        %v1311 = vpop.permute.xlu0 %1310
        %1314 = vset.pattern.permute.xlu0 0
        %1315 = vperm.xlu0 %1314, %v318
        %v1316 = vpop.permute.xlu0 %1315
        %vm1318 = vcmask 261120
        %v1320 = vsel %vm1318, %v291, 0
        %v1323 = vsel %vm1318, %v292, 0
        %v1326 = vsel %vm1318, %v293, 0
        %v1329 = vsel %vm1318, %v294, 0
        %1331 = vmatprep.subr.mxu0 0.0
        %1332 = vmatpush1.msra.mxu0 %v569
        %1333 = vmatprep.subr.mxu0 0.0
        %1334 = vmatpush1.msra.mxu0 %v777
        %1335 = vmatprep.subr.mxu0 0.0
        %1336 = vmatpush1.msra.mxu0 %v985
        %1337 = vmatprep.subr.mxu0 0.0
        %1338 = vmatpush1.msra.mxu0 %v1193
        %1339 = vmatprep.subr.mxu0 0.0
        %1340 = vmatpush1.msra.mxu0 0.0
        %1341 = vmatprep.subr.mxu0 0.0
        %1342 = vmatpush1.msra.mxu0 0.0
        %1343 = vmatprep.subr.mxu0 0.0
        %1344 = vmatpush1.msra.mxu0 0.0
        %1345 = vmatprep.subr.mxu0 0.0
        %1346 = vmatpush1.msra.mxu0 0.0
        %1347 = vmatprep.subr.mxu0 0.0
        %1348 = vmatpush1.msra.mxu0 0.0
        %1349 = vmatprep.subr.mxu0 0.0
        %1350 = vmatpush1.msra.mxu0 0.0
        %1351 = vmatprep.subr.mxu0 0.0
        %1352 = vmatpush1.msra.mxu0 0.0
        %1353 = vmatprep.subr.mxu0 0.0
        %1354 = vmatpush1.msra.mxu0 0.0
        %1355 = vmatprep.subr.mxu0 0.0
        %1356 = vmatpush1.msra.mxu0 0.0
        %1357 = vmatprep.subr.mxu0 0.0
        %1358 = vmatpush1.msra.mxu0 0.0
        %1359 = vmatprep.subr.mxu0 0.0
        %1360 = vmatpush1.msra.mxu0 0.0
        %1361 = vmatprep.subr.mxu0 0.0
        %1362 = vmatpush1.msra.mxu0 0.0
        %1363 = vmatprep.subr.mxu0 0.0
        %1364 = vmatpush1.msra.mxu0 0.0
        %1365 = vmatprep.subr.mxu0 0.0
        %1366 = vmatpush1.msra.mxu0 0.0
        %1367 = vmatprep.subr.mxu0 0.0
        %1368 = vmatpush1.msra.mxu0 0.0
        %1369 = vmatprep.subr.mxu0 0.0
        %1370 = vmatpush1.msra.mxu0 0.0
        %1371 = vmatprep.subr.mxu0 0.0
        %1372 = vmatpush1.msra.mxu0 0.0
        %1373 = vmatprep.subr.mxu0 0.0
        %1374 = vmatpush1.msra.mxu0 0.0
        %1375 = vmatprep.subr.mxu0 0.0
        %1376 = vmatpush1.msra.mxu0 0.0
        %1377 = vmatprep.subr.mxu0 0.0
        %1378 = vmatpush1.msra.mxu0 0.0
        %1379 = vmatprep.subr.mxu0 0.0
        %1380 = vmatpush1.msra.mxu0 0.0
        %1381 = vmatprep.subr.mxu0 0.0
        %1382 = vmatpush1.msra.mxu0 0.0
        %1383 = vmatprep.subr.mxu0 0.0
        %1384 = vmatpush1.msra.mxu0 0.0
        %1385 = vmatprep.subr.mxu0 0.0
        %1386 = vmatpush1.msra.mxu0 0.0
        %1387 = vmatprep.subr.mxu0 0.0
        %1388 = vmatpush1.msra.mxu0 0.0
        %1389 = vmatprep.subr.mxu0 0.0
        %1390 = vmatpush1.msra.mxu0 0.0
        %1391 = vmatprep.subr.mxu0 0.0
        %1392 = vmatpush1.msra.mxu0 0.0
        %1393 = vmatprep.subr.mxu0 0.0
        %1394 = vmatpush1.msra.mxu0 0.0
        %1395 = vmatprep.mubr.f32.mxu0 0.0
        %1396 = vmatmul.mubr.f32.gmra.mrb[0].mxu0 %v1320
        %v1397 = vpop.f32.mrb[0].mxu0
        %v1398 = vadd.f32 %v1301, %v1397
        %v1399 = vpop.f32.mrb[0].mxu0
        %1400 = vmatprep.mubr.f32.mxu0 0.0
        %1401 = vmatmul.mubr.f32.gmra.mrb[0].mxu0 %v1323
        %v1402 = vpop.f32.mrb[0].mxu0
        %v1403 = vadd.f32 %v1306, %v1402
        %v1404 = vpop.f32.mrb[0].mxu0
        %1405 = vmatprep.mubr.f32.mxu0 0.0
        %1406 = vmatmul.mubr.f32.gmra.mrb[0].mxu0 %v1326
        %v1407 = vpop.f32.mrb[0].mxu0
        %v1408 = vadd.f32 %v1311, %v1407
        %v1409 = vpop.f32.mrb[0].mxu0
        %1410 = vmatprep.mubr.f32.mxu0 0.0
        %1411 = vmatmul.mubr.f32.gmra.mrb[0].mxu0 %v1329
        %v1412 = vpop.f32.mrb[0].mxu0
        %v1413 = vadd.f32 %v1316, %v1412
        %v1414 = vpop.f32.mrb[0].mxu0
        %1415 = vdwg.mxu0
        %v1416 = vand.u32 2147483647, %v1398
        %vm1417 = vcmp.le.f32.partialorder %v1416, 0.7853982
        %vm1418 = vcmp.lt.s32.totalorder %v1398, 0
        %v1419 = vand.u32 %v1398, 2139095040
        %v1420 = vshrl.u32 %v1419, 23
        %v1421 = vsub.s32 %v1420, 127
        %v1422 = vand.u32 2147483647, %v1398
        %v1423 = vand.u32 %v1422, 8388607
        %v1424 = vor.u32 %v1423, 8388608
        %v1425 = vsub.s32 0, %v1424
        %v1426 = vadd.s32 %v1421, 1
        %vm1427 = vcmp.gt.s32.totalorder %v1426, 0
        %v1428 = vsel %vm1427, %v1426, 0
        %v1429 = vshrl.u32 %v1428, 5
        %v1430 = vand.u32 %v1428, 31
        %v1431 = vsub.s32 32, %v1430
        %v1432 = vshrl.u32 683565275, %v1431
        %v1433 = vshll.u32 683565275, %v1430
        %v1434 = vshrl.u32 2475754826, %v1431
        %v1435 = vor.u32 %v1433, %v1434
        %v1436 = vshll.u32 2475754826, %v1430
        %v1437 = vshrl.u32 2131351028, %v1431
        %v1438 = vor.u32 %v1436, %v1437
        %v1439 = vshll.u32 2131351028, %v1430
        %v1440 = vshrl.u32 2102212464, %v1431
        %v1441 = vor.u32 %v1439, %v1440
        %v1442 = vshll.u32 2102212464, %v1430
        %v1443 = vshrl.u32 920167782, %v1431
        %v1444 = vor.u32 %v1442, %v1443
        %v1445 = vshll.u32 920167782, %v1430
        %v1446 = vshrl.u32 1326507024, %v1431
        %v1447 = vor.u32 %v1445, %v1446
        %vm1448 = vcmp.lt.s32.totalorder %v1429, 1
        %vm1449 = vcmp.lt.s32.totalorder %v1429, 2
        %vm1450 = vcmp.lt.s32.totalorder %v1429, 3
        %vm1451 = vcmp.lt.s32.totalorder %v1429, 4
        %v1452 = vsel %vm1448, %v1432, %v1435
        %v1453 = vsel %vm1451, %v1441, 2102212464
        %v1454 = vsel %vm1450, %v1438, %v1453
        %v1455 = vsel %vm1449, %v1452, %v1454
        %v1456 = vsel %vm1448, %v1435, %v1438
        %v1457 = vsel %vm1451, %v1444, 920167782
        %v1458 = vsel %vm1450, %v1441, %v1457
        %v1459 = vsel %vm1449, %v1456, %v1458
        %v1460 = vsel %vm1448, %v1438, %v1441
        %v1461 = vsel %vm1451, %v1447, 1326507024
        %v1462 = vsel %vm1450, %v1444, %v1461
        %v1463 = vsel %vm1449, %v1460, %v1462
        %v1464 = vshll.u32 %v1424, 8
        %v1465 = vmul.u32.u64.compose %v1464, %v1463
        %v1466 = vextract.low.u32 %v1465
        %v1467 = vextract.high.u32 %v1465
        %v1468 = vmul.u32.u64.compose %v1464, %v1459
        %v1469 = vextract.low.u32 %v1468
        %v1470 = vextract.high.u32 %v1468
        %v1471 = vmul.u32 %v1464, %v1455
        %v1472 = vadd.s32 %v1467, %v1469
        %vm1473 = vc.u32 %v1467, %v1469
        %v1474 = vadd.s32 %v1470, 1
        %v1475 = vsel %vm1473, %v1474, %v1470
        %v1476 = vadd.s32 %v1471, %v1475
        %v1477 = vadd.s32 %v1476, 536870912
        %v1478 = vshrl.u32 %v1477, 30
        %v1479 = vshll.u32 %v1478, 30
        %v1480 = vsub.s32 %v1476, %v1479
        %vm1481 = vcmp.lt.s32.totalorder %v1480, 0
        %v1482 = vsub.s32 0, %v1480
        %v1483 = vsel %vm1481, %v1482, %v1480
        %v1484 = vclz %v1483
        %v1485 = vsub.s32 %v1484, 2
        %vm1486 = vcmp.gt.s32.totalorder 0, %v1485
        %v1487 = vsel %vm1486, 0, %v1485
        %v1488 = vsub.s32 32, %v1487
        %v1489 = vshll.u32 %v1480, %v1487
        %v1490 = vshrl.u32 %v1472, %v1488
        %v1491 = vor.u32 %v1489, %v1490
        %v1492 = vsub.s32 4294967266, %v1487
        %v1493 = vadd.s32 %v1492, 127
        %v1494 = vshll.u32 %v1493, 23
        %v1495 = vor.u32 4788187, %v1494
        %v1496 = vand.u32 2147483647, %v1495
        %v1498 = vcvt.s32.f32 %v1491
        %v1499 = vmul.f32 %v1498, %v1496
        %v1500 = vxor.u32 %v1499, 2147483648
        %v1501 = vsel %vm1418, %v1500, %v1499
        %v1502 = vsub.s32 4, %v1478
        %v1503 = vsel %vm1418, %v1502, %v1478
        %v1504 = vsel %vm1417, %v1398, %v1501
        %v1505 = vsel %vm1417, 0, %v1503
        %v1506 = vcosq.f32.pop %v1504
        %v1507 = vsinq.f32.pop %v1504
        %vm1508 = vweird.f32 %v1398
        %v1509 = vadd.s32 %v1505, 3
        %v1510 = vand.u32 %v1509, 3
        %vm1511 = vcmp.lt.s32.totalorder %v1510, 2
        %vm1512 = vcmp.eq.s32.totalorder %v1510, 0
        %v1513 = vxor.u32 %v1507, 2147483648
        %v1514 = vsel %vm1512, %v1506, %v1513
        %vm1515 = vcmp.eq.s32.totalorder %v1510, 2
        %v1516 = vxor.u32 %v1506, 2147483648
        %v1517 = vsel %vm1515, %v1516, %v1507
        %v1518 = vsel %vm1511, %v1514, %v1517
        %v1519 = vsel %vm1508, nan, %v1518
        %v1520 = vand.u32 2147483647, %v1403
        %vm1521 = vcmp.le.f32.partialorder %v1520, 0.7853982
        %vm1522 = vcmp.lt.s32.totalorder %v1403, 0
        %v1523 = vand.u32 %v1403, 2139095040
        %v1524 = vshrl.u32 %v1523, 23
        %v1525 = vsub.s32 %v1524, 127
        %v1526 = vand.u32 2147483647, %v1403
        %v1527 = vand.u32 %v1526, 8388607
        %v1528 = vor.u32 %v1527, 8388608
        %v1529 = vsub.s32 0, %v1528
        %v1530 = vadd.s32 %v1525, 1
        %vm1531 = vcmp.gt.s32.totalorder %v1530, 0
        %v1532 = vsel %vm1531, %v1530, 0
        %v1533 = vshrl.u32 %v1532, 5
        %v1534 = vand.u32 %v1532, 31
        %v1535 = vsub.s32 32, %v1534
        %v1536 = vshrl.u32 683565275, %v1535
        %v1537 = vshll.u32 683565275, %v1534
        %v1538 = vshrl.u32 2475754826, %v1535
        %v1539 = vor.u32 %v1537, %v1538
        %v1540 = vshll.u32 2475754826, %v1534
        %v1541 = vshrl.u32 2131351028, %v1535
        %v1542 = vor.u32 %v1540, %v1541
        %v1543 = vshll.u32 2131351028, %v1534
        %v1544 = vshrl.u32 2102212464, %v1535
        %v1545 = vor.u32 %v1543, %v1544
        %v1546 = vshll.u32 2102212464, %v1534
        %v1547 = vshrl.u32 920167782, %v1535
        %v1548 = vor.u32 %v1546, %v1547
        %v1549 = vshll.u32 920167782, %v1534
        %v1550 = vshrl.u32 1326507024, %v1535
        %v1551 = vor.u32 %v1549, %v1550
        %vm1552 = vcmp.lt.s32.totalorder %v1533, 1
        %vm1553 = vcmp.lt.s32.totalorder %v1533, 2
        %vm1554 = vcmp.lt.s32.totalorder %v1533, 3
        %vm1555 = vcmp.lt.s32.totalorder %v1533, 4
        %v1556 = vsel %vm1552, %v1536, %v1539
        %v1557 = vsel %vm1555, %v1545, 2102212464
        %v1558 = vsel %vm1554, %v1542, %v1557
        %v1559 = vsel %vm1553, %v1556, %v1558
        %v1560 = vsel %vm1552, %v1539, %v1542
        %v1561 = vsel %vm1555, %v1548, 920167782
        %v1562 = vsel %vm1554, %v1545, %v1561
        %v1563 = vsel %vm1553, %v1560, %v1562
        %v1564 = vsel %vm1552, %v1542, %v1545
        %v1565 = vsel %vm1555, %v1551, 1326507024
        %v1566 = vsel %vm1554, %v1548, %v1565
        %v1567 = vsel %vm1553, %v1564, %v1566
        %v1568 = vshll.u32 %v1528, 8
        %v1569 = vmul.u32.u64.compose %v1568, %v1567
        %v1570 = vextract.low.u32 %v1569
        %v1571 = vextract.high.u32 %v1569
        %v1572 = vmul.u32.u64.compose %v1568, %v1563
        %v1573 = vextract.low.u32 %v1572
        %v1574 = vextract.high.u32 %v1572
        %v1575 = vmul.u32 %v1568, %v1559
        %v1576 = vadd.s32 %v1571, %v1573
        %vm1577 = vc.u32 %v1571, %v1573
        %v1578 = vadd.s32 %v1574, 1
        %v1579 = vsel %vm1577, %v1578, %v1574
        %v1580 = vadd.s32 %v1575, %v1579
        %v1581 = vadd.s32 %v1580, 536870912
        %v1582 = vshrl.u32 %v1581, 30
        %v1583 = vshll.u32 %v1582, 30
        %v1584 = vsub.s32 %v1580, %v1583
        %vm1585 = vcmp.lt.s32.totalorder %v1584, 0
        %v1586 = vsub.s32 0, %v1584
        %v1587 = vsel %vm1585, %v1586, %v1584
        %v1588 = vclz %v1587
        %v1589 = vsub.s32 %v1588, 2
        %vm1590 = vcmp.gt.s32.totalorder 0, %v1589
        %v1591 = vsel %vm1590, 0, %v1589
        %v1592 = vsub.s32 32, %v1591
        %v1593 = vshll.u32 %v1584, %v1591
        %v1594 = vshrl.u32 %v1576, %v1592
        %v1595 = vor.u32 %v1593, %v1594
        %v1596 = vsub.s32 4294967266, %v1591
        %v1597 = vadd.s32 %v1596, 127
        %v1598 = vshll.u32 %v1597, 23
        %v1599 = vor.u32 4788187, %v1598
        %v1600 = vand.u32 2147483647, %v1599
        %v1602 = vcvt.s32.f32 %v1595
        %v1603 = vmul.f32 %v1602, %v1600
        %v1604 = vxor.u32 %v1603, 2147483648
        %v1605 = vsel %vm1522, %v1604, %v1603
        %v1606 = vsub.s32 4, %v1582
        %v1607 = vsel %vm1522, %v1606, %v1582
        %v1608 = vsel %vm1521, %v1403, %v1605
        %v1609 = vsel %vm1521, 0, %v1607
        %v1610 = vcosq.f32.pop %v1608
        %v1611 = vsinq.f32.pop %v1608
        %vm1612 = vweird.f32 %v1403
        %v1613 = vadd.s32 %v1609, 3
        %v1614 = vand.u32 %v1613, 3
        %vm1615 = vcmp.lt.s32.totalorder %v1614, 2
        %vm1616 = vcmp.eq.s32.totalorder %v1614, 0
        %v1617 = vxor.u32 %v1611, 2147483648
        %v1618 = vsel %vm1616, %v1610, %v1617
        %vm1619 = vcmp.eq.s32.totalorder %v1614, 2
        %v1620 = vxor.u32 %v1610, 2147483648
        %v1621 = vsel %vm1619, %v1620, %v1611
        %v1622 = vsel %vm1615, %v1618, %v1621
        %v1623 = vsel %vm1612, nan, %v1622
        %v1624 = vand.u32 2147483647, %v1408
        %vm1625 = vcmp.le.f32.partialorder %v1624, 0.7853982
        %vm1626 = vcmp.lt.s32.totalorder %v1408, 0
        %v1627 = vand.u32 %v1408, 2139095040
        %v1628 = vshrl.u32 %v1627, 23
        %v1629 = vsub.s32 %v1628, 127
        %v1630 = vand.u32 2147483647, %v1408
        %v1631 = vand.u32 %v1630, 8388607
        %v1632 = vor.u32 %v1631, 8388608
        %v1633 = vsub.s32 0, %v1632
        %v1634 = vadd.s32 %v1629, 1
        %vm1635 = vcmp.gt.s32.totalorder %v1634, 0
        %v1636 = vsel %vm1635, %v1634, 0
        %v1637 = vshrl.u32 %v1636, 5
        %v1638 = vand.u32 %v1636, 31
        %v1639 = vsub.s32 32, %v1638
        %v1640 = vshrl.u32 683565275, %v1639
        %v1641 = vshll.u32 683565275, %v1638
        %v1642 = vshrl.u32 2475754826, %v1639
        %v1643 = vor.u32 %v1641, %v1642
        %v1644 = vshll.u32 2475754826, %v1638
        %v1645 = vshrl.u32 2131351028, %v1639
        %v1646 = vor.u32 %v1644, %v1645
        %v1647 = vshll.u32 2131351028, %v1638
        %v1648 = vshrl.u32 2102212464, %v1639
        %v1649 = vor.u32 %v1647, %v1648
        %v1650 = vshll.u32 2102212464, %v1638
        %v1651 = vshrl.u32 920167782, %v1639
        %v1652 = vor.u32 %v1650, %v1651
        %v1653 = vshll.u32 920167782, %v1638
        %v1654 = vshrl.u32 1326507024, %v1639
        %v1655 = vor.u32 %v1653, %v1654
        %vm1656 = vcmp.lt.s32.totalorder %v1637, 1
        %vm1657 = vcmp.lt.s32.totalorder %v1637, 2
        %vm1658 = vcmp.lt.s32.totalorder %v1637, 3
        %vm1659 = vcmp.lt.s32.totalorder %v1637, 4
        %v1660 = vsel %vm1656, %v1640, %v1643
        %v1661 = vsel %vm1659, %v1649, 2102212464
        %v1662 = vsel %vm1658, %v1646, %v1661
        %v1663 = vsel %vm1657, %v1660, %v1662
        %v1664 = vsel %vm1656, %v1643, %v1646
        %v1665 = vsel %vm1659, %v1652, 920167782
        %v1666 = vsel %vm1658, %v1649, %v1665
        %v1667 = vsel %vm1657, %v1664, %v1666
        %v1668 = vsel %vm1656, %v1646, %v1649
        %v1669 = vsel %vm1659, %v1655, 1326507024
        %v1670 = vsel %vm1658, %v1652, %v1669
        %v1671 = vsel %vm1657, %v1668, %v1670
        %v1672 = vshll.u32 %v1632, 8
        %v1673 = vmul.u32.u64.compose %v1672, %v1671
        %v1674 = vextract.low.u32 %v1673
        %v1675 = vextract.high.u32 %v1673
        %v1676 = vmul.u32.u64.compose %v1672, %v1667
        %v1677 = vextract.low.u32 %v1676
        %v1678 = vextract.high.u32 %v1676
        %v1679 = vmul.u32 %v1672, %v1663
        %v1680 = vadd.s32 %v1675, %v1677
        %vm1681 = vc.u32 %v1675, %v1677
        %v1682 = vadd.s32 %v1678, 1
        %v1683 = vsel %vm1681, %v1682, %v1678
        %v1684 = vadd.s32 %v1679, %v1683
        %v1685 = vadd.s32 %v1684, 536870912
        %v1686 = vshrl.u32 %v1685, 30
        %v1687 = vshll.u32 %v1686, 30
        %v1688 = vsub.s32 %v1684, %v1687
        %vm1689 = vcmp.lt.s32.totalorder %v1688, 0
        %v1690 = vsub.s32 0, %v1688
        %v1691 = vsel %vm1689, %v1690, %v1688
        %v1692 = vclz %v1691
        %v1693 = vsub.s32 %v1692, 2
        %vm1694 = vcmp.gt.s32.totalorder 0, %v1693
        %v1695 = vsel %vm1694, 0, %v1693
        %v1696 = vsub.s32 32, %v1695
        %v1697 = vshll.u32 %v1688, %v1695
        %v1698 = vshrl.u32 %v1680, %v1696
        %v1699 = vor.u32 %v1697, %v1698
        %v1700 = vsub.s32 4294967266, %v1695
        %v1701 = vadd.s32 %v1700, 127
        %v1702 = vshll.u32 %v1701, 23
        %v1703 = vor.u32 4788187, %v1702
        %v1704 = vand.u32 2147483647, %v1703
        %v1706 = vcvt.s32.f32 %v1699
        %v1707 = vmul.f32 %v1706, %v1704
        %v1708 = vxor.u32 %v1707, 2147483648
        %v1709 = vsel %vm1626, %v1708, %v1707
        %v1710 = vsub.s32 4, %v1686
        %v1711 = vsel %vm1626, %v1710, %v1686
        %v1712 = vsel %vm1625, %v1408, %v1709
        %v1713 = vsel %vm1625, 0, %v1711
        %v1714 = vcosq.f32.pop %v1712
        %v1715 = vsinq.f32.pop %v1712
        %vm1716 = vweird.f32 %v1408
        %v1717 = vadd.s32 %v1713, 3
        %v1718 = vand.u32 %v1717, 3
        %vm1719 = vcmp.lt.s32.totalorder %v1718, 2
        %vm1720 = vcmp.eq.s32.totalorder %v1718, 0
        %v1721 = vxor.u32 %v1715, 2147483648
        %v1722 = vsel %vm1720, %v1714, %v1721
        %vm1723 = vcmp.eq.s32.totalorder %v1718, 2
        %v1724 = vxor.u32 %v1714, 2147483648
        %v1725 = vsel %vm1723, %v1724, %v1715
        %v1726 = vsel %vm1719, %v1722, %v1725
        %v1727 = vsel %vm1716, nan, %v1726
        %v1728 = vand.u32 2147483647, %v1413
        %vm1729 = vcmp.le.f32.partialorder %v1728, 0.7853982
        %vm1730 = vcmp.lt.s32.totalorder %v1413, 0
        %v1731 = vand.u32 %v1413, 2139095040
        %v1732 = vshrl.u32 %v1731, 23
        %v1733 = vsub.s32 %v1732, 127
        %v1734 = vand.u32 2147483647, %v1413
        %v1735 = vand.u32 %v1734, 8388607
        %v1736 = vor.u32 %v1735, 8388608
        %v1737 = vsub.s32 0, %v1736
        %v1738 = vadd.s32 %v1733, 1
        %vm1739 = vcmp.gt.s32.totalorder %v1738, 0
        %v1740 = vsel %vm1739, %v1738, 0
        %v1741 = vshrl.u32 %v1740, 5
        %v1742 = vand.u32 %v1740, 31
        %v1743 = vsub.s32 32, %v1742
        %v1744 = vshrl.u32 683565275, %v1743
        %v1745 = vshll.u32 683565275, %v1742
        %v1746 = vshrl.u32 2475754826, %v1743
        %v1747 = vor.u32 %v1745, %v1746
        %v1748 = vshll.u32 2475754826, %v1742
        %v1749 = vshrl.u32 2131351028, %v1743
        %v1750 = vor.u32 %v1748, %v1749
        %v1751 = vshll.u32 2131351028, %v1742
        %v1752 = vshrl.u32 2102212464, %v1743
        %v1753 = vor.u32 %v1751, %v1752
        %v1754 = vshll.u32 2102212464, %v1742
        %v1755 = vshrl.u32 920167782, %v1743
        %v1756 = vor.u32 %v1754, %v1755
        %v1757 = vshll.u32 920167782, %v1742
        %v1758 = vshrl.u32 1326507024, %v1743
        %v1759 = vor.u32 %v1757, %v1758
        %vm1760 = vcmp.lt.s32.totalorder %v1741, 1
        %vm1761 = vcmp.lt.s32.totalorder %v1741, 2
        %vm1762 = vcmp.lt.s32.totalorder %v1741, 3
        %vm1763 = vcmp.lt.s32.totalorder %v1741, 4
        %v1764 = vsel %vm1760, %v1744, %v1747
        %v1765 = vsel %vm1763, %v1753, 2102212464
        %v1766 = vsel %vm1762, %v1750, %v1765
        %v1767 = vsel %vm1761, %v1764, %v1766
        %v1768 = vsel %vm1760, %v1747, %v1750
        %v1769 = vsel %vm1763, %v1756, 920167782
        %v1770 = vsel %vm1762, %v1753, %v1769
        %v1771 = vsel %vm1761, %v1768, %v1770
        %v1772 = vsel %vm1760, %v1750, %v1753
        %v1773 = vsel %vm1763, %v1759, 1326507024
        %v1774 = vsel %vm1762, %v1756, %v1773
        %v1775 = vsel %vm1761, %v1772, %v1774
        %v1776 = vshll.u32 %v1736, 8
        %v1777 = vmul.u32.u64.compose %v1776, %v1775
        %v1778 = vextract.low.u32 %v1777
        %v1779 = vextract.high.u32 %v1777
        %v1780 = vmul.u32.u64.compose %v1776, %v1771
        %v1781 = vextract.low.u32 %v1780
        %v1782 = vextract.high.u32 %v1780
        %v1783 = vmul.u32 %v1776, %v1767
        %v1784 = vadd.s32 %v1779, %v1781
        %vm1785 = vc.u32 %v1779, %v1781
        %v1786 = vadd.s32 %v1782, 1
        %v1787 = vsel %vm1785, %v1786, %v1782
        %v1788 = vadd.s32 %v1783, %v1787
        %v1789 = vadd.s32 %v1788, 536870912
        %v1790 = vshrl.u32 %v1789, 30
        %v1791 = vshll.u32 %v1790, 30
        %v1792 = vsub.s32 %v1788, %v1791
        %vm1793 = vcmp.lt.s32.totalorder %v1792, 0
        %v1794 = vsub.s32 0, %v1792
        %v1795 = vsel %vm1793, %v1794, %v1792
        %v1796 = vclz %v1795
        %v1797 = vsub.s32 %v1796, 2
        %vm1798 = vcmp.gt.s32.totalorder 0, %v1797
        %v1799 = vsel %vm1798, 0, %v1797
        %v1800 = vsub.s32 32, %v1799
        %v1801 = vshll.u32 %v1792, %v1799
        %v1802 = vshrl.u32 %v1784, %v1800
        %v1803 = vor.u32 %v1801, %v1802
        %v1804 = vsub.s32 4294967266, %v1799
        %v1805 = vadd.s32 %v1804, 127
        %v1806 = vshll.u32 %v1805, 23
        %v1807 = vor.u32 4788187, %v1806
        %v1808 = vand.u32 2147483647, %v1807
        %v1810 = vcvt.s32.f32 %v1803
        %v1811 = vmul.f32 %v1810, %v1808
        %v1812 = vxor.u32 %v1811, 2147483648
        %v1813 = vsel %vm1730, %v1812, %v1811
        %v1814 = vsub.s32 4, %v1790
        %v1815 = vsel %vm1730, %v1814, %v1790
        %v1816 = vsel %vm1729, %v1413, %v1813
        %v1817 = vsel %vm1729, 0, %v1815
        %v1818 = vcosq.f32.pop %v1816
        %v1819 = vsinq.f32.pop %v1816
        %vm1820 = vweird.f32 %v1413
        %v1821 = vadd.s32 %v1817, 3
        %v1822 = vand.u32 %v1821, 3
        %vm1823 = vcmp.lt.s32.totalorder %v1822, 2
        %vm1824 = vcmp.eq.s32.totalorder %v1822, 0
        %v1825 = vxor.u32 %v1819, 2147483648
        %v1826 = vsel %vm1824, %v1818, %v1825
        %vm1827 = vcmp.eq.s32.totalorder %v1822, 2
        %v1828 = vxor.u32 %v1818, 2147483648
        %v1829 = vsel %vm1827, %v1828, %v1819
        %v1830 = vsel %vm1823, %v1826, %v1829
        %v1831 = vsel %vm1820, nan, %v1830
        %1832 = vmatprep.subr.mxu0 0.0
        %1833 = vmatpush1.msra.mxu0 %v673
        %1834 = vmatprep.subr.mxu0 0.0
        %1835 = vmatpush1.msra.mxu0 %v881
        %1836 = vmatprep.subr.mxu0 0.0
        %1837 = vmatpush1.msra.mxu0 %v1089
        %1838 = vmatprep.subr.mxu0 0.0
        %1839 = vmatpush1.msra.mxu0 %v1297
        %1840 = vmatprep.subr.mxu0 0.0
        %1841 = vmatpush1.msra.mxu0 0.0
        %1842 = vmatprep.subr.mxu0 0.0
        %1843 = vmatpush1.msra.mxu0 0.0
        %1844 = vmatprep.subr.mxu0 0.0
        %1845 = vmatpush1.msra.mxu0 0.0
        %1846 = vmatprep.subr.mxu0 0.0
        %1847 = vmatpush1.msra.mxu0 0.0
        %1848 = vmatprep.subr.mxu0 0.0
        %1849 = vmatpush1.msra.mxu0 0.0
        %1850 = vmatprep.subr.mxu0 0.0
        %1851 = vmatpush1.msra.mxu0 0.0
        %1852 = vmatprep.subr.mxu0 0.0
        %1853 = vmatpush1.msra.mxu0 0.0
        %1854 = vmatprep.subr.mxu0 0.0
        %1855 = vmatpush1.msra.mxu0 0.0
        %1856 = vmatprep.subr.mxu0 0.0
        %1857 = vmatpush1.msra.mxu0 0.0
        %1858 = vmatprep.subr.mxu0 0.0
        %1859 = vmatpush1.msra.mxu0 0.0
        %1860 = vmatprep.subr.mxu0 0.0
        %1861 = vmatpush1.msra.mxu0 0.0
        %1862 = vmatprep.subr.mxu0 0.0
        %1863 = vmatpush1.msra.mxu0 0.0
        %1864 = vmatprep.subr.mxu0 0.0
        %1865 = vmatpush1.msra.mxu0 0.0
        %1866 = vmatprep.subr.mxu0 0.0
        %1867 = vmatpush1.msra.mxu0 0.0
        %1868 = vmatprep.subr.mxu0 0.0
        %1869 = vmatpush1.msra.mxu0 0.0
        %1870 = vmatprep.subr.mxu0 0.0
        %1871 = vmatpush1.msra.mxu0 0.0
        %1872 = vmatprep.subr.mxu0 0.0
        %1873 = vmatpush1.msra.mxu0 0.0
        %1874 = vmatprep.subr.mxu0 0.0
        %1875 = vmatpush1.msra.mxu0 0.0
        %1876 = vmatprep.subr.mxu0 0.0
        %1877 = vmatpush1.msra.mxu0 0.0
        %1878 = vmatprep.subr.mxu0 0.0
        %1879 = vmatpush1.msra.mxu0 0.0
        %1880 = vmatprep.subr.mxu0 0.0
        %1881 = vmatpush1.msra.mxu0 0.0
        %1882 = vmatprep.subr.mxu0 0.0
        %1883 = vmatpush1.msra.mxu0 0.0
        %1884 = vmatprep.subr.mxu0 0.0
        %1885 = vmatpush1.msra.mxu0 0.0
        %1886 = vmatprep.subr.mxu0 0.0
        %1887 = vmatpush1.msra.mxu0 0.0
        %1888 = vmatprep.subr.mxu0 0.0
        %1889 = vmatpush1.msra.mxu0 0.0
        %1890 = vmatprep.subr.mxu0 0.0
        %1891 = vmatpush1.msra.mxu0 0.0
        %1892 = vmatprep.subr.mxu0 0.0
        %1893 = vmatpush1.msra.mxu0 0.0
        %1894 = vmatprep.subr.mxu0 0.0
        %1895 = vmatpush1.msra.mxu0 0.0
        %1896 = vmatprep.mubr.f32.mxu0 0.0
        %1897 = vmatmul.mubr.f32.gmra.mrb[0].mxu0 %v1320
        %v1898 = vpop.f32.mrb[0].mxu0
        %v1899 = vadd.f32 %v1301, %v1898
        %v1900 = vpop.f32.mrb[0].mxu0
        %1901 = vmatprep.mubr.f32.mxu0 0.0
        %1902 = vmatmul.mubr.f32.gmra.mrb[0].mxu0 %v1323
        %v1903 = vpop.f32.mrb[0].mxu0
        %v1904 = vadd.f32 %v1306, %v1903
        %v1905 = vpop.f32.mrb[0].mxu0
        %1906 = vmatprep.mubr.f32.mxu0 0.0
        %1907 = vmatmul.mubr.f32.gmra.mrb[0].mxu0 %v1326
        %v1908 = vpop.f32.mrb[0].mxu0
        %v1909 = vadd.f32 %v1311, %v1908
        %v1910 = vpop.f32.mrb[0].mxu0
        %1911 = vmatprep.mubr.f32.mxu0 0.0
        %1912 = vmatmul.mubr.f32.gmra.mrb[0].mxu0 %v1329
        %v1913 = vpop.f32.mrb[0].mxu0
        %v1914 = vadd.f32 %v1316, %v1913
        %v1915 = vpop.f32.mrb[0].mxu0
        %1916 = vdwg.mxu0
        %v1917 = vand.u32 2147483647, %v1899
        %vm1918 = vcmp.le.f32.partialorder %v1917, 0.7853982
        %vm1919 = vcmp.lt.s32.totalorder %v1899, 0
        %v1920 = vand.u32 %v1899, 2139095040
        %v1921 = vshrl.u32 %v1920, 23
        %v1922 = vsub.s32 %v1921, 127
        %v1923 = vand.u32 2147483647, %v1899
        %v1924 = vand.u32 %v1923, 8388607
        %v1925 = vor.u32 %v1924, 8388608
        %v1926 = vsub.s32 0, %v1925
        %v1927 = vadd.s32 %v1922, 1
        %vm1928 = vcmp.gt.s32.totalorder %v1927, 0
        %v1929 = vsel %vm1928, %v1927, 0
        %v1930 = vshrl.u32 %v1929, 5
        %v1931 = vand.u32 %v1929, 31
        %v1932 = vsub.s32 32, %v1931
        %v1933 = vshrl.u32 683565275, %v1932
        %v1934 = vshll.u32 683565275, %v1931
        %v1935 = vshrl.u32 2475754826, %v1932
        %v1936 = vor.u32 %v1934, %v1935
        %v1937 = vshll.u32 2475754826, %v1931
        %v1938 = vshrl.u32 2131351028, %v1932
        %v1939 = vor.u32 %v1937, %v1938
        %v1940 = vshll.u32 2131351028, %v1931
        %v1941 = vshrl.u32 2102212464, %v1932
        %v1942 = vor.u32 %v1940, %v1941
        %v1943 = vshll.u32 2102212464, %v1931
        %v1944 = vshrl.u32 920167782, %v1932
        %v1945 = vor.u32 %v1943, %v1944
        %v1946 = vshll.u32 920167782, %v1931
        %v1947 = vshrl.u32 1326507024, %v1932
        %v1948 = vor.u32 %v1946, %v1947
        %vm1949 = vcmp.lt.s32.totalorder %v1930, 1
        %vm1950 = vcmp.lt.s32.totalorder %v1930, 2
        %vm1951 = vcmp.lt.s32.totalorder %v1930, 3
        %vm1952 = vcmp.lt.s32.totalorder %v1930, 4
        %v1953 = vsel %vm1949, %v1933, %v1936
        %v1954 = vsel %vm1952, %v1942, 2102212464
        %v1955 = vsel %vm1951, %v1939, %v1954
        %v1956 = vsel %vm1950, %v1953, %v1955
        %v1957 = vsel %vm1949, %v1936, %v1939
        %v1958 = vsel %vm1952, %v1945, 920167782
        %v1959 = vsel %vm1951, %v1942, %v1958
        %v1960 = vsel %vm1950, %v1957, %v1959
        %v1961 = vsel %vm1949, %v1939, %v1942
        %v1962 = vsel %vm1952, %v1948, 1326507024
        %v1963 = vsel %vm1951, %v1945, %v1962
        %v1964 = vsel %vm1950, %v1961, %v1963
        %v1965 = vshll.u32 %v1925, 8
        %v1966 = vmul.u32.u64.compose %v1965, %v1964
        %v1967 = vextract.low.u32 %v1966
        %v1968 = vextract.high.u32 %v1966
        %v1969 = vmul.u32.u64.compose %v1965, %v1960
        %v1970 = vextract.low.u32 %v1969
        %v1971 = vextract.high.u32 %v1969
        %v1972 = vmul.u32 %v1965, %v1956
        %v1973 = vadd.s32 %v1968, %v1970
        %vm1974 = vc.u32 %v1968, %v1970
        %v1975 = vadd.s32 %v1971, 1
        %v1976 = vsel %vm1974, %v1975, %v1971
        %v1977 = vadd.s32 %v1972, %v1976
        %v1978 = vadd.s32 %v1977, 536870912
        %v1979 = vshrl.u32 %v1978, 30
        %v1980 = vshll.u32 %v1979, 30
        %v1981 = vsub.s32 %v1977, %v1980
        %vm1982 = vcmp.lt.s32.totalorder %v1981, 0
        %v1983 = vsub.s32 0, %v1981
        %v1984 = vsel %vm1982, %v1983, %v1981
        %v1985 = vclz %v1984
        %v1986 = vsub.s32 %v1985, 2
        %vm1987 = vcmp.gt.s32.totalorder 0, %v1986
        %v1988 = vsel %vm1987, 0, %v1986
        %v1989 = vsub.s32 32, %v1988
        %v1990 = vshll.u32 %v1981, %v1988
        %v1991 = vshrl.u32 %v1973, %v1989
        %v1992 = vor.u32 %v1990, %v1991
        %v1993 = vsub.s32 4294967266, %v1988
        %v1994 = vadd.s32 %v1993, 127
        %v1995 = vshll.u32 %v1994, 23
        %v1996 = vor.u32 4788187, %v1995
        %v1997 = vand.u32 2147483647, %v1996
        %v1999 = vcvt.s32.f32 %v1992
        %v2000 = vmul.f32 %v1999, %v1997
        %v2001 = vxor.u32 %v2000, 2147483648
        %v2002 = vsel %vm1919, %v2001, %v2000
        %v2003 = vsub.s32 4, %v1979
        %v2004 = vsel %vm1919, %v2003, %v1979
        %v2005 = vsel %vm1918, %v1899, %v2002
        %v2006 = vsel %vm1918, 0, %v2004
        %v2007 = vcosq.f32.pop %v2005
        %v2008 = vsinq.f32.pop %v2005
        %vm2009 = vweird.f32 %v1899
        %v2010 = vadd.s32 %v2006, 3
        %v2011 = vand.u32 %v2010, 3
        %vm2012 = vcmp.lt.s32.totalorder %v2011, 2
        %vm2013 = vcmp.eq.s32.totalorder %v2011, 0
        %v2014 = vxor.u32 %v2008, 2147483648
        %v2015 = vsel %vm2013, %v2007, %v2014
        %vm2016 = vcmp.eq.s32.totalorder %v2011, 2
        %v2017 = vxor.u32 %v2007, 2147483648
        %v2018 = vsel %vm2016, %v2017, %v2008
        %v2019 = vsel %vm2012, %v2015, %v2018
        %v2020 = vsel %vm2009, nan, %v2019
        %v2021 = vand.u32 2147483647, %v1904
        %vm2022 = vcmp.le.f32.partialorder %v2021, 0.7853982
        %vm2023 = vcmp.lt.s32.totalorder %v1904, 0
        %v2024 = vand.u32 %v1904, 2139095040
        %v2025 = vshrl.u32 %v2024, 23
        %v2026 = vsub.s32 %v2025, 127
        %v2027 = vand.u32 2147483647, %v1904
        %v2028 = vand.u32 %v2027, 8388607
        %v2029 = vor.u32 %v2028, 8388608
        %v2030 = vsub.s32 0, %v2029
        %v2031 = vadd.s32 %v2026, 1
        %vm2032 = vcmp.gt.s32.totalorder %v2031, 0
        %v2033 = vsel %vm2032, %v2031, 0
        %v2034 = vshrl.u32 %v2033, 5
        %v2035 = vand.u32 %v2033, 31
        %v2036 = vsub.s32 32, %v2035
        %v2037 = vshrl.u32 683565275, %v2036
        %v2038 = vshll.u32 683565275, %v2035
        %v2039 = vshrl.u32 2475754826, %v2036
        %v2040 = vor.u32 %v2038, %v2039
        %v2041 = vshll.u32 2475754826, %v2035
        %v2042 = vshrl.u32 2131351028, %v2036
        %v2043 = vor.u32 %v2041, %v2042
        %v2044 = vshll.u32 2131351028, %v2035
        %v2045 = vshrl.u32 2102212464, %v2036
        %v2046 = vor.u32 %v2044, %v2045
        %v2047 = vshll.u32 2102212464, %v2035
        %v2048 = vshrl.u32 920167782, %v2036
        %v2049 = vor.u32 %v2047, %v2048
        %v2050 = vshll.u32 920167782, %v2035
        %v2051 = vshrl.u32 1326507024, %v2036
        %v2052 = vor.u32 %v2050, %v2051
        %vm2053 = vcmp.lt.s32.totalorder %v2034, 1
        %vm2054 = vcmp.lt.s32.totalorder %v2034, 2
        %vm2055 = vcmp.lt.s32.totalorder %v2034, 3
        %vm2056 = vcmp.lt.s32.totalorder %v2034, 4
        %v2057 = vsel %vm2053, %v2037, %v2040
        %v2058 = vsel %vm2056, %v2046, 2102212464
        %v2059 = vsel %vm2055, %v2043, %v2058
        %v2060 = vsel %vm2054, %v2057, %v2059
        %v2061 = vsel %vm2053, %v2040, %v2043
        %v2062 = vsel %vm2056, %v2049, 920167782
        %v2063 = vsel %vm2055, %v2046, %v2062
        %v2064 = vsel %vm2054, %v2061, %v2063
        %v2065 = vsel %vm2053, %v2043, %v2046
        %v2066 = vsel %vm2056, %v2052, 1326507024
        %v2067 = vsel %vm2055, %v2049, %v2066
        %v2068 = vsel %vm2054, %v2065, %v2067
        %v2069 = vshll.u32 %v2029, 8
        %v2070 = vmul.u32.u64.compose %v2069, %v2068
        %v2071 = vextract.low.u32 %v2070
        %v2072 = vextract.high.u32 %v2070
        %v2073 = vmul.u32.u64.compose %v2069, %v2064
        %v2074 = vextract.low.u32 %v2073
        %v2075 = vextract.high.u32 %v2073
        %v2076 = vmul.u32 %v2069, %v2060
        %v2077 = vadd.s32 %v2072, %v2074
        %vm2078 = vc.u32 %v2072, %v2074
        %v2079 = vadd.s32 %v2075, 1
        %v2080 = vsel %vm2078, %v2079, %v2075
        %v2081 = vadd.s32 %v2076, %v2080
        %v2082 = vadd.s32 %v2081, 536870912
        %v2083 = vshrl.u32 %v2082, 30
        %v2084 = vshll.u32 %v2083, 30
        %v2085 = vsub.s32 %v2081, %v2084
        %vm2086 = vcmp.lt.s32.totalorder %v2085, 0
        %v2087 = vsub.s32 0, %v2085
        %v2088 = vsel %vm2086, %v2087, %v2085
        %v2089 = vclz %v2088
        %v2090 = vsub.s32 %v2089, 2
        %vm2091 = vcmp.gt.s32.totalorder 0, %v2090
        %v2092 = vsel %vm2091, 0, %v2090
        %v2093 = vsub.s32 32, %v2092
        %v2094 = vshll.u32 %v2085, %v2092
        %v2095 = vshrl.u32 %v2077, %v2093
        %v2096 = vor.u32 %v2094, %v2095
        %v2097 = vsub.s32 4294967266, %v2092
        %v2098 = vadd.s32 %v2097, 127
        %v2099 = vshll.u32 %v2098, 23
        %v2100 = vor.u32 4788187, %v2099
        %v2101 = vand.u32 2147483647, %v2100
        %v2103 = vcvt.s32.f32 %v2096
        %v2104 = vmul.f32 %v2103, %v2101
        %v2105 = vxor.u32 %v2104, 2147483648
        %v2106 = vsel %vm2023, %v2105, %v2104
        %v2107 = vsub.s32 4, %v2083
        %v2108 = vsel %vm2023, %v2107, %v2083
        %v2109 = vsel %vm2022, %v1904, %v2106
        %v2110 = vsel %vm2022, 0, %v2108
        %v2111 = vcosq.f32.pop %v2109
        %v2112 = vsinq.f32.pop %v2109
        %vm2113 = vweird.f32 %v1904
        %v2114 = vadd.s32 %v2110, 3
        %v2115 = vand.u32 %v2114, 3
        %vm2116 = vcmp.lt.s32.totalorder %v2115, 2
        %vm2117 = vcmp.eq.s32.totalorder %v2115, 0
        %v2118 = vxor.u32 %v2112, 2147483648
        %v2119 = vsel %vm2117, %v2111, %v2118
        %vm2120 = vcmp.eq.s32.totalorder %v2115, 2
        %v2121 = vxor.u32 %v2111, 2147483648
        %v2122 = vsel %vm2120, %v2121, %v2112
        %v2123 = vsel %vm2116, %v2119, %v2122
        %v2124 = vsel %vm2113, nan, %v2123
        %v2125 = vand.u32 2147483647, %v1909
        %vm2126 = vcmp.le.f32.partialorder %v2125, 0.7853982
        %vm2127 = vcmp.lt.s32.totalorder %v1909, 0
        %v2128 = vand.u32 %v1909, 2139095040
        %v2129 = vshrl.u32 %v2128, 23
        %v2130 = vsub.s32 %v2129, 127
        %v2131 = vand.u32 2147483647, %v1909
        %v2132 = vand.u32 %v2131, 8388607
        %v2133 = vor.u32 %v2132, 8388608
        %v2134 = vsub.s32 0, %v2133
        %v2135 = vadd.s32 %v2130, 1
        %vm2136 = vcmp.gt.s32.totalorder %v2135, 0
        %v2137 = vsel %vm2136, %v2135, 0
        %v2138 = vshrl.u32 %v2137, 5
        %v2139 = vand.u32 %v2137, 31
        %v2140 = vsub.s32 32, %v2139
        %v2141 = vshrl.u32 683565275, %v2140
        %v2142 = vshll.u32 683565275, %v2139
        %v2143 = vshrl.u32 2475754826, %v2140
        %v2144 = vor.u32 %v2142, %v2143
        %v2145 = vshll.u32 2475754826, %v2139
        %v2146 = vshrl.u32 2131351028, %v2140
        %v2147 = vor.u32 %v2145, %v2146
        %v2148 = vshll.u32 2131351028, %v2139
        %v2149 = vshrl.u32 2102212464, %v2140
        %v2150 = vor.u32 %v2148, %v2149
        %v2151 = vshll.u32 2102212464, %v2139
        %v2152 = vshrl.u32 920167782, %v2140
        %v2153 = vor.u32 %v2151, %v2152
        %v2154 = vshll.u32 920167782, %v2139
        %v2155 = vshrl.u32 1326507024, %v2140
        %v2156 = vor.u32 %v2154, %v2155
        %vm2157 = vcmp.lt.s32.totalorder %v2138, 1
        %vm2158 = vcmp.lt.s32.totalorder %v2138, 2
        %vm2159 = vcmp.lt.s32.totalorder %v2138, 3
        %vm2160 = vcmp.lt.s32.totalorder %v2138, 4
        %v2161 = vsel %vm2157, %v2141, %v2144
        %v2162 = vsel %vm2160, %v2150, 2102212464
        %v2163 = vsel %vm2159, %v2147, %v2162
        %v2164 = vsel %vm2158, %v2161, %v2163
        %v2165 = vsel %vm2157, %v2144, %v2147
        %v2166 = vsel %vm2160, %v2153, 920167782
        %v2167 = vsel %vm2159, %v2150, %v2166
        %v2168 = vsel %vm2158, %v2165, %v2167
        %v2169 = vsel %vm2157, %v2147, %v2150
        %v2170 = vsel %vm2160, %v2156, 1326507024
        %v2171 = vsel %vm2159, %v2153, %v2170
        %v2172 = vsel %vm2158, %v2169, %v2171
        %v2173 = vshll.u32 %v2133, 8
        %v2174 = vmul.u32.u64.compose %v2173, %v2172
        %v2175 = vextract.low.u32 %v2174
        %v2176 = vextract.high.u32 %v2174
        %v2177 = vmul.u32.u64.compose %v2173, %v2168
        %v2178 = vextract.low.u32 %v2177
        %v2179 = vextract.high.u32 %v2177
        %v2180 = vmul.u32 %v2173, %v2164
        %v2181 = vadd.s32 %v2176, %v2178
        %vm2182 = vc.u32 %v2176, %v2178
        %v2183 = vadd.s32 %v2179, 1
        %v2184 = vsel %vm2182, %v2183, %v2179
        %v2185 = vadd.s32 %v2180, %v2184
        %v2186 = vadd.s32 %v2185, 536870912
        %v2187 = vshrl.u32 %v2186, 30
        %v2188 = vshll.u32 %v2187, 30
        %v2189 = vsub.s32 %v2185, %v2188
        %vm2190 = vcmp.lt.s32.totalorder %v2189, 0
        %v2191 = vsub.s32 0, %v2189
        %v2192 = vsel %vm2190, %v2191, %v2189
        %v2193 = vclz %v2192
        %v2194 = vsub.s32 %v2193, 2
        %vm2195 = vcmp.gt.s32.totalorder 0, %v2194
        %v2196 = vsel %vm2195, 0, %v2194
        %v2197 = vsub.s32 32, %v2196
        %v2198 = vshll.u32 %v2189, %v2196
        %v2199 = vshrl.u32 %v2181, %v2197
        %v2200 = vor.u32 %v2198, %v2199
        %v2201 = vsub.s32 4294967266, %v2196
        %v2202 = vadd.s32 %v2201, 127
        %v2203 = vshll.u32 %v2202, 23
        %v2204 = vor.u32 4788187, %v2203
        %v2205 = vand.u32 2147483647, %v2204
        %v2207 = vcvt.s32.f32 %v2200
        %v2208 = vmul.f32 %v2207, %v2205
        %v2209 = vxor.u32 %v2208, 2147483648
        %v2210 = vsel %vm2127, %v2209, %v2208
        %v2211 = vsub.s32 4, %v2187
        %v2212 = vsel %vm2127, %v2211, %v2187
        %v2213 = vsel %vm2126, %v1909, %v2210
        %v2214 = vsel %vm2126, 0, %v2212
        %v2215 = vcosq.f32.pop %v2213
        %v2216 = vsinq.f32.pop %v2213
        %vm2217 = vweird.f32 %v1909
        %v2218 = vadd.s32 %v2214, 3
        %v2219 = vand.u32 %v2218, 3
        %vm2220 = vcmp.lt.s32.totalorder %v2219, 2
        %vm2221 = vcmp.eq.s32.totalorder %v2219, 0
        %v2222 = vxor.u32 %v2216, 2147483648
        %v2223 = vsel %vm2221, %v2215, %v2222
        %vm2224 = vcmp.eq.s32.totalorder %v2219, 2
        %v2225 = vxor.u32 %v2215, 2147483648
        %v2226 = vsel %vm2224, %v2225, %v2216
        %v2227 = vsel %vm2220, %v2223, %v2226
        %v2228 = vsel %vm2217, nan, %v2227
        %v2229 = vand.u32 2147483647, %v1914
        %vm2230 = vcmp.le.f32.partialorder %v2229, 0.7853982
        %vm2231 = vcmp.lt.s32.totalorder %v1914, 0
        %v2232 = vand.u32 %v1914, 2139095040
        %v2233 = vshrl.u32 %v2232, 23
        %v2234 = vsub.s32 %v2233, 127
        %v2235 = vand.u32 2147483647, %v1914
        %v2236 = vand.u32 %v2235, 8388607
        %v2237 = vor.u32 %v2236, 8388608
        %v2238 = vsub.s32 0, %v2237
        %v2239 = vadd.s32 %v2234, 1
        %vm2240 = vcmp.gt.s32.totalorder %v2239, 0
        %v2241 = vsel %vm2240, %v2239, 0
        %v2242 = vshrl.u32 %v2241, 5
        %v2243 = vand.u32 %v2241, 31
        %v2244 = vsub.s32 32, %v2243
        %v2245 = vshrl.u32 683565275, %v2244
        %v2246 = vshll.u32 683565275, %v2243
        %v2247 = vshrl.u32 2475754826, %v2244
        %v2248 = vor.u32 %v2246, %v2247
        %v2249 = vshll.u32 2475754826, %v2243
        %v2250 = vshrl.u32 2131351028, %v2244
        %v2251 = vor.u32 %v2249, %v2250
        %v2252 = vshll.u32 2131351028, %v2243
        %v2253 = vshrl.u32 2102212464, %v2244
        %v2254 = vor.u32 %v2252, %v2253
        %v2255 = vshll.u32 2102212464, %v2243
        %v2256 = vshrl.u32 920167782, %v2244
        %v2257 = vor.u32 %v2255, %v2256
        %v2258 = vshll.u32 920167782, %v2243
        %v2259 = vshrl.u32 1326507024, %v2244
        %v2260 = vor.u32 %v2258, %v2259
        %vm2261 = vcmp.lt.s32.totalorder %v2242, 1
        %vm2262 = vcmp.lt.s32.totalorder %v2242, 2
        %vm2263 = vcmp.lt.s32.totalorder %v2242, 3
        %vm2264 = vcmp.lt.s32.totalorder %v2242, 4
        %v2265 = vsel %vm2261, %v2245, %v2248
        %v2266 = vsel %vm2264, %v2254, 2102212464
        %v2267 = vsel %vm2263, %v2251, %v2266
        %v2268 = vsel %vm2262, %v2265, %v2267
        %v2269 = vsel %vm2261, %v2248, %v2251
        %v2270 = vsel %vm2264, %v2257, 920167782
        %v2271 = vsel %vm2263, %v2254, %v2270
        %v2272 = vsel %vm2262, %v2269, %v2271
        %v2273 = vsel %vm2261, %v2251, %v2254
        %v2274 = vsel %vm2264, %v2260, 1326507024
        %v2275 = vsel %vm2263, %v2257, %v2274
        %v2276 = vsel %vm2262, %v2273, %v2275
        %v2277 = vshll.u32 %v2237, 8
        %v2278 = vmul.u32.u64.compose %v2277, %v2276
        %v2279 = vextract.low.u32 %v2278
        %v2280 = vextract.high.u32 %v2278
        %v2281 = vmul.u32.u64.compose %v2277, %v2272
        %v2282 = vextract.low.u32 %v2281
        %v2283 = vextract.high.u32 %v2281
        %v2284 = vmul.u32 %v2277, %v2268
        %v2285 = vadd.s32 %v2280, %v2282
        %vm2286 = vc.u32 %v2280, %v2282
        %v2287 = vadd.s32 %v2283, 1
        %v2288 = vsel %vm2286, %v2287, %v2283
        %v2289 = vadd.s32 %v2284, %v2288
        %v2290 = vadd.s32 %v2289, 536870912
        %v2291 = vshrl.u32 %v2290, 30
        %v2292 = vshll.u32 %v2291, 30
        %v2293 = vsub.s32 %v2289, %v2292
        %vm2294 = vcmp.lt.s32.totalorder %v2293, 0
        %v2295 = vsub.s32 0, %v2293
        %v2296 = vsel %vm2294, %v2295, %v2293
        %v2297 = vclz %v2296
        %v2298 = vsub.s32 %v2297, 2
        %vm2299 = vcmp.gt.s32.totalorder 0, %v2298
        %v2300 = vsel %vm2299, 0, %v2298
        %v2301 = vsub.s32 32, %v2300
        %v2302 = vshll.u32 %v2293, %v2300
        %v2303 = vshrl.u32 %v2285, %v2301
        %v2304 = vor.u32 %v2302, %v2303
        %v2305 = vsub.s32 4294967266, %v2300
        %v2306 = vadd.s32 %v2305, 127
        %v2307 = vshll.u32 %v2306, 23
        %v2308 = vor.u32 4788187, %v2307
        %v2309 = vand.u32 2147483647, %v2308
        %v2311 = vcvt.s32.f32 %v2304
        %v2312 = vmul.f32 %v2311, %v2309
        %v2313 = vxor.u32 %v2312, 2147483648
        %v2314 = vsel %vm2231, %v2313, %v2312
        %v2315 = vsub.s32 4, %v2291
        %v2316 = vsel %vm2231, %v2315, %v2291
        %v2317 = vsel %vm2230, %v1914, %v2314
        %v2318 = vsel %vm2230, 0, %v2316
        %v2319 = vcosq.f32.pop %v2317
        %v2320 = vsinq.f32.pop %v2317
        %vm2321 = vweird.f32 %v1914
        %v2322 = vadd.s32 %v2318, 3
        %v2323 = vand.u32 %v2322, 3
        %vm2324 = vcmp.lt.s32.totalorder %v2323, 2
        %vm2325 = vcmp.eq.s32.totalorder %v2323, 0
        %v2326 = vxor.u32 %v2320, 2147483648
        %v2327 = vsel %vm2325, %v2319, %v2326
        %vm2328 = vcmp.eq.s32.totalorder %v2323, 2
        %v2329 = vxor.u32 %v2319, 2147483648
        %v2330 = vsel %vm2328, %v2329, %v2320
        %v2331 = vsel %vm2324, %v2327, %v2330
        %v2332 = vsel %vm2321, nan, %v2331
        %2334 = vset.pattern.permute.xlu0 0
        %2335 = vperm.xlu0 %2334, %v319
        %v2336 = vpop.permute.xlu0 %2335
        %2339 = vset.pattern.permute.xlu0 0
        %2340 = vperm.xlu0 %2339, %v320
        %v2341 = vpop.permute.xlu0 %2340
        %2344 = vset.pattern.permute.xlu0 0
        %2345 = vperm.xlu0 %2344, %v321
        %v2346 = vpop.permute.xlu0 %2345
        %2349 = vset.pattern.permute.xlu0 0
        %2350 = vperm.xlu0 %2349, %v322
        %v2351 = vpop.permute.xlu0 %2350
        %v2354 = vsel %vm1318, %v295, 0
        %v2357 = vsel %vm1318, %v296, 0
        %v2360 = vsel %vm1318, %v297, 0
        %v2363 = vsel %vm1318, %v298, 0
        %2365 = vmatprep.subr.mxu0 0.0
        %2366 = vmatpush1.msra.mxu0 %v1519
        %2367 = vmatprep.subr.mxu0 0.0
        %2368 = vmatpush1.msra.mxu0 %v1623
        %2369 = vmatprep.subr.mxu0 0.0
        %2370 = vmatpush1.msra.mxu0 %v1727
        %2371 = vmatprep.subr.mxu0 0.0
        %2372 = vmatpush1.msra.mxu0 %v1831
        %2373 = vmatprep.subr.mxu0 0.0
        %2374 = vmatpush1.msra.mxu0 0.0
        %2375 = vmatprep.subr.mxu0 0.0
        %2376 = vmatpush1.msra.mxu0 0.0
        %2377 = vmatprep.subr.mxu0 0.0
        %2378 = vmatpush1.msra.mxu0 0.0
        %2379 = vmatprep.subr.mxu0 0.0
        %2380 = vmatpush1.msra.mxu0 0.0
        %2381 = vmatprep.subr.mxu0 0.0
        %2382 = vmatpush1.msra.mxu0 0.0
        %2383 = vmatprep.subr.mxu0 0.0
        %2384 = vmatpush1.msra.mxu0 0.0
        %2385 = vmatprep.subr.mxu0 0.0
        %2386 = vmatpush1.msra.mxu0 0.0
        %2387 = vmatprep.subr.mxu0 0.0
        %2388 = vmatpush1.msra.mxu0 0.0
        %2389 = vmatprep.subr.mxu0 0.0
        %2390 = vmatpush1.msra.mxu0 0.0
        %2391 = vmatprep.subr.mxu0 0.0
        %2392 = vmatpush1.msra.mxu0 0.0
        %2393 = vmatprep.subr.mxu0 0.0
        %2394 = vmatpush1.msra.mxu0 0.0
        %2395 = vmatprep.subr.mxu0 0.0
        %2396 = vmatpush1.msra.mxu0 0.0
        %2397 = vmatprep.subr.mxu0 0.0
        %2398 = vmatpush1.msra.mxu0 0.0
        %2399 = vmatprep.subr.mxu0 0.0
        %2400 = vmatpush1.msra.mxu0 0.0
        %2401 = vmatprep.subr.mxu0 0.0
        %2402 = vmatpush1.msra.mxu0 0.0
        %2403 = vmatprep.subr.mxu0 0.0
        %2404 = vmatpush1.msra.mxu0 0.0
        %2405 = vmatprep.subr.mxu0 0.0
        %2406 = vmatpush1.msra.mxu0 0.0
        %2407 = vmatprep.subr.mxu0 0.0
        %2408 = vmatpush1.msra.mxu0 0.0
        %2409 = vmatprep.subr.mxu0 0.0
        %2410 = vmatpush1.msra.mxu0 0.0
        %2411 = vmatprep.subr.mxu0 0.0
        %2412 = vmatpush1.msra.mxu0 0.0
        %2413 = vmatprep.subr.mxu0 0.0
        %2414 = vmatpush1.msra.mxu0 0.0
        %2415 = vmatprep.subr.mxu0 0.0
        %2416 = vmatpush1.msra.mxu0 0.0
        %2417 = vmatprep.subr.mxu0 0.0
        %2418 = vmatpush1.msra.mxu0 0.0
        %2419 = vmatprep.subr.mxu0 0.0
        %2420 = vmatpush1.msra.mxu0 0.0
        %2421 = vmatprep.subr.mxu0 0.0
        %2422 = vmatpush1.msra.mxu0 0.0
        %2423 = vmatprep.subr.mxu0 0.0
        %2424 = vmatpush1.msra.mxu0 0.0
        %2425 = vmatprep.subr.mxu0 0.0
        %2426 = vmatpush1.msra.mxu0 0.0
        %2427 = vmatprep.subr.mxu0 0.0
        %2428 = vmatpush1.msra.mxu0 0.0
        %2429 = vmatprep.mubr.f32.mxu0 0.0
        %2430 = vmatmul.mubr.f32.gmra.mrb[0].mxu0 %v2354
        %v2431 = vpop.f32.mrb[0].mxu0
        %v2432 = vadd.f32 %v2336, %v2431
        %v2433 = vpop.f32.mrb[0].mxu0
        %2434 = vmatprep.mubr.f32.mxu0 0.0
        %2435 = vmatmul.mubr.f32.gmra.mrb[0].mxu0 %v2357
        %v2436 = vpop.f32.mrb[0].mxu0
        %v2437 = vadd.f32 %v2341, %v2436
        %v2438 = vpop.f32.mrb[0].mxu0
        %2439 = vmatprep.mubr.f32.mxu0 0.0
        %2440 = vmatmul.mubr.f32.gmra.mrb[0].mxu0 %v2360
        %v2441 = vpop.f32.mrb[0].mxu0
        %v2442 = vadd.f32 %v2346, %v2441
        %v2443 = vpop.f32.mrb[0].mxu0
        %2444 = vmatprep.mubr.f32.mxu0 0.0
        %2445 = vmatmul.mubr.f32.gmra.mrb[0].mxu0 %v2363
        %v2446 = vpop.f32.mrb[0].mxu0
        %v2447 = vadd.f32 %v2351, %v2446
        %v2448 = vpop.f32.mrb[0].mxu0
        %2449 = vdwg.mxu0
        %v2450 = vand.u32 2147483647, %v2432
        %vm2451 = vcmp.le.f32.partialorder %v2450, 0.7853982
        %vm2452 = vcmp.lt.s32.totalorder %v2432, 0
        %v2453 = vand.u32 %v2432, 2139095040
        %v2454 = vshrl.u32 %v2453, 23
        %v2455 = vsub.s32 %v2454, 127
        %v2456 = vand.u32 2147483647, %v2432
        %v2457 = vand.u32 %v2456, 8388607
        %v2458 = vor.u32 %v2457, 8388608
        %v2459 = vsub.s32 0, %v2458
        %v2460 = vadd.s32 %v2455, 1
        %vm2461 = vcmp.gt.s32.totalorder %v2460, 0
        %v2462 = vsel %vm2461, %v2460, 0
        %v2463 = vshrl.u32 %v2462, 5
        %v2464 = vand.u32 %v2462, 31
        %v2465 = vsub.s32 32, %v2464
        %v2466 = vshrl.u32 683565275, %v2465
        %v2467 = vshll.u32 683565275, %v2464
        %v2468 = vshrl.u32 2475754826, %v2465
        %v2469 = vor.u32 %v2467, %v2468
        %v2470 = vshll.u32 2475754826, %v2464
        %v2471 = vshrl.u32 2131351028, %v2465
        %v2472 = vor.u32 %v2470, %v2471
        %v2473 = vshll.u32 2131351028, %v2464
        %v2474 = vshrl.u32 2102212464, %v2465
        %v2475 = vor.u32 %v2473, %v2474
        %v2476 = vshll.u32 2102212464, %v2464
        %v2477 = vshrl.u32 920167782, %v2465
        %v2478 = vor.u32 %v2476, %v2477
        %v2479 = vshll.u32 920167782, %v2464
        %v2480 = vshrl.u32 1326507024, %v2465
        %v2481 = vor.u32 %v2479, %v2480
        %vm2482 = vcmp.lt.s32.totalorder %v2463, 1
        %vm2483 = vcmp.lt.s32.totalorder %v2463, 2
        %vm2484 = vcmp.lt.s32.totalorder %v2463, 3
        %vm2485 = vcmp.lt.s32.totalorder %v2463, 4
        %v2486 = vsel %vm2482, %v2466, %v2469
        %v2487 = vsel %vm2485, %v2475, 2102212464
        %v2488 = vsel %vm2484, %v2472, %v2487
        %v2489 = vsel %vm2483, %v2486, %v2488
        %v2490 = vsel %vm2482, %v2469, %v2472
        %v2491 = vsel %vm2485, %v2478, 920167782
        %v2492 = vsel %vm2484, %v2475, %v2491
        %v2493 = vsel %vm2483, %v2490, %v2492
        %v2494 = vsel %vm2482, %v2472, %v2475
        %v2495 = vsel %vm2485, %v2481, 1326507024
        %v2496 = vsel %vm2484, %v2478, %v2495
        %v2497 = vsel %vm2483, %v2494, %v2496
        %v2498 = vshll.u32 %v2458, 8
        %v2499 = vmul.u32.u64.compose %v2498, %v2497
        %v2500 = vextract.low.u32 %v2499
        %v2501 = vextract.high.u32 %v2499
        %v2502 = vmul.u32.u64.compose %v2498, %v2493
        %v2503 = vextract.low.u32 %v2502
        %v2504 = vextract.high.u32 %v2502
        %v2505 = vmul.u32 %v2498, %v2489
        %v2506 = vadd.s32 %v2501, %v2503
        %vm2507 = vc.u32 %v2501, %v2503
        %v2508 = vadd.s32 %v2504, 1
        %v2509 = vsel %vm2507, %v2508, %v2504
        %v2510 = vadd.s32 %v2505, %v2509
        %v2511 = vadd.s32 %v2510, 536870912
        %v2512 = vshrl.u32 %v2511, 30
        %v2513 = vshll.u32 %v2512, 30
        %v2514 = vsub.s32 %v2510, %v2513
        %vm2515 = vcmp.lt.s32.totalorder %v2514, 0
        %v2516 = vsub.s32 0, %v2514
        %v2517 = vsel %vm2515, %v2516, %v2514
        %v2518 = vclz %v2517
        %v2519 = vsub.s32 %v2518, 2
        %vm2520 = vcmp.gt.s32.totalorder 0, %v2519
        %v2521 = vsel %vm2520, 0, %v2519
        %v2522 = vsub.s32 32, %v2521
        %v2523 = vshll.u32 %v2514, %v2521
        %v2524 = vshrl.u32 %v2506, %v2522
        %v2525 = vor.u32 %v2523, %v2524
        %v2526 = vsub.s32 4294967266, %v2521
        %v2527 = vadd.s32 %v2526, 127
        %v2528 = vshll.u32 %v2527, 23
        %v2529 = vor.u32 4788187, %v2528
        %v2530 = vand.u32 2147483647, %v2529
        %v2532 = vcvt.s32.f32 %v2525
        %v2533 = vmul.f32 %v2532, %v2530
        %v2534 = vxor.u32 %v2533, 2147483648
        %v2535 = vsel %vm2452, %v2534, %v2533
        %v2536 = vsub.s32 4, %v2512
        %v2537 = vsel %vm2452, %v2536, %v2512
        %v2538 = vsel %vm2451, %v2432, %v2535
        %v2539 = vsel %vm2451, 0, %v2537
        %v2540 = vcosq.f32.pop %v2538
        %v2541 = vsinq.f32.pop %v2538
        %vm2542 = vweird.f32 %v2432
        %v2543 = vadd.s32 %v2539, 3
        %v2544 = vand.u32 %v2543, 3
        %vm2545 = vcmp.lt.s32.totalorder %v2544, 2
        %vm2546 = vcmp.eq.s32.totalorder %v2544, 0
        %v2547 = vxor.u32 %v2541, 2147483648
        %v2548 = vsel %vm2546, %v2540, %v2547
        %vm2549 = vcmp.eq.s32.totalorder %v2544, 2
        %v2550 = vxor.u32 %v2540, 2147483648
        %v2551 = vsel %vm2549, %v2550, %v2541
        %v2552 = vsel %vm2545, %v2548, %v2551
        %v2553 = vsel %vm2542, nan, %v2552
        %v2554 = vand.u32 2147483647, %v2437
        %vm2555 = vcmp.le.f32.partialorder %v2554, 0.7853982
        %vm2556 = vcmp.lt.s32.totalorder %v2437, 0
        %v2557 = vand.u32 %v2437, 2139095040
        %v2558 = vshrl.u32 %v2557, 23
        %v2559 = vsub.s32 %v2558, 127
        %v2560 = vand.u32 2147483647, %v2437
        %v2561 = vand.u32 %v2560, 8388607
        %v2562 = vor.u32 %v2561, 8388608
        %v2563 = vsub.s32 0, %v2562
        %v2564 = vadd.s32 %v2559, 1
        %vm2565 = vcmp.gt.s32.totalorder %v2564, 0
        %v2566 = vsel %vm2565, %v2564, 0
        %v2567 = vshrl.u32 %v2566, 5
        %v2568 = vand.u32 %v2566, 31
        %v2569 = vsub.s32 32, %v2568
        %v2570 = vshrl.u32 683565275, %v2569
        %v2571 = vshll.u32 683565275, %v2568
        %v2572 = vshrl.u32 2475754826, %v2569
        %v2573 = vor.u32 %v2571, %v2572
        %v2574 = vshll.u32 2475754826, %v2568
        %v2575 = vshrl.u32 2131351028, %v2569
        %v2576 = vor.u32 %v2574, %v2575
        %v2577 = vshll.u32 2131351028, %v2568
        %v2578 = vshrl.u32 2102212464, %v2569
        %v2579 = vor.u32 %v2577, %v2578
        %v2580 = vshll.u32 2102212464, %v2568
        %v2581 = vshrl.u32 920167782, %v2569
        %v2582 = vor.u32 %v2580, %v2581
        %v2583 = vshll.u32 920167782, %v2568
        %v2584 = vshrl.u32 1326507024, %v2569
        %v2585 = vor.u32 %v2583, %v2584
        %vm2586 = vcmp.lt.s32.totalorder %v2567, 1
        %vm2587 = vcmp.lt.s32.totalorder %v2567, 2
        %vm2588 = vcmp.lt.s32.totalorder %v2567, 3
        %vm2589 = vcmp.lt.s32.totalorder %v2567, 4
        %v2590 = vsel %vm2586, %v2570, %v2573
        %v2591 = vsel %vm2589, %v2579, 2102212464
        %v2592 = vsel %vm2588, %v2576, %v2591
        %v2593 = vsel %vm2587, %v2590, %v2592
        %v2594 = vsel %vm2586, %v2573, %v2576
        %v2595 = vsel %vm2589, %v2582, 920167782
        %v2596 = vsel %vm2588, %v2579, %v2595
        %v2597 = vsel %vm2587, %v2594, %v2596
        %v2598 = vsel %vm2586, %v2576, %v2579
        %v2599 = vsel %vm2589, %v2585, 1326507024
        %v2600 = vsel %vm2588, %v2582, %v2599
        %v2601 = vsel %vm2587, %v2598, %v2600
        %v2602 = vshll.u32 %v2562, 8
        %v2603 = vmul.u32.u64.compose %v2602, %v2601
        %v2604 = vextract.low.u32 %v2603
        %v2605 = vextract.high.u32 %v2603
        %v2606 = vmul.u32.u64.compose %v2602, %v2597
        %v2607 = vextract.low.u32 %v2606
        %v2608 = vextract.high.u32 %v2606
        %v2609 = vmul.u32 %v2602, %v2593
        %v2610 = vadd.s32 %v2605, %v2607
        %vm2611 = vc.u32 %v2605, %v2607
        %v2612 = vadd.s32 %v2608, 1
        %v2613 = vsel %vm2611, %v2612, %v2608
        %v2614 = vadd.s32 %v2609, %v2613
        %v2615 = vadd.s32 %v2614, 536870912
        %v2616 = vshrl.u32 %v2615, 30
        %v2617 = vshll.u32 %v2616, 30
        %v2618 = vsub.s32 %v2614, %v2617
        %vm2619 = vcmp.lt.s32.totalorder %v2618, 0
        %v2620 = vsub.s32 0, %v2618
        %v2621 = vsel %vm2619, %v2620, %v2618
        %v2622 = vclz %v2621
        %v2623 = vsub.s32 %v2622, 2
        %vm2624 = vcmp.gt.s32.totalorder 0, %v2623
        %v2625 = vsel %vm2624, 0, %v2623
        %v2626 = vsub.s32 32, %v2625
        %v2627 = vshll.u32 %v2618, %v2625
        %v2628 = vshrl.u32 %v2610, %v2626
        %v2629 = vor.u32 %v2627, %v2628
        %v2630 = vsub.s32 4294967266, %v2625
        %v2631 = vadd.s32 %v2630, 127
        %v2632 = vshll.u32 %v2631, 23
        %v2633 = vor.u32 4788187, %v2632
        %v2634 = vand.u32 2147483647, %v2633
        %v2636 = vcvt.s32.f32 %v2629
        %v2637 = vmul.f32 %v2636, %v2634
        %v2638 = vxor.u32 %v2637, 2147483648
        %v2639 = vsel %vm2556, %v2638, %v2637
        %v2640 = vsub.s32 4, %v2616
        %v2641 = vsel %vm2556, %v2640, %v2616
        %v2642 = vsel %vm2555, %v2437, %v2639
        %v2643 = vsel %vm2555, 0, %v2641
        %v2644 = vcosq.f32.pop %v2642
        %v2645 = vsinq.f32.pop %v2642
        %vm2646 = vweird.f32 %v2437
        %v2647 = vadd.s32 %v2643, 3
        %v2648 = vand.u32 %v2647, 3
        %vm2649 = vcmp.lt.s32.totalorder %v2648, 2
        %vm2650 = vcmp.eq.s32.totalorder %v2648, 0
        %v2651 = vxor.u32 %v2645, 2147483648
        %v2652 = vsel %vm2650, %v2644, %v2651
        %vm2653 = vcmp.eq.s32.totalorder %v2648, 2
        %v2654 = vxor.u32 %v2644, 2147483648
        %v2655 = vsel %vm2653, %v2654, %v2645
        %v2656 = vsel %vm2649, %v2652, %v2655
        %v2657 = vsel %vm2646, nan, %v2656
        %v2658 = vand.u32 2147483647, %v2442
        %vm2659 = vcmp.le.f32.partialorder %v2658, 0.7853982
        %vm2660 = vcmp.lt.s32.totalorder %v2442, 0
        %v2661 = vand.u32 %v2442, 2139095040
        %v2662 = vshrl.u32 %v2661, 23
        %v2663 = vsub.s32 %v2662, 127
        %v2664 = vand.u32 2147483647, %v2442
        %v2665 = vand.u32 %v2664, 8388607
        %v2666 = vor.u32 %v2665, 8388608
        %v2667 = vsub.s32 0, %v2666
        %v2668 = vadd.s32 %v2663, 1
        %vm2669 = vcmp.gt.s32.totalorder %v2668, 0
        %v2670 = vsel %vm2669, %v2668, 0
        %v2671 = vshrl.u32 %v2670, 5
        %v2672 = vand.u32 %v2670, 31
        %v2673 = vsub.s32 32, %v2672
        %v2674 = vshrl.u32 683565275, %v2673
        %v2675 = vshll.u32 683565275, %v2672
        %v2676 = vshrl.u32 2475754826, %v2673
        %v2677 = vor.u32 %v2675, %v2676
        %v2678 = vshll.u32 2475754826, %v2672
        %v2679 = vshrl.u32 2131351028, %v2673
        %v2680 = vor.u32 %v2678, %v2679
        %v2681 = vshll.u32 2131351028, %v2672
        %v2682 = vshrl.u32 2102212464, %v2673
        %v2683 = vor.u32 %v2681, %v2682
        %v2684 = vshll.u32 2102212464, %v2672
        %v2685 = vshrl.u32 920167782, %v2673
        %v2686 = vor.u32 %v2684, %v2685
        %v2687 = vshll.u32 920167782, %v2672
        %v2688 = vshrl.u32 1326507024, %v2673
        %v2689 = vor.u32 %v2687, %v2688
        %vm2690 = vcmp.lt.s32.totalorder %v2671, 1
        %vm2691 = vcmp.lt.s32.totalorder %v2671, 2
        %vm2692 = vcmp.lt.s32.totalorder %v2671, 3
        %vm2693 = vcmp.lt.s32.totalorder %v2671, 4
        %v2694 = vsel %vm2690, %v2674, %v2677
        %v2695 = vsel %vm2693, %v2683, 2102212464
        %v2696 = vsel %vm2692, %v2680, %v2695
        %v2697 = vsel %vm2691, %v2694, %v2696
        %v2698 = vsel %vm2690, %v2677, %v2680
        %v2699 = vsel %vm2693, %v2686, 920167782
        %v2700 = vsel %vm2692, %v2683, %v2699
        %v2701 = vsel %vm2691, %v2698, %v2700
        %v2702 = vsel %vm2690, %v2680, %v2683
        %v2703 = vsel %vm2693, %v2689, 1326507024
        %v2704 = vsel %vm2692, %v2686, %v2703
        %v2705 = vsel %vm2691, %v2702, %v2704
        %v2706 = vshll.u32 %v2666, 8
        %v2707 = vmul.u32.u64.compose %v2706, %v2705
        %v2708 = vextract.low.u32 %v2707
        %v2709 = vextract.high.u32 %v2707
        %v2710 = vmul.u32.u64.compose %v2706, %v2701
        %v2711 = vextract.low.u32 %v2710
        %v2712 = vextract.high.u32 %v2710
        %v2713 = vmul.u32 %v2706, %v2697
        %v2714 = vadd.s32 %v2709, %v2711
        %vm2715 = vc.u32 %v2709, %v2711
        %v2716 = vadd.s32 %v2712, 1
        %v2717 = vsel %vm2715, %v2716, %v2712
        %v2718 = vadd.s32 %v2713, %v2717
        %v2719 = vadd.s32 %v2718, 536870912
        %v2720 = vshrl.u32 %v2719, 30
        %v2721 = vshll.u32 %v2720, 30
        %v2722 = vsub.s32 %v2718, %v2721
        %vm2723 = vcmp.lt.s32.totalorder %v2722, 0
        %v2724 = vsub.s32 0, %v2722
        %v2725 = vsel %vm2723, %v2724, %v2722
        %v2726 = vclz %v2725
        %v2727 = vsub.s32 %v2726, 2
        %vm2728 = vcmp.gt.s32.totalorder 0, %v2727
        %v2729 = vsel %vm2728, 0, %v2727
        %v2730 = vsub.s32 32, %v2729
        %v2731 = vshll.u32 %v2722, %v2729
        %v2732 = vshrl.u32 %v2714, %v2730
        %v2733 = vor.u32 %v2731, %v2732
        %v2734 = vsub.s32 4294967266, %v2729
        %v2735 = vadd.s32 %v2734, 127
        %v2736 = vshll.u32 %v2735, 23
        %v2737 = vor.u32 4788187, %v2736
        %v2738 = vand.u32 2147483647, %v2737
        %v2740 = vcvt.s32.f32 %v2733
        %v2741 = vmul.f32 %v2740, %v2738
        %v2742 = vxor.u32 %v2741, 2147483648
        %v2743 = vsel %vm2660, %v2742, %v2741
        %v2744 = vsub.s32 4, %v2720
        %v2745 = vsel %vm2660, %v2744, %v2720
        %v2746 = vsel %vm2659, %v2442, %v2743
        %v2747 = vsel %vm2659, 0, %v2745
        %v2748 = vcosq.f32.pop %v2746
        %v2749 = vsinq.f32.pop %v2746
        %vm2750 = vweird.f32 %v2442
        %v2751 = vadd.s32 %v2747, 3
        %v2752 = vand.u32 %v2751, 3
        %vm2753 = vcmp.lt.s32.totalorder %v2752, 2
        %vm2754 = vcmp.eq.s32.totalorder %v2752, 0
        %v2755 = vxor.u32 %v2749, 2147483648
        %v2756 = vsel %vm2754, %v2748, %v2755
        %vm2757 = vcmp.eq.s32.totalorder %v2752, 2
        %v2758 = vxor.u32 %v2748, 2147483648
        %v2759 = vsel %vm2757, %v2758, %v2749
        %v2760 = vsel %vm2753, %v2756, %v2759
        %v2761 = vsel %vm2750, nan, %v2760
        %v2762 = vand.u32 2147483647, %v2447
        %vm2763 = vcmp.le.f32.partialorder %v2762, 0.7853982
        %vm2764 = vcmp.lt.s32.totalorder %v2447, 0
        %v2765 = vand.u32 %v2447, 2139095040
        %v2766 = vshrl.u32 %v2765, 23
        %v2767 = vsub.s32 %v2766, 127
        %v2768 = vand.u32 2147483647, %v2447
        %v2769 = vand.u32 %v2768, 8388607
        %v2770 = vor.u32 %v2769, 8388608
        %v2771 = vsub.s32 0, %v2770
        %v2772 = vadd.s32 %v2767, 1
        %vm2773 = vcmp.gt.s32.totalorder %v2772, 0
        %v2774 = vsel %vm2773, %v2772, 0
        %v2775 = vshrl.u32 %v2774, 5
        %v2776 = vand.u32 %v2774, 31
        %v2777 = vsub.s32 32, %v2776
        %v2778 = vshrl.u32 683565275, %v2777
        %v2779 = vshll.u32 683565275, %v2776
        %v2780 = vshrl.u32 2475754826, %v2777
        %v2781 = vor.u32 %v2779, %v2780
        %v2782 = vshll.u32 2475754826, %v2776
        %v2783 = vshrl.u32 2131351028, %v2777
        %v2784 = vor.u32 %v2782, %v2783
        %v2785 = vshll.u32 2131351028, %v2776
        %v2786 = vshrl.u32 2102212464, %v2777
        %v2787 = vor.u32 %v2785, %v2786
        %v2788 = vshll.u32 2102212464, %v2776
        %v2789 = vshrl.u32 920167782, %v2777
        %v2790 = vor.u32 %v2788, %v2789
        %v2791 = vshll.u32 920167782, %v2776
        %v2792 = vshrl.u32 1326507024, %v2777
        %v2793 = vor.u32 %v2791, %v2792
        %vm2794 = vcmp.lt.s32.totalorder %v2775, 1
        %vm2795 = vcmp.lt.s32.totalorder %v2775, 2
        %vm2796 = vcmp.lt.s32.totalorder %v2775, 3
        %vm2797 = vcmp.lt.s32.totalorder %v2775, 4
        %v2798 = vsel %vm2794, %v2778, %v2781
        %v2799 = vsel %vm2797, %v2787, 2102212464
        %v2800 = vsel %vm2796, %v2784, %v2799
        %v2801 = vsel %vm2795, %v2798, %v2800
        %v2802 = vsel %vm2794, %v2781, %v2784
        %v2803 = vsel %vm2797, %v2790, 920167782
        %v2804 = vsel %vm2796, %v2787, %v2803
        %v2805 = vsel %vm2795, %v2802, %v2804
        %v2806 = vsel %vm2794, %v2784, %v2787
        %v2807 = vsel %vm2797, %v2793, 1326507024
        %v2808 = vsel %vm2796, %v2790, %v2807
        %v2809 = vsel %vm2795, %v2806, %v2808
        %v2810 = vshll.u32 %v2770, 8
        %v2811 = vmul.u32.u64.compose %v2810, %v2809
        %v2812 = vextract.low.u32 %v2811
        %v2813 = vextract.high.u32 %v2811
        %v2814 = vmul.u32.u64.compose %v2810, %v2805
        %v2815 = vextract.low.u32 %v2814
        %v2816 = vextract.high.u32 %v2814
        %v2817 = vmul.u32 %v2810, %v2801
        %v2818 = vadd.s32 %v2813, %v2815
        %vm2819 = vc.u32 %v2813, %v2815
        %v2820 = vadd.s32 %v2816, 1
        %v2821 = vsel %vm2819, %v2820, %v2816
        %v2822 = vadd.s32 %v2817, %v2821
        %v2823 = vadd.s32 %v2822, 536870912
        %v2824 = vshrl.u32 %v2823, 30
        %v2825 = vshll.u32 %v2824, 30
        %v2826 = vsub.s32 %v2822, %v2825
        %vm2827 = vcmp.lt.s32.totalorder %v2826, 0
        %v2828 = vsub.s32 0, %v2826
        %v2829 = vsel %vm2827, %v2828, %v2826
        %v2830 = vclz %v2829
        %v2831 = vsub.s32 %v2830, 2
        %vm2832 = vcmp.gt.s32.totalorder 0, %v2831
        %v2833 = vsel %vm2832, 0, %v2831
        %v2834 = vsub.s32 32, %v2833
        %v2835 = vshll.u32 %v2826, %v2833
        %v2836 = vshrl.u32 %v2818, %v2834
        %v2837 = vor.u32 %v2835, %v2836
        %v2838 = vsub.s32 4294967266, %v2833
        %v2839 = vadd.s32 %v2838, 127
        %v2840 = vshll.u32 %v2839, 23
        %v2841 = vor.u32 4788187, %v2840
        %v2842 = vand.u32 2147483647, %v2841
        %v2844 = vcvt.s32.f32 %v2837
        %v2845 = vmul.f32 %v2844, %v2842
        %v2846 = vxor.u32 %v2845, 2147483648
        %v2847 = vsel %vm2764, %v2846, %v2845
        %v2848 = vsub.s32 4, %v2824
        %v2849 = vsel %vm2764, %v2848, %v2824
        %v2850 = vsel %vm2763, %v2447, %v2847
        %v2851 = vsel %vm2763, 0, %v2849
        %v2852 = vcosq.f32.pop %v2850
        %v2853 = vsinq.f32.pop %v2850
        %vm2854 = vweird.f32 %v2447
        %v2855 = vadd.s32 %v2851, 3
        %v2856 = vand.u32 %v2855, 3
        %vm2857 = vcmp.lt.s32.totalorder %v2856, 2
        %vm2858 = vcmp.eq.s32.totalorder %v2856, 0
        %v2859 = vxor.u32 %v2853, 2147483648
        %v2860 = vsel %vm2858, %v2852, %v2859
        %vm2861 = vcmp.eq.s32.totalorder %v2856, 2
        %v2862 = vxor.u32 %v2852, 2147483648
        %v2863 = vsel %vm2861, %v2862, %v2853
        %v2864 = vsel %vm2857, %v2860, %v2863
        %v2865 = vsel %vm2854, nan, %v2864
        %2866 = vmatprep.subr.mxu0 0.0
        %2867 = vmatpush1.msra.mxu0 %v2020
        %2868 = vmatprep.subr.mxu0 0.0
        %2869 = vmatpush1.msra.mxu0 %v2124
        %2870 = vmatprep.subr.mxu0 0.0
        %2871 = vmatpush1.msra.mxu0 %v2228
        %2872 = vmatprep.subr.mxu0 0.0
        %2873 = vmatpush1.msra.mxu0 %v2332
        %2874 = vmatprep.subr.mxu0 0.0
        %2875 = vmatpush1.msra.mxu0 0.0
        %2876 = vmatprep.subr.mxu0 0.0
        %2877 = vmatpush1.msra.mxu0 0.0
        %2878 = vmatprep.subr.mxu0 0.0
        %2879 = vmatpush1.msra.mxu0 0.0
        %2880 = vmatprep.subr.mxu0 0.0
        %2881 = vmatpush1.msra.mxu0 0.0
        %2882 = vmatprep.subr.mxu0 0.0
        %2883 = vmatpush1.msra.mxu0 0.0
        %2884 = vmatprep.subr.mxu0 0.0
        %2885 = vmatpush1.msra.mxu0 0.0
        %2886 = vmatprep.subr.mxu0 0.0
        %2887 = vmatpush1.msra.mxu0 0.0
        %2888 = vmatprep.subr.mxu0 0.0
        %2889 = vmatpush1.msra.mxu0 0.0
        %2890 = vmatprep.subr.mxu0 0.0
        %2891 = vmatpush1.msra.mxu0 0.0
        %2892 = vmatprep.subr.mxu0 0.0
        %2893 = vmatpush1.msra.mxu0 0.0
        %2894 = vmatprep.subr.mxu0 0.0
        %2895 = vmatpush1.msra.mxu0 0.0
        %2896 = vmatprep.subr.mxu0 0.0
        %2897 = vmatpush1.msra.mxu0 0.0
        %2898 = vmatprep.subr.mxu0 0.0
        %2899 = vmatpush1.msra.mxu0 0.0
        %2900 = vmatprep.subr.mxu0 0.0
        %2901 = vmatpush1.msra.mxu0 0.0
        %2902 = vmatprep.subr.mxu0 0.0
        %2903 = vmatpush1.msra.mxu0 0.0
        %2904 = vmatprep.subr.mxu0 0.0
        %2905 = vmatpush1.msra.mxu0 0.0
        %2906 = vmatprep.subr.mxu0 0.0
        %2907 = vmatpush1.msra.mxu0 0.0
        %2908 = vmatprep.subr.mxu0 0.0
        %2909 = vmatpush1.msra.mxu0 0.0
        %2910 = vmatprep.subr.mxu0 0.0
        %2911 = vmatpush1.msra.mxu0 0.0
        %2912 = vmatprep.subr.mxu0 0.0
        %2913 = vmatpush1.msra.mxu0 0.0
        %2914 = vmatprep.subr.mxu0 0.0
        %2915 = vmatpush1.msra.mxu0 0.0
        %2916 = vmatprep.subr.mxu0 0.0
        %2917 = vmatpush1.msra.mxu0 0.0
        %2918 = vmatprep.subr.mxu0 0.0
        %2919 = vmatpush1.msra.mxu0 0.0
        %2920 = vmatprep.subr.mxu0 0.0
        %2921 = vmatpush1.msra.mxu0 0.0
        %2922 = vmatprep.subr.mxu0 0.0
        %2923 = vmatpush1.msra.mxu0 0.0
        %2924 = vmatprep.subr.mxu0 0.0
        %2925 = vmatpush1.msra.mxu0 0.0
        %2926 = vmatprep.subr.mxu0 0.0
        %2927 = vmatpush1.msra.mxu0 0.0
        %2928 = vmatprep.subr.mxu0 0.0
        %2929 = vmatpush1.msra.mxu0 0.0
        %2930 = vmatprep.mubr.f32.mxu0 0.0
        %2931 = vmatmul.mubr.f32.gmra.mrb[0].mxu0 %v2354
        %v2932 = vpop.f32.mrb[0].mxu0
        %v2933 = vadd.f32 %v2336, %v2932
        %v2934 = vpop.f32.mrb[0].mxu0
        %2935 = vmatprep.mubr.f32.mxu0 0.0
        %2936 = vmatmul.mubr.f32.gmra.mrb[0].mxu0 %v2357
        %v2937 = vpop.f32.mrb[0].mxu0
        %v2938 = vadd.f32 %v2341, %v2937
        %v2939 = vpop.f32.mrb[0].mxu0
        %2940 = vmatprep.mubr.f32.mxu0 0.0
        %2941 = vmatmul.mubr.f32.gmra.mrb[0].mxu0 %v2360
        %v2942 = vpop.f32.mrb[0].mxu0
        %v2943 = vadd.f32 %v2346, %v2942
        %v2944 = vpop.f32.mrb[0].mxu0
        %2945 = vmatprep.mubr.f32.mxu0 0.0
        %2946 = vmatmul.mubr.f32.gmra.mrb[0].mxu0 %v2363
        %v2947 = vpop.f32.mrb[0].mxu0
        %v2948 = vadd.f32 %v2351, %v2947
        %v2949 = vpop.f32.mrb[0].mxu0
        %2950 = vdwg.mxu0
        %v2951 = vand.u32 2147483647, %v2933
        %vm2952 = vcmp.le.f32.partialorder %v2951, 0.7853982
        %vm2953 = vcmp.lt.s32.totalorder %v2933, 0
        %v2954 = vand.u32 %v2933, 2139095040
        %v2955 = vshrl.u32 %v2954, 23
        %v2956 = vsub.s32 %v2955, 127
        %v2957 = vand.u32 2147483647, %v2933
        %v2958 = vand.u32 %v2957, 8388607
        %v2959 = vor.u32 %v2958, 8388608
        %v2960 = vsub.s32 0, %v2959
        %v2961 = vadd.s32 %v2956, 1
        %vm2962 = vcmp.gt.s32.totalorder %v2961, 0
        %v2963 = vsel %vm2962, %v2961, 0
        %v2964 = vshrl.u32 %v2963, 5
        %v2965 = vand.u32 %v2963, 31
        %v2966 = vsub.s32 32, %v2965
        %v2967 = vshrl.u32 683565275, %v2966
        %v2968 = vshll.u32 683565275, %v2965
        %v2969 = vshrl.u32 2475754826, %v2966
        %v2970 = vor.u32 %v2968, %v2969
        %v2971 = vshll.u32 2475754826, %v2965
        %v2972 = vshrl.u32 2131351028, %v2966
        %v2973 = vor.u32 %v2971, %v2972
        %v2974 = vshll.u32 2131351028, %v2965
        %v2975 = vshrl.u32 2102212464, %v2966
        %v2976 = vor.u32 %v2974, %v2975
        %v2977 = vshll.u32 2102212464, %v2965
        %v2978 = vshrl.u32 920167782, %v2966
        %v2979 = vor.u32 %v2977, %v2978
        %v2980 = vshll.u32 920167782, %v2965
        %v2981 = vshrl.u32 1326507024, %v2966
        %v2982 = vor.u32 %v2980, %v2981
        %vm2983 = vcmp.lt.s32.totalorder %v2964, 1
        %vm2984 = vcmp.lt.s32.totalorder %v2964, 2
        %vm2985 = vcmp.lt.s32.totalorder %v2964, 3
        %vm2986 = vcmp.lt.s32.totalorder %v2964, 4
        %v2987 = vsel %vm2983, %v2967, %v2970
        %v2988 = vsel %vm2986, %v2976, 2102212464
        %v2989 = vsel %vm2985, %v2973, %v2988
        %v2990 = vsel %vm2984, %v2987, %v2989
        %v2991 = vsel %vm2983, %v2970, %v2973
        %v2992 = vsel %vm2986, %v2979, 920167782
        %v2993 = vsel %vm2985, %v2976, %v2992
        %v2994 = vsel %vm2984, %v2991, %v2993
        %v2995 = vsel %vm2983, %v2973, %v2976
        %v2996 = vsel %vm2986, %v2982, 1326507024
        %v2997 = vsel %vm2985, %v2979, %v2996
        %v2998 = vsel %vm2984, %v2995, %v2997
        %v2999 = vshll.u32 %v2959, 8
        %v3000 = vmul.u32.u64.compose %v2999, %v2998
        %v3001 = vextract.low.u32 %v3000
        %v3002 = vextract.high.u32 %v3000
        %v3003 = vmul.u32.u64.compose %v2999, %v2994
        %v3004 = vextract.low.u32 %v3003
        %v3005 = vextract.high.u32 %v3003
        %v3006 = vmul.u32 %v2999, %v2990
        %v3007 = vadd.s32 %v3002, %v3004
        %vm3008 = vc.u32 %v3002, %v3004
        %v3009 = vadd.s32 %v3005, 1
        %v3010 = vsel %vm3008, %v3009, %v3005
        %v3011 = vadd.s32 %v3006, %v3010
        %v3012 = vadd.s32 %v3011, 536870912
        %v3013 = vshrl.u32 %v3012, 30
        %v3014 = vshll.u32 %v3013, 30
        %v3015 = vsub.s32 %v3011, %v3014
        %vm3016 = vcmp.lt.s32.totalorder %v3015, 0
        %v3017 = vsub.s32 0, %v3015
        %v3018 = vsel %vm3016, %v3017, %v3015
        %v3019 = vclz %v3018
        %v3020 = vsub.s32 %v3019, 2
        %vm3021 = vcmp.gt.s32.totalorder 0, %v3020
        %v3022 = vsel %vm3021, 0, %v3020
        %v3023 = vsub.s32 32, %v3022
        %v3024 = vshll.u32 %v3015, %v3022
        %v3025 = vshrl.u32 %v3007, %v3023
        %v3026 = vor.u32 %v3024, %v3025
        %v3027 = vsub.s32 4294967266, %v3022
        %v3028 = vadd.s32 %v3027, 127
        %v3029 = vshll.u32 %v3028, 23
        %v3030 = vor.u32 4788187, %v3029
        %v3031 = vand.u32 2147483647, %v3030
        %v3033 = vcvt.s32.f32 %v3026
        %v3034 = vmul.f32 %v3033, %v3031
        %v3035 = vxor.u32 %v3034, 2147483648
        %v3036 = vsel %vm2953, %v3035, %v3034
        %v3037 = vsub.s32 4, %v3013
        %v3038 = vsel %vm2953, %v3037, %v3013
        %v3039 = vsel %vm2952, %v2933, %v3036
        %v3040 = vsel %vm2952, 0, %v3038
        %v3041 = vcosq.f32.pop %v3039
        %v3042 = vsinq.f32.pop %v3039
        %vm3043 = vweird.f32 %v2933
        %v3044 = vadd.s32 %v3040, 3
        %v3045 = vand.u32 %v3044, 3
        %vm3046 = vcmp.lt.s32.totalorder %v3045, 2
        %vm3047 = vcmp.eq.s32.totalorder %v3045, 0
        %v3048 = vxor.u32 %v3042, 2147483648
        %v3049 = vsel %vm3047, %v3041, %v3048
        %vm3050 = vcmp.eq.s32.totalorder %v3045, 2
        %v3051 = vxor.u32 %v3041, 2147483648
        %v3052 = vsel %vm3050, %v3051, %v3042
        %v3053 = vsel %vm3046, %v3049, %v3052
        %v3054 = vsel %vm3043, nan, %v3053
        %v3055 = vand.u32 2147483647, %v2938
        %vm3056 = vcmp.le.f32.partialorder %v3055, 0.7853982
        %vm3057 = vcmp.lt.s32.totalorder %v2938, 0
        %v3058 = vand.u32 %v2938, 2139095040
        %v3059 = vshrl.u32 %v3058, 23
        %v3060 = vsub.s32 %v3059, 127
        %v3061 = vand.u32 2147483647, %v2938
        %v3062 = vand.u32 %v3061, 8388607
        %v3063 = vor.u32 %v3062, 8388608
        %v3064 = vsub.s32 0, %v3063
        %v3065 = vadd.s32 %v3060, 1
        %vm3066 = vcmp.gt.s32.totalorder %v3065, 0
        %v3067 = vsel %vm3066, %v3065, 0
        %v3068 = vshrl.u32 %v3067, 5
        %v3069 = vand.u32 %v3067, 31
        %v3070 = vsub.s32 32, %v3069
        %v3071 = vshrl.u32 683565275, %v3070
        %v3072 = vshll.u32 683565275, %v3069
        %v3073 = vshrl.u32 2475754826, %v3070
        %v3074 = vor.u32 %v3072, %v3073
        %v3075 = vshll.u32 2475754826, %v3069
        %v3076 = vshrl.u32 2131351028, %v3070
        %v3077 = vor.u32 %v3075, %v3076
        %v3078 = vshll.u32 2131351028, %v3069
        %v3079 = vshrl.u32 2102212464, %v3070
        %v3080 = vor.u32 %v3078, %v3079
        %v3081 = vshll.u32 2102212464, %v3069
        %v3082 = vshrl.u32 920167782, %v3070
        %v3083 = vor.u32 %v3081, %v3082
        %v3084 = vshll.u32 920167782, %v3069
        %v3085 = vshrl.u32 1326507024, %v3070
        %v3086 = vor.u32 %v3084, %v3085
        %vm3087 = vcmp.lt.s32.totalorder %v3068, 1
        %vm3088 = vcmp.lt.s32.totalorder %v3068, 2
        %vm3089 = vcmp.lt.s32.totalorder %v3068, 3
        %vm3090 = vcmp.lt.s32.totalorder %v3068, 4
        %v3091 = vsel %vm3087, %v3071, %v3074
        %v3092 = vsel %vm3090, %v3080, 2102212464
        %v3093 = vsel %vm3089, %v3077, %v3092
        %v3094 = vsel %vm3088, %v3091, %v3093
        %v3095 = vsel %vm3087, %v3074, %v3077
        %v3096 = vsel %vm3090, %v3083, 920167782
        %v3097 = vsel %vm3089, %v3080, %v3096
        %v3098 = vsel %vm3088, %v3095, %v3097
        %v3099 = vsel %vm3087, %v3077, %v3080
        %v3100 = vsel %vm3090, %v3086, 1326507024
        %v3101 = vsel %vm3089, %v3083, %v3100
        %v3102 = vsel %vm3088, %v3099, %v3101
        %v3103 = vshll.u32 %v3063, 8
        %v3104 = vmul.u32.u64.compose %v3103, %v3102
        %v3105 = vextract.low.u32 %v3104
        %v3106 = vextract.high.u32 %v3104
        %v3107 = vmul.u32.u64.compose %v3103, %v3098
        %v3108 = vextract.low.u32 %v3107
        %v3109 = vextract.high.u32 %v3107
        %v3110 = vmul.u32 %v3103, %v3094
        %v3111 = vadd.s32 %v3106, %v3108
        %vm3112 = vc.u32 %v3106, %v3108
        %v3113 = vadd.s32 %v3109, 1
        %v3114 = vsel %vm3112, %v3113, %v3109
        %v3115 = vadd.s32 %v3110, %v3114
        %v3116 = vadd.s32 %v3115, 536870912
        %v3117 = vshrl.u32 %v3116, 30
        %v3118 = vshll.u32 %v3117, 30
        %v3119 = vsub.s32 %v3115, %v3118
        %vm3120 = vcmp.lt.s32.totalorder %v3119, 0
        %v3121 = vsub.s32 0, %v3119
        %v3122 = vsel %vm3120, %v3121, %v3119
        %v3123 = vclz %v3122
        %v3124 = vsub.s32 %v3123, 2
        %vm3125 = vcmp.gt.s32.totalorder 0, %v3124
        %v3126 = vsel %vm3125, 0, %v3124
        %v3127 = vsub.s32 32, %v3126
        %v3128 = vshll.u32 %v3119, %v3126
        %v3129 = vshrl.u32 %v3111, %v3127
        %v3130 = vor.u32 %v3128, %v3129
        %v3131 = vsub.s32 4294967266, %v3126
        %v3132 = vadd.s32 %v3131, 127
        %v3133 = vshll.u32 %v3132, 23
        %v3134 = vor.u32 4788187, %v3133
        %v3135 = vand.u32 2147483647, %v3134
        %v3137 = vcvt.s32.f32 %v3130
        %v3138 = vmul.f32 %v3137, %v3135
        %v3139 = vxor.u32 %v3138, 2147483648
        %v3140 = vsel %vm3057, %v3139, %v3138
        %v3141 = vsub.s32 4, %v3117
        %v3142 = vsel %vm3057, %v3141, %v3117
        %v3143 = vsel %vm3056, %v2938, %v3140
        %v3144 = vsel %vm3056, 0, %v3142
        %v3145 = vcosq.f32.pop %v3143
        %v3146 = vsinq.f32.pop %v3143
        %vm3147 = vweird.f32 %v2938
        %v3148 = vadd.s32 %v3144, 3
        %v3149 = vand.u32 %v3148, 3
        %vm3150 = vcmp.lt.s32.totalorder %v3149, 2
        %vm3151 = vcmp.eq.s32.totalorder %v3149, 0
        %v3152 = vxor.u32 %v3146, 2147483648
        %v3153 = vsel %vm3151, %v3145, %v3152
        %vm3154 = vcmp.eq.s32.totalorder %v3149, 2
        %v3155 = vxor.u32 %v3145, 2147483648
        %v3156 = vsel %vm3154, %v3155, %v3146
        %v3157 = vsel %vm3150, %v3153, %v3156
        %v3158 = vsel %vm3147, nan, %v3157
        %v3159 = vand.u32 2147483647, %v2943
        %vm3160 = vcmp.le.f32.partialorder %v3159, 0.7853982
        %vm3161 = vcmp.lt.s32.totalorder %v2943, 0
        %v3162 = vand.u32 %v2943, 2139095040
        %v3163 = vshrl.u32 %v3162, 23
        %v3164 = vsub.s32 %v3163, 127
        %v3165 = vand.u32 2147483647, %v2943
        %v3166 = vand.u32 %v3165, 8388607
        %v3167 = vor.u32 %v3166, 8388608
        %v3168 = vsub.s32 0, %v3167
        %v3169 = vadd.s32 %v3164, 1
        %vm3170 = vcmp.gt.s32.totalorder %v3169, 0
        %v3171 = vsel %vm3170, %v3169, 0
        %v3172 = vshrl.u32 %v3171, 5
        %v3173 = vand.u32 %v3171, 31
        %v3174 = vsub.s32 32, %v3173
        %v3175 = vshrl.u32 683565275, %v3174
        %v3176 = vshll.u32 683565275, %v3173
        %v3177 = vshrl.u32 2475754826, %v3174
        %v3178 = vor.u32 %v3176, %v3177
        %v3179 = vshll.u32 2475754826, %v3173
        %v3180 = vshrl.u32 2131351028, %v3174
        %v3181 = vor.u32 %v3179, %v3180
        %v3182 = vshll.u32 2131351028, %v3173
        %v3183 = vshrl.u32 2102212464, %v3174
        %v3184 = vor.u32 %v3182, %v3183
        %v3185 = vshll.u32 2102212464, %v3173
        %v3186 = vshrl.u32 920167782, %v3174
        %v3187 = vor.u32 %v3185, %v3186
        %v3188 = vshll.u32 920167782, %v3173
        %v3189 = vshrl.u32 1326507024, %v3174
        %v3190 = vor.u32 %v3188, %v3189
        %vm3191 = vcmp.lt.s32.totalorder %v3172, 1
        %vm3192 = vcmp.lt.s32.totalorder %v3172, 2
        %vm3193 = vcmp.lt.s32.totalorder %v3172, 3
        %vm3194 = vcmp.lt.s32.totalorder %v3172, 4
        %v3195 = vsel %vm3191, %v3175, %v3178
        %v3196 = vsel %vm3194, %v3184, 2102212464
        %v3197 = vsel %vm3193, %v3181, %v3196
        %v3198 = vsel %vm3192, %v3195, %v3197
        %v3199 = vsel %vm3191, %v3178, %v3181
        %v3200 = vsel %vm3194, %v3187, 920167782
        %v3201 = vsel %vm3193, %v3184, %v3200
        %v3202 = vsel %vm3192, %v3199, %v3201
        %v3203 = vsel %vm3191, %v3181, %v3184
        %v3204 = vsel %vm3194, %v3190, 1326507024
        %v3205 = vsel %vm3193, %v3187, %v3204
        %v3206 = vsel %vm3192, %v3203, %v3205
        %v3207 = vshll.u32 %v3167, 8
        %v3208 = vmul.u32.u64.compose %v3207, %v3206
        %v3209 = vextract.low.u32 %v3208
        %v3210 = vextract.high.u32 %v3208
        %v3211 = vmul.u32.u64.compose %v3207, %v3202
        %v3212 = vextract.low.u32 %v3211
        %v3213 = vextract.high.u32 %v3211
        %v3214 = vmul.u32 %v3207, %v3198
        %v3215 = vadd.s32 %v3210, %v3212
        %vm3216 = vc.u32 %v3210, %v3212
        %v3217 = vadd.s32 %v3213, 1
        %v3218 = vsel %vm3216, %v3217, %v3213
        %v3219 = vadd.s32 %v3214, %v3218
        %v3220 = vadd.s32 %v3219, 536870912
        %v3221 = vshrl.u32 %v3220, 30
        %v3222 = vshll.u32 %v3221, 30
        %v3223 = vsub.s32 %v3219, %v3222
        %vm3224 = vcmp.lt.s32.totalorder %v3223, 0
        %v3225 = vsub.s32 0, %v3223
        %v3226 = vsel %vm3224, %v3225, %v3223
        %v3227 = vclz %v3226
        %v3228 = vsub.s32 %v3227, 2
        %vm3229 = vcmp.gt.s32.totalorder 0, %v3228
        %v3230 = vsel %vm3229, 0, %v3228
        %v3231 = vsub.s32 32, %v3230
        %v3232 = vshll.u32 %v3223, %v3230
        %v3233 = vshrl.u32 %v3215, %v3231
        %v3234 = vor.u32 %v3232, %v3233
        %v3235 = vsub.s32 4294967266, %v3230
        %v3236 = vadd.s32 %v3235, 127
        %v3237 = vshll.u32 %v3236, 23
        %v3238 = vor.u32 4788187, %v3237
        %v3239 = vand.u32 2147483647, %v3238
        %v3241 = vcvt.s32.f32 %v3234
        %v3242 = vmul.f32 %v3241, %v3239
        %v3243 = vxor.u32 %v3242, 2147483648
        %v3244 = vsel %vm3161, %v3243, %v3242
        %v3245 = vsub.s32 4, %v3221
        %v3246 = vsel %vm3161, %v3245, %v3221
        %v3247 = vsel %vm3160, %v2943, %v3244
        %v3248 = vsel %vm3160, 0, %v3246
        %v3249 = vcosq.f32.pop %v3247
        %v3250 = vsinq.f32.pop %v3247
        %vm3251 = vweird.f32 %v2943
        %v3252 = vadd.s32 %v3248, 3
        %v3253 = vand.u32 %v3252, 3
        %vm3254 = vcmp.lt.s32.totalorder %v3253, 2
        %vm3255 = vcmp.eq.s32.totalorder %v3253, 0
        %v3256 = vxor.u32 %v3250, 2147483648
        %v3257 = vsel %vm3255, %v3249, %v3256
        %vm3258 = vcmp.eq.s32.totalorder %v3253, 2
        %v3259 = vxor.u32 %v3249, 2147483648
        %v3260 = vsel %vm3258, %v3259, %v3250
        %v3261 = vsel %vm3254, %v3257, %v3260
        %v3262 = vsel %vm3251, nan, %v3261
        %v3263 = vand.u32 2147483647, %v2948
        %vm3264 = vcmp.le.f32.partialorder %v3263, 0.7853982
        %vm3265 = vcmp.lt.s32.totalorder %v2948, 0
        %v3266 = vand.u32 %v2948, 2139095040
        %v3267 = vshrl.u32 %v3266, 23
        %v3268 = vsub.s32 %v3267, 127
        %v3269 = vand.u32 2147483647, %v2948
        %v3270 = vand.u32 %v3269, 8388607
        %v3271 = vor.u32 %v3270, 8388608
        %v3272 = vsub.s32 0, %v3271
        %v3273 = vadd.s32 %v3268, 1
        %vm3274 = vcmp.gt.s32.totalorder %v3273, 0
        %v3275 = vsel %vm3274, %v3273, 0
        %v3276 = vshrl.u32 %v3275, 5
        %v3277 = vand.u32 %v3275, 31
        %v3278 = vsub.s32 32, %v3277
        %v3279 = vshrl.u32 683565275, %v3278
        %v3280 = vshll.u32 683565275, %v3277
        %v3281 = vshrl.u32 2475754826, %v3278
        %v3282 = vor.u32 %v3280, %v3281
        %v3283 = vshll.u32 2475754826, %v3277
        %v3284 = vshrl.u32 2131351028, %v3278
        %v3285 = vor.u32 %v3283, %v3284
        %v3286 = vshll.u32 2131351028, %v3277
        %v3287 = vshrl.u32 2102212464, %v3278
        %v3288 = vor.u32 %v3286, %v3287
        %v3289 = vshll.u32 2102212464, %v3277
        %v3290 = vshrl.u32 920167782, %v3278
        %v3291 = vor.u32 %v3289, %v3290
        %v3292 = vshll.u32 920167782, %v3277
        %v3293 = vshrl.u32 1326507024, %v3278
        %v3294 = vor.u32 %v3292, %v3293
        %vm3295 = vcmp.lt.s32.totalorder %v3276, 1
        %vm3296 = vcmp.lt.s32.totalorder %v3276, 2
        %vm3297 = vcmp.lt.s32.totalorder %v3276, 3
        %vm3298 = vcmp.lt.s32.totalorder %v3276, 4
        %v3299 = vsel %vm3295, %v3279, %v3282
        %v3300 = vsel %vm3298, %v3288, 2102212464
        %v3301 = vsel %vm3297, %v3285, %v3300
        %v3302 = vsel %vm3296, %v3299, %v3301
        %v3303 = vsel %vm3295, %v3282, %v3285
        %v3304 = vsel %vm3298, %v3291, 920167782
        %v3305 = vsel %vm3297, %v3288, %v3304
        %v3306 = vsel %vm3296, %v3303, %v3305
        %v3307 = vsel %vm3295, %v3285, %v3288
        %v3308 = vsel %vm3298, %v3294, 1326507024
        %v3309 = vsel %vm3297, %v3291, %v3308
        %v3310 = vsel %vm3296, %v3307, %v3309
        %v3311 = vshll.u32 %v3271, 8
        %v3312 = vmul.u32.u64.compose %v3311, %v3310
        %v3313 = vextract.low.u32 %v3312
        %v3314 = vextract.high.u32 %v3312
        %v3315 = vmul.u32.u64.compose %v3311, %v3306
        %v3316 = vextract.low.u32 %v3315
        %v3317 = vextract.high.u32 %v3315
        %v3318 = vmul.u32 %v3311, %v3302
        %v3319 = vadd.s32 %v3314, %v3316
        %vm3320 = vc.u32 %v3314, %v3316
        %v3321 = vadd.s32 %v3317, 1
        %v3322 = vsel %vm3320, %v3321, %v3317
        %v3323 = vadd.s32 %v3318, %v3322
        %v3324 = vadd.s32 %v3323, 536870912
        %v3325 = vshrl.u32 %v3324, 30
        %v3326 = vshll.u32 %v3325, 30
        %v3327 = vsub.s32 %v3323, %v3326
        %vm3328 = vcmp.lt.s32.totalorder %v3327, 0
        %v3329 = vsub.s32 0, %v3327
        %v3330 = vsel %vm3328, %v3329, %v3327
        %v3331 = vclz %v3330
        %v3332 = vsub.s32 %v3331, 2
        %vm3333 = vcmp.gt.s32.totalorder 0, %v3332
        %v3334 = vsel %vm3333, 0, %v3332
        %v3335 = vsub.s32 32, %v3334
        %v3336 = vshll.u32 %v3327, %v3334
        %v3337 = vshrl.u32 %v3319, %v3335
        %v3338 = vor.u32 %v3336, %v3337
        %v3339 = vsub.s32 4294967266, %v3334
        %v3340 = vadd.s32 %v3339, 127
        %v3341 = vshll.u32 %v3340, 23
        %v3342 = vor.u32 4788187, %v3341
        %v3343 = vand.u32 2147483647, %v3342
        %v3345 = vcvt.s32.f32 %v3338
        %v3346 = vmul.f32 %v3345, %v3343
        %v3347 = vxor.u32 %v3346, 2147483648
        %v3348 = vsel %vm3265, %v3347, %v3346
        %v3349 = vsub.s32 4, %v3325
        %v3350 = vsel %vm3265, %v3349, %v3325
        %v3351 = vsel %vm3264, %v2948, %v3348
        %v3352 = vsel %vm3264, 0, %v3350
        %v3353 = vcosq.f32.pop %v3351
        %v3354 = vsinq.f32.pop %v3351
        %vm3355 = vweird.f32 %v2948
        %v3356 = vadd.s32 %v3352, 3
        %v3357 = vand.u32 %v3356, 3
        %vm3358 = vcmp.lt.s32.totalorder %v3357, 2
        %vm3359 = vcmp.eq.s32.totalorder %v3357, 0
        %v3360 = vxor.u32 %v3354, 2147483648
        %v3361 = vsel %vm3359, %v3353, %v3360
        %vm3362 = vcmp.eq.s32.totalorder %v3357, 2
        %v3363 = vxor.u32 %v3353, 2147483648
        %v3364 = vsel %vm3362, %v3363, %v3354
        %v3365 = vsel %vm3358, %v3361, %v3364
        %v3366 = vsel %vm3355, nan, %v3365
        %v3367 = vadd.f32 %v569, %v2553
        %v3368 = vadd.f32 %v777, %v2657
        %v3369 = vadd.f32 %v985, %v2761
        %v3370 = vadd.f32 %v1193, %v2865
        %v3371 = vadd.f32 %v673, %v3054
        %v3372 = vadd.f32 %v881, %v3158
        %v3373 = vadd.f32 %v1089, %v3262
        %v3374 = vadd.f32 %v1297, %v3366
        %3376 = vset.pattern.permute.xlu0 0
        %3377 = vperm.xlu0 %3376, %v323
        %v3378 = vpop.permute.xlu0 %3377
        %3381 = vset.pattern.permute.xlu0 0
        %3382 = vperm.xlu0 %3381, %v324
        %v3383 = vpop.permute.xlu0 %3382
        %3386 = vset.pattern.permute.xlu0 0
        %3387 = vperm.xlu0 %3386, %v325
        %v3388 = vpop.permute.xlu0 %3387
        %3391 = vset.pattern.permute.xlu0 0
        %3392 = vperm.xlu0 %3391, %v326
        %v3393 = vpop.permute.xlu0 %3392
        %v3396 = vsel %vm1318, %v299, 0
        %v3399 = vsel %vm1318, %v300, 0
        %v3402 = vsel %vm1318, %v301, 0
        %v3405 = vsel %vm1318, %v302, 0
        %3407 = vmatprep.subr.mxu0 0.0
        %3408 = vmatpush1.msra.mxu0 %v3367
        %3409 = vmatprep.subr.mxu0 0.0
        %3410 = vmatpush1.msra.mxu0 %v3368
        %3411 = vmatprep.subr.mxu0 0.0
        %3412 = vmatpush1.msra.mxu0 %v3369
        %3413 = vmatprep.subr.mxu0 0.0
        %3414 = vmatpush1.msra.mxu0 %v3370
        %3415 = vmatprep.subr.mxu0 0.0
        %3416 = vmatpush1.msra.mxu0 0.0
        %3417 = vmatprep.subr.mxu0 0.0
        %3418 = vmatpush1.msra.mxu0 0.0
        %3419 = vmatprep.subr.mxu0 0.0
        %3420 = vmatpush1.msra.mxu0 0.0
        %3421 = vmatprep.subr.mxu0 0.0
        %3422 = vmatpush1.msra.mxu0 0.0
        %3423 = vmatprep.subr.mxu0 0.0
        %3424 = vmatpush1.msra.mxu0 0.0
        %3425 = vmatprep.subr.mxu0 0.0
        %3426 = vmatpush1.msra.mxu0 0.0
        %3427 = vmatprep.subr.mxu0 0.0
        %3428 = vmatpush1.msra.mxu0 0.0
        %3429 = vmatprep.subr.mxu0 0.0
        %3430 = vmatpush1.msra.mxu0 0.0
        %3431 = vmatprep.subr.mxu0 0.0
        %3432 = vmatpush1.msra.mxu0 0.0
        %3433 = vmatprep.subr.mxu0 0.0
        %3434 = vmatpush1.msra.mxu0 0.0
        %3435 = vmatprep.subr.mxu0 0.0
        %3436 = vmatpush1.msra.mxu0 0.0
        %3437 = vmatprep.subr.mxu0 0.0
        %3438 = vmatpush1.msra.mxu0 0.0
        %3439 = vmatprep.subr.mxu0 0.0
        %3440 = vmatpush1.msra.mxu0 0.0
        %3441 = vmatprep.subr.mxu0 0.0
        %3442 = vmatpush1.msra.mxu0 0.0
        %3443 = vmatprep.subr.mxu0 0.0
        %3444 = vmatpush1.msra.mxu0 0.0
        %3445 = vmatprep.subr.mxu0 0.0
        %3446 = vmatpush1.msra.mxu0 0.0
        %3447 = vmatprep.subr.mxu0 0.0
        %3448 = vmatpush1.msra.mxu0 0.0
        %3449 = vmatprep.subr.mxu0 0.0
        %3450 = vmatpush1.msra.mxu0 0.0
        %3451 = vmatprep.subr.mxu0 0.0
        %3452 = vmatpush1.msra.mxu0 0.0
        %3453 = vmatprep.subr.mxu0 0.0
        %3454 = vmatpush1.msra.mxu0 0.0
        %3455 = vmatprep.subr.mxu0 0.0
        %3456 = vmatpush1.msra.mxu0 0.0
        %3457 = vmatprep.subr.mxu0 0.0
        %3458 = vmatpush1.msra.mxu0 0.0
        %3459 = vmatprep.subr.mxu0 0.0
        %3460 = vmatpush1.msra.mxu0 0.0
        %3461 = vmatprep.subr.mxu0 0.0
        %3462 = vmatpush1.msra.mxu0 0.0
        %3463 = vmatprep.subr.mxu0 0.0
        %3464 = vmatpush1.msra.mxu0 0.0
        %3465 = vmatprep.subr.mxu0 0.0
        %3466 = vmatpush1.msra.mxu0 0.0
        %3467 = vmatprep.subr.mxu0 0.0
        %3468 = vmatpush1.msra.mxu0 0.0
        %3469 = vmatprep.subr.mxu0 0.0
        %3470 = vmatpush1.msra.mxu0 0.0
        %3471 = vmatprep.mubr.f32.mxu0 0.0
        %3472 = vmatmul.mubr.f32.gmra.mrb[0].mxu0 %v3396
        %v3473 = vpop.f32.mrb[0].mxu0
        %v3474 = vadd.f32 %v3378, %v3473
        %v3475 = vpop.f32.mrb[0].mxu0
        %3476 = vmatprep.mubr.f32.mxu0 0.0
        %3477 = vmatmul.mubr.f32.gmra.mrb[0].mxu0 %v3399
        %v3478 = vpop.f32.mrb[0].mxu0
        %v3479 = vadd.f32 %v3383, %v3478
        %v3480 = vpop.f32.mrb[0].mxu0
        %3481 = vmatprep.mubr.f32.mxu0 0.0
        %3482 = vmatmul.mubr.f32.gmra.mrb[0].mxu0 %v3402
        %v3483 = vpop.f32.mrb[0].mxu0
        %v3484 = vadd.f32 %v3388, %v3483
        %v3485 = vpop.f32.mrb[0].mxu0
        %3486 = vmatprep.mubr.f32.mxu0 0.0
        %3487 = vmatmul.mubr.f32.gmra.mrb[0].mxu0 %v3405
        %v3488 = vpop.f32.mrb[0].mxu0
        %v3489 = vadd.f32 %v3393, %v3488
        %v3490 = vpop.f32.mrb[0].mxu0
        %3491 = vdwg.mxu0
        %v3492 = vand.u32 2147483647, %v3474
        %vm3493 = vcmp.le.f32.partialorder %v3492, 0.7853982
        %vm3494 = vcmp.lt.s32.totalorder %v3474, 0
        %v3495 = vand.u32 %v3474, 2139095040
        %v3496 = vshrl.u32 %v3495, 23
        %v3497 = vsub.s32 %v3496, 127
        %v3498 = vand.u32 2147483647, %v3474
        %v3499 = vand.u32 %v3498, 8388607
        %v3500 = vor.u32 %v3499, 8388608
        %v3501 = vsub.s32 0, %v3500
        %v3502 = vadd.s32 %v3497, 1
        %vm3503 = vcmp.gt.s32.totalorder %v3502, 0
        %v3504 = vsel %vm3503, %v3502, 0
        %v3505 = vshrl.u32 %v3504, 5
        %v3506 = vand.u32 %v3504, 31
        %v3507 = vsub.s32 32, %v3506
        %v3508 = vshrl.u32 683565275, %v3507
        %v3509 = vshll.u32 683565275, %v3506
        %v3510 = vshrl.u32 2475754826, %v3507
        %v3511 = vor.u32 %v3509, %v3510
        %v3512 = vshll.u32 2475754826, %v3506
        %v3513 = vshrl.u32 2131351028, %v3507
        %v3514 = vor.u32 %v3512, %v3513
        %v3515 = vshll.u32 2131351028, %v3506
        %v3516 = vshrl.u32 2102212464, %v3507
        %v3517 = vor.u32 %v3515, %v3516
        %v3518 = vshll.u32 2102212464, %v3506
        %v3519 = vshrl.u32 920167782, %v3507
        %v3520 = vor.u32 %v3518, %v3519
        %v3521 = vshll.u32 920167782, %v3506
        %v3522 = vshrl.u32 1326507024, %v3507
        %v3523 = vor.u32 %v3521, %v3522
        %vm3524 = vcmp.lt.s32.totalorder %v3505, 1
        %vm3525 = vcmp.lt.s32.totalorder %v3505, 2
        %vm3526 = vcmp.lt.s32.totalorder %v3505, 3
        %vm3527 = vcmp.lt.s32.totalorder %v3505, 4
        %v3528 = vsel %vm3524, %v3508, %v3511
        %v3529 = vsel %vm3527, %v3517, 2102212464
        %v3530 = vsel %vm3526, %v3514, %v3529
        %v3531 = vsel %vm3525, %v3528, %v3530
        %v3532 = vsel %vm3524, %v3511, %v3514
        %v3533 = vsel %vm3527, %v3520, 920167782
        %v3534 = vsel %vm3526, %v3517, %v3533
        %v3535 = vsel %vm3525, %v3532, %v3534
        %v3536 = vsel %vm3524, %v3514, %v3517
        %v3537 = vsel %vm3527, %v3523, 1326507024
        %v3538 = vsel %vm3526, %v3520, %v3537
        %v3539 = vsel %vm3525, %v3536, %v3538
        %v3540 = vshll.u32 %v3500, 8
        %v3541 = vmul.u32.u64.compose %v3540, %v3539
        %v3542 = vextract.low.u32 %v3541
        %v3543 = vextract.high.u32 %v3541
        %v3544 = vmul.u32.u64.compose %v3540, %v3535
        %v3545 = vextract.low.u32 %v3544
        %v3546 = vextract.high.u32 %v3544
        %v3547 = vmul.u32 %v3540, %v3531
        %v3548 = vadd.s32 %v3543, %v3545
        %vm3549 = vc.u32 %v3543, %v3545
        %v3550 = vadd.s32 %v3546, 1
        %v3551 = vsel %vm3549, %v3550, %v3546
        %v3552 = vadd.s32 %v3547, %v3551
        %v3553 = vadd.s32 %v3552, 536870912
        %v3554 = vshrl.u32 %v3553, 30
        %v3555 = vshll.u32 %v3554, 30
        %v3556 = vsub.s32 %v3552, %v3555
        %vm3557 = vcmp.lt.s32.totalorder %v3556, 0
        %v3558 = vsub.s32 0, %v3556
        %v3559 = vsel %vm3557, %v3558, %v3556
        %v3560 = vclz %v3559
        %v3561 = vsub.s32 %v3560, 2
        %vm3562 = vcmp.gt.s32.totalorder 0, %v3561
        %v3563 = vsel %vm3562, 0, %v3561
        %v3564 = vsub.s32 32, %v3563
        %v3565 = vshll.u32 %v3556, %v3563
        %v3566 = vshrl.u32 %v3548, %v3564
        %v3567 = vor.u32 %v3565, %v3566
        %v3568 = vsub.s32 4294967266, %v3563
        %v3569 = vadd.s32 %v3568, 127
        %v3570 = vshll.u32 %v3569, 23
        %v3571 = vor.u32 4788187, %v3570
        %v3572 = vand.u32 2147483647, %v3571
        %v3574 = vcvt.s32.f32 %v3567
        %v3575 = vmul.f32 %v3574, %v3572
        %v3576 = vxor.u32 %v3575, 2147483648
        %v3577 = vsel %vm3494, %v3576, %v3575
        %v3578 = vsub.s32 4, %v3554
        %v3579 = vsel %vm3494, %v3578, %v3554
        %v3580 = vsel %vm3493, %v3474, %v3577
        %v3581 = vsel %vm3493, 0, %v3579
        %v3582 = vcosq.f32.pop %v3580
        %v3583 = vsinq.f32.pop %v3580
        %vm3584 = vweird.f32 %v3474
        %v3585 = vadd.s32 %v3581, 3
        %v3586 = vand.u32 %v3585, 3
        %vm3587 = vcmp.lt.s32.totalorder %v3586, 2
        %vm3588 = vcmp.eq.s32.totalorder %v3586, 0
        %v3589 = vxor.u32 %v3583, 2147483648
        %v3590 = vsel %vm3588, %v3582, %v3589
        %vm3591 = vcmp.eq.s32.totalorder %v3586, 2
        %v3592 = vxor.u32 %v3582, 2147483648
        %v3593 = vsel %vm3591, %v3592, %v3583
        %v3594 = vsel %vm3587, %v3590, %v3593
        %v3595 = vsel %vm3584, nan, %v3594
        %v3596 = vand.u32 2147483647, %v3479
        %vm3597 = vcmp.le.f32.partialorder %v3596, 0.7853982
        %vm3598 = vcmp.lt.s32.totalorder %v3479, 0
        %v3599 = vand.u32 %v3479, 2139095040
        %v3600 = vshrl.u32 %v3599, 23
        %v3601 = vsub.s32 %v3600, 127
        %v3602 = vand.u32 2147483647, %v3479
        %v3603 = vand.u32 %v3602, 8388607
        %v3604 = vor.u32 %v3603, 8388608
        %v3605 = vsub.s32 0, %v3604
        %v3606 = vadd.s32 %v3601, 1
        %vm3607 = vcmp.gt.s32.totalorder %v3606, 0
        %v3608 = vsel %vm3607, %v3606, 0
        %v3609 = vshrl.u32 %v3608, 5
        %v3610 = vand.u32 %v3608, 31
        %v3611 = vsub.s32 32, %v3610
        %v3612 = vshrl.u32 683565275, %v3611
        %v3613 = vshll.u32 683565275, %v3610
        %v3614 = vshrl.u32 2475754826, %v3611
        %v3615 = vor.u32 %v3613, %v3614
        %v3616 = vshll.u32 2475754826, %v3610
        %v3617 = vshrl.u32 2131351028, %v3611
        %v3618 = vor.u32 %v3616, %v3617
        %v3619 = vshll.u32 2131351028, %v3610
        %v3620 = vshrl.u32 2102212464, %v3611
        %v3621 = vor.u32 %v3619, %v3620
        %v3622 = vshll.u32 2102212464, %v3610
        %v3623 = vshrl.u32 920167782, %v3611
        %v3624 = vor.u32 %v3622, %v3623
        %v3625 = vshll.u32 920167782, %v3610
        %v3626 = vshrl.u32 1326507024, %v3611
        %v3627 = vor.u32 %v3625, %v3626
        %vm3628 = vcmp.lt.s32.totalorder %v3609, 1
        %vm3629 = vcmp.lt.s32.totalorder %v3609, 2
        %vm3630 = vcmp.lt.s32.totalorder %v3609, 3
        %vm3631 = vcmp.lt.s32.totalorder %v3609, 4
        %v3632 = vsel %vm3628, %v3612, %v3615
        %v3633 = vsel %vm3631, %v3621, 2102212464
        %v3634 = vsel %vm3630, %v3618, %v3633
        %v3635 = vsel %vm3629, %v3632, %v3634
        %v3636 = vsel %vm3628, %v3615, %v3618
        %v3637 = vsel %vm3631, %v3624, 920167782
        %v3638 = vsel %vm3630, %v3621, %v3637
        %v3639 = vsel %vm3629, %v3636, %v3638
        %v3640 = vsel %vm3628, %v3618, %v3621
        %v3641 = vsel %vm3631, %v3627, 1326507024
        %v3642 = vsel %vm3630, %v3624, %v3641
        %v3643 = vsel %vm3629, %v3640, %v3642
        %v3644 = vshll.u32 %v3604, 8
        %v3645 = vmul.u32.u64.compose %v3644, %v3643
        %v3646 = vextract.low.u32 %v3645
        %v3647 = vextract.high.u32 %v3645
        %v3648 = vmul.u32.u64.compose %v3644, %v3639
        %v3649 = vextract.low.u32 %v3648
        %v3650 = vextract.high.u32 %v3648
        %v3651 = vmul.u32 %v3644, %v3635
        %v3652 = vadd.s32 %v3647, %v3649
        %vm3653 = vc.u32 %v3647, %v3649
        %v3654 = vadd.s32 %v3650, 1
        %v3655 = vsel %vm3653, %v3654, %v3650
        %v3656 = vadd.s32 %v3651, %v3655
        %v3657 = vadd.s32 %v3656, 536870912
        %v3658 = vshrl.u32 %v3657, 30
        %v3659 = vshll.u32 %v3658, 30
        %v3660 = vsub.s32 %v3656, %v3659
        %vm3661 = vcmp.lt.s32.totalorder %v3660, 0
        %v3662 = vsub.s32 0, %v3660
        %v3663 = vsel %vm3661, %v3662, %v3660
        %v3664 = vclz %v3663
        %v3665 = vsub.s32 %v3664, 2
        %vm3666 = vcmp.gt.s32.totalorder 0, %v3665
        %v3667 = vsel %vm3666, 0, %v3665
        %v3668 = vsub.s32 32, %v3667
        %v3669 = vshll.u32 %v3660, %v3667
        %v3670 = vshrl.u32 %v3652, %v3668
        %v3671 = vor.u32 %v3669, %v3670
        %v3672 = vsub.s32 4294967266, %v3667
        %v3673 = vadd.s32 %v3672, 127
        %v3674 = vshll.u32 %v3673, 23
        %v3675 = vor.u32 4788187, %v3674
        %v3676 = vand.u32 2147483647, %v3675
        %v3678 = vcvt.s32.f32 %v3671
        %v3679 = vmul.f32 %v3678, %v3676
        %v3680 = vxor.u32 %v3679, 2147483648
        %v3681 = vsel %vm3598, %v3680, %v3679
        %v3682 = vsub.s32 4, %v3658
        %v3683 = vsel %vm3598, %v3682, %v3658
        %v3684 = vsel %vm3597, %v3479, %v3681
        %v3685 = vsel %vm3597, 0, %v3683
        %v3686 = vcosq.f32.pop %v3684
        %v3687 = vsinq.f32.pop %v3684
        %vm3688 = vweird.f32 %v3479
        %v3689 = vadd.s32 %v3685, 3
        %v3690 = vand.u32 %v3689, 3
        %vm3691 = vcmp.lt.s32.totalorder %v3690, 2
        %vm3692 = vcmp.eq.s32.totalorder %v3690, 0
        %v3693 = vxor.u32 %v3687, 2147483648
        %v3694 = vsel %vm3692, %v3686, %v3693
        %vm3695 = vcmp.eq.s32.totalorder %v3690, 2
        %v3696 = vxor.u32 %v3686, 2147483648
        %v3697 = vsel %vm3695, %v3696, %v3687
        %v3698 = vsel %vm3691, %v3694, %v3697
        %v3699 = vsel %vm3688, nan, %v3698
        %v3700 = vand.u32 2147483647, %v3484
        %vm3701 = vcmp.le.f32.partialorder %v3700, 0.7853982
        %vm3702 = vcmp.lt.s32.totalorder %v3484, 0
        %v3703 = vand.u32 %v3484, 2139095040
        %v3704 = vshrl.u32 %v3703, 23
        %v3705 = vsub.s32 %v3704, 127
        %v3706 = vand.u32 2147483647, %v3484
        %v3707 = vand.u32 %v3706, 8388607
        %v3708 = vor.u32 %v3707, 8388608
        %v3709 = vsub.s32 0, %v3708
        %v3710 = vadd.s32 %v3705, 1
        %vm3711 = vcmp.gt.s32.totalorder %v3710, 0
        %v3712 = vsel %vm3711, %v3710, 0
        %v3713 = vshrl.u32 %v3712, 5
        %v3714 = vand.u32 %v3712, 31
        %v3715 = vsub.s32 32, %v3714
        %v3716 = vshrl.u32 683565275, %v3715
        %v3717 = vshll.u32 683565275, %v3714
        %v3718 = vshrl.u32 2475754826, %v3715
        %v3719 = vor.u32 %v3717, %v3718
        %v3720 = vshll.u32 2475754826, %v3714
        %v3721 = vshrl.u32 2131351028, %v3715
        %v3722 = vor.u32 %v3720, %v3721
        %v3723 = vshll.u32 2131351028, %v3714
        %v3724 = vshrl.u32 2102212464, %v3715
        %v3725 = vor.u32 %v3723, %v3724
        %v3726 = vshll.u32 2102212464, %v3714
        %v3727 = vshrl.u32 920167782, %v3715
        %v3728 = vor.u32 %v3726, %v3727
        %v3729 = vshll.u32 920167782, %v3714
        %v3730 = vshrl.u32 1326507024, %v3715
        %v3731 = vor.u32 %v3729, %v3730
        %vm3732 = vcmp.lt.s32.totalorder %v3713, 1
        %vm3733 = vcmp.lt.s32.totalorder %v3713, 2
        %vm3734 = vcmp.lt.s32.totalorder %v3713, 3
        %vm3735 = vcmp.lt.s32.totalorder %v3713, 4
        %v3736 = vsel %vm3732, %v3716, %v3719
        %v3737 = vsel %vm3735, %v3725, 2102212464
        %v3738 = vsel %vm3734, %v3722, %v3737
        %v3739 = vsel %vm3733, %v3736, %v3738
        %v3740 = vsel %vm3732, %v3719, %v3722
        %v3741 = vsel %vm3735, %v3728, 920167782
        %v3742 = vsel %vm3734, %v3725, %v3741
        %v3743 = vsel %vm3733, %v3740, %v3742
        %v3744 = vsel %vm3732, %v3722, %v3725
        %v3745 = vsel %vm3735, %v3731, 1326507024
        %v3746 = vsel %vm3734, %v3728, %v3745
        %v3747 = vsel %vm3733, %v3744, %v3746
        %v3748 = vshll.u32 %v3708, 8
        %v3749 = vmul.u32.u64.compose %v3748, %v3747
        %v3750 = vextract.low.u32 %v3749
        %v3751 = vextract.high.u32 %v3749
        %v3752 = vmul.u32.u64.compose %v3748, %v3743
        %v3753 = vextract.low.u32 %v3752
        %v3754 = vextract.high.u32 %v3752
        %v3755 = vmul.u32 %v3748, %v3739
        %v3756 = vadd.s32 %v3751, %v3753
        %vm3757 = vc.u32 %v3751, %v3753
        %v3758 = vadd.s32 %v3754, 1
        %v3759 = vsel %vm3757, %v3758, %v3754
        %v3760 = vadd.s32 %v3755, %v3759
        %v3761 = vadd.s32 %v3760, 536870912
        %v3762 = vshrl.u32 %v3761, 30
        %v3763 = vshll.u32 %v3762, 30
        %v3764 = vsub.s32 %v3760, %v3763
        %vm3765 = vcmp.lt.s32.totalorder %v3764, 0
        %v3766 = vsub.s32 0, %v3764
        %v3767 = vsel %vm3765, %v3766, %v3764
        %v3768 = vclz %v3767
        %v3769 = vsub.s32 %v3768, 2
        %vm3770 = vcmp.gt.s32.totalorder 0, %v3769
        %v3771 = vsel %vm3770, 0, %v3769
        %v3772 = vsub.s32 32, %v3771
        %v3773 = vshll.u32 %v3764, %v3771
        %v3774 = vshrl.u32 %v3756, %v3772
        %v3775 = vor.u32 %v3773, %v3774
        %v3776 = vsub.s32 4294967266, %v3771
        %v3777 = vadd.s32 %v3776, 127
        %v3778 = vshll.u32 %v3777, 23
        %v3779 = vor.u32 4788187, %v3778
        %v3780 = vand.u32 2147483647, %v3779
        %v3782 = vcvt.s32.f32 %v3775
        %v3783 = vmul.f32 %v3782, %v3780
        %v3784 = vxor.u32 %v3783, 2147483648
        %v3785 = vsel %vm3702, %v3784, %v3783
        %v3786 = vsub.s32 4, %v3762
        %v3787 = vsel %vm3702, %v3786, %v3762
        %v3788 = vsel %vm3701, %v3484, %v3785
        %v3789 = vsel %vm3701, 0, %v3787
        %v3790 = vcosq.f32.pop %v3788
        %v3791 = vsinq.f32.pop %v3788
        %vm3792 = vweird.f32 %v3484
        %v3793 = vadd.s32 %v3789, 3
        %v3794 = vand.u32 %v3793, 3
        %vm3795 = vcmp.lt.s32.totalorder %v3794, 2
        %vm3796 = vcmp.eq.s32.totalorder %v3794, 0
        %v3797 = vxor.u32 %v3791, 2147483648
        %v3798 = vsel %vm3796, %v3790, %v3797
        %vm3799 = vcmp.eq.s32.totalorder %v3794, 2
        %v3800 = vxor.u32 %v3790, 2147483648
        %v3801 = vsel %vm3799, %v3800, %v3791
        %v3802 = vsel %vm3795, %v3798, %v3801
        %v3803 = vsel %vm3792, nan, %v3802
        %v3804 = vand.u32 2147483647, %v3489
        %vm3805 = vcmp.le.f32.partialorder %v3804, 0.7853982
        %vm3806 = vcmp.lt.s32.totalorder %v3489, 0
        %v3807 = vand.u32 %v3489, 2139095040
        %v3808 = vshrl.u32 %v3807, 23
        %v3809 = vsub.s32 %v3808, 127
        %v3810 = vand.u32 2147483647, %v3489
        %v3811 = vand.u32 %v3810, 8388607
        %v3812 = vor.u32 %v3811, 8388608
        %v3813 = vsub.s32 0, %v3812
        %v3814 = vadd.s32 %v3809, 1
        %vm3815 = vcmp.gt.s32.totalorder %v3814, 0
        %v3816 = vsel %vm3815, %v3814, 0
        %v3817 = vshrl.u32 %v3816, 5
        %v3818 = vand.u32 %v3816, 31
        %v3819 = vsub.s32 32, %v3818
        %v3820 = vshrl.u32 683565275, %v3819
        %v3821 = vshll.u32 683565275, %v3818
        %v3822 = vshrl.u32 2475754826, %v3819
        %v3823 = vor.u32 %v3821, %v3822
        %v3824 = vshll.u32 2475754826, %v3818
        %v3825 = vshrl.u32 2131351028, %v3819
        %v3826 = vor.u32 %v3824, %v3825
        %v3827 = vshll.u32 2131351028, %v3818
        %v3828 = vshrl.u32 2102212464, %v3819
        %v3829 = vor.u32 %v3827, %v3828
        %v3830 = vshll.u32 2102212464, %v3818
        %v3831 = vshrl.u32 920167782, %v3819
        %v3832 = vor.u32 %v3830, %v3831
        %v3833 = vshll.u32 920167782, %v3818
        %v3834 = vshrl.u32 1326507024, %v3819
        %v3835 = vor.u32 %v3833, %v3834
        %vm3836 = vcmp.lt.s32.totalorder %v3817, 1
        %vm3837 = vcmp.lt.s32.totalorder %v3817, 2
        %vm3838 = vcmp.lt.s32.totalorder %v3817, 3
        %vm3839 = vcmp.lt.s32.totalorder %v3817, 4
        %v3840 = vsel %vm3836, %v3820, %v3823
        %v3841 = vsel %vm3839, %v3829, 2102212464
        %v3842 = vsel %vm3838, %v3826, %v3841
        %v3843 = vsel %vm3837, %v3840, %v3842
        %v3844 = vsel %vm3836, %v3823, %v3826
        %v3845 = vsel %vm3839, %v3832, 920167782
        %v3846 = vsel %vm3838, %v3829, %v3845
        %v3847 = vsel %vm3837, %v3844, %v3846
        %v3848 = vsel %vm3836, %v3826, %v3829
        %v3849 = vsel %vm3839, %v3835, 1326507024
        %v3850 = vsel %vm3838, %v3832, %v3849
        %v3851 = vsel %vm3837, %v3848, %v3850
        %v3852 = vshll.u32 %v3812, 8
        %v3853 = vmul.u32.u64.compose %v3852, %v3851
        %v3854 = vextract.low.u32 %v3853
        %v3855 = vextract.high.u32 %v3853
        %v3856 = vmul.u32.u64.compose %v3852, %v3847
        %v3857 = vextract.low.u32 %v3856
        %v3858 = vextract.high.u32 %v3856
        %v3859 = vmul.u32 %v3852, %v3843
        %v3860 = vadd.s32 %v3855, %v3857
        %vm3861 = vc.u32 %v3855, %v3857
        %v3862 = vadd.s32 %v3858, 1
        %v3863 = vsel %vm3861, %v3862, %v3858
        %v3864 = vadd.s32 %v3859, %v3863
        %v3865 = vadd.s32 %v3864, 536870912
        %v3866 = vshrl.u32 %v3865, 30
        %v3867 = vshll.u32 %v3866, 30
        %v3868 = vsub.s32 %v3864, %v3867
        %vm3869 = vcmp.lt.s32.totalorder %v3868, 0
        %v3870 = vsub.s32 0, %v3868
        %v3871 = vsel %vm3869, %v3870, %v3868
        %v3872 = vclz %v3871
        %v3873 = vsub.s32 %v3872, 2
        %vm3874 = vcmp.gt.s32.totalorder 0, %v3873
        %v3875 = vsel %vm3874, 0, %v3873
        %v3876 = vsub.s32 32, %v3875
        %v3877 = vshll.u32 %v3868, %v3875
        %v3878 = vshrl.u32 %v3860, %v3876
        %v3879 = vor.u32 %v3877, %v3878
        %v3880 = vsub.s32 4294967266, %v3875
        %v3881 = vadd.s32 %v3880, 127
        %v3882 = vshll.u32 %v3881, 23
        %v3883 = vor.u32 4788187, %v3882
        %v3884 = vand.u32 2147483647, %v3883
        %v3886 = vcvt.s32.f32 %v3879
        %v3887 = vmul.f32 %v3886, %v3884
        %v3888 = vxor.u32 %v3887, 2147483648
        %v3889 = vsel %vm3806, %v3888, %v3887
        %v3890 = vsub.s32 4, %v3866
        %v3891 = vsel %vm3806, %v3890, %v3866
        %v3892 = vsel %vm3805, %v3489, %v3889
        %v3893 = vsel %vm3805, 0, %v3891
        %v3894 = vcosq.f32.pop %v3892
        %v3895 = vsinq.f32.pop %v3892
        %vm3896 = vweird.f32 %v3489
        %v3897 = vadd.s32 %v3893, 3
        %v3898 = vand.u32 %v3897, 3
        %vm3899 = vcmp.lt.s32.totalorder %v3898, 2
        %vm3900 = vcmp.eq.s32.totalorder %v3898, 0
        %v3901 = vxor.u32 %v3895, 2147483648
        %v3902 = vsel %vm3900, %v3894, %v3901
        %vm3903 = vcmp.eq.s32.totalorder %v3898, 2
        %v3904 = vxor.u32 %v3894, 2147483648
        %v3905 = vsel %vm3903, %v3904, %v3895
        %v3906 = vsel %vm3899, %v3902, %v3905
        %v3907 = vsel %vm3896, nan, %v3906
        %3908 = vmatprep.subr.mxu0 0.0
        %3909 = vmatpush1.msra.mxu0 %v3371
        %3910 = vmatprep.subr.mxu0 0.0
        %3911 = vmatpush1.msra.mxu0 %v3372
        %3912 = vmatprep.subr.mxu0 0.0
        %3913 = vmatpush1.msra.mxu0 %v3373
        %3914 = vmatprep.subr.mxu0 0.0
        %3915 = vmatpush1.msra.mxu0 %v3374
        %3916 = vmatprep.subr.mxu0 0.0
        %3917 = vmatpush1.msra.mxu0 0.0
        %3918 = vmatprep.subr.mxu0 0.0
        %3919 = vmatpush1.msra.mxu0 0.0
        %3920 = vmatprep.subr.mxu0 0.0
        %3921 = vmatpush1.msra.mxu0 0.0
        %3922 = vmatprep.subr.mxu0 0.0
        %3923 = vmatpush1.msra.mxu0 0.0
        %3924 = vmatprep.subr.mxu0 0.0
        %3925 = vmatpush1.msra.mxu0 0.0
        %3926 = vmatprep.subr.mxu0 0.0
        %3927 = vmatpush1.msra.mxu0 0.0
        %3928 = vmatprep.subr.mxu0 0.0
        %3929 = vmatpush1.msra.mxu0 0.0
        %3930 = vmatprep.subr.mxu0 0.0
        %3931 = vmatpush1.msra.mxu0 0.0
        %3932 = vmatprep.subr.mxu0 0.0
        %3933 = vmatpush1.msra.mxu0 0.0
        %3934 = vmatprep.subr.mxu0 0.0
        %3935 = vmatpush1.msra.mxu0 0.0
        %3936 = vmatprep.subr.mxu0 0.0
        %3937 = vmatpush1.msra.mxu0 0.0
        %3938 = vmatprep.subr.mxu0 0.0
        %3939 = vmatpush1.msra.mxu0 0.0
        %3940 = vmatprep.subr.mxu0 0.0
        %3941 = vmatpush1.msra.mxu0 0.0
        %3942 = vmatprep.subr.mxu0 0.0
        %3943 = vmatpush1.msra.mxu0 0.0
        %3944 = vmatprep.subr.mxu0 0.0
        %3945 = vmatpush1.msra.mxu0 0.0
        %3946 = vmatprep.subr.mxu0 0.0
        %3947 = vmatpush1.msra.mxu0 0.0
        %3948 = vmatprep.subr.mxu0 0.0
        %3949 = vmatpush1.msra.mxu0 0.0
        %3950 = vmatprep.subr.mxu0 0.0
        %3951 = vmatpush1.msra.mxu0 0.0
        %3952 = vmatprep.subr.mxu0 0.0
        %3953 = vmatpush1.msra.mxu0 0.0
        %3954 = vmatprep.subr.mxu0 0.0
        %3955 = vmatpush1.msra.mxu0 0.0
        %3956 = vmatprep.subr.mxu0 0.0
        %3957 = vmatpush1.msra.mxu0 0.0
        %3958 = vmatprep.subr.mxu0 0.0
        %3959 = vmatpush1.msra.mxu0 0.0
        %3960 = vmatprep.subr.mxu0 0.0
        %3961 = vmatpush1.msra.mxu0 0.0
        %3962 = vmatprep.subr.mxu0 0.0
        %3963 = vmatpush1.msra.mxu0 0.0
        %3964 = vmatprep.subr.mxu0 0.0
        %3965 = vmatpush1.msra.mxu0 0.0
        %3966 = vmatprep.subr.mxu0 0.0
        %3967 = vmatpush1.msra.mxu0 0.0
        %3968 = vmatprep.subr.mxu0 0.0
        %3969 = vmatpush1.msra.mxu0 0.0
        %3970 = vmatprep.subr.mxu0 0.0
        %3971 = vmatpush1.msra.mxu0 0.0
        %3972 = vmatprep.mubr.f32.mxu0 0.0
        %3973 = vmatmul.mubr.f32.gmra.mrb[0].mxu0 %v3396
        %v3974 = vpop.f32.mrb[0].mxu0
        %v3975 = vadd.f32 %v3378, %v3974
        %v3976 = vpop.f32.mrb[0].mxu0
        %3977 = vmatprep.mubr.f32.mxu0 0.0
        %3978 = vmatmul.mubr.f32.gmra.mrb[0].mxu0 %v3399
        %v3979 = vpop.f32.mrb[0].mxu0
        %v3980 = vadd.f32 %v3383, %v3979
        %v3981 = vpop.f32.mrb[0].mxu0
        %3982 = vmatprep.mubr.f32.mxu0 0.0
        %3983 = vmatmul.mubr.f32.gmra.mrb[0].mxu0 %v3402
        %v3984 = vpop.f32.mrb[0].mxu0
        %v3985 = vadd.f32 %v3388, %v3984
        %v3986 = vpop.f32.mrb[0].mxu0
        %3987 = vmatprep.mubr.f32.mxu0 0.0
        %3988 = vmatmul.mubr.f32.gmra.mrb[0].mxu0 %v3405
        %v3989 = vpop.f32.mrb[0].mxu0
        %v3990 = vadd.f32 %v3393, %v3989
        %v3991 = vpop.f32.mrb[0].mxu0
        %3992 = vdwg.mxu0
        %v3993 = vand.u32 2147483647, %v3975
        %vm3994 = vcmp.le.f32.partialorder %v3993, 0.7853982
        %vm3995 = vcmp.lt.s32.totalorder %v3975, 0
        %v3996 = vand.u32 %v3975, 2139095040
        %v3997 = vshrl.u32 %v3996, 23
        %v3998 = vsub.s32 %v3997, 127
        %v3999 = vand.u32 2147483647, %v3975
        %v4000 = vand.u32 %v3999, 8388607
        %v4001 = vor.u32 %v4000, 8388608
        %v4002 = vsub.s32 0, %v4001
        %v4003 = vadd.s32 %v3998, 1
        %vm4004 = vcmp.gt.s32.totalorder %v4003, 0
        %v4005 = vsel %vm4004, %v4003, 0
        %v4006 = vshrl.u32 %v4005, 5
        %v4007 = vand.u32 %v4005, 31
        %v4008 = vsub.s32 32, %v4007
        %v4009 = vshrl.u32 683565275, %v4008
        %v4010 = vshll.u32 683565275, %v4007
        %v4011 = vshrl.u32 2475754826, %v4008
        %v4012 = vor.u32 %v4010, %v4011
        %v4013 = vshll.u32 2475754826, %v4007
        %v4014 = vshrl.u32 2131351028, %v4008
        %v4015 = vor.u32 %v4013, %v4014
        %v4016 = vshll.u32 2131351028, %v4007
        %v4017 = vshrl.u32 2102212464, %v4008
        %v4018 = vor.u32 %v4016, %v4017
        %v4019 = vshll.u32 2102212464, %v4007
        %v4020 = vshrl.u32 920167782, %v4008
        %v4021 = vor.u32 %v4019, %v4020
        %v4022 = vshll.u32 920167782, %v4007
        %v4023 = vshrl.u32 1326507024, %v4008
        %v4024 = vor.u32 %v4022, %v4023
        %vm4025 = vcmp.lt.s32.totalorder %v4006, 1
        %vm4026 = vcmp.lt.s32.totalorder %v4006, 2
        %vm4027 = vcmp.lt.s32.totalorder %v4006, 3
        %vm4028 = vcmp.lt.s32.totalorder %v4006, 4
        %v4029 = vsel %vm4025, %v4009, %v4012
        %v4030 = vsel %vm4028, %v4018, 2102212464
        %v4031 = vsel %vm4027, %v4015, %v4030
        %v4032 = vsel %vm4026, %v4029, %v4031
        %v4033 = vsel %vm4025, %v4012, %v4015
        %v4034 = vsel %vm4028, %v4021, 920167782
        %v4035 = vsel %vm4027, %v4018, %v4034
        %v4036 = vsel %vm4026, %v4033, %v4035
        %v4037 = vsel %vm4025, %v4015, %v4018
        %v4038 = vsel %vm4028, %v4024, 1326507024
        %v4039 = vsel %vm4027, %v4021, %v4038
        %v4040 = vsel %vm4026, %v4037, %v4039
        %v4041 = vshll.u32 %v4001, 8
        %v4042 = vmul.u32.u64.compose %v4041, %v4040
        %v4043 = vextract.low.u32 %v4042
        %v4044 = vextract.high.u32 %v4042
        %v4045 = vmul.u32.u64.compose %v4041, %v4036
        %v4046 = vextract.low.u32 %v4045
        %v4047 = vextract.high.u32 %v4045
        %v4048 = vmul.u32 %v4041, %v4032
        %v4049 = vadd.s32 %v4044, %v4046
        %vm4050 = vc.u32 %v4044, %v4046
        %v4051 = vadd.s32 %v4047, 1
        %v4052 = vsel %vm4050, %v4051, %v4047
        %v4053 = vadd.s32 %v4048, %v4052
        %v4054 = vadd.s32 %v4053, 536870912
        %v4055 = vshrl.u32 %v4054, 30
        %v4056 = vshll.u32 %v4055, 30
        %v4057 = vsub.s32 %v4053, %v4056
        %vm4058 = vcmp.lt.s32.totalorder %v4057, 0
        %v4059 = vsub.s32 0, %v4057
        %v4060 = vsel %vm4058, %v4059, %v4057
        %v4061 = vclz %v4060
        %v4062 = vsub.s32 %v4061, 2
        %vm4063 = vcmp.gt.s32.totalorder 0, %v4062
        %v4064 = vsel %vm4063, 0, %v4062
        %v4065 = vsub.s32 32, %v4064
        %v4066 = vshll.u32 %v4057, %v4064
        %v4067 = vshrl.u32 %v4049, %v4065
        %v4068 = vor.u32 %v4066, %v4067
        %v4069 = vsub.s32 4294967266, %v4064
        %v4070 = vadd.s32 %v4069, 127
        %v4071 = vshll.u32 %v4070, 23
        %v4072 = vor.u32 4788187, %v4071
        %v4073 = vand.u32 2147483647, %v4072
        %v4075 = vcvt.s32.f32 %v4068
        %v4076 = vmul.f32 %v4075, %v4073
        %v4077 = vxor.u32 %v4076, 2147483648
        %v4078 = vsel %vm3995, %v4077, %v4076
        %v4079 = vsub.s32 4, %v4055
        %v4080 = vsel %vm3995, %v4079, %v4055
        %v4081 = vsel %vm3994, %v3975, %v4078
        %v4082 = vsel %vm3994, 0, %v4080
        %v4083 = vcosq.f32.pop %v4081
        %v4084 = vsinq.f32.pop %v4081
        %vm4085 = vweird.f32 %v3975
        %v4086 = vadd.s32 %v4082, 3
        %v4087 = vand.u32 %v4086, 3
        %vm4088 = vcmp.lt.s32.totalorder %v4087, 2
        %vm4089 = vcmp.eq.s32.totalorder %v4087, 0
        %v4090 = vxor.u32 %v4084, 2147483648
        %v4091 = vsel %vm4089, %v4083, %v4090
        %vm4092 = vcmp.eq.s32.totalorder %v4087, 2
        %v4093 = vxor.u32 %v4083, 2147483648
        %v4094 = vsel %vm4092, %v4093, %v4084
        %v4095 = vsel %vm4088, %v4091, %v4094
        %v4096 = vsel %vm4085, nan, %v4095
        %v4097 = vand.u32 2147483647, %v3980
        %vm4098 = vcmp.le.f32.partialorder %v4097, 0.7853982
        %vm4099 = vcmp.lt.s32.totalorder %v3980, 0
        %v4100 = vand.u32 %v3980, 2139095040
        %v4101 = vshrl.u32 %v4100, 23
        %v4102 = vsub.s32 %v4101, 127
        %v4103 = vand.u32 2147483647, %v3980
        %v4104 = vand.u32 %v4103, 8388607
        %v4105 = vor.u32 %v4104, 8388608
        %v4106 = vsub.s32 0, %v4105
        %v4107 = vadd.s32 %v4102, 1
        %vm4108 = vcmp.gt.s32.totalorder %v4107, 0
        %v4109 = vsel %vm4108, %v4107, 0
        %v4110 = vshrl.u32 %v4109, 5
        %v4111 = vand.u32 %v4109, 31
        %v4112 = vsub.s32 32, %v4111
        %v4113 = vshrl.u32 683565275, %v4112
        %v4114 = vshll.u32 683565275, %v4111
        %v4115 = vshrl.u32 2475754826, %v4112
        %v4116 = vor.u32 %v4114, %v4115
        %v4117 = vshll.u32 2475754826, %v4111
        %v4118 = vshrl.u32 2131351028, %v4112
        %v4119 = vor.u32 %v4117, %v4118
        %v4120 = vshll.u32 2131351028, %v4111
        %v4121 = vshrl.u32 2102212464, %v4112
        %v4122 = vor.u32 %v4120, %v4121
        %v4123 = vshll.u32 2102212464, %v4111
        %v4124 = vshrl.u32 920167782, %v4112
        %v4125 = vor.u32 %v4123, %v4124
        %v4126 = vshll.u32 920167782, %v4111
        %v4127 = vshrl.u32 1326507024, %v4112
        %v4128 = vor.u32 %v4126, %v4127
        %vm4129 = vcmp.lt.s32.totalorder %v4110, 1
        %vm4130 = vcmp.lt.s32.totalorder %v4110, 2
        %vm4131 = vcmp.lt.s32.totalorder %v4110, 3
        %vm4132 = vcmp.lt.s32.totalorder %v4110, 4
        %v4133 = vsel %vm4129, %v4113, %v4116
        %v4134 = vsel %vm4132, %v4122, 2102212464
        %v4135 = vsel %vm4131, %v4119, %v4134
        %v4136 = vsel %vm4130, %v4133, %v4135
        %v4137 = vsel %vm4129, %v4116, %v4119
        %v4138 = vsel %vm4132, %v4125, 920167782
        %v4139 = vsel %vm4131, %v4122, %v4138
        %v4140 = vsel %vm4130, %v4137, %v4139
        %v4141 = vsel %vm4129, %v4119, %v4122
        %v4142 = vsel %vm4132, %v4128, 1326507024
        %v4143 = vsel %vm4131, %v4125, %v4142
        %v4144 = vsel %vm4130, %v4141, %v4143
        %v4145 = vshll.u32 %v4105, 8
        %v4146 = vmul.u32.u64.compose %v4145, %v4144
        %v4147 = vextract.low.u32 %v4146
        %v4148 = vextract.high.u32 %v4146
        %v4149 = vmul.u32.u64.compose %v4145, %v4140
        %v4150 = vextract.low.u32 %v4149
        %v4151 = vextract.high.u32 %v4149
        %v4152 = vmul.u32 %v4145, %v4136
        %v4153 = vadd.s32 %v4148, %v4150
        %vm4154 = vc.u32 %v4148, %v4150
        %v4155 = vadd.s32 %v4151, 1
        %v4156 = vsel %vm4154, %v4155, %v4151
        %v4157 = vadd.s32 %v4152, %v4156
        %v4158 = vadd.s32 %v4157, 536870912
        %v4159 = vshrl.u32 %v4158, 30
        %v4160 = vshll.u32 %v4159, 30
        %v4161 = vsub.s32 %v4157, %v4160
        %vm4162 = vcmp.lt.s32.totalorder %v4161, 0
        %v4163 = vsub.s32 0, %v4161
        %v4164 = vsel %vm4162, %v4163, %v4161
        %v4165 = vclz %v4164
        %v4166 = vsub.s32 %v4165, 2
        %vm4167 = vcmp.gt.s32.totalorder 0, %v4166
        %v4168 = vsel %vm4167, 0, %v4166
        %v4169 = vsub.s32 32, %v4168
        %v4170 = vshll.u32 %v4161, %v4168
        %v4171 = vshrl.u32 %v4153, %v4169
        %v4172 = vor.u32 %v4170, %v4171
        %v4173 = vsub.s32 4294967266, %v4168
        %v4174 = vadd.s32 %v4173, 127
        %v4175 = vshll.u32 %v4174, 23
        %v4176 = vor.u32 4788187, %v4175
        %v4177 = vand.u32 2147483647, %v4176
        %v4179 = vcvt.s32.f32 %v4172
        %v4180 = vmul.f32 %v4179, %v4177
        %v4181 = vxor.u32 %v4180, 2147483648
        %v4182 = vsel %vm4099, %v4181, %v4180
        %v4183 = vsub.s32 4, %v4159
        %v4184 = vsel %vm4099, %v4183, %v4159
        %v4185 = vsel %vm4098, %v3980, %v4182
        %v4186 = vsel %vm4098, 0, %v4184
        %v4187 = vcosq.f32.pop %v4185
        %v4188 = vsinq.f32.pop %v4185
        %vm4189 = vweird.f32 %v3980
        %v4190 = vadd.s32 %v4186, 3
        %v4191 = vand.u32 %v4190, 3
        %vm4192 = vcmp.lt.s32.totalorder %v4191, 2
        %vm4193 = vcmp.eq.s32.totalorder %v4191, 0
        %v4194 = vxor.u32 %v4188, 2147483648
        %v4195 = vsel %vm4193, %v4187, %v4194
        %vm4196 = vcmp.eq.s32.totalorder %v4191, 2
        %v4197 = vxor.u32 %v4187, 2147483648
        %v4198 = vsel %vm4196, %v4197, %v4188
        %v4199 = vsel %vm4192, %v4195, %v4198
        %v4200 = vsel %vm4189, nan, %v4199
        %v4201 = vand.u32 2147483647, %v3985
        %vm4202 = vcmp.le.f32.partialorder %v4201, 0.7853982
        %vm4203 = vcmp.lt.s32.totalorder %v3985, 0
        %v4204 = vand.u32 %v3985, 2139095040
        %v4205 = vshrl.u32 %v4204, 23
        %v4206 = vsub.s32 %v4205, 127
        %v4207 = vand.u32 2147483647, %v3985
        %v4208 = vand.u32 %v4207, 8388607
        %v4209 = vor.u32 %v4208, 8388608
        %v4210 = vsub.s32 0, %v4209
        %v4211 = vadd.s32 %v4206, 1
        %vm4212 = vcmp.gt.s32.totalorder %v4211, 0
        %v4213 = vsel %vm4212, %v4211, 0
        %v4214 = vshrl.u32 %v4213, 5
        %v4215 = vand.u32 %v4213, 31
        %v4216 = vsub.s32 32, %v4215
        %v4217 = vshrl.u32 683565275, %v4216
        %v4218 = vshll.u32 683565275, %v4215
        %v4219 = vshrl.u32 2475754826, %v4216
        %v4220 = vor.u32 %v4218, %v4219
        %v4221 = vshll.u32 2475754826, %v4215
        %v4222 = vshrl.u32 2131351028, %v4216
        %v4223 = vor.u32 %v4221, %v4222
        %v4224 = vshll.u32 2131351028, %v4215
        %v4225 = vshrl.u32 2102212464, %v4216
        %v4226 = vor.u32 %v4224, %v4225
        %v4227 = vshll.u32 2102212464, %v4215
        %v4228 = vshrl.u32 920167782, %v4216
        %v4229 = vor.u32 %v4227, %v4228
        %v4230 = vshll.u32 920167782, %v4215
        %v4231 = vshrl.u32 1326507024, %v4216
        %v4232 = vor.u32 %v4230, %v4231
        %vm4233 = vcmp.lt.s32.totalorder %v4214, 1
        %vm4234 = vcmp.lt.s32.totalorder %v4214, 2
        %vm4235 = vcmp.lt.s32.totalorder %v4214, 3
        %vm4236 = vcmp.lt.s32.totalorder %v4214, 4
        %v4237 = vsel %vm4233, %v4217, %v4220
        %v4238 = vsel %vm4236, %v4226, 2102212464
        %v4239 = vsel %vm4235, %v4223, %v4238
        %v4240 = vsel %vm4234, %v4237, %v4239
        %v4241 = vsel %vm4233, %v4220, %v4223
        %v4242 = vsel %vm4236, %v4229, 920167782
        %v4243 = vsel %vm4235, %v4226, %v4242
        %v4244 = vsel %vm4234, %v4241, %v4243
        %v4245 = vsel %vm4233, %v4223, %v4226
        %v4246 = vsel %vm4236, %v4232, 1326507024
        %v4247 = vsel %vm4235, %v4229, %v4246
        %v4248 = vsel %vm4234, %v4245, %v4247
        %v4249 = vshll.u32 %v4209, 8
        %v4250 = vmul.u32.u64.compose %v4249, %v4248
        %v4251 = vextract.low.u32 %v4250
        %v4252 = vextract.high.u32 %v4250
        %v4253 = vmul.u32.u64.compose %v4249, %v4244
        %v4254 = vextract.low.u32 %v4253
        %v4255 = vextract.high.u32 %v4253
        %v4256 = vmul.u32 %v4249, %v4240
        %v4257 = vadd.s32 %v4252, %v4254
        %vm4258 = vc.u32 %v4252, %v4254
        %v4259 = vadd.s32 %v4255, 1
        %v4260 = vsel %vm4258, %v4259, %v4255
        %v4261 = vadd.s32 %v4256, %v4260
        %v4262 = vadd.s32 %v4261, 536870912
        %v4263 = vshrl.u32 %v4262, 30
        %v4264 = vshll.u32 %v4263, 30
        %v4265 = vsub.s32 %v4261, %v4264
        %vm4266 = vcmp.lt.s32.totalorder %v4265, 0
        %v4267 = vsub.s32 0, %v4265
        %v4268 = vsel %vm4266, %v4267, %v4265
        %v4269 = vclz %v4268
        %v4270 = vsub.s32 %v4269, 2
        %vm4271 = vcmp.gt.s32.totalorder 0, %v4270
        %v4272 = vsel %vm4271, 0, %v4270
        %v4273 = vsub.s32 32, %v4272
        %v4274 = vshll.u32 %v4265, %v4272
        %v4275 = vshrl.u32 %v4257, %v4273
        %v4276 = vor.u32 %v4274, %v4275
        %v4277 = vsub.s32 4294967266, %v4272
        %v4278 = vadd.s32 %v4277, 127
        %v4279 = vshll.u32 %v4278, 23
        %v4280 = vor.u32 4788187, %v4279
        %v4281 = vand.u32 2147483647, %v4280
        %v4283 = vcvt.s32.f32 %v4276
        %v4284 = vmul.f32 %v4283, %v4281
        %v4285 = vxor.u32 %v4284, 2147483648
        %v4286 = vsel %vm4203, %v4285, %v4284
        %v4287 = vsub.s32 4, %v4263
        %v4288 = vsel %vm4203, %v4287, %v4263
        %v4289 = vsel %vm4202, %v3985, %v4286
        %v4290 = vsel %vm4202, 0, %v4288
        %v4291 = vcosq.f32.pop %v4289
        %v4292 = vsinq.f32.pop %v4289
        %vm4293 = vweird.f32 %v3985
        %v4294 = vadd.s32 %v4290, 3
        %v4295 = vand.u32 %v4294, 3
        %vm4296 = vcmp.lt.s32.totalorder %v4295, 2
        %vm4297 = vcmp.eq.s32.totalorder %v4295, 0
        %v4298 = vxor.u32 %v4292, 2147483648
        %v4299 = vsel %vm4297, %v4291, %v4298
        %vm4300 = vcmp.eq.s32.totalorder %v4295, 2
        %v4301 = vxor.u32 %v4291, 2147483648
        %v4302 = vsel %vm4300, %v4301, %v4292
        %v4303 = vsel %vm4296, %v4299, %v4302
        %v4304 = vsel %vm4293, nan, %v4303
        %v4305 = vand.u32 2147483647, %v3990
        %vm4306 = vcmp.le.f32.partialorder %v4305, 0.7853982
        %vm4307 = vcmp.lt.s32.totalorder %v3990, 0
        %v4308 = vand.u32 %v3990, 2139095040
        %v4309 = vshrl.u32 %v4308, 23
        %v4310 = vsub.s32 %v4309, 127
        %v4311 = vand.u32 2147483647, %v3990
        %v4312 = vand.u32 %v4311, 8388607
        %v4313 = vor.u32 %v4312, 8388608
        %v4314 = vsub.s32 0, %v4313
        %v4315 = vadd.s32 %v4310, 1
        %vm4316 = vcmp.gt.s32.totalorder %v4315, 0
        %v4317 = vsel %vm4316, %v4315, 0
        %v4318 = vshrl.u32 %v4317, 5
        %v4319 = vand.u32 %v4317, 31
        %v4320 = vsub.s32 32, %v4319
        %v4321 = vshrl.u32 683565275, %v4320
        %v4322 = vshll.u32 683565275, %v4319
        %v4323 = vshrl.u32 2475754826, %v4320
        %v4324 = vor.u32 %v4322, %v4323
        %v4325 = vshll.u32 2475754826, %v4319
        %v4326 = vshrl.u32 2131351028, %v4320
        %v4327 = vor.u32 %v4325, %v4326
        %v4328 = vshll.u32 2131351028, %v4319
        %v4329 = vshrl.u32 2102212464, %v4320
        %v4330 = vor.u32 %v4328, %v4329
        %v4331 = vshll.u32 2102212464, %v4319
        %v4332 = vshrl.u32 920167782, %v4320
        %v4333 = vor.u32 %v4331, %v4332
        %v4334 = vshll.u32 920167782, %v4319
        %v4335 = vshrl.u32 1326507024, %v4320
        %v4336 = vor.u32 %v4334, %v4335
        %vm4337 = vcmp.lt.s32.totalorder %v4318, 1
        %vm4338 = vcmp.lt.s32.totalorder %v4318, 2
        %vm4339 = vcmp.lt.s32.totalorder %v4318, 3
        %vm4340 = vcmp.lt.s32.totalorder %v4318, 4
        %v4341 = vsel %vm4337, %v4321, %v4324
        %v4342 = vsel %vm4340, %v4330, 2102212464
        %v4343 = vsel %vm4339, %v4327, %v4342
        %v4344 = vsel %vm4338, %v4341, %v4343
        %v4345 = vsel %vm4337, %v4324, %v4327
        %v4346 = vsel %vm4340, %v4333, 920167782
        %v4347 = vsel %vm4339, %v4330, %v4346
        %v4348 = vsel %vm4338, %v4345, %v4347
        %v4349 = vsel %vm4337, %v4327, %v4330
        %v4350 = vsel %vm4340, %v4336, 1326507024
        %v4351 = vsel %vm4339, %v4333, %v4350
        %v4352 = vsel %vm4338, %v4349, %v4351
        %v4353 = vshll.u32 %v4313, 8
        %v4354 = vmul.u32.u64.compose %v4353, %v4352
        %v4355 = vextract.low.u32 %v4354
        %v4356 = vextract.high.u32 %v4354
        %v4357 = vmul.u32.u64.compose %v4353, %v4348
        %v4358 = vextract.low.u32 %v4357
        %v4359 = vextract.high.u32 %v4357
        %v4360 = vmul.u32 %v4353, %v4344
        %v4361 = vadd.s32 %v4356, %v4358
        %vm4362 = vc.u32 %v4356, %v4358
        %v4363 = vadd.s32 %v4359, 1
        %v4364 = vsel %vm4362, %v4363, %v4359
        %v4365 = vadd.s32 %v4360, %v4364
        %v4366 = vadd.s32 %v4365, 536870912
        %v4367 = vshrl.u32 %v4366, 30
        %v4368 = vshll.u32 %v4367, 30
        %v4369 = vsub.s32 %v4365, %v4368
        %vm4370 = vcmp.lt.s32.totalorder %v4369, 0
        %v4371 = vsub.s32 0, %v4369
        %v4372 = vsel %vm4370, %v4371, %v4369
        %v4373 = vclz %v4372
        %v4374 = vsub.s32 %v4373, 2
        %vm4375 = vcmp.gt.s32.totalorder 0, %v4374
        %v4376 = vsel %vm4375, 0, %v4374
        %v4377 = vsub.s32 32, %v4376
        %v4378 = vshll.u32 %v4369, %v4376
        %v4379 = vshrl.u32 %v4361, %v4377
        %v4380 = vor.u32 %v4378, %v4379
        %v4381 = vsub.s32 4294967266, %v4376
        %v4382 = vadd.s32 %v4381, 127
        %v4383 = vshll.u32 %v4382, 23
        %v4384 = vor.u32 4788187, %v4383
        %v4385 = vand.u32 2147483647, %v4384
        %v4387 = vcvt.s32.f32 %v4380
        %v4388 = vmul.f32 %v4387, %v4385
        %v4389 = vxor.u32 %v4388, 2147483648
        %v4390 = vsel %vm4307, %v4389, %v4388
        %v4391 = vsub.s32 4, %v4367
        %v4392 = vsel %vm4307, %v4391, %v4367
        %v4393 = vsel %vm4306, %v3990, %v4390
        %v4394 = vsel %vm4306, 0, %v4392
        %v4395 = vcosq.f32.pop %v4393
        %v4396 = vsinq.f32.pop %v4393
        %vm4397 = vweird.f32 %v3990
        %v4398 = vadd.s32 %v4394, 3
        %v4399 = vand.u32 %v4398, 3
        %vm4400 = vcmp.lt.s32.totalorder %v4399, 2
        %vm4401 = vcmp.eq.s32.totalorder %v4399, 0
        %v4402 = vxor.u32 %v4396, 2147483648
        %v4403 = vsel %vm4401, %v4395, %v4402
        %vm4404 = vcmp.eq.s32.totalorder %v4399, 2
        %v4405 = vxor.u32 %v4395, 2147483648
        %v4406 = vsel %vm4404, %v4405, %v4396
        %v4407 = vsel %vm4400, %v4403, %v4406
        %v4408 = vsel %vm4397, nan, %v4407
        %4410 = vset.pattern.permute.xlu0 0
        %4411 = vperm.xlu0 %4410, %v327
        %v4412 = vpop.permute.xlu0 %4411
        %4415 = vset.pattern.permute.xlu0 0
        %4416 = vperm.xlu0 %4415, %v328
        %v4417 = vpop.permute.xlu0 %4416
        %4420 = vset.pattern.permute.xlu0 0
        %4421 = vperm.xlu0 %4420, %v329
        %v4422 = vpop.permute.xlu0 %4421
        %4425 = vset.pattern.permute.xlu0 0
        %4426 = vperm.xlu0 %4425, %v330
        %v4427 = vpop.permute.xlu0 %4426
        %v4430 = vsel %vm1318, %v303, 0
        %v4433 = vsel %vm1318, %v304, 0
        %v4436 = vsel %vm1318, %v305, 0
        %v4439 = vsel %vm1318, %v306, 0
        %4441 = vmatprep.subr.mxu0 0.0
        %4442 = vmatpush1.msra.mxu0 %v3595
        %4443 = vmatprep.subr.mxu0 0.0
        %4444 = vmatpush1.msra.mxu0 %v3699
        %4445 = vmatprep.subr.mxu0 0.0
        %4446 = vmatpush1.msra.mxu0 %v3803
        %4447 = vmatprep.subr.mxu0 0.0
        %4448 = vmatpush1.msra.mxu0 %v3907
        %4449 = vmatprep.subr.mxu0 0.0
        %4450 = vmatpush1.msra.mxu0 0.0
        %4451 = vmatprep.subr.mxu0 0.0
        %4452 = vmatpush1.msra.mxu0 0.0
        %4453 = vmatprep.subr.mxu0 0.0
        %4454 = vmatpush1.msra.mxu0 0.0
        %4455 = vmatprep.subr.mxu0 0.0
        %4456 = vmatpush1.msra.mxu0 0.0
        %4457 = vmatprep.subr.mxu0 0.0
        %4458 = vmatpush1.msra.mxu0 0.0
        %4459 = vmatprep.subr.mxu0 0.0
        %4460 = vmatpush1.msra.mxu0 0.0
        %4461 = vmatprep.subr.mxu0 0.0
        %4462 = vmatpush1.msra.mxu0 0.0
        %4463 = vmatprep.subr.mxu0 0.0
        %4464 = vmatpush1.msra.mxu0 0.0
        %4465 = vmatprep.subr.mxu0 0.0
        %4466 = vmatpush1.msra.mxu0 0.0
        %4467 = vmatprep.subr.mxu0 0.0
        %4468 = vmatpush1.msra.mxu0 0.0
        %4469 = vmatprep.subr.mxu0 0.0
        %4470 = vmatpush1.msra.mxu0 0.0
        %4471 = vmatprep.subr.mxu0 0.0
        %4472 = vmatpush1.msra.mxu0 0.0
        %4473 = vmatprep.subr.mxu0 0.0
        %4474 = vmatpush1.msra.mxu0 0.0
        %4475 = vmatprep.subr.mxu0 0.0
        %4476 = vmatpush1.msra.mxu0 0.0
        %4477 = vmatprep.subr.mxu0 0.0
        %4478 = vmatpush1.msra.mxu0 0.0
        %4479 = vmatprep.subr.mxu0 0.0
        %4480 = vmatpush1.msra.mxu0 0.0
        %4481 = vmatprep.subr.mxu0 0.0
        %4482 = vmatpush1.msra.mxu0 0.0
        %4483 = vmatprep.subr.mxu0 0.0
        %4484 = vmatpush1.msra.mxu0 0.0
        %4485 = vmatprep.subr.mxu0 0.0
        %4486 = vmatpush1.msra.mxu0 0.0
        %4487 = vmatprep.subr.mxu0 0.0
        %4488 = vmatpush1.msra.mxu0 0.0
        %4489 = vmatprep.subr.mxu0 0.0
        %4490 = vmatpush1.msra.mxu0 0.0
        %4491 = vmatprep.subr.mxu0 0.0
        %4492 = vmatpush1.msra.mxu0 0.0
        %4493 = vmatprep.subr.mxu0 0.0
        %4494 = vmatpush1.msra.mxu0 0.0
        %4495 = vmatprep.subr.mxu0 0.0
        %4496 = vmatpush1.msra.mxu0 0.0
        %4497 = vmatprep.subr.mxu0 0.0
        %4498 = vmatpush1.msra.mxu0 0.0
        %4499 = vmatprep.subr.mxu0 0.0
        %4500 = vmatpush1.msra.mxu0 0.0
        %4501 = vmatprep.subr.mxu0 0.0
        %4502 = vmatpush1.msra.mxu0 0.0
        %4503 = vmatprep.subr.mxu0 0.0
        %4504 = vmatpush1.msra.mxu0 0.0
        %4505 = vmatprep.mubr.f32.mxu0 0.0
        %4506 = vmatmul.mubr.f32.gmra.mrb[0].mxu0 %v4430
        %v4507 = vpop.f32.mrb[0].mxu0
        %v4508 = vadd.f32 %v4412, %v4507
        %v4509 = vpop.f32.mrb[0].mxu0
        %4510 = vmatprep.mubr.f32.mxu0 0.0
        %4511 = vmatmul.mubr.f32.gmra.mrb[0].mxu0 %v4433
        %v4512 = vpop.f32.mrb[0].mxu0
        %v4513 = vadd.f32 %v4417, %v4512
        %v4514 = vpop.f32.mrb[0].mxu0
        %4515 = vmatprep.mubr.f32.mxu0 0.0
        %4516 = vmatmul.mubr.f32.gmra.mrb[0].mxu0 %v4436
        %v4517 = vpop.f32.mrb[0].mxu0
        %v4518 = vadd.f32 %v4422, %v4517
        %v4519 = vpop.f32.mrb[0].mxu0
        %4520 = vmatprep.mubr.f32.mxu0 0.0
        %4521 = vmatmul.mubr.f32.gmra.mrb[0].mxu0 %v4439
        %v4522 = vpop.f32.mrb[0].mxu0
        %v4523 = vadd.f32 %v4427, %v4522
        %v4524 = vpop.f32.mrb[0].mxu0
        %4525 = vdwg.mxu0
        %v4526 = vand.u32 2147483647, %v4508
        %vm4527 = vcmp.le.f32.partialorder %v4526, 0.7853982
        %vm4528 = vcmp.lt.s32.totalorder %v4508, 0
        %v4529 = vand.u32 %v4508, 2139095040
        %v4530 = vshrl.u32 %v4529, 23
        %v4531 = vsub.s32 %v4530, 127
        %v4532 = vand.u32 2147483647, %v4508
        %v4533 = vand.u32 %v4532, 8388607
        %v4534 = vor.u32 %v4533, 8388608
        %v4535 = vsub.s32 0, %v4534
        %v4536 = vadd.s32 %v4531, 1
        %vm4537 = vcmp.gt.s32.totalorder %v4536, 0
        %v4538 = vsel %vm4537, %v4536, 0
        %v4539 = vshrl.u32 %v4538, 5
        %v4540 = vand.u32 %v4538, 31
        %v4541 = vsub.s32 32, %v4540
        %v4542 = vshrl.u32 683565275, %v4541
        %v4543 = vshll.u32 683565275, %v4540
        %v4544 = vshrl.u32 2475754826, %v4541
        %v4545 = vor.u32 %v4543, %v4544
        %v4546 = vshll.u32 2475754826, %v4540
        %v4547 = vshrl.u32 2131351028, %v4541
        %v4548 = vor.u32 %v4546, %v4547
        %v4549 = vshll.u32 2131351028, %v4540
        %v4550 = vshrl.u32 2102212464, %v4541
        %v4551 = vor.u32 %v4549, %v4550
        %v4552 = vshll.u32 2102212464, %v4540
        %v4553 = vshrl.u32 920167782, %v4541
        %v4554 = vor.u32 %v4552, %v4553
        %v4555 = vshll.u32 920167782, %v4540
        %v4556 = vshrl.u32 1326507024, %v4541
        %v4557 = vor.u32 %v4555, %v4556
        %vm4558 = vcmp.lt.s32.totalorder %v4539, 1
        %vm4559 = vcmp.lt.s32.totalorder %v4539, 2
        %vm4560 = vcmp.lt.s32.totalorder %v4539, 3
        %vm4561 = vcmp.lt.s32.totalorder %v4539, 4
        %v4562 = vsel %vm4558, %v4542, %v4545
        %v4563 = vsel %vm4561, %v4551, 2102212464
        %v4564 = vsel %vm4560, %v4548, %v4563
        %v4565 = vsel %vm4559, %v4562, %v4564
        %v4566 = vsel %vm4558, %v4545, %v4548
        %v4567 = vsel %vm4561, %v4554, 920167782
        %v4568 = vsel %vm4560, %v4551, %v4567
        %v4569 = vsel %vm4559, %v4566, %v4568
        %v4570 = vsel %vm4558, %v4548, %v4551
        %v4571 = vsel %vm4561, %v4557, 1326507024
        %v4572 = vsel %vm4560, %v4554, %v4571
        %v4573 = vsel %vm4559, %v4570, %v4572
        %v4574 = vshll.u32 %v4534, 8
        %v4575 = vmul.u32.u64.compose %v4574, %v4573
        %v4576 = vextract.low.u32 %v4575
        %v4577 = vextract.high.u32 %v4575
        %v4578 = vmul.u32.u64.compose %v4574, %v4569
        %v4579 = vextract.low.u32 %v4578
        %v4580 = vextract.high.u32 %v4578
        %v4581 = vmul.u32 %v4574, %v4565
        %v4582 = vadd.s32 %v4577, %v4579
        %vm4583 = vc.u32 %v4577, %v4579
        %v4584 = vadd.s32 %v4580, 1
        %v4585 = vsel %vm4583, %v4584, %v4580
        %v4586 = vadd.s32 %v4581, %v4585
        %v4587 = vadd.s32 %v4586, 536870912
        %v4588 = vshrl.u32 %v4587, 30
        %v4589 = vshll.u32 %v4588, 30
        %v4590 = vsub.s32 %v4586, %v4589
        %vm4591 = vcmp.lt.s32.totalorder %v4590, 0
        %v4592 = vsub.s32 0, %v4590
        %v4593 = vsel %vm4591, %v4592, %v4590
        %v4594 = vclz %v4593
        %v4595 = vsub.s32 %v4594, 2
        %vm4596 = vcmp.gt.s32.totalorder 0, %v4595
        %v4597 = vsel %vm4596, 0, %v4595
        %v4598 = vsub.s32 32, %v4597
        %v4599 = vshll.u32 %v4590, %v4597
        %v4600 = vshrl.u32 %v4582, %v4598
        %v4601 = vor.u32 %v4599, %v4600
        %v4602 = vsub.s32 4294967266, %v4597
        %v4603 = vadd.s32 %v4602, 127
        %v4604 = vshll.u32 %v4603, 23
        %v4605 = vor.u32 4788187, %v4604
        %v4606 = vand.u32 2147483647, %v4605
        %v4608 = vcvt.s32.f32 %v4601
        %v4609 = vmul.f32 %v4608, %v4606
        %v4610 = vxor.u32 %v4609, 2147483648
        %v4611 = vsel %vm4528, %v4610, %v4609
        %v4612 = vsub.s32 4, %v4588
        %v4613 = vsel %vm4528, %v4612, %v4588
        %v4614 = vsel %vm4527, %v4508, %v4611
        %v4615 = vsel %vm4527, 0, %v4613
        %v4616 = vcosq.f32.pop %v4614
        %v4617 = vsinq.f32.pop %v4614
        %vm4618 = vweird.f32 %v4508
        %v4619 = vadd.s32 %v4615, 3
        %v4620 = vand.u32 %v4619, 3
        %vm4621 = vcmp.lt.s32.totalorder %v4620, 2
        %vm4622 = vcmp.eq.s32.totalorder %v4620, 0
        %v4623 = vxor.u32 %v4617, 2147483648
        %v4624 = vsel %vm4622, %v4616, %v4623
        %vm4625 = vcmp.eq.s32.totalorder %v4620, 2
        %v4626 = vxor.u32 %v4616, 2147483648
        %v4627 = vsel %vm4625, %v4626, %v4617
        %v4628 = vsel %vm4621, %v4624, %v4627
        %v4629 = vsel %vm4618, nan, %v4628
        %v4630 = vand.u32 2147483647, %v4513
        %vm4631 = vcmp.le.f32.partialorder %v4630, 0.7853982
        %vm4632 = vcmp.lt.s32.totalorder %v4513, 0
        %v4633 = vand.u32 %v4513, 2139095040
        %v4634 = vshrl.u32 %v4633, 23
        %v4635 = vsub.s32 %v4634, 127
        %v4636 = vand.u32 2147483647, %v4513
        %v4637 = vand.u32 %v4636, 8388607
        %v4638 = vor.u32 %v4637, 8388608
        %v4639 = vsub.s32 0, %v4638
        %v4640 = vadd.s32 %v4635, 1
        %vm4641 = vcmp.gt.s32.totalorder %v4640, 0
        %v4642 = vsel %vm4641, %v4640, 0
        %v4643 = vshrl.u32 %v4642, 5
        %v4644 = vand.u32 %v4642, 31
        %v4645 = vsub.s32 32, %v4644
        %v4646 = vshrl.u32 683565275, %v4645
        %v4647 = vshll.u32 683565275, %v4644
        %v4648 = vshrl.u32 2475754826, %v4645
        %v4649 = vor.u32 %v4647, %v4648
        %v4650 = vshll.u32 2475754826, %v4644
        %v4651 = vshrl.u32 2131351028, %v4645
        %v4652 = vor.u32 %v4650, %v4651
        %v4653 = vshll.u32 2131351028, %v4644
        %v4654 = vshrl.u32 2102212464, %v4645
        %v4655 = vor.u32 %v4653, %v4654
        %v4656 = vshll.u32 2102212464, %v4644
        %v4657 = vshrl.u32 920167782, %v4645
        %v4658 = vor.u32 %v4656, %v4657
        %v4659 = vshll.u32 920167782, %v4644
        %v4660 = vshrl.u32 1326507024, %v4645
        %v4661 = vor.u32 %v4659, %v4660
        %vm4662 = vcmp.lt.s32.totalorder %v4643, 1
        %vm4663 = vcmp.lt.s32.totalorder %v4643, 2
        %vm4664 = vcmp.lt.s32.totalorder %v4643, 3
        %vm4665 = vcmp.lt.s32.totalorder %v4643, 4
        %v4666 = vsel %vm4662, %v4646, %v4649
        %v4667 = vsel %vm4665, %v4655, 2102212464
        %v4668 = vsel %vm4664, %v4652, %v4667
        %v4669 = vsel %vm4663, %v4666, %v4668
        %v4670 = vsel %vm4662, %v4649, %v4652
        %v4671 = vsel %vm4665, %v4658, 920167782
        %v4672 = vsel %vm4664, %v4655, %v4671
        %v4673 = vsel %vm4663, %v4670, %v4672
        %v4674 = vsel %vm4662, %v4652, %v4655
        %v4675 = vsel %vm4665, %v4661, 1326507024
        %v4676 = vsel %vm4664, %v4658, %v4675
        %v4677 = vsel %vm4663, %v4674, %v4676
        %v4678 = vshll.u32 %v4638, 8
        %v4679 = vmul.u32.u64.compose %v4678, %v4677
        %v4680 = vextract.low.u32 %v4679
        %v4681 = vextract.high.u32 %v4679
        %v4682 = vmul.u32.u64.compose %v4678, %v4673
        %v4683 = vextract.low.u32 %v4682
        %v4684 = vextract.high.u32 %v4682
        %v4685 = vmul.u32 %v4678, %v4669
        %v4686 = vadd.s32 %v4681, %v4683
        %vm4687 = vc.u32 %v4681, %v4683
        %v4688 = vadd.s32 %v4684, 1
        %v4689 = vsel %vm4687, %v4688, %v4684
        %v4690 = vadd.s32 %v4685, %v4689
        %v4691 = vadd.s32 %v4690, 536870912
        %v4692 = vshrl.u32 %v4691, 30
        %v4693 = vshll.u32 %v4692, 30
        %v4694 = vsub.s32 %v4690, %v4693
        %vm4695 = vcmp.lt.s32.totalorder %v4694, 0
        %v4696 = vsub.s32 0, %v4694
        %v4697 = vsel %vm4695, %v4696, %v4694
        %v4698 = vclz %v4697
        %v4699 = vsub.s32 %v4698, 2
        %vm4700 = vcmp.gt.s32.totalorder 0, %v4699
        %v4701 = vsel %vm4700, 0, %v4699
        %v4702 = vsub.s32 32, %v4701
        %v4703 = vshll.u32 %v4694, %v4701
        %v4704 = vshrl.u32 %v4686, %v4702
        %v4705 = vor.u32 %v4703, %v4704
        %v4706 = vsub.s32 4294967266, %v4701
        %v4707 = vadd.s32 %v4706, 127
        %v4708 = vshll.u32 %v4707, 23
        %v4709 = vor.u32 4788187, %v4708
        %v4710 = vand.u32 2147483647, %v4709
        %v4712 = vcvt.s32.f32 %v4705
        %v4713 = vmul.f32 %v4712, %v4710
        %v4714 = vxor.u32 %v4713, 2147483648
        %v4715 = vsel %vm4632, %v4714, %v4713
        %v4716 = vsub.s32 4, %v4692
        %v4717 = vsel %vm4632, %v4716, %v4692
        %v4718 = vsel %vm4631, %v4513, %v4715
        %v4719 = vsel %vm4631, 0, %v4717
        %v4720 = vcosq.f32.pop %v4718
        %v4721 = vsinq.f32.pop %v4718
        %vm4722 = vweird.f32 %v4513
        %v4723 = vadd.s32 %v4719, 3
        %v4724 = vand.u32 %v4723, 3
        %vm4725 = vcmp.lt.s32.totalorder %v4724, 2
        %vm4726 = vcmp.eq.s32.totalorder %v4724, 0
        %v4727 = vxor.u32 %v4721, 2147483648
        %v4728 = vsel %vm4726, %v4720, %v4727
        %vm4729 = vcmp.eq.s32.totalorder %v4724, 2
        %v4730 = vxor.u32 %v4720, 2147483648
        %v4731 = vsel %vm4729, %v4730, %v4721
        %v4732 = vsel %vm4725, %v4728, %v4731
        %v4733 = vsel %vm4722, nan, %v4732
        %v4734 = vand.u32 2147483647, %v4518
        %vm4735 = vcmp.le.f32.partialorder %v4734, 0.7853982
        %vm4736 = vcmp.lt.s32.totalorder %v4518, 0
        %v4737 = vand.u32 %v4518, 2139095040
        %v4738 = vshrl.u32 %v4737, 23
        %v4739 = vsub.s32 %v4738, 127
        %v4740 = vand.u32 2147483647, %v4518
        %v4741 = vand.u32 %v4740, 8388607
        %v4742 = vor.u32 %v4741, 8388608
        %v4743 = vsub.s32 0, %v4742
        %v4744 = vadd.s32 %v4739, 1
        %vm4745 = vcmp.gt.s32.totalorder %v4744, 0
        %v4746 = vsel %vm4745, %v4744, 0
        %v4747 = vshrl.u32 %v4746, 5
        %v4748 = vand.u32 %v4746, 31
        %v4749 = vsub.s32 32, %v4748
        %v4750 = vshrl.u32 683565275, %v4749
        %v4751 = vshll.u32 683565275, %v4748
        %v4752 = vshrl.u32 2475754826, %v4749
        %v4753 = vor.u32 %v4751, %v4752
        %v4754 = vshll.u32 2475754826, %v4748
        %v4755 = vshrl.u32 2131351028, %v4749
        %v4756 = vor.u32 %v4754, %v4755
        %v4757 = vshll.u32 2131351028, %v4748
        %v4758 = vshrl.u32 2102212464, %v4749
        %v4759 = vor.u32 %v4757, %v4758
        %v4760 = vshll.u32 2102212464, %v4748
        %v4761 = vshrl.u32 920167782, %v4749
        %v4762 = vor.u32 %v4760, %v4761
        %v4763 = vshll.u32 920167782, %v4748
        %v4764 = vshrl.u32 1326507024, %v4749
        %v4765 = vor.u32 %v4763, %v4764
        %vm4766 = vcmp.lt.s32.totalorder %v4747, 1
        %vm4767 = vcmp.lt.s32.totalorder %v4747, 2
        %vm4768 = vcmp.lt.s32.totalorder %v4747, 3
        %vm4769 = vcmp.lt.s32.totalorder %v4747, 4
        %v4770 = vsel %vm4766, %v4750, %v4753
        %v4771 = vsel %vm4769, %v4759, 2102212464
        %v4772 = vsel %vm4768, %v4756, %v4771
        %v4773 = vsel %vm4767, %v4770, %v4772
        %v4774 = vsel %vm4766, %v4753, %v4756
        %v4775 = vsel %vm4769, %v4762, 920167782
        %v4776 = vsel %vm4768, %v4759, %v4775
        %v4777 = vsel %vm4767, %v4774, %v4776
        %v4778 = vsel %vm4766, %v4756, %v4759
        %v4779 = vsel %vm4769, %v4765, 1326507024
        %v4780 = vsel %vm4768, %v4762, %v4779
        %v4781 = vsel %vm4767, %v4778, %v4780
        %v4782 = vshll.u32 %v4742, 8
        %v4783 = vmul.u32.u64.compose %v4782, %v4781
        %v4784 = vextract.low.u32 %v4783
        %v4785 = vextract.high.u32 %v4783
        %v4786 = vmul.u32.u64.compose %v4782, %v4777
        %v4787 = vextract.low.u32 %v4786
        %v4788 = vextract.high.u32 %v4786
        %v4789 = vmul.u32 %v4782, %v4773
        %v4790 = vadd.s32 %v4785, %v4787
        %vm4791 = vc.u32 %v4785, %v4787
        %v4792 = vadd.s32 %v4788, 1
        %v4793 = vsel %vm4791, %v4792, %v4788
        %v4794 = vadd.s32 %v4789, %v4793
        %v4795 = vadd.s32 %v4794, 536870912
        %v4796 = vshrl.u32 %v4795, 30
        %v4797 = vshll.u32 %v4796, 30
        %v4798 = vsub.s32 %v4794, %v4797
        %vm4799 = vcmp.lt.s32.totalorder %v4798, 0
        %v4800 = vsub.s32 0, %v4798
        %v4801 = vsel %vm4799, %v4800, %v4798
        %v4802 = vclz %v4801
        %v4803 = vsub.s32 %v4802, 2
        %vm4804 = vcmp.gt.s32.totalorder 0, %v4803
        %v4805 = vsel %vm4804, 0, %v4803
        %v4806 = vsub.s32 32, %v4805
        %v4807 = vshll.u32 %v4798, %v4805
        %v4808 = vshrl.u32 %v4790, %v4806
        %v4809 = vor.u32 %v4807, %v4808
        %v4810 = vsub.s32 4294967266, %v4805
        %v4811 = vadd.s32 %v4810, 127
        %v4812 = vshll.u32 %v4811, 23
        %v4813 = vor.u32 4788187, %v4812
        %v4814 = vand.u32 2147483647, %v4813
        %v4816 = vcvt.s32.f32 %v4809
        %v4817 = vmul.f32 %v4816, %v4814
        %v4818 = vxor.u32 %v4817, 2147483648
        %v4819 = vsel %vm4736, %v4818, %v4817
        %v4820 = vsub.s32 4, %v4796
        %v4821 = vsel %vm4736, %v4820, %v4796
        %v4822 = vsel %vm4735, %v4518, %v4819
        %v4823 = vsel %vm4735, 0, %v4821
        %v4824 = vcosq.f32.pop %v4822
        %v4825 = vsinq.f32.pop %v4822
        %vm4826 = vweird.f32 %v4518
        %v4827 = vadd.s32 %v4823, 3
        %v4828 = vand.u32 %v4827, 3
        %vm4829 = vcmp.lt.s32.totalorder %v4828, 2
        %vm4830 = vcmp.eq.s32.totalorder %v4828, 0
        %v4831 = vxor.u32 %v4825, 2147483648
        %v4832 = vsel %vm4830, %v4824, %v4831
        %vm4833 = vcmp.eq.s32.totalorder %v4828, 2
        %v4834 = vxor.u32 %v4824, 2147483648
        %v4835 = vsel %vm4833, %v4834, %v4825
        %v4836 = vsel %vm4829, %v4832, %v4835
        %v4837 = vsel %vm4826, nan, %v4836
        %v4838 = vand.u32 2147483647, %v4523
        %vm4839 = vcmp.le.f32.partialorder %v4838, 0.7853982
        %vm4840 = vcmp.lt.s32.totalorder %v4523, 0
        %v4841 = vand.u32 %v4523, 2139095040
        %v4842 = vshrl.u32 %v4841, 23
        %v4843 = vsub.s32 %v4842, 127
        %v4844 = vand.u32 2147483647, %v4523
        %v4845 = vand.u32 %v4844, 8388607
        %v4846 = vor.u32 %v4845, 8388608
        %v4847 = vsub.s32 0, %v4846
        %v4848 = vadd.s32 %v4843, 1
        %vm4849 = vcmp.gt.s32.totalorder %v4848, 0
        %v4850 = vsel %vm4849, %v4848, 0
        %v4851 = vshrl.u32 %v4850, 5
        %v4852 = vand.u32 %v4850, 31
        %v4853 = vsub.s32 32, %v4852
        %v4854 = vshrl.u32 683565275, %v4853
        %v4855 = vshll.u32 683565275, %v4852
        %v4856 = vshrl.u32 2475754826, %v4853
        %v4857 = vor.u32 %v4855, %v4856
        %v4858 = vshll.u32 2475754826, %v4852
        %v4859 = vshrl.u32 2131351028, %v4853
        %v4860 = vor.u32 %v4858, %v4859
        %v4861 = vshll.u32 2131351028, %v4852
        %v4862 = vshrl.u32 2102212464, %v4853
        %v4863 = vor.u32 %v4861, %v4862
        %v4864 = vshll.u32 2102212464, %v4852
        %v4865 = vshrl.u32 920167782, %v4853
        %v4866 = vor.u32 %v4864, %v4865
        %v4867 = vshll.u32 920167782, %v4852
        %v4868 = vshrl.u32 1326507024, %v4853
        %v4869 = vor.u32 %v4867, %v4868
        %vm4870 = vcmp.lt.s32.totalorder %v4851, 1
        %vm4871 = vcmp.lt.s32.totalorder %v4851, 2
        %vm4872 = vcmp.lt.s32.totalorder %v4851, 3
        %vm4873 = vcmp.lt.s32.totalorder %v4851, 4
        %v4874 = vsel %vm4870, %v4854, %v4857
        %v4875 = vsel %vm4873, %v4863, 2102212464
        %v4876 = vsel %vm4872, %v4860, %v4875
        %v4877 = vsel %vm4871, %v4874, %v4876
        %v4878 = vsel %vm4870, %v4857, %v4860
        %v4879 = vsel %vm4873, %v4866, 920167782
        %v4880 = vsel %vm4872, %v4863, %v4879
        %v4881 = vsel %vm4871, %v4878, %v4880
        %v4882 = vsel %vm4870, %v4860, %v4863
        %v4883 = vsel %vm4873, %v4869, 1326507024
        %v4884 = vsel %vm4872, %v4866, %v4883
        %v4885 = vsel %vm4871, %v4882, %v4884
        %v4886 = vshll.u32 %v4846, 8
        %v4887 = vmul.u32.u64.compose %v4886, %v4885
        %v4888 = vextract.low.u32 %v4887
        %v4889 = vextract.high.u32 %v4887
        %v4890 = vmul.u32.u64.compose %v4886, %v4881
        %v4891 = vextract.low.u32 %v4890
        %v4892 = vextract.high.u32 %v4890
        %v4893 = vmul.u32 %v4886, %v4877
        %v4894 = vadd.s32 %v4889, %v4891
        %vm4895 = vc.u32 %v4889, %v4891
        %v4896 = vadd.s32 %v4892, 1
        %v4897 = vsel %vm4895, %v4896, %v4892
        %v4898 = vadd.s32 %v4893, %v4897
        %v4899 = vadd.s32 %v4898, 536870912
        %v4900 = vshrl.u32 %v4899, 30
        %v4901 = vshll.u32 %v4900, 30
        %v4902 = vsub.s32 %v4898, %v4901
        %vm4903 = vcmp.lt.s32.totalorder %v4902, 0
        %v4904 = vsub.s32 0, %v4902
        %v4905 = vsel %vm4903, %v4904, %v4902
        %v4906 = vclz %v4905
        %v4907 = vsub.s32 %v4906, 2
        %vm4908 = vcmp.gt.s32.totalorder 0, %v4907
        %v4909 = vsel %vm4908, 0, %v4907
        %v4910 = vsub.s32 32, %v4909
        %v4911 = vshll.u32 %v4902, %v4909
        %v4912 = vshrl.u32 %v4894, %v4910
        %v4913 = vor.u32 %v4911, %v4912
        %v4914 = vsub.s32 4294967266, %v4909
        %v4915 = vadd.s32 %v4914, 127
        %v4916 = vshll.u32 %v4915, 23
        %v4917 = vor.u32 4788187, %v4916
        %v4918 = vand.u32 2147483647, %v4917
        %v4920 = vcvt.s32.f32 %v4913
        %v4921 = vmul.f32 %v4920, %v4918
        %v4922 = vxor.u32 %v4921, 2147483648
        %v4923 = vsel %vm4840, %v4922, %v4921
        %v4924 = vsub.s32 4, %v4900
        %v4925 = vsel %vm4840, %v4924, %v4900
        %v4926 = vsel %vm4839, %v4523, %v4923
        %v4927 = vsel %vm4839, 0, %v4925
        %v4928 = vcosq.f32.pop %v4926
        %v4929 = vsinq.f32.pop %v4926
        %vm4930 = vweird.f32 %v4523
        %v4931 = vadd.s32 %v4927, 3
        %v4932 = vand.u32 %v4931, 3
        %vm4933 = vcmp.lt.s32.totalorder %v4932, 2
        %vm4934 = vcmp.eq.s32.totalorder %v4932, 0
        %v4935 = vxor.u32 %v4929, 2147483648
        %v4936 = vsel %vm4934, %v4928, %v4935
        %vm4937 = vcmp.eq.s32.totalorder %v4932, 2
        %v4938 = vxor.u32 %v4928, 2147483648
        %v4939 = vsel %vm4937, %v4938, %v4929
        %v4940 = vsel %vm4933, %v4936, %v4939
        %v4941 = vsel %vm4930, nan, %v4940
        %4942 = vmatprep.subr.mxu0 0.0
        %4943 = vmatpush1.msra.mxu0 %v4096
        %4944 = vmatprep.subr.mxu0 0.0
        %4945 = vmatpush1.msra.mxu0 %v4200
        %4946 = vmatprep.subr.mxu0 0.0
        %4947 = vmatpush1.msra.mxu0 %v4304
        %4948 = vmatprep.subr.mxu0 0.0
        %4949 = vmatpush1.msra.mxu0 %v4408
        %4950 = vmatprep.subr.mxu0 0.0
        %4951 = vmatpush1.msra.mxu0 0.0
        %4952 = vmatprep.subr.mxu0 0.0
        %4953 = vmatpush1.msra.mxu0 0.0
        %4954 = vmatprep.subr.mxu0 0.0
        %4955 = vmatpush1.msra.mxu0 0.0
        %4956 = vmatprep.subr.mxu0 0.0
        %4957 = vmatpush1.msra.mxu0 0.0
        %4958 = vmatprep.subr.mxu0 0.0
        %4959 = vmatpush1.msra.mxu0 0.0
        %4960 = vmatprep.subr.mxu0 0.0
        %4961 = vmatpush1.msra.mxu0 0.0
        %4962 = vmatprep.subr.mxu0 0.0
        %4963 = vmatpush1.msra.mxu0 0.0
        %4964 = vmatprep.subr.mxu0 0.0
        %4965 = vmatpush1.msra.mxu0 0.0
        %4966 = vmatprep.subr.mxu0 0.0
        %4967 = vmatpush1.msra.mxu0 0.0
        %4968 = vmatprep.subr.mxu0 0.0
        %4969 = vmatpush1.msra.mxu0 0.0
        %4970 = vmatprep.subr.mxu0 0.0
        %4971 = vmatpush1.msra.mxu0 0.0
        %4972 = vmatprep.subr.mxu0 0.0
        %4973 = vmatpush1.msra.mxu0 0.0
        %4974 = vmatprep.subr.mxu0 0.0
        %4975 = vmatpush1.msra.mxu0 0.0
        %4976 = vmatprep.subr.mxu0 0.0
        %4977 = vmatpush1.msra.mxu0 0.0
        %4978 = vmatprep.subr.mxu0 0.0
        %4979 = vmatpush1.msra.mxu0 0.0
        %4980 = vmatprep.subr.mxu0 0.0
        %4981 = vmatpush1.msra.mxu0 0.0
        %4982 = vmatprep.subr.mxu0 0.0
        %4983 = vmatpush1.msra.mxu0 0.0
        %4984 = vmatprep.subr.mxu0 0.0
        %4985 = vmatpush1.msra.mxu0 0.0
        %4986 = vmatprep.subr.mxu0 0.0
        %4987 = vmatpush1.msra.mxu0 0.0
        %4988 = vmatprep.subr.mxu0 0.0
        %4989 = vmatpush1.msra.mxu0 0.0
        %4990 = vmatprep.subr.mxu0 0.0
        %4991 = vmatpush1.msra.mxu0 0.0
        %4992 = vmatprep.subr.mxu0 0.0
        %4993 = vmatpush1.msra.mxu0 0.0
        %4994 = vmatprep.subr.mxu0 0.0
        %4995 = vmatpush1.msra.mxu0 0.0
        %4996 = vmatprep.subr.mxu0 0.0
        %4997 = vmatpush1.msra.mxu0 0.0
        %4998 = vmatprep.subr.mxu0 0.0
        %4999 = vmatpush1.msra.mxu0 0.0
        %5000 = vmatprep.subr.mxu0 0.0
        %5001 = vmatpush1.msra.mxu0 0.0
        %5002 = vmatprep.subr.mxu0 0.0
        %5003 = vmatpush1.msra.mxu0 0.0
        %5004 = vmatprep.subr.mxu0 0.0
        %5005 = vmatpush1.msra.mxu0 0.0
        %5006 = vmatprep.mubr.f32.mxu0 0.0
        %5007 = vmatmul.mubr.f32.gmra.mrb[0].mxu0 %v4430
        %v5008 = vpop.f32.mrb[0].mxu0
        %v5009 = vadd.f32 %v4412, %v5008
        %v5010 = vpop.f32.mrb[0].mxu0
        %5011 = vmatprep.mubr.f32.mxu0 0.0
        %5012 = vmatmul.mubr.f32.gmra.mrb[0].mxu0 %v4433
        %v5013 = vpop.f32.mrb[0].mxu0
        %v5014 = vadd.f32 %v4417, %v5013
        %v5015 = vpop.f32.mrb[0].mxu0
        %5016 = vmatprep.mubr.f32.mxu0 0.0
        %5017 = vmatmul.mubr.f32.gmra.mrb[0].mxu0 %v4436
        %v5018 = vpop.f32.mrb[0].mxu0
        %v5019 = vadd.f32 %v4422, %v5018
        %v5020 = vpop.f32.mrb[0].mxu0
        %5021 = vmatprep.mubr.f32.mxu0 0.0
        %5022 = vmatmul.mubr.f32.gmra.mrb[0].mxu0 %v4439
        %v5023 = vpop.f32.mrb[0].mxu0
        %v5024 = vadd.f32 %v4427, %v5023
        %v5025 = vpop.f32.mrb[0].mxu0
        %5026 = vdwg.mxu0
        %v5027 = vand.u32 2147483647, %v5009
        %vm5028 = vcmp.le.f32.partialorder %v5027, 0.7853982
        %vm5029 = vcmp.lt.s32.totalorder %v5009, 0
        %v5030 = vand.u32 %v5009, 2139095040
        %v5031 = vshrl.u32 %v5030, 23
        %v5032 = vsub.s32 %v5031, 127
        %v5033 = vand.u32 2147483647, %v5009
        %v5034 = vand.u32 %v5033, 8388607
        %v5035 = vor.u32 %v5034, 8388608
        %v5036 = vsub.s32 0, %v5035
        %v5037 = vadd.s32 %v5032, 1
        %vm5038 = vcmp.gt.s32.totalorder %v5037, 0
        %v5039 = vsel %vm5038, %v5037, 0
        %v5040 = vshrl.u32 %v5039, 5
        %v5041 = vand.u32 %v5039, 31
        %v5042 = vsub.s32 32, %v5041
        %v5043 = vshrl.u32 683565275, %v5042
        %v5044 = vshll.u32 683565275, %v5041
        %v5045 = vshrl.u32 2475754826, %v5042
        %v5046 = vor.u32 %v5044, %v5045
        %v5047 = vshll.u32 2475754826, %v5041
        %v5048 = vshrl.u32 2131351028, %v5042
        %v5049 = vor.u32 %v5047, %v5048
        %v5050 = vshll.u32 2131351028, %v5041
        %v5051 = vshrl.u32 2102212464, %v5042
        %v5052 = vor.u32 %v5050, %v5051
        %v5053 = vshll.u32 2102212464, %v5041
        %v5054 = vshrl.u32 920167782, %v5042
        %v5055 = vor.u32 %v5053, %v5054
        %v5056 = vshll.u32 920167782, %v5041
        %v5057 = vshrl.u32 1326507024, %v5042
        %v5058 = vor.u32 %v5056, %v5057
        %vm5059 = vcmp.lt.s32.totalorder %v5040, 1
        %vm5060 = vcmp.lt.s32.totalorder %v5040, 2
        %vm5061 = vcmp.lt.s32.totalorder %v5040, 3
        %vm5062 = vcmp.lt.s32.totalorder %v5040, 4
        %v5063 = vsel %vm5059, %v5043, %v5046
        %v5064 = vsel %vm5062, %v5052, 2102212464
        %v5065 = vsel %vm5061, %v5049, %v5064
        %v5066 = vsel %vm5060, %v5063, %v5065
        %v5067 = vsel %vm5059, %v5046, %v5049
        %v5068 = vsel %vm5062, %v5055, 920167782
        %v5069 = vsel %vm5061, %v5052, %v5068
        %v5070 = vsel %vm5060, %v5067, %v5069
        %v5071 = vsel %vm5059, %v5049, %v5052
        %v5072 = vsel %vm5062, %v5058, 1326507024
        %v5073 = vsel %vm5061, %v5055, %v5072
        %v5074 = vsel %vm5060, %v5071, %v5073
        %v5075 = vshll.u32 %v5035, 8
        %v5076 = vmul.u32.u64.compose %v5075, %v5074
        %v5077 = vextract.low.u32 %v5076
        %v5078 = vextract.high.u32 %v5076
        %v5079 = vmul.u32.u64.compose %v5075, %v5070
        %v5080 = vextract.low.u32 %v5079
        %v5081 = vextract.high.u32 %v5079
        %v5082 = vmul.u32 %v5075, %v5066
        %v5083 = vadd.s32 %v5078, %v5080
        %vm5084 = vc.u32 %v5078, %v5080
        %v5085 = vadd.s32 %v5081, 1
        %v5086 = vsel %vm5084, %v5085, %v5081
        %v5087 = vadd.s32 %v5082, %v5086
        %v5088 = vadd.s32 %v5087, 536870912
        %v5089 = vshrl.u32 %v5088, 30
        %v5090 = vshll.u32 %v5089, 30
        %v5091 = vsub.s32 %v5087, %v5090
        %vm5092 = vcmp.lt.s32.totalorder %v5091, 0
        %v5093 = vsub.s32 0, %v5091
        %v5094 = vsel %vm5092, %v5093, %v5091
        %v5095 = vclz %v5094
        %v5096 = vsub.s32 %v5095, 2
        %vm5097 = vcmp.gt.s32.totalorder 0, %v5096
        %v5098 = vsel %vm5097, 0, %v5096
        %v5099 = vsub.s32 32, %v5098
        %v5100 = vshll.u32 %v5091, %v5098
        %v5101 = vshrl.u32 %v5083, %v5099
        %v5102 = vor.u32 %v5100, %v5101
        %v5103 = vsub.s32 4294967266, %v5098
        %v5104 = vadd.s32 %v5103, 127
        %v5105 = vshll.u32 %v5104, 23
        %v5106 = vor.u32 4788187, %v5105
        %v5107 = vand.u32 2147483647, %v5106
        %v5109 = vcvt.s32.f32 %v5102
        %v5110 = vmul.f32 %v5109, %v5107
        %v5111 = vxor.u32 %v5110, 2147483648
        %v5112 = vsel %vm5029, %v5111, %v5110
        %v5113 = vsub.s32 4, %v5089
        %v5114 = vsel %vm5029, %v5113, %v5089
        %v5115 = vsel %vm5028, %v5009, %v5112
        %v5116 = vsel %vm5028, 0, %v5114
        %v5117 = vcosq.f32.pop %v5115
        %v5118 = vsinq.f32.pop %v5115
        %vm5119 = vweird.f32 %v5009
        %v5120 = vadd.s32 %v5116, 3
        %v5121 = vand.u32 %v5120, 3
        %vm5122 = vcmp.lt.s32.totalorder %v5121, 2
        %vm5123 = vcmp.eq.s32.totalorder %v5121, 0
        %v5124 = vxor.u32 %v5118, 2147483648
        %v5125 = vsel %vm5123, %v5117, %v5124
        %vm5126 = vcmp.eq.s32.totalorder %v5121, 2
        %v5127 = vxor.u32 %v5117, 2147483648
        %v5128 = vsel %vm5126, %v5127, %v5118
        %v5129 = vsel %vm5122, %v5125, %v5128
        %v5130 = vsel %vm5119, nan, %v5129
        %v5131 = vand.u32 2147483647, %v5014
        %vm5132 = vcmp.le.f32.partialorder %v5131, 0.7853982
        %vm5133 = vcmp.lt.s32.totalorder %v5014, 0
        %v5134 = vand.u32 %v5014, 2139095040
        %v5135 = vshrl.u32 %v5134, 23
        %v5136 = vsub.s32 %v5135, 127
        %v5137 = vand.u32 2147483647, %v5014
        %v5138 = vand.u32 %v5137, 8388607
        %v5139 = vor.u32 %v5138, 8388608
        %v5140 = vsub.s32 0, %v5139
        %v5141 = vadd.s32 %v5136, 1
        %vm5142 = vcmp.gt.s32.totalorder %v5141, 0
        %v5143 = vsel %vm5142, %v5141, 0
        %v5144 = vshrl.u32 %v5143, 5
        %v5145 = vand.u32 %v5143, 31
        %v5146 = vsub.s32 32, %v5145
        %v5147 = vshrl.u32 683565275, %v5146
        %v5148 = vshll.u32 683565275, %v5145
        %v5149 = vshrl.u32 2475754826, %v5146
        %v5150 = vor.u32 %v5148, %v5149
        %v5151 = vshll.u32 2475754826, %v5145
        %v5152 = vshrl.u32 2131351028, %v5146
        %v5153 = vor.u32 %v5151, %v5152
        %v5154 = vshll.u32 2131351028, %v5145
        %v5155 = vshrl.u32 2102212464, %v5146
        %v5156 = vor.u32 %v5154, %v5155
        %v5157 = vshll.u32 2102212464, %v5145
        %v5158 = vshrl.u32 920167782, %v5146
        %v5159 = vor.u32 %v5157, %v5158
        %v5160 = vshll.u32 920167782, %v5145
        %v5161 = vshrl.u32 1326507024, %v5146
        %v5162 = vor.u32 %v5160, %v5161
        %vm5163 = vcmp.lt.s32.totalorder %v5144, 1
        %vm5164 = vcmp.lt.s32.totalorder %v5144, 2
        %vm5165 = vcmp.lt.s32.totalorder %v5144, 3
        %vm5166 = vcmp.lt.s32.totalorder %v5144, 4
        %v5167 = vsel %vm5163, %v5147, %v5150
        %v5168 = vsel %vm5166, %v5156, 2102212464
        %v5169 = vsel %vm5165, %v5153, %v5168
        %v5170 = vsel %vm5164, %v5167, %v5169
        %v5171 = vsel %vm5163, %v5150, %v5153
        %v5172 = vsel %vm5166, %v5159, 920167782
        %v5173 = vsel %vm5165, %v5156, %v5172
        %v5174 = vsel %vm5164, %v5171, %v5173
        %v5175 = vsel %vm5163, %v5153, %v5156
        %v5176 = vsel %vm5166, %v5162, 1326507024
        %v5177 = vsel %vm5165, %v5159, %v5176
        %v5178 = vsel %vm5164, %v5175, %v5177
        %v5179 = vshll.u32 %v5139, 8
        %v5180 = vmul.u32.u64.compose %v5179, %v5178
        %v5181 = vextract.low.u32 %v5180
        %v5182 = vextract.high.u32 %v5180
        %v5183 = vmul.u32.u64.compose %v5179, %v5174
        %v5184 = vextract.low.u32 %v5183
        %v5185 = vextract.high.u32 %v5183
        %v5186 = vmul.u32 %v5179, %v5170
        %v5187 = vadd.s32 %v5182, %v5184
        %vm5188 = vc.u32 %v5182, %v5184
        %v5189 = vadd.s32 %v5185, 1
        %v5190 = vsel %vm5188, %v5189, %v5185
        %v5191 = vadd.s32 %v5186, %v5190
        %v5192 = vadd.s32 %v5191, 536870912
        %v5193 = vshrl.u32 %v5192, 30
        %v5194 = vshll.u32 %v5193, 30
        %v5195 = vsub.s32 %v5191, %v5194
        %vm5196 = vcmp.lt.s32.totalorder %v5195, 0
        %v5197 = vsub.s32 0, %v5195
        %v5198 = vsel %vm5196, %v5197, %v5195
        %v5199 = vclz %v5198
        %v5200 = vsub.s32 %v5199, 2
        %vm5201 = vcmp.gt.s32.totalorder 0, %v5200
        %v5202 = vsel %vm5201, 0, %v5200
        %v5203 = vsub.s32 32, %v5202
        %v5204 = vshll.u32 %v5195, %v5202
        %v5205 = vshrl.u32 %v5187, %v5203
        %v5206 = vor.u32 %v5204, %v5205
        %v5207 = vsub.s32 4294967266, %v5202
        %v5208 = vadd.s32 %v5207, 127
        %v5209 = vshll.u32 %v5208, 23
        %v5210 = vor.u32 4788187, %v5209
        %v5211 = vand.u32 2147483647, %v5210
        %v5213 = vcvt.s32.f32 %v5206
        %v5214 = vmul.f32 %v5213, %v5211
        %v5215 = vxor.u32 %v5214, 2147483648
        %v5216 = vsel %vm5133, %v5215, %v5214
        %v5217 = vsub.s32 4, %v5193
        %v5218 = vsel %vm5133, %v5217, %v5193
        %v5219 = vsel %vm5132, %v5014, %v5216
        %v5220 = vsel %vm5132, 0, %v5218
        %v5221 = vcosq.f32.pop %v5219
        %v5222 = vsinq.f32.pop %v5219
        %vm5223 = vweird.f32 %v5014
        %v5224 = vadd.s32 %v5220, 3
        %v5225 = vand.u32 %v5224, 3
        %vm5226 = vcmp.lt.s32.totalorder %v5225, 2
        %vm5227 = vcmp.eq.s32.totalorder %v5225, 0
        %v5228 = vxor.u32 %v5222, 2147483648
        %v5229 = vsel %vm5227, %v5221, %v5228
        %vm5230 = vcmp.eq.s32.totalorder %v5225, 2
        %v5231 = vxor.u32 %v5221, 2147483648
        %v5232 = vsel %vm5230, %v5231, %v5222
        %v5233 = vsel %vm5226, %v5229, %v5232
        %v5234 = vsel %vm5223, nan, %v5233
        %v5235 = vand.u32 2147483647, %v5019
        %vm5236 = vcmp.le.f32.partialorder %v5235, 0.7853982
        %vm5237 = vcmp.lt.s32.totalorder %v5019, 0
        %v5238 = vand.u32 %v5019, 2139095040
        %v5239 = vshrl.u32 %v5238, 23
        %v5240 = vsub.s32 %v5239, 127
        %v5241 = vand.u32 2147483647, %v5019
        %v5242 = vand.u32 %v5241, 8388607
        %v5243 = vor.u32 %v5242, 8388608
        %v5244 = vsub.s32 0, %v5243
        %v5245 = vadd.s32 %v5240, 1
        %vm5246 = vcmp.gt.s32.totalorder %v5245, 0
        %v5247 = vsel %vm5246, %v5245, 0
        %v5248 = vshrl.u32 %v5247, 5
        %v5249 = vand.u32 %v5247, 31
        %v5250 = vsub.s32 32, %v5249
        %v5251 = vshrl.u32 683565275, %v5250
        %v5252 = vshll.u32 683565275, %v5249
        %v5253 = vshrl.u32 2475754826, %v5250
        %v5254 = vor.u32 %v5252, %v5253
        %v5255 = vshll.u32 2475754826, %v5249
        %v5256 = vshrl.u32 2131351028, %v5250
        %v5257 = vor.u32 %v5255, %v5256
        %v5258 = vshll.u32 2131351028, %v5249
        %v5259 = vshrl.u32 2102212464, %v5250
        %v5260 = vor.u32 %v5258, %v5259
        %v5261 = vshll.u32 2102212464, %v5249
        %v5262 = vshrl.u32 920167782, %v5250
        %v5263 = vor.u32 %v5261, %v5262
        %v5264 = vshll.u32 920167782, %v5249
        %v5265 = vshrl.u32 1326507024, %v5250
        %v5266 = vor.u32 %v5264, %v5265
        %vm5267 = vcmp.lt.s32.totalorder %v5248, 1
        %vm5268 = vcmp.lt.s32.totalorder %v5248, 2
        %vm5269 = vcmp.lt.s32.totalorder %v5248, 3
        %vm5270 = vcmp.lt.s32.totalorder %v5248, 4
        %v5271 = vsel %vm5267, %v5251, %v5254
        %v5272 = vsel %vm5270, %v5260, 2102212464
        %v5273 = vsel %vm5269, %v5257, %v5272
        %v5274 = vsel %vm5268, %v5271, %v5273
        %v5275 = vsel %vm5267, %v5254, %v5257
        %v5276 = vsel %vm5270, %v5263, 920167782
        %v5277 = vsel %vm5269, %v5260, %v5276
        %v5278 = vsel %vm5268, %v5275, %v5277
        %v5279 = vsel %vm5267, %v5257, %v5260
        %v5280 = vsel %vm5270, %v5266, 1326507024
        %v5281 = vsel %vm5269, %v5263, %v5280
        %v5282 = vsel %vm5268, %v5279, %v5281
        %v5283 = vshll.u32 %v5243, 8
        %v5284 = vmul.u32.u64.compose %v5283, %v5282
        %v5285 = vextract.low.u32 %v5284
        %v5286 = vextract.high.u32 %v5284
        %v5287 = vmul.u32.u64.compose %v5283, %v5278
        %v5288 = vextract.low.u32 %v5287
        %v5289 = vextract.high.u32 %v5287
        %v5290 = vmul.u32 %v5283, %v5274
        %v5291 = vadd.s32 %v5286, %v5288
        %vm5292 = vc.u32 %v5286, %v5288
        %v5293 = vadd.s32 %v5289, 1
        %v5294 = vsel %vm5292, %v5293, %v5289
        %v5295 = vadd.s32 %v5290, %v5294
        %v5296 = vadd.s32 %v5295, 536870912
        %v5297 = vshrl.u32 %v5296, 30
        %v5298 = vshll.u32 %v5297, 30
        %v5299 = vsub.s32 %v5295, %v5298
        %vm5300 = vcmp.lt.s32.totalorder %v5299, 0
        %v5301 = vsub.s32 0, %v5299
        %v5302 = vsel %vm5300, %v5301, %v5299
        %v5303 = vclz %v5302
        %v5304 = vsub.s32 %v5303, 2
        %vm5305 = vcmp.gt.s32.totalorder 0, %v5304
        %v5306 = vsel %vm5305, 0, %v5304
        %v5307 = vsub.s32 32, %v5306
        %v5308 = vshll.u32 %v5299, %v5306
        %v5309 = vshrl.u32 %v5291, %v5307
        %v5310 = vor.u32 %v5308, %v5309
        %v5311 = vsub.s32 4294967266, %v5306
        %v5312 = vadd.s32 %v5311, 127
        %v5313 = vshll.u32 %v5312, 23
        %v5314 = vor.u32 4788187, %v5313
        %v5315 = vand.u32 2147483647, %v5314
        %v5317 = vcvt.s32.f32 %v5310
        %v5318 = vmul.f32 %v5317, %v5315
        %v5319 = vxor.u32 %v5318, 2147483648
        %v5320 = vsel %vm5237, %v5319, %v5318
        %v5321 = vsub.s32 4, %v5297
        %v5322 = vsel %vm5237, %v5321, %v5297
        %v5323 = vsel %vm5236, %v5019, %v5320
        %v5324 = vsel %vm5236, 0, %v5322
        %v5325 = vcosq.f32.pop %v5323
        %v5326 = vsinq.f32.pop %v5323
        %vm5327 = vweird.f32 %v5019
        %v5328 = vadd.s32 %v5324, 3
        %v5329 = vand.u32 %v5328, 3
        %vm5330 = vcmp.lt.s32.totalorder %v5329, 2
        %vm5331 = vcmp.eq.s32.totalorder %v5329, 0
        %v5332 = vxor.u32 %v5326, 2147483648
        %v5333 = vsel %vm5331, %v5325, %v5332
        %vm5334 = vcmp.eq.s32.totalorder %v5329, 2
        %v5335 = vxor.u32 %v5325, 2147483648
        %v5336 = vsel %vm5334, %v5335, %v5326
        %v5337 = vsel %vm5330, %v5333, %v5336
        %v5338 = vsel %vm5327, nan, %v5337
        %v5339 = vand.u32 2147483647, %v5024
        %vm5340 = vcmp.le.f32.partialorder %v5339, 0.7853982
        %vm5341 = vcmp.lt.s32.totalorder %v5024, 0
        %v5342 = vand.u32 %v5024, 2139095040
        %v5343 = vshrl.u32 %v5342, 23
        %v5344 = vsub.s32 %v5343, 127
        %v5345 = vand.u32 2147483647, %v5024
        %v5346 = vand.u32 %v5345, 8388607
        %v5347 = vor.u32 %v5346, 8388608
        %v5348 = vsub.s32 0, %v5347
        %v5349 = vadd.s32 %v5344, 1
        %vm5350 = vcmp.gt.s32.totalorder %v5349, 0
        %v5351 = vsel %vm5350, %v5349, 0
        %v5352 = vshrl.u32 %v5351, 5
        %v5353 = vand.u32 %v5351, 31
        %v5354 = vsub.s32 32, %v5353
        %v5355 = vshrl.u32 683565275, %v5354
        %v5356 = vshll.u32 683565275, %v5353
        %v5357 = vshrl.u32 2475754826, %v5354
        %v5358 = vor.u32 %v5356, %v5357
        %v5359 = vshll.u32 2475754826, %v5353
        %v5360 = vshrl.u32 2131351028, %v5354
        %v5361 = vor.u32 %v5359, %v5360
        %v5362 = vshll.u32 2131351028, %v5353
        %v5363 = vshrl.u32 2102212464, %v5354
        %v5364 = vor.u32 %v5362, %v5363
        %v5365 = vshll.u32 2102212464, %v5353
        %v5366 = vshrl.u32 920167782, %v5354
        %v5367 = vor.u32 %v5365, %v5366
        %v5368 = vshll.u32 920167782, %v5353
        %v5369 = vshrl.u32 1326507024, %v5354
        %v5370 = vor.u32 %v5368, %v5369
        %vm5371 = vcmp.lt.s32.totalorder %v5352, 1
        %vm5372 = vcmp.lt.s32.totalorder %v5352, 2
        %vm5373 = vcmp.lt.s32.totalorder %v5352, 3
        %vm5374 = vcmp.lt.s32.totalorder %v5352, 4
        %v5375 = vsel %vm5371, %v5355, %v5358
        %v5376 = vsel %vm5374, %v5364, 2102212464
        %v5377 = vsel %vm5373, %v5361, %v5376
        %v5378 = vsel %vm5372, %v5375, %v5377
        %v5379 = vsel %vm5371, %v5358, %v5361
        %v5380 = vsel %vm5374, %v5367, 920167782
        %v5381 = vsel %vm5373, %v5364, %v5380
        %v5382 = vsel %vm5372, %v5379, %v5381
        %v5383 = vsel %vm5371, %v5361, %v5364
        %v5384 = vsel %vm5374, %v5370, 1326507024
        %v5385 = vsel %vm5373, %v5367, %v5384
        %v5386 = vsel %vm5372, %v5383, %v5385
        %v5387 = vshll.u32 %v5347, 8
        %v5388 = vmul.u32.u64.compose %v5387, %v5386
        %v5389 = vextract.low.u32 %v5388
        %v5390 = vextract.high.u32 %v5388
        %v5391 = vmul.u32.u64.compose %v5387, %v5382
        %v5392 = vextract.low.u32 %v5391
        %v5393 = vextract.high.u32 %v5391
        %v5394 = vmul.u32 %v5387, %v5378
        %v5395 = vadd.s32 %v5390, %v5392
        %vm5396 = vc.u32 %v5390, %v5392
        %v5397 = vadd.s32 %v5393, 1
        %v5398 = vsel %vm5396, %v5397, %v5393
        %v5399 = vadd.s32 %v5394, %v5398
        %v5400 = vadd.s32 %v5399, 536870912
        %v5401 = vshrl.u32 %v5400, 30
        %v5402 = vshll.u32 %v5401, 30
        %v5403 = vsub.s32 %v5399, %v5402
        %vm5404 = vcmp.lt.s32.totalorder %v5403, 0
        %v5405 = vsub.s32 0, %v5403
        %v5406 = vsel %vm5404, %v5405, %v5403
        %v5407 = vclz %v5406
        %v5408 = vsub.s32 %v5407, 2
        %vm5409 = vcmp.gt.s32.totalorder 0, %v5408
        %v5410 = vsel %vm5409, 0, %v5408
        %v5411 = vsub.s32 32, %v5410
        %v5412 = vshll.u32 %v5403, %v5410
        %v5413 = vshrl.u32 %v5395, %v5411
        %v5414 = vor.u32 %v5412, %v5413
        %v5415 = vsub.s32 4294967266, %v5410
        %v5416 = vadd.s32 %v5415, 127
        %v5417 = vshll.u32 %v5416, 23
        %v5418 = vor.u32 4788187, %v5417
        %v5419 = vand.u32 2147483647, %v5418
        %v5421 = vcvt.s32.f32 %v5414
        %v5422 = vmul.f32 %v5421, %v5419
        %v5423 = vxor.u32 %v5422, 2147483648
        %v5424 = vsel %vm5341, %v5423, %v5422
        %v5425 = vsub.s32 4, %v5401
        %v5426 = vsel %vm5341, %v5425, %v5401
        %v5427 = vsel %vm5340, %v5024, %v5424
        %v5428 = vsel %vm5340, 0, %v5426
        %v5429 = vcosq.f32.pop %v5427
        %v5430 = vsinq.f32.pop %v5427
        %vm5431 = vweird.f32 %v5024
        %v5432 = vadd.s32 %v5428, 3
        %v5433 = vand.u32 %v5432, 3
        %vm5434 = vcmp.lt.s32.totalorder %v5433, 2
        %vm5435 = vcmp.eq.s32.totalorder %v5433, 0
        %v5436 = vxor.u32 %v5430, 2147483648
        %v5437 = vsel %vm5435, %v5429, %v5436
        %vm5438 = vcmp.eq.s32.totalorder %v5433, 2
        %v5439 = vxor.u32 %v5429, 2147483648
        %v5440 = vsel %vm5438, %v5439, %v5430
        %v5441 = vsel %vm5434, %v5437, %v5440
        %v5442 = vsel %vm5431, nan, %v5441
        %v5443 = vadd.f32 %v3367, %v4629
        %v5444 = vadd.f32 %v3368, %v4733
        %v5445 = vadd.f32 %v3369, %v4837
        %v5446 = vadd.f32 %v3370, %v4941
        %v5447 = vadd.f32 %v3371, %v5130
        %v5448 = vadd.f32 %v3372, %v5234
        %v5449 = vadd.f32 %v3373, %v5338
        %v5450 = vadd.f32 %v3374, %v5442
        %5452 = vset.pattern.permute.xlu0 0
        %5453 = vperm.xlu0 %5452, %v331
        %v5454 = vpop.permute.xlu0 %5453
        %5457 = vset.pattern.permute.xlu0 0
        %5458 = vperm.xlu0 %5457, %v332
        %v5459 = vpop.permute.xlu0 %5458
        %5462 = vset.pattern.permute.xlu0 0
        %5463 = vperm.xlu0 %5462, %v333
        %v5464 = vpop.permute.xlu0 %5463
        %5467 = vset.pattern.permute.xlu0 0
        %5468 = vperm.xlu0 %5467, %v334
        %v5469 = vpop.permute.xlu0 %5468
        %v5472 = vsel %vm1318, %v307, 0
        %v5475 = vsel %vm1318, %v308, 0
        %v5478 = vsel %vm1318, %v309, 0
        %v5481 = vsel %vm1318, %v310, 0
        %5483 = vmatprep.subr.mxu0 0.0
        %5484 = vmatpush1.msra.mxu0 %v5443
        %5485 = vmatprep.subr.mxu0 0.0
        %5486 = vmatpush1.msra.mxu0 %v5444
        %5487 = vmatprep.subr.mxu0 0.0
        %5488 = vmatpush1.msra.mxu0 %v5445
        %5489 = vmatprep.subr.mxu0 0.0
        %5490 = vmatpush1.msra.mxu0 %v5446
        %5491 = vmatprep.subr.mxu0 0.0
        %5492 = vmatpush1.msra.mxu0 0.0
        %5493 = vmatprep.subr.mxu0 0.0
        %5494 = vmatpush1.msra.mxu0 0.0
        %5495 = vmatprep.subr.mxu0 0.0
        %5496 = vmatpush1.msra.mxu0 0.0
        %5497 = vmatprep.subr.mxu0 0.0
        %5498 = vmatpush1.msra.mxu0 0.0
        %5499 = vmatprep.subr.mxu0 0.0
        %5500 = vmatpush1.msra.mxu0 0.0
        %5501 = vmatprep.subr.mxu0 0.0
        %5502 = vmatpush1.msra.mxu0 0.0
        %5503 = vmatprep.subr.mxu0 0.0
        %5504 = vmatpush1.msra.mxu0 0.0
        %5505 = vmatprep.subr.mxu0 0.0
        %5506 = vmatpush1.msra.mxu0 0.0
        %5507 = vmatprep.subr.mxu0 0.0
        %5508 = vmatpush1.msra.mxu0 0.0
        %5509 = vmatprep.subr.mxu0 0.0
        %5510 = vmatpush1.msra.mxu0 0.0
        %5511 = vmatprep.subr.mxu0 0.0
        %5512 = vmatpush1.msra.mxu0 0.0
        %5513 = vmatprep.subr.mxu0 0.0
        %5514 = vmatpush1.msra.mxu0 0.0
        %5515 = vmatprep.subr.mxu0 0.0
        %5516 = vmatpush1.msra.mxu0 0.0
        %5517 = vmatprep.subr.mxu0 0.0
        %5518 = vmatpush1.msra.mxu0 0.0
        %5519 = vmatprep.subr.mxu0 0.0
        %5520 = vmatpush1.msra.mxu0 0.0
        %5521 = vmatprep.subr.mxu0 0.0
        %5522 = vmatpush1.msra.mxu0 0.0
        %5523 = vmatprep.subr.mxu0 0.0
        %5524 = vmatpush1.msra.mxu0 0.0
        %5525 = vmatprep.subr.mxu0 0.0
        %5526 = vmatpush1.msra.mxu0 0.0
        %5527 = vmatprep.subr.mxu0 0.0
        %5528 = vmatpush1.msra.mxu0 0.0
        %5529 = vmatprep.subr.mxu0 0.0
        %5530 = vmatpush1.msra.mxu0 0.0
        %5531 = vmatprep.subr.mxu0 0.0
        %5532 = vmatpush1.msra.mxu0 0.0
        %5533 = vmatprep.subr.mxu0 0.0
        %5534 = vmatpush1.msra.mxu0 0.0
        %5535 = vmatprep.subr.mxu0 0.0
        %5536 = vmatpush1.msra.mxu0 0.0
        %5537 = vmatprep.subr.mxu0 0.0
        %5538 = vmatpush1.msra.mxu0 0.0
        %5539 = vmatprep.subr.mxu0 0.0
        %5540 = vmatpush1.msra.mxu0 0.0
        %5541 = vmatprep.subr.mxu0 0.0
        %5542 = vmatpush1.msra.mxu0 0.0
        %5543 = vmatprep.subr.mxu0 0.0
        %5544 = vmatpush1.msra.mxu0 0.0
        %5545 = vmatprep.subr.mxu0 0.0
        %5546 = vmatpush1.msra.mxu0 0.0
        %5547 = vmatprep.mubr.f32.mxu0 0.0
        %5548 = vmatmul.mubr.f32.gmra.mrb[0].mxu0 %v5472
        %v5549 = vpop.f32.mrb[0].mxu0
        %v5550 = vadd.f32 %v5454, %v5549
        %v5551 = vpop.f32.mrb[0].mxu0
        %5552 = vmatprep.mubr.f32.mxu0 0.0
        %5553 = vmatmul.mubr.f32.gmra.mrb[0].mxu0 %v5475
        %v5554 = vpop.f32.mrb[0].mxu0
        %v5555 = vadd.f32 %v5459, %v5554
        %v5556 = vpop.f32.mrb[0].mxu0
        %5557 = vmatprep.mubr.f32.mxu0 0.0
        %5558 = vmatmul.mubr.f32.gmra.mrb[0].mxu0 %v5478
        %v5559 = vpop.f32.mrb[0].mxu0
        %v5560 = vadd.f32 %v5464, %v5559
        %v5561 = vpop.f32.mrb[0].mxu0
        %5562 = vmatprep.mubr.f32.mxu0 0.0
        %5563 = vmatmul.mubr.f32.gmra.mrb[0].mxu0 %v5481
        %v5564 = vpop.f32.mrb[0].mxu0
        %v5565 = vadd.f32 %v5469, %v5564
        %v5566 = vpop.f32.mrb[0].mxu0
        %5567 = vdwg.mxu0
        %v5568 = vand.u32 2147483647, %v5550
        %vm5569 = vcmp.le.f32.partialorder %v5568, 0.7853982
        %vm5570 = vcmp.lt.s32.totalorder %v5550, 0
        %v5571 = vand.u32 %v5550, 2139095040
        %v5572 = vshrl.u32 %v5571, 23
        %v5573 = vsub.s32 %v5572, 127
        %v5574 = vand.u32 2147483647, %v5550
        %v5575 = vand.u32 %v5574, 8388607
        %v5576 = vor.u32 %v5575, 8388608
        %v5577 = vsub.s32 0, %v5576
        %v5578 = vadd.s32 %v5573, 1
        %vm5579 = vcmp.gt.s32.totalorder %v5578, 0
        %v5580 = vsel %vm5579, %v5578, 0
        %v5581 = vshrl.u32 %v5580, 5
        %v5582 = vand.u32 %v5580, 31
        %v5583 = vsub.s32 32, %v5582
        %v5584 = vshrl.u32 683565275, %v5583
        %v5585 = vshll.u32 683565275, %v5582
        %v5586 = vshrl.u32 2475754826, %v5583
        %v5587 = vor.u32 %v5585, %v5586
        %v5588 = vshll.u32 2475754826, %v5582
        %v5589 = vshrl.u32 2131351028, %v5583
        %v5590 = vor.u32 %v5588, %v5589
        %v5591 = vshll.u32 2131351028, %v5582
        %v5592 = vshrl.u32 2102212464, %v5583
        %v5593 = vor.u32 %v5591, %v5592
        %v5594 = vshll.u32 2102212464, %v5582
        %v5595 = vshrl.u32 920167782, %v5583
        %v5596 = vor.u32 %v5594, %v5595
        %v5597 = vshll.u32 920167782, %v5582
        %v5598 = vshrl.u32 1326507024, %v5583
        %v5599 = vor.u32 %v5597, %v5598
        %vm5600 = vcmp.lt.s32.totalorder %v5581, 1
        %vm5601 = vcmp.lt.s32.totalorder %v5581, 2
        %vm5602 = vcmp.lt.s32.totalorder %v5581, 3
        %vm5603 = vcmp.lt.s32.totalorder %v5581, 4
        %v5604 = vsel %vm5600, %v5584, %v5587
        %v5605 = vsel %vm5603, %v5593, 2102212464
        %v5606 = vsel %vm5602, %v5590, %v5605
        %v5607 = vsel %vm5601, %v5604, %v5606
        %v5608 = vsel %vm5600, %v5587, %v5590
        %v5609 = vsel %vm5603, %v5596, 920167782
        %v5610 = vsel %vm5602, %v5593, %v5609
        %v5611 = vsel %vm5601, %v5608, %v5610
        %v5612 = vsel %vm5600, %v5590, %v5593
        %v5613 = vsel %vm5603, %v5599, 1326507024
        %v5614 = vsel %vm5602, %v5596, %v5613
        %v5615 = vsel %vm5601, %v5612, %v5614
        %v5616 = vshll.u32 %v5576, 8
        %v5617 = vmul.u32.u64.compose %v5616, %v5615
        %v5618 = vextract.low.u32 %v5617
        %v5619 = vextract.high.u32 %v5617
        %v5620 = vmul.u32.u64.compose %v5616, %v5611
        %v5621 = vextract.low.u32 %v5620
        %v5622 = vextract.high.u32 %v5620
        %v5623 = vmul.u32 %v5616, %v5607
        %v5624 = vadd.s32 %v5619, %v5621
        %vm5625 = vc.u32 %v5619, %v5621
        %v5626 = vadd.s32 %v5622, 1
        %v5627 = vsel %vm5625, %v5626, %v5622
        %v5628 = vadd.s32 %v5623, %v5627
        %v5629 = vadd.s32 %v5628, 536870912
        %v5630 = vshrl.u32 %v5629, 30
        %v5631 = vshll.u32 %v5630, 30
        %v5632 = vsub.s32 %v5628, %v5631
        %vm5633 = vcmp.lt.s32.totalorder %v5632, 0
        %v5634 = vsub.s32 0, %v5632
        %v5635 = vsel %vm5633, %v5634, %v5632
        %v5636 = vclz %v5635
        %v5637 = vsub.s32 %v5636, 2
        %vm5638 = vcmp.gt.s32.totalorder 0, %v5637
        %v5639 = vsel %vm5638, 0, %v5637
        %v5640 = vsub.s32 32, %v5639
        %v5641 = vshll.u32 %v5632, %v5639
        %v5642 = vshrl.u32 %v5624, %v5640
        %v5643 = vor.u32 %v5641, %v5642
        %v5644 = vsub.s32 4294967266, %v5639
        %v5645 = vadd.s32 %v5644, 127
        %v5646 = vshll.u32 %v5645, 23
        %v5647 = vor.u32 4788187, %v5646
        %v5648 = vand.u32 2147483647, %v5647
        %v5650 = vcvt.s32.f32 %v5643
        %v5651 = vmul.f32 %v5650, %v5648
        %v5652 = vxor.u32 %v5651, 2147483648
        %v5653 = vsel %vm5570, %v5652, %v5651
        %v5654 = vsub.s32 4, %v5630
        %v5655 = vsel %vm5570, %v5654, %v5630
        %v5656 = vsel %vm5569, %v5550, %v5653
        %v5657 = vsel %vm5569, 0, %v5655
        %v5658 = vcosq.f32.pop %v5656
        %v5659 = vsinq.f32.pop %v5656
        %vm5660 = vweird.f32 %v5550
        %v5661 = vadd.s32 %v5657, 3
        %v5662 = vand.u32 %v5661, 3
        %vm5663 = vcmp.lt.s32.totalorder %v5662, 2
        %vm5664 = vcmp.eq.s32.totalorder %v5662, 0
        %v5665 = vxor.u32 %v5659, 2147483648
        %v5666 = vsel %vm5664, %v5658, %v5665
        %vm5667 = vcmp.eq.s32.totalorder %v5662, 2
        %v5668 = vxor.u32 %v5658, 2147483648
        %v5669 = vsel %vm5667, %v5668, %v5659
        %v5670 = vsel %vm5663, %v5666, %v5669
        %v5671 = vsel %vm5660, nan, %v5670
        %v5672 = vand.u32 2147483647, %v5555
        %vm5673 = vcmp.le.f32.partialorder %v5672, 0.7853982
        %vm5674 = vcmp.lt.s32.totalorder %v5555, 0
        %v5675 = vand.u32 %v5555, 2139095040
        %v5676 = vshrl.u32 %v5675, 23
        %v5677 = vsub.s32 %v5676, 127
        %v5678 = vand.u32 2147483647, %v5555
        %v5679 = vand.u32 %v5678, 8388607
        %v5680 = vor.u32 %v5679, 8388608
        %v5681 = vsub.s32 0, %v5680
        %v5682 = vadd.s32 %v5677, 1
        %vm5683 = vcmp.gt.s32.totalorder %v5682, 0
        %v5684 = vsel %vm5683, %v5682, 0
        %v5685 = vshrl.u32 %v5684, 5
        %v5686 = vand.u32 %v5684, 31
        %v5687 = vsub.s32 32, %v5686
        %v5688 = vshrl.u32 683565275, %v5687
        %v5689 = vshll.u32 683565275, %v5686
        %v5690 = vshrl.u32 2475754826, %v5687
        %v5691 = vor.u32 %v5689, %v5690
        %v5692 = vshll.u32 2475754826, %v5686
        %v5693 = vshrl.u32 2131351028, %v5687
        %v5694 = vor.u32 %v5692, %v5693
        %v5695 = vshll.u32 2131351028, %v5686
        %v5696 = vshrl.u32 2102212464, %v5687
        %v5697 = vor.u32 %v5695, %v5696
        %v5698 = vshll.u32 2102212464, %v5686
        %v5699 = vshrl.u32 920167782, %v5687
        %v5700 = vor.u32 %v5698, %v5699
        %v5701 = vshll.u32 920167782, %v5686
        %v5702 = vshrl.u32 1326507024, %v5687
        %v5703 = vor.u32 %v5701, %v5702
        %vm5704 = vcmp.lt.s32.totalorder %v5685, 1
        %vm5705 = vcmp.lt.s32.totalorder %v5685, 2
        %vm5706 = vcmp.lt.s32.totalorder %v5685, 3
        %vm5707 = vcmp.lt.s32.totalorder %v5685, 4
        %v5708 = vsel %vm5704, %v5688, %v5691
        %v5709 = vsel %vm5707, %v5697, 2102212464
        %v5710 = vsel %vm5706, %v5694, %v5709
        %v5711 = vsel %vm5705, %v5708, %v5710
        %v5712 = vsel %vm5704, %v5691, %v5694
        %v5713 = vsel %vm5707, %v5700, 920167782
        %v5714 = vsel %vm5706, %v5697, %v5713
        %v5715 = vsel %vm5705, %v5712, %v5714
        %v5716 = vsel %vm5704, %v5694, %v5697
        %v5717 = vsel %vm5707, %v5703, 1326507024
        %v5718 = vsel %vm5706, %v5700, %v5717
        %v5719 = vsel %vm5705, %v5716, %v5718
        %v5720 = vshll.u32 %v5680, 8
        %v5721 = vmul.u32.u64.compose %v5720, %v5719
        %v5722 = vextract.low.u32 %v5721
        %v5723 = vextract.high.u32 %v5721
        %v5724 = vmul.u32.u64.compose %v5720, %v5715
        %v5725 = vextract.low.u32 %v5724
        %v5726 = vextract.high.u32 %v5724
        %v5727 = vmul.u32 %v5720, %v5711
        %v5728 = vadd.s32 %v5723, %v5725
        %vm5729 = vc.u32 %v5723, %v5725
        %v5730 = vadd.s32 %v5726, 1
        %v5731 = vsel %vm5729, %v5730, %v5726
        %v5732 = vadd.s32 %v5727, %v5731
        %v5733 = vadd.s32 %v5732, 536870912
        %v5734 = vshrl.u32 %v5733, 30
        %v5735 = vshll.u32 %v5734, 30
        %v5736 = vsub.s32 %v5732, %v5735
        %vm5737 = vcmp.lt.s32.totalorder %v5736, 0
        %v5738 = vsub.s32 0, %v5736
        %v5739 = vsel %vm5737, %v5738, %v5736
        %v5740 = vclz %v5739
        %v5741 = vsub.s32 %v5740, 2
        %vm5742 = vcmp.gt.s32.totalorder 0, %v5741
        %v5743 = vsel %vm5742, 0, %v5741
        %v5744 = vsub.s32 32, %v5743
        %v5745 = vshll.u32 %v5736, %v5743
        %v5746 = vshrl.u32 %v5728, %v5744
        %v5747 = vor.u32 %v5745, %v5746
        %v5748 = vsub.s32 4294967266, %v5743
        %v5749 = vadd.s32 %v5748, 127
        %v5750 = vshll.u32 %v5749, 23
        %v5751 = vor.u32 4788187, %v5750
        %v5752 = vand.u32 2147483647, %v5751
        %v5754 = vcvt.s32.f32 %v5747
        %v5755 = vmul.f32 %v5754, %v5752
        %v5756 = vxor.u32 %v5755, 2147483648
        %v5757 = vsel %vm5674, %v5756, %v5755
        %v5758 = vsub.s32 4, %v5734
        %v5759 = vsel %vm5674, %v5758, %v5734
        %v5760 = vsel %vm5673, %v5555, %v5757
        %v5761 = vsel %vm5673, 0, %v5759
        %v5762 = vcosq.f32.pop %v5760
        %v5763 = vsinq.f32.pop %v5760
        %vm5764 = vweird.f32 %v5555
        %v5765 = vadd.s32 %v5761, 3
        %v5766 = vand.u32 %v5765, 3
        %vm5767 = vcmp.lt.s32.totalorder %v5766, 2
        %vm5768 = vcmp.eq.s32.totalorder %v5766, 0
        %v5769 = vxor.u32 %v5763, 2147483648
        %v5770 = vsel %vm5768, %v5762, %v5769
        %vm5771 = vcmp.eq.s32.totalorder %v5766, 2
        %v5772 = vxor.u32 %v5762, 2147483648
        %v5773 = vsel %vm5771, %v5772, %v5763
        %v5774 = vsel %vm5767, %v5770, %v5773
        %v5775 = vsel %vm5764, nan, %v5774
        %v5776 = vand.u32 2147483647, %v5560
        %vm5777 = vcmp.le.f32.partialorder %v5776, 0.7853982
        %vm5778 = vcmp.lt.s32.totalorder %v5560, 0
        %v5779 = vand.u32 %v5560, 2139095040
        %v5780 = vshrl.u32 %v5779, 23
        %v5781 = vsub.s32 %v5780, 127
        %v5782 = vand.u32 2147483647, %v5560
        %v5783 = vand.u32 %v5782, 8388607
        %v5784 = vor.u32 %v5783, 8388608
        %v5785 = vsub.s32 0, %v5784
        %v5786 = vadd.s32 %v5781, 1
        %vm5787 = vcmp.gt.s32.totalorder %v5786, 0
        %v5788 = vsel %vm5787, %v5786, 0
        %v5789 = vshrl.u32 %v5788, 5
        %v5790 = vand.u32 %v5788, 31
        %v5791 = vsub.s32 32, %v5790
        %v5792 = vshrl.u32 683565275, %v5791
        %v5793 = vshll.u32 683565275, %v5790
        %v5794 = vshrl.u32 2475754826, %v5791
        %v5795 = vor.u32 %v5793, %v5794
        %v5796 = vshll.u32 2475754826, %v5790
        %v5797 = vshrl.u32 2131351028, %v5791
        %v5798 = vor.u32 %v5796, %v5797
        %v5799 = vshll.u32 2131351028, %v5790
        %v5800 = vshrl.u32 2102212464, %v5791
        %v5801 = vor.u32 %v5799, %v5800
        %v5802 = vshll.u32 2102212464, %v5790
        %v5803 = vshrl.u32 920167782, %v5791
        %v5804 = vor.u32 %v5802, %v5803
        %v5805 = vshll.u32 920167782, %v5790
        %v5806 = vshrl.u32 1326507024, %v5791
        %v5807 = vor.u32 %v5805, %v5806
        %vm5808 = vcmp.lt.s32.totalorder %v5789, 1
        %vm5809 = vcmp.lt.s32.totalorder %v5789, 2
        %vm5810 = vcmp.lt.s32.totalorder %v5789, 3
        %vm5811 = vcmp.lt.s32.totalorder %v5789, 4
        %v5812 = vsel %vm5808, %v5792, %v5795
        %v5813 = vsel %vm5811, %v5801, 2102212464
        %v5814 = vsel %vm5810, %v5798, %v5813
        %v5815 = vsel %vm5809, %v5812, %v5814
        %v5816 = vsel %vm5808, %v5795, %v5798
        %v5817 = vsel %vm5811, %v5804, 920167782
        %v5818 = vsel %vm5810, %v5801, %v5817
        %v5819 = vsel %vm5809, %v5816, %v5818
        %v5820 = vsel %vm5808, %v5798, %v5801
        %v5821 = vsel %vm5811, %v5807, 1326507024
        %v5822 = vsel %vm5810, %v5804, %v5821
        %v5823 = vsel %vm5809, %v5820, %v5822
        %v5824 = vshll.u32 %v5784, 8
        %v5825 = vmul.u32.u64.compose %v5824, %v5823
        %v5826 = vextract.low.u32 %v5825
        %v5827 = vextract.high.u32 %v5825
        %v5828 = vmul.u32.u64.compose %v5824, %v5819
        %v5829 = vextract.low.u32 %v5828
        %v5830 = vextract.high.u32 %v5828
        %v5831 = vmul.u32 %v5824, %v5815
        %v5832 = vadd.s32 %v5827, %v5829
        %vm5833 = vc.u32 %v5827, %v5829
        %v5834 = vadd.s32 %v5830, 1
        %v5835 = vsel %vm5833, %v5834, %v5830
        %v5836 = vadd.s32 %v5831, %v5835
        %v5837 = vadd.s32 %v5836, 536870912
        %v5838 = vshrl.u32 %v5837, 30
        %v5839 = vshll.u32 %v5838, 30
        %v5840 = vsub.s32 %v5836, %v5839
        %vm5841 = vcmp.lt.s32.totalorder %v5840, 0
        %v5842 = vsub.s32 0, %v5840
        %v5843 = vsel %vm5841, %v5842, %v5840
        %v5844 = vclz %v5843
        %v5845 = vsub.s32 %v5844, 2
        %vm5846 = vcmp.gt.s32.totalorder 0, %v5845
        %v5847 = vsel %vm5846, 0, %v5845
        %v5848 = vsub.s32 32, %v5847
        %v5849 = vshll.u32 %v5840, %v5847
        %v5850 = vshrl.u32 %v5832, %v5848
        %v5851 = vor.u32 %v5849, %v5850
        %v5852 = vsub.s32 4294967266, %v5847
        %v5853 = vadd.s32 %v5852, 127
        %v5854 = vshll.u32 %v5853, 23
        %v5855 = vor.u32 4788187, %v5854
        %v5856 = vand.u32 2147483647, %v5855
        %v5858 = vcvt.s32.f32 %v5851
        %v5859 = vmul.f32 %v5858, %v5856
        %v5860 = vxor.u32 %v5859, 2147483648
        %v5861 = vsel %vm5778, %v5860, %v5859
        %v5862 = vsub.s32 4, %v5838
        %v5863 = vsel %vm5778, %v5862, %v5838
        %v5864 = vsel %vm5777, %v5560, %v5861
        %v5865 = vsel %vm5777, 0, %v5863
        %v5866 = vcosq.f32.pop %v5864
        %v5867 = vsinq.f32.pop %v5864
        %vm5868 = vweird.f32 %v5560
        %v5869 = vadd.s32 %v5865, 3
        %v5870 = vand.u32 %v5869, 3
        %vm5871 = vcmp.lt.s32.totalorder %v5870, 2
        %vm5872 = vcmp.eq.s32.totalorder %v5870, 0
        %v5873 = vxor.u32 %v5867, 2147483648
        %v5874 = vsel %vm5872, %v5866, %v5873
        %vm5875 = vcmp.eq.s32.totalorder %v5870, 2
        %v5876 = vxor.u32 %v5866, 2147483648
        %v5877 = vsel %vm5875, %v5876, %v5867
        %v5878 = vsel %vm5871, %v5874, %v5877
        %v5879 = vsel %vm5868, nan, %v5878
        %v5880 = vand.u32 2147483647, %v5565
        %vm5881 = vcmp.le.f32.partialorder %v5880, 0.7853982
        %vm5882 = vcmp.lt.s32.totalorder %v5565, 0
        %v5883 = vand.u32 %v5565, 2139095040
        %v5884 = vshrl.u32 %v5883, 23
        %v5885 = vsub.s32 %v5884, 127
        %v5886 = vand.u32 2147483647, %v5565
        %v5887 = vand.u32 %v5886, 8388607
        %v5888 = vor.u32 %v5887, 8388608
        %v5889 = vsub.s32 0, %v5888
        %v5890 = vadd.s32 %v5885, 1
        %vm5891 = vcmp.gt.s32.totalorder %v5890, 0
        %v5892 = vsel %vm5891, %v5890, 0
        %v5893 = vshrl.u32 %v5892, 5
        %v5894 = vand.u32 %v5892, 31
        %v5895 = vsub.s32 32, %v5894
        %v5896 = vshrl.u32 683565275, %v5895
        %v5897 = vshll.u32 683565275, %v5894
        %v5898 = vshrl.u32 2475754826, %v5895
        %v5899 = vor.u32 %v5897, %v5898
        %v5900 = vshll.u32 2475754826, %v5894
        %v5901 = vshrl.u32 2131351028, %v5895
        %v5902 = vor.u32 %v5900, %v5901
        %v5903 = vshll.u32 2131351028, %v5894
        %v5904 = vshrl.u32 2102212464, %v5895
        %v5905 = vor.u32 %v5903, %v5904
        %v5906 = vshll.u32 2102212464, %v5894
        %v5907 = vshrl.u32 920167782, %v5895
        %v5908 = vor.u32 %v5906, %v5907
        %v5909 = vshll.u32 920167782, %v5894
        %v5910 = vshrl.u32 1326507024, %v5895
        %v5911 = vor.u32 %v5909, %v5910
        %vm5912 = vcmp.lt.s32.totalorder %v5893, 1
        %vm5913 = vcmp.lt.s32.totalorder %v5893, 2
        %vm5914 = vcmp.lt.s32.totalorder %v5893, 3
        %vm5915 = vcmp.lt.s32.totalorder %v5893, 4
        %v5916 = vsel %vm5912, %v5896, %v5899
        %v5917 = vsel %vm5915, %v5905, 2102212464
        %v5918 = vsel %vm5914, %v5902, %v5917
        %v5919 = vsel %vm5913, %v5916, %v5918
        %v5920 = vsel %vm5912, %v5899, %v5902
        %v5921 = vsel %vm5915, %v5908, 920167782
        %v5922 = vsel %vm5914, %v5905, %v5921
        %v5923 = vsel %vm5913, %v5920, %v5922
        %v5924 = vsel %vm5912, %v5902, %v5905
        %v5925 = vsel %vm5915, %v5911, 1326507024
        %v5926 = vsel %vm5914, %v5908, %v5925
        %v5927 = vsel %vm5913, %v5924, %v5926
        %v5928 = vshll.u32 %v5888, 8
        %v5929 = vmul.u32.u64.compose %v5928, %v5927
        %v5930 = vextract.low.u32 %v5929
        %v5931 = vextract.high.u32 %v5929
        %v5932 = vmul.u32.u64.compose %v5928, %v5923
        %v5933 = vextract.low.u32 %v5932
        %v5934 = vextract.high.u32 %v5932
        %v5935 = vmul.u32 %v5928, %v5919
        %v5936 = vadd.s32 %v5931, %v5933
        %vm5937 = vc.u32 %v5931, %v5933
        %v5938 = vadd.s32 %v5934, 1
        %v5939 = vsel %vm5937, %v5938, %v5934
        %v5940 = vadd.s32 %v5935, %v5939
        %v5941 = vadd.s32 %v5940, 536870912
        %v5942 = vshrl.u32 %v5941, 30
        %v5943 = vshll.u32 %v5942, 30
        %v5944 = vsub.s32 %v5940, %v5943
        %vm5945 = vcmp.lt.s32.totalorder %v5944, 0
        %v5946 = vsub.s32 0, %v5944
        %v5947 = vsel %vm5945, %v5946, %v5944
        %v5948 = vclz %v5947
        %v5949 = vsub.s32 %v5948, 2
        %vm5950 = vcmp.gt.s32.totalorder 0, %v5949
        %v5951 = vsel %vm5950, 0, %v5949
        %v5952 = vsub.s32 32, %v5951
        %v5953 = vshll.u32 %v5944, %v5951
        %v5954 = vshrl.u32 %v5936, %v5952
        %v5955 = vor.u32 %v5953, %v5954
        %v5956 = vsub.s32 4294967266, %v5951
        %v5957 = vadd.s32 %v5956, 127
        %v5958 = vshll.u32 %v5957, 23
        %v5959 = vor.u32 4788187, %v5958
        %v5960 = vand.u32 2147483647, %v5959
        %v5962 = vcvt.s32.f32 %v5955
        %v5963 = vmul.f32 %v5962, %v5960
        %v5964 = vxor.u32 %v5963, 2147483648
        %v5965 = vsel %vm5882, %v5964, %v5963
        %v5966 = vsub.s32 4, %v5942
        %v5967 = vsel %vm5882, %v5966, %v5942
        %v5968 = vsel %vm5881, %v5565, %v5965
        %v5969 = vsel %vm5881, 0, %v5967
        %v5970 = vcosq.f32.pop %v5968
        %v5971 = vsinq.f32.pop %v5968
        %vm5972 = vweird.f32 %v5565
        %v5973 = vadd.s32 %v5969, 3
        %v5974 = vand.u32 %v5973, 3
        %vm5975 = vcmp.lt.s32.totalorder %v5974, 2
        %vm5976 = vcmp.eq.s32.totalorder %v5974, 0
        %v5977 = vxor.u32 %v5971, 2147483648
        %v5978 = vsel %vm5976, %v5970, %v5977
        %vm5979 = vcmp.eq.s32.totalorder %v5974, 2
        %v5980 = vxor.u32 %v5970, 2147483648
        %v5981 = vsel %vm5979, %v5980, %v5971
        %v5982 = vsel %vm5975, %v5978, %v5981
        %v5983 = vsel %vm5972, nan, %v5982
        %5984 = vmatprep.subr.mxu0 0.0
        %5985 = vmatpush1.msra.mxu0 %v5447
        %5986 = vmatprep.subr.mxu0 0.0
        %5987 = vmatpush1.msra.mxu0 %v5448
        %5988 = vmatprep.subr.mxu0 0.0
        %5989 = vmatpush1.msra.mxu0 %v5449
        %5990 = vmatprep.subr.mxu0 0.0
        %5991 = vmatpush1.msra.mxu0 %v5450
        %5992 = vmatprep.subr.mxu0 0.0
        %5993 = vmatpush1.msra.mxu0 0.0
        %5994 = vmatprep.subr.mxu0 0.0
        %5995 = vmatpush1.msra.mxu0 0.0
        %5996 = vmatprep.subr.mxu0 0.0
        %5997 = vmatpush1.msra.mxu0 0.0
        %5998 = vmatprep.subr.mxu0 0.0
        %5999 = vmatpush1.msra.mxu0 0.0
        %6000 = vmatprep.subr.mxu0 0.0
        %6001 = vmatpush1.msra.mxu0 0.0
        %6002 = vmatprep.subr.mxu0 0.0
        %6003 = vmatpush1.msra.mxu0 0.0
        %6004 = vmatprep.subr.mxu0 0.0
        %6005 = vmatpush1.msra.mxu0 0.0
        %6006 = vmatprep.subr.mxu0 0.0
        %6007 = vmatpush1.msra.mxu0 0.0
        %6008 = vmatprep.subr.mxu0 0.0
        %6009 = vmatpush1.msra.mxu0 0.0
        %6010 = vmatprep.subr.mxu0 0.0
        %6011 = vmatpush1.msra.mxu0 0.0
        %6012 = vmatprep.subr.mxu0 0.0
        %6013 = vmatpush1.msra.mxu0 0.0
        %6014 = vmatprep.subr.mxu0 0.0
        %6015 = vmatpush1.msra.mxu0 0.0
        %6016 = vmatprep.subr.mxu0 0.0
        %6017 = vmatpush1.msra.mxu0 0.0
        %6018 = vmatprep.subr.mxu0 0.0
        %6019 = vmatpush1.msra.mxu0 0.0
        %6020 = vmatprep.subr.mxu0 0.0
        %6021 = vmatpush1.msra.mxu0 0.0
        %6022 = vmatprep.subr.mxu0 0.0
        %6023 = vmatpush1.msra.mxu0 0.0
        %6024 = vmatprep.subr.mxu0 0.0
        %6025 = vmatpush1.msra.mxu0 0.0
        %6026 = vmatprep.subr.mxu0 0.0
        %6027 = vmatpush1.msra.mxu0 0.0
        %6028 = vmatprep.subr.mxu0 0.0
        %6029 = vmatpush1.msra.mxu0 0.0
        %6030 = vmatprep.subr.mxu0 0.0
        %6031 = vmatpush1.msra.mxu0 0.0
        %6032 = vmatprep.subr.mxu0 0.0
        %6033 = vmatpush1.msra.mxu0 0.0
        %6034 = vmatprep.subr.mxu0 0.0
        %6035 = vmatpush1.msra.mxu0 0.0
        %6036 = vmatprep.subr.mxu0 0.0
        %6037 = vmatpush1.msra.mxu0 0.0
        %6038 = vmatprep.subr.mxu0 0.0
        %6039 = vmatpush1.msra.mxu0 0.0
        %6040 = vmatprep.subr.mxu0 0.0
        %6041 = vmatpush1.msra.mxu0 0.0
        %6042 = vmatprep.subr.mxu0 0.0
        %6043 = vmatpush1.msra.mxu0 0.0
        %6044 = vmatprep.subr.mxu0 0.0
        %6045 = vmatpush1.msra.mxu0 0.0
        %6046 = vmatprep.subr.mxu0 0.0
        %6047 = vmatpush1.msra.mxu0 0.0
        %6048 = vmatprep.mubr.f32.mxu0 0.0
        %6049 = vmatmul.mubr.f32.gmra.mrb[0].mxu0 %v5472
        %v6050 = vpop.f32.mrb[0].mxu0
        %v6051 = vadd.f32 %v5454, %v6050
        %v6052 = vpop.f32.mrb[0].mxu0
        %6053 = vmatprep.mubr.f32.mxu0 0.0
        %6054 = vmatmul.mubr.f32.gmra.mrb[0].mxu0 %v5475
        %v6055 = vpop.f32.mrb[0].mxu0
        %v6056 = vadd.f32 %v5459, %v6055
        %v6057 = vpop.f32.mrb[0].mxu0
        %6058 = vmatprep.mubr.f32.mxu0 0.0
        %6059 = vmatmul.mubr.f32.gmra.mrb[0].mxu0 %v5478
        %v6060 = vpop.f32.mrb[0].mxu0
        %v6061 = vadd.f32 %v5464, %v6060
        %v6062 = vpop.f32.mrb[0].mxu0
        %6063 = vmatprep.mubr.f32.mxu0 0.0
        %6064 = vmatmul.mubr.f32.gmra.mrb[0].mxu0 %v5481
        %v6065 = vpop.f32.mrb[0].mxu0
        %v6066 = vadd.f32 %v5469, %v6065
        %v6067 = vpop.f32.mrb[0].mxu0
        %6068 = vdwg.mxu0
        %v6069 = vand.u32 2147483647, %v6051
        %vm6070 = vcmp.le.f32.partialorder %v6069, 0.7853982
        %vm6071 = vcmp.lt.s32.totalorder %v6051, 0
        %v6072 = vand.u32 %v6051, 2139095040
        %v6073 = vshrl.u32 %v6072, 23
        %v6074 = vsub.s32 %v6073, 127
        %v6075 = vand.u32 2147483647, %v6051
        %v6076 = vand.u32 %v6075, 8388607
        %v6077 = vor.u32 %v6076, 8388608
        %v6078 = vsub.s32 0, %v6077
        %v6079 = vadd.s32 %v6074, 1
        %vm6080 = vcmp.gt.s32.totalorder %v6079, 0
        %v6081 = vsel %vm6080, %v6079, 0
        %v6082 = vshrl.u32 %v6081, 5
        %v6083 = vand.u32 %v6081, 31
        %v6084 = vsub.s32 32, %v6083
        %v6085 = vshrl.u32 683565275, %v6084
        %v6086 = vshll.u32 683565275, %v6083
        %v6087 = vshrl.u32 2475754826, %v6084
        %v6088 = vor.u32 %v6086, %v6087
        %v6089 = vshll.u32 2475754826, %v6083
        %v6090 = vshrl.u32 2131351028, %v6084
        %v6091 = vor.u32 %v6089, %v6090
        %v6092 = vshll.u32 2131351028, %v6083
        %v6093 = vshrl.u32 2102212464, %v6084
        %v6094 = vor.u32 %v6092, %v6093
        %v6095 = vshll.u32 2102212464, %v6083
        %v6096 = vshrl.u32 920167782, %v6084
        %v6097 = vor.u32 %v6095, %v6096
        %v6098 = vshll.u32 920167782, %v6083
        %v6099 = vshrl.u32 1326507024, %v6084
        %v6100 = vor.u32 %v6098, %v6099
        %vm6101 = vcmp.lt.s32.totalorder %v6082, 1
        %vm6102 = vcmp.lt.s32.totalorder %v6082, 2
        %vm6103 = vcmp.lt.s32.totalorder %v6082, 3
        %vm6104 = vcmp.lt.s32.totalorder %v6082, 4
        %v6105 = vsel %vm6101, %v6085, %v6088
        %v6106 = vsel %vm6104, %v6094, 2102212464
        %v6107 = vsel %vm6103, %v6091, %v6106
        %v6108 = vsel %vm6102, %v6105, %v6107
        %v6109 = vsel %vm6101, %v6088, %v6091
        %v6110 = vsel %vm6104, %v6097, 920167782
        %v6111 = vsel %vm6103, %v6094, %v6110
        %v6112 = vsel %vm6102, %v6109, %v6111
        %v6113 = vsel %vm6101, %v6091, %v6094
        %v6114 = vsel %vm6104, %v6100, 1326507024
        %v6115 = vsel %vm6103, %v6097, %v6114
        %v6116 = vsel %vm6102, %v6113, %v6115
        %v6117 = vshll.u32 %v6077, 8
        %v6118 = vmul.u32.u64.compose %v6117, %v6116
        %v6119 = vextract.low.u32 %v6118
        %v6120 = vextract.high.u32 %v6118
        %v6121 = vmul.u32.u64.compose %v6117, %v6112
        %v6122 = vextract.low.u32 %v6121
        %v6123 = vextract.high.u32 %v6121
        %v6124 = vmul.u32 %v6117, %v6108
        %v6125 = vadd.s32 %v6120, %v6122
        %vm6126 = vc.u32 %v6120, %v6122
        %v6127 = vadd.s32 %v6123, 1
        %v6128 = vsel %vm6126, %v6127, %v6123
        %v6129 = vadd.s32 %v6124, %v6128
        %v6130 = vadd.s32 %v6129, 536870912
        %v6131 = vshrl.u32 %v6130, 30
        %v6132 = vshll.u32 %v6131, 30
        %v6133 = vsub.s32 %v6129, %v6132
        %vm6134 = vcmp.lt.s32.totalorder %v6133, 0
        %v6135 = vsub.s32 0, %v6133
        %v6136 = vsel %vm6134, %v6135, %v6133
        %v6137 = vclz %v6136
        %v6138 = vsub.s32 %v6137, 2
        %vm6139 = vcmp.gt.s32.totalorder 0, %v6138
        %v6140 = vsel %vm6139, 0, %v6138
        %v6141 = vsub.s32 32, %v6140
        %v6142 = vshll.u32 %v6133, %v6140
        %v6143 = vshrl.u32 %v6125, %v6141
        %v6144 = vor.u32 %v6142, %v6143
        %v6145 = vsub.s32 4294967266, %v6140
        %v6146 = vadd.s32 %v6145, 127
        %v6147 = vshll.u32 %v6146, 23
        %v6148 = vor.u32 4788187, %v6147
        %v6149 = vand.u32 2147483647, %v6148
        %v6151 = vcvt.s32.f32 %v6144
        %v6152 = vmul.f32 %v6151, %v6149
        %v6153 = vxor.u32 %v6152, 2147483648
        %v6154 = vsel %vm6071, %v6153, %v6152
        %v6155 = vsub.s32 4, %v6131
        %v6156 = vsel %vm6071, %v6155, %v6131
        %v6157 = vsel %vm6070, %v6051, %v6154
        %v6158 = vsel %vm6070, 0, %v6156
        %v6159 = vcosq.f32.pop %v6157
        %v6160 = vsinq.f32.pop %v6157
        %vm6161 = vweird.f32 %v6051
        %v6162 = vadd.s32 %v6158, 3
        %v6163 = vand.u32 %v6162, 3
        %vm6164 = vcmp.lt.s32.totalorder %v6163, 2
        %vm6165 = vcmp.eq.s32.totalorder %v6163, 0
        %v6166 = vxor.u32 %v6160, 2147483648
        %v6167 = vsel %vm6165, %v6159, %v6166
        %vm6168 = vcmp.eq.s32.totalorder %v6163, 2
        %v6169 = vxor.u32 %v6159, 2147483648
        %v6170 = vsel %vm6168, %v6169, %v6160
        %v6171 = vsel %vm6164, %v6167, %v6170
        %v6172 = vsel %vm6161, nan, %v6171
        %v6173 = vand.u32 2147483647, %v6056
        %vm6174 = vcmp.le.f32.partialorder %v6173, 0.7853982
        %vm6175 = vcmp.lt.s32.totalorder %v6056, 0
        %v6176 = vand.u32 %v6056, 2139095040
        %v6177 = vshrl.u32 %v6176, 23
        %v6178 = vsub.s32 %v6177, 127
        %v6179 = vand.u32 2147483647, %v6056
        %v6180 = vand.u32 %v6179, 8388607
        %v6181 = vor.u32 %v6180, 8388608
        %v6182 = vsub.s32 0, %v6181
        %v6183 = vadd.s32 %v6178, 1
        %vm6184 = vcmp.gt.s32.totalorder %v6183, 0
        %v6185 = vsel %vm6184, %v6183, 0
        %v6186 = vshrl.u32 %v6185, 5
        %v6187 = vand.u32 %v6185, 31
        %v6188 = vsub.s32 32, %v6187
        %v6189 = vshrl.u32 683565275, %v6188
        %v6190 = vshll.u32 683565275, %v6187
        %v6191 = vshrl.u32 2475754826, %v6188
        %v6192 = vor.u32 %v6190, %v6191
        %v6193 = vshll.u32 2475754826, %v6187
        %v6194 = vshrl.u32 2131351028, %v6188
        %v6195 = vor.u32 %v6193, %v6194
        %v6196 = vshll.u32 2131351028, %v6187
        %v6197 = vshrl.u32 2102212464, %v6188
        %v6198 = vor.u32 %v6196, %v6197
        %v6199 = vshll.u32 2102212464, %v6187
        %v6200 = vshrl.u32 920167782, %v6188
        %v6201 = vor.u32 %v6199, %v6200
        %v6202 = vshll.u32 920167782, %v6187
        %v6203 = vshrl.u32 1326507024, %v6188
        %v6204 = vor.u32 %v6202, %v6203
        %vm6205 = vcmp.lt.s32.totalorder %v6186, 1
        %vm6206 = vcmp.lt.s32.totalorder %v6186, 2
        %vm6207 = vcmp.lt.s32.totalorder %v6186, 3
        %vm6208 = vcmp.lt.s32.totalorder %v6186, 4
        %v6209 = vsel %vm6205, %v6189, %v6192
        %v6210 = vsel %vm6208, %v6198, 2102212464
        %v6211 = vsel %vm6207, %v6195, %v6210
        %v6212 = vsel %vm6206, %v6209, %v6211
        %v6213 = vsel %vm6205, %v6192, %v6195
        %v6214 = vsel %vm6208, %v6201, 920167782
        %v6215 = vsel %vm6207, %v6198, %v6214
        %v6216 = vsel %vm6206, %v6213, %v6215
        %v6217 = vsel %vm6205, %v6195, %v6198
        %v6218 = vsel %vm6208, %v6204, 1326507024
        %v6219 = vsel %vm6207, %v6201, %v6218
        %v6220 = vsel %vm6206, %v6217, %v6219
        %v6221 = vshll.u32 %v6181, 8
        %v6222 = vmul.u32.u64.compose %v6221, %v6220
        %v6223 = vextract.low.u32 %v6222
        %v6224 = vextract.high.u32 %v6222
        %v6225 = vmul.u32.u64.compose %v6221, %v6216
        %v6226 = vextract.low.u32 %v6225
        %v6227 = vextract.high.u32 %v6225
        %v6228 = vmul.u32 %v6221, %v6212
        %v6229 = vadd.s32 %v6224, %v6226
        %vm6230 = vc.u32 %v6224, %v6226
        %v6231 = vadd.s32 %v6227, 1
        %v6232 = vsel %vm6230, %v6231, %v6227
        %v6233 = vadd.s32 %v6228, %v6232
        %v6234 = vadd.s32 %v6233, 536870912
        %v6235 = vshrl.u32 %v6234, 30
        %v6236 = vshll.u32 %v6235, 30
        %v6237 = vsub.s32 %v6233, %v6236
        %vm6238 = vcmp.lt.s32.totalorder %v6237, 0
        %v6239 = vsub.s32 0, %v6237
        %v6240 = vsel %vm6238, %v6239, %v6237
        %v6241 = vclz %v6240
        %v6242 = vsub.s32 %v6241, 2
        %vm6243 = vcmp.gt.s32.totalorder 0, %v6242
        %v6244 = vsel %vm6243, 0, %v6242
        %v6245 = vsub.s32 32, %v6244
        %v6246 = vshll.u32 %v6237, %v6244
        %v6247 = vshrl.u32 %v6229, %v6245
        %v6248 = vor.u32 %v6246, %v6247
        %v6249 = vsub.s32 4294967266, %v6244
        %v6250 = vadd.s32 %v6249, 127
        %v6251 = vshll.u32 %v6250, 23
        %v6252 = vor.u32 4788187, %v6251
        %v6253 = vand.u32 2147483647, %v6252
        %v6255 = vcvt.s32.f32 %v6248
        %v6256 = vmul.f32 %v6255, %v6253
        %v6257 = vxor.u32 %v6256, 2147483648
        %v6258 = vsel %vm6175, %v6257, %v6256
        %v6259 = vsub.s32 4, %v6235
        %v6260 = vsel %vm6175, %v6259, %v6235
        %v6261 = vsel %vm6174, %v6056, %v6258
        %v6262 = vsel %vm6174, 0, %v6260
        %v6263 = vcosq.f32.pop %v6261
        %v6264 = vsinq.f32.pop %v6261
        %vm6265 = vweird.f32 %v6056
        %v6266 = vadd.s32 %v6262, 3
        %v6267 = vand.u32 %v6266, 3
        %vm6268 = vcmp.lt.s32.totalorder %v6267, 2
        %vm6269 = vcmp.eq.s32.totalorder %v6267, 0
        %v6270 = vxor.u32 %v6264, 2147483648
        %v6271 = vsel %vm6269, %v6263, %v6270
        %vm6272 = vcmp.eq.s32.totalorder %v6267, 2
        %v6273 = vxor.u32 %v6263, 2147483648
        %v6274 = vsel %vm6272, %v6273, %v6264
        %v6275 = vsel %vm6268, %v6271, %v6274
        %v6276 = vsel %vm6265, nan, %v6275
        %v6277 = vand.u32 2147483647, %v6061
        %vm6278 = vcmp.le.f32.partialorder %v6277, 0.7853982
        %vm6279 = vcmp.lt.s32.totalorder %v6061, 0
        %v6280 = vand.u32 %v6061, 2139095040
        %v6281 = vshrl.u32 %v6280, 23
        %v6282 = vsub.s32 %v6281, 127
        %v6283 = vand.u32 2147483647, %v6061
        %v6284 = vand.u32 %v6283, 8388607
        %v6285 = vor.u32 %v6284, 8388608
        %v6286 = vsub.s32 0, %v6285
        %v6287 = vadd.s32 %v6282, 1
        %vm6288 = vcmp.gt.s32.totalorder %v6287, 0
        %v6289 = vsel %vm6288, %v6287, 0
        %v6290 = vshrl.u32 %v6289, 5
        %v6291 = vand.u32 %v6289, 31
        %v6292 = vsub.s32 32, %v6291
        %v6293 = vshrl.u32 683565275, %v6292
        %v6294 = vshll.u32 683565275, %v6291
        %v6295 = vshrl.u32 2475754826, %v6292
        %v6296 = vor.u32 %v6294, %v6295
        %v6297 = vshll.u32 2475754826, %v6291
        %v6298 = vshrl.u32 2131351028, %v6292
        %v6299 = vor.u32 %v6297, %v6298
        %v6300 = vshll.u32 2131351028, %v6291
        %v6301 = vshrl.u32 2102212464, %v6292
        %v6302 = vor.u32 %v6300, %v6301
        %v6303 = vshll.u32 2102212464, %v6291
        %v6304 = vshrl.u32 920167782, %v6292
        %v6305 = vor.u32 %v6303, %v6304
        %v6306 = vshll.u32 920167782, %v6291
        %v6307 = vshrl.u32 1326507024, %v6292
        %v6308 = vor.u32 %v6306, %v6307
        %vm6309 = vcmp.lt.s32.totalorder %v6290, 1
        %vm6310 = vcmp.lt.s32.totalorder %v6290, 2
        %vm6311 = vcmp.lt.s32.totalorder %v6290, 3
        %vm6312 = vcmp.lt.s32.totalorder %v6290, 4
        %v6313 = vsel %vm6309, %v6293, %v6296
        %v6314 = vsel %vm6312, %v6302, 2102212464
        %v6315 = vsel %vm6311, %v6299, %v6314
        %v6316 = vsel %vm6310, %v6313, %v6315
        %v6317 = vsel %vm6309, %v6296, %v6299
        %v6318 = vsel %vm6312, %v6305, 920167782
        %v6319 = vsel %vm6311, %v6302, %v6318
        %v6320 = vsel %vm6310, %v6317, %v6319
        %v6321 = vsel %vm6309, %v6299, %v6302
        %v6322 = vsel %vm6312, %v6308, 1326507024
        %v6323 = vsel %vm6311, %v6305, %v6322
        %v6324 = vsel %vm6310, %v6321, %v6323
        %v6325 = vshll.u32 %v6285, 8
        %v6326 = vmul.u32.u64.compose %v6325, %v6324
        %v6327 = vextract.low.u32 %v6326
        %v6328 = vextract.high.u32 %v6326
        %v6329 = vmul.u32.u64.compose %v6325, %v6320
        %v6330 = vextract.low.u32 %v6329
        %v6331 = vextract.high.u32 %v6329
        %v6332 = vmul.u32 %v6325, %v6316
        %v6333 = vadd.s32 %v6328, %v6330
        %vm6334 = vc.u32 %v6328, %v6330
        %v6335 = vadd.s32 %v6331, 1
        %v6336 = vsel %vm6334, %v6335, %v6331
        %v6337 = vadd.s32 %v6332, %v6336
        %v6338 = vadd.s32 %v6337, 536870912
        %v6339 = vshrl.u32 %v6338, 30
        %v6340 = vshll.u32 %v6339, 30
        %v6341 = vsub.s32 %v6337, %v6340
        %vm6342 = vcmp.lt.s32.totalorder %v6341, 0
        %v6343 = vsub.s32 0, %v6341
        %v6344 = vsel %vm6342, %v6343, %v6341
        %v6345 = vclz %v6344
        %v6346 = vsub.s32 %v6345, 2
        %vm6347 = vcmp.gt.s32.totalorder 0, %v6346
        %v6348 = vsel %vm6347, 0, %v6346
        %v6349 = vsub.s32 32, %v6348
        %v6350 = vshll.u32 %v6341, %v6348
        %v6351 = vshrl.u32 %v6333, %v6349
        %v6352 = vor.u32 %v6350, %v6351
        %v6353 = vsub.s32 4294967266, %v6348
        %v6354 = vadd.s32 %v6353, 127
        %v6355 = vshll.u32 %v6354, 23
        %v6356 = vor.u32 4788187, %v6355
        %v6357 = vand.u32 2147483647, %v6356
        %v6359 = vcvt.s32.f32 %v6352
        %v6360 = vmul.f32 %v6359, %v6357
        %v6361 = vxor.u32 %v6360, 2147483648
        %v6362 = vsel %vm6279, %v6361, %v6360
        %v6363 = vsub.s32 4, %v6339
        %v6364 = vsel %vm6279, %v6363, %v6339
        %v6365 = vsel %vm6278, %v6061, %v6362
        %v6366 = vsel %vm6278, 0, %v6364
        %v6367 = vcosq.f32.pop %v6365
        %v6368 = vsinq.f32.pop %v6365
        %vm6369 = vweird.f32 %v6061
        %v6370 = vadd.s32 %v6366, 3
        %v6371 = vand.u32 %v6370, 3
        %vm6372 = vcmp.lt.s32.totalorder %v6371, 2
        %vm6373 = vcmp.eq.s32.totalorder %v6371, 0
        %v6374 = vxor.u32 %v6368, 2147483648
        %v6375 = vsel %vm6373, %v6367, %v6374
        %vm6376 = vcmp.eq.s32.totalorder %v6371, 2
        %v6377 = vxor.u32 %v6367, 2147483648
        %v6378 = vsel %vm6376, %v6377, %v6368
        %v6379 = vsel %vm6372, %v6375, %v6378
        %v6380 = vsel %vm6369, nan, %v6379
        %v6381 = vand.u32 2147483647, %v6066
        %vm6382 = vcmp.le.f32.partialorder %v6381, 0.7853982
        %vm6383 = vcmp.lt.s32.totalorder %v6066, 0
        %v6384 = vand.u32 %v6066, 2139095040
        %v6385 = vshrl.u32 %v6384, 23
        %v6386 = vsub.s32 %v6385, 127
        %v6387 = vand.u32 2147483647, %v6066
        %v6388 = vand.u32 %v6387, 8388607
        %v6389 = vor.u32 %v6388, 8388608
        %v6390 = vsub.s32 0, %v6389
        %v6391 = vadd.s32 %v6386, 1
        %vm6392 = vcmp.gt.s32.totalorder %v6391, 0
        %v6393 = vsel %vm6392, %v6391, 0
        %v6394 = vshrl.u32 %v6393, 5
        %v6395 = vand.u32 %v6393, 31
        %v6396 = vsub.s32 32, %v6395
        %v6397 = vshrl.u32 683565275, %v6396
        %v6398 = vshll.u32 683565275, %v6395
        %v6399 = vshrl.u32 2475754826, %v6396
        %v6400 = vor.u32 %v6398, %v6399
        %v6401 = vshll.u32 2475754826, %v6395
        %v6402 = vshrl.u32 2131351028, %v6396
        %v6403 = vor.u32 %v6401, %v6402
        %v6404 = vshll.u32 2131351028, %v6395
        %v6405 = vshrl.u32 2102212464, %v6396
        %v6406 = vor.u32 %v6404, %v6405
        %v6407 = vshll.u32 2102212464, %v6395
        %v6408 = vshrl.u32 920167782, %v6396
        %v6409 = vor.u32 %v6407, %v6408
        %v6410 = vshll.u32 920167782, %v6395
        %v6411 = vshrl.u32 1326507024, %v6396
        %v6412 = vor.u32 %v6410, %v6411
        %vm6413 = vcmp.lt.s32.totalorder %v6394, 1
        %vm6414 = vcmp.lt.s32.totalorder %v6394, 2
        %vm6415 = vcmp.lt.s32.totalorder %v6394, 3
        %vm6416 = vcmp.lt.s32.totalorder %v6394, 4
        %v6417 = vsel %vm6413, %v6397, %v6400
        %v6418 = vsel %vm6416, %v6406, 2102212464
        %v6419 = vsel %vm6415, %v6403, %v6418
        %v6420 = vsel %vm6414, %v6417, %v6419
        %v6421 = vsel %vm6413, %v6400, %v6403
        %v6422 = vsel %vm6416, %v6409, 920167782
        %v6423 = vsel %vm6415, %v6406, %v6422
        %v6424 = vsel %vm6414, %v6421, %v6423
        %v6425 = vsel %vm6413, %v6403, %v6406
        %v6426 = vsel %vm6416, %v6412, 1326507024
        %v6427 = vsel %vm6415, %v6409, %v6426
        %v6428 = vsel %vm6414, %v6425, %v6427
        %v6429 = vshll.u32 %v6389, 8
        %v6430 = vmul.u32.u64.compose %v6429, %v6428
        %v6431 = vextract.low.u32 %v6430
        %v6432 = vextract.high.u32 %v6430
        %v6433 = vmul.u32.u64.compose %v6429, %v6424
        %v6434 = vextract.low.u32 %v6433
        %v6435 = vextract.high.u32 %v6433
        %v6436 = vmul.u32 %v6429, %v6420
        %v6437 = vadd.s32 %v6432, %v6434
        %vm6438 = vc.u32 %v6432, %v6434
        %v6439 = vadd.s32 %v6435, 1
        %v6440 = vsel %vm6438, %v6439, %v6435
        %v6441 = vadd.s32 %v6436, %v6440
        %v6442 = vadd.s32 %v6441, 536870912
        %v6443 = vshrl.u32 %v6442, 30
        %v6444 = vshll.u32 %v6443, 30
        %v6445 = vsub.s32 %v6441, %v6444
        %vm6446 = vcmp.lt.s32.totalorder %v6445, 0
        %v6447 = vsub.s32 0, %v6445
        %v6448 = vsel %vm6446, %v6447, %v6445
        %v6449 = vclz %v6448
        %v6450 = vsub.s32 %v6449, 2
        %vm6451 = vcmp.gt.s32.totalorder 0, %v6450
        %v6452 = vsel %vm6451, 0, %v6450
        %v6453 = vsub.s32 32, %v6452
        %v6454 = vshll.u32 %v6445, %v6452
        %v6455 = vshrl.u32 %v6437, %v6453
        %v6456 = vor.u32 %v6454, %v6455
        %v6457 = vsub.s32 4294967266, %v6452
        %v6458 = vadd.s32 %v6457, 127
        %v6459 = vshll.u32 %v6458, 23
        %v6460 = vor.u32 4788187, %v6459
        %v6461 = vand.u32 2147483647, %v6460
        %v6463 = vcvt.s32.f32 %v6456
        %v6464 = vmul.f32 %v6463, %v6461
        %v6465 = vxor.u32 %v6464, 2147483648
        %v6466 = vsel %vm6383, %v6465, %v6464
        %v6467 = vsub.s32 4, %v6443
        %v6468 = vsel %vm6383, %v6467, %v6443
        %v6469 = vsel %vm6382, %v6066, %v6466
        %v6470 = vsel %vm6382, 0, %v6468
        %v6471 = vcosq.f32.pop %v6469
        %v6472 = vsinq.f32.pop %v6469
        %vm6473 = vweird.f32 %v6066
        %v6474 = vadd.s32 %v6470, 3
        %v6475 = vand.u32 %v6474, 3
        %vm6476 = vcmp.lt.s32.totalorder %v6475, 2
        %vm6477 = vcmp.eq.s32.totalorder %v6475, 0
        %v6478 = vxor.u32 %v6472, 2147483648
        %v6479 = vsel %vm6477, %v6471, %v6478
        %vm6480 = vcmp.eq.s32.totalorder %v6475, 2
        %v6481 = vxor.u32 %v6471, 2147483648
        %v6482 = vsel %vm6480, %v6481, %v6472
        %v6483 = vsel %vm6476, %v6479, %v6482
        %v6484 = vsel %vm6473, nan, %v6483
        %6486 = vset.pattern.permute.xlu0 0
        %6487 = vperm.xlu0 %6486, %v335
        %v6488 = vpop.permute.xlu0 %6487
        %6491 = vset.pattern.permute.xlu0 0
        %6492 = vperm.xlu0 %6491, %v336
        %v6493 = vpop.permute.xlu0 %6492
        %6496 = vset.pattern.permute.xlu0 0
        %6497 = vperm.xlu0 %6496, %v337
        %v6498 = vpop.permute.xlu0 %6497
        %6501 = vset.pattern.permute.xlu0 0
        %6502 = vperm.xlu0 %6501, %v338
        %v6503 = vpop.permute.xlu0 %6502
        %v6506 = vsel %vm1318, %v311, 0
        %v6509 = vsel %vm1318, %v312, 0
        %v6512 = vsel %vm1318, %v313, 0
        %v6515 = vsel %vm1318, %v314, 0
        %6517 = vmatprep.subr.mxu0 0.0
        %6518 = vmatpush1.msra.mxu0 %v5671
        %6519 = vmatprep.subr.mxu0 0.0
        %6520 = vmatpush1.msra.mxu0 %v5775
        %6521 = vmatprep.subr.mxu0 0.0
        %6522 = vmatpush1.msra.mxu0 %v5879
        %6523 = vmatprep.subr.mxu0 0.0
        %6524 = vmatpush1.msra.mxu0 %v5983
        %6525 = vmatprep.subr.mxu0 0.0
        %6526 = vmatpush1.msra.mxu0 0.0
        %6527 = vmatprep.subr.mxu0 0.0
        %6528 = vmatpush1.msra.mxu0 0.0
        %6529 = vmatprep.subr.mxu0 0.0
        %6530 = vmatpush1.msra.mxu0 0.0
        %6531 = vmatprep.subr.mxu0 0.0
        %6532 = vmatpush1.msra.mxu0 0.0
        %6533 = vmatprep.subr.mxu0 0.0
        %6534 = vmatpush1.msra.mxu0 0.0
        %6535 = vmatprep.subr.mxu0 0.0
        %6536 = vmatpush1.msra.mxu0 0.0
        %6537 = vmatprep.subr.mxu0 0.0
        %6538 = vmatpush1.msra.mxu0 0.0
        %6539 = vmatprep.subr.mxu0 0.0
        %6540 = vmatpush1.msra.mxu0 0.0
        %6541 = vmatprep.subr.mxu0 0.0
        %6542 = vmatpush1.msra.mxu0 0.0
        %6543 = vmatprep.subr.mxu0 0.0
        %6544 = vmatpush1.msra.mxu0 0.0
        %6545 = vmatprep.subr.mxu0 0.0
        %6546 = vmatpush1.msra.mxu0 0.0
        %6547 = vmatprep.subr.mxu0 0.0
        %6548 = vmatpush1.msra.mxu0 0.0
        %6549 = vmatprep.subr.mxu0 0.0
        %6550 = vmatpush1.msra.mxu0 0.0
        %6551 = vmatprep.subr.mxu0 0.0
        %6552 = vmatpush1.msra.mxu0 0.0
        %6553 = vmatprep.subr.mxu0 0.0
        %6554 = vmatpush1.msra.mxu0 0.0
        %6555 = vmatprep.subr.mxu0 0.0
        %6556 = vmatpush1.msra.mxu0 0.0
        %6557 = vmatprep.subr.mxu0 0.0
        %6558 = vmatpush1.msra.mxu0 0.0
        %6559 = vmatprep.subr.mxu0 0.0
        %6560 = vmatpush1.msra.mxu0 0.0
        %6561 = vmatprep.subr.mxu0 0.0
        %6562 = vmatpush1.msra.mxu0 0.0
        %6563 = vmatprep.subr.mxu0 0.0
        %6564 = vmatpush1.msra.mxu0 0.0
        %6565 = vmatprep.subr.mxu0 0.0
        %6566 = vmatpush1.msra.mxu0 0.0
        %6567 = vmatprep.subr.mxu0 0.0
        %6568 = vmatpush1.msra.mxu0 0.0
        %6569 = vmatprep.subr.mxu0 0.0
        %6570 = vmatpush1.msra.mxu0 0.0
        %6571 = vmatprep.subr.mxu0 0.0
        %6572 = vmatpush1.msra.mxu0 0.0
        %6573 = vmatprep.subr.mxu0 0.0
        %6574 = vmatpush1.msra.mxu0 0.0
        %6575 = vmatprep.subr.mxu0 0.0
        %6576 = vmatpush1.msra.mxu0 0.0
        %6577 = vmatprep.subr.mxu0 0.0
        %6578 = vmatpush1.msra.mxu0 0.0
        %6579 = vmatprep.subr.mxu0 0.0
        %6580 = vmatpush1.msra.mxu0 0.0
        %6581 = vmatprep.mubr.f32.mxu0 0.0
        %6582 = vmatmul.mubr.f32.gmra.mrb[0].mxu0 %v6506
        %v6583 = vpop.f32.mrb[0].mxu0
        %v6584 = vadd.f32 %v6488, %v6583
        %v6585 = vpop.f32.mrb[0].mxu0
        %6586 = vmatprep.mubr.f32.mxu0 0.0
        %6587 = vmatmul.mubr.f32.gmra.mrb[0].mxu0 %v6509
        %v6588 = vpop.f32.mrb[0].mxu0
        %v6589 = vadd.f32 %v6493, %v6588
        %v6590 = vpop.f32.mrb[0].mxu0
        %6591 = vmatprep.mubr.f32.mxu0 0.0
        %6592 = vmatmul.mubr.f32.gmra.mrb[0].mxu0 %v6512
        %v6593 = vpop.f32.mrb[0].mxu0
        %v6594 = vadd.f32 %v6498, %v6593
        %v6595 = vpop.f32.mrb[0].mxu0
        %6596 = vmatprep.mubr.f32.mxu0 0.0
        %6597 = vmatmul.mubr.f32.gmra.mrb[0].mxu0 %v6515
        %v6598 = vpop.f32.mrb[0].mxu0
        %v6599 = vadd.f32 %v6503, %v6598
        %v6600 = vpop.f32.mrb[0].mxu0
        %6601 = vdwg.mxu0
        %v6602 = vand.u32 2147483647, %v6584
        %vm6603 = vcmp.le.f32.partialorder %v6602, 0.7853982
        %vm6604 = vcmp.lt.s32.totalorder %v6584, 0
        %v6605 = vand.u32 %v6584, 2139095040
        %v6606 = vshrl.u32 %v6605, 23
        %v6607 = vsub.s32 %v6606, 127
        %v6608 = vand.u32 2147483647, %v6584
        %v6609 = vand.u32 %v6608, 8388607
        %v6610 = vor.u32 %v6609, 8388608
        %v6611 = vsub.s32 0, %v6610
        %v6612 = vadd.s32 %v6607, 1
        %vm6613 = vcmp.gt.s32.totalorder %v6612, 0
        %v6614 = vsel %vm6613, %v6612, 0
        %v6615 = vshrl.u32 %v6614, 5
        %v6616 = vand.u32 %v6614, 31
        %v6617 = vsub.s32 32, %v6616
        %v6618 = vshrl.u32 683565275, %v6617
        %v6619 = vshll.u32 683565275, %v6616
        %v6620 = vshrl.u32 2475754826, %v6617
        %v6621 = vor.u32 %v6619, %v6620
        %v6622 = vshll.u32 2475754826, %v6616
        %v6623 = vshrl.u32 2131351028, %v6617
        %v6624 = vor.u32 %v6622, %v6623
        %v6625 = vshll.u32 2131351028, %v6616
        %v6626 = vshrl.u32 2102212464, %v6617
        %v6627 = vor.u32 %v6625, %v6626
        %v6628 = vshll.u32 2102212464, %v6616
        %v6629 = vshrl.u32 920167782, %v6617
        %v6630 = vor.u32 %v6628, %v6629
        %v6631 = vshll.u32 920167782, %v6616
        %v6632 = vshrl.u32 1326507024, %v6617
        %v6633 = vor.u32 %v6631, %v6632
        %vm6634 = vcmp.lt.s32.totalorder %v6615, 1
        %vm6635 = vcmp.lt.s32.totalorder %v6615, 2
        %vm6636 = vcmp.lt.s32.totalorder %v6615, 3
        %vm6637 = vcmp.lt.s32.totalorder %v6615, 4
        %v6638 = vsel %vm6634, %v6618, %v6621
        %v6639 = vsel %vm6637, %v6627, 2102212464
        %v6640 = vsel %vm6636, %v6624, %v6639
        %v6641 = vsel %vm6635, %v6638, %v6640
        %v6642 = vsel %vm6634, %v6621, %v6624
        %v6643 = vsel %vm6637, %v6630, 920167782
        %v6644 = vsel %vm6636, %v6627, %v6643
        %v6645 = vsel %vm6635, %v6642, %v6644
        %v6646 = vsel %vm6634, %v6624, %v6627
        %v6647 = vsel %vm6637, %v6633, 1326507024
        %v6648 = vsel %vm6636, %v6630, %v6647
        %v6649 = vsel %vm6635, %v6646, %v6648
        %v6650 = vshll.u32 %v6610, 8
        %v6651 = vmul.u32.u64.compose %v6650, %v6649
        %v6652 = vextract.low.u32 %v6651
        %v6653 = vextract.high.u32 %v6651
        %v6654 = vmul.u32.u64.compose %v6650, %v6645
        %v6655 = vextract.low.u32 %v6654
        %v6656 = vextract.high.u32 %v6654
        %v6657 = vmul.u32 %v6650, %v6641
        %v6658 = vadd.s32 %v6653, %v6655
        %vm6659 = vc.u32 %v6653, %v6655
        %v6660 = vadd.s32 %v6656, 1
        %v6661 = vsel %vm6659, %v6660, %v6656
        %v6662 = vadd.s32 %v6657, %v6661
        %v6663 = vadd.s32 %v6662, 536870912
        %v6664 = vshrl.u32 %v6663, 30
        %v6665 = vshll.u32 %v6664, 30
        %v6666 = vsub.s32 %v6662, %v6665
        %vm6667 = vcmp.lt.s32.totalorder %v6666, 0
        %v6668 = vsub.s32 0, %v6666
        %v6669 = vsel %vm6667, %v6668, %v6666
        %v6670 = vclz %v6669
        %v6671 = vsub.s32 %v6670, 2
        %vm6672 = vcmp.gt.s32.totalorder 0, %v6671
        %v6673 = vsel %vm6672, 0, %v6671
        %v6674 = vsub.s32 32, %v6673
        %v6675 = vshll.u32 %v6666, %v6673
        %v6676 = vshrl.u32 %v6658, %v6674
        %v6677 = vor.u32 %v6675, %v6676
        %v6678 = vsub.s32 4294967266, %v6673
        %v6679 = vadd.s32 %v6678, 127
        %v6680 = vshll.u32 %v6679, 23
        %v6681 = vor.u32 4788187, %v6680
        %v6682 = vand.u32 2147483647, %v6681
        %v6684 = vcvt.s32.f32 %v6677
        %v6685 = vmul.f32 %v6684, %v6682
        %v6686 = vxor.u32 %v6685, 2147483648
        %v6687 = vsel %vm6604, %v6686, %v6685
        %v6688 = vsub.s32 4, %v6664
        %v6689 = vsel %vm6604, %v6688, %v6664
        %v6690 = vsel %vm6603, %v6584, %v6687
        %v6691 = vsel %vm6603, 0, %v6689
        %v6692 = vcosq.f32.pop %v6690
        %v6693 = vsinq.f32.pop %v6690
        %vm6694 = vweird.f32 %v6584
        %v6695 = vadd.s32 %v6691, 3
        %v6696 = vand.u32 %v6695, 3
        %vm6697 = vcmp.lt.s32.totalorder %v6696, 2
        %vm6698 = vcmp.eq.s32.totalorder %v6696, 0
        %v6699 = vxor.u32 %v6693, 2147483648
        %v6700 = vsel %vm6698, %v6692, %v6699
        %vm6701 = vcmp.eq.s32.totalorder %v6696, 2
        %v6702 = vxor.u32 %v6692, 2147483648
        %v6703 = vsel %vm6701, %v6702, %v6693
        %v6704 = vsel %vm6697, %v6700, %v6703
        %v6705 = vsel %vm6694, nan, %v6704
        %v6706 = vand.u32 2147483647, %v6589
        %vm6707 = vcmp.le.f32.partialorder %v6706, 0.7853982
        %vm6708 = vcmp.lt.s32.totalorder %v6589, 0
        %v6709 = vand.u32 %v6589, 2139095040
        %v6710 = vshrl.u32 %v6709, 23
        %v6711 = vsub.s32 %v6710, 127
        %v6712 = vand.u32 2147483647, %v6589
        %v6713 = vand.u32 %v6712, 8388607
        %v6714 = vor.u32 %v6713, 8388608
        %v6715 = vsub.s32 0, %v6714
        %v6716 = vadd.s32 %v6711, 1
        %vm6717 = vcmp.gt.s32.totalorder %v6716, 0
        %v6718 = vsel %vm6717, %v6716, 0
        %v6719 = vshrl.u32 %v6718, 5
        %v6720 = vand.u32 %v6718, 31
        %v6721 = vsub.s32 32, %v6720
        %v6722 = vshrl.u32 683565275, %v6721
        %v6723 = vshll.u32 683565275, %v6720
        %v6724 = vshrl.u32 2475754826, %v6721
        %v6725 = vor.u32 %v6723, %v6724
        %v6726 = vshll.u32 2475754826, %v6720
        %v6727 = vshrl.u32 2131351028, %v6721
        %v6728 = vor.u32 %v6726, %v6727
        %v6729 = vshll.u32 2131351028, %v6720
        %v6730 = vshrl.u32 2102212464, %v6721
        %v6731 = vor.u32 %v6729, %v6730
        %v6732 = vshll.u32 2102212464, %v6720
        %v6733 = vshrl.u32 920167782, %v6721
        %v6734 = vor.u32 %v6732, %v6733
        %v6735 = vshll.u32 920167782, %v6720
        %v6736 = vshrl.u32 1326507024, %v6721
        %v6737 = vor.u32 %v6735, %v6736
        %vm6738 = vcmp.lt.s32.totalorder %v6719, 1
        %vm6739 = vcmp.lt.s32.totalorder %v6719, 2
        %vm6740 = vcmp.lt.s32.totalorder %v6719, 3
        %vm6741 = vcmp.lt.s32.totalorder %v6719, 4
        %v6742 = vsel %vm6738, %v6722, %v6725
        %v6743 = vsel %vm6741, %v6731, 2102212464
        %v6744 = vsel %vm6740, %v6728, %v6743
        %v6745 = vsel %vm6739, %v6742, %v6744
        %v6746 = vsel %vm6738, %v6725, %v6728
        %v6747 = vsel %vm6741, %v6734, 920167782
        %v6748 = vsel %vm6740, %v6731, %v6747
        %v6749 = vsel %vm6739, %v6746, %v6748
        %v6750 = vsel %vm6738, %v6728, %v6731
        %v6751 = vsel %vm6741, %v6737, 1326507024
        %v6752 = vsel %vm6740, %v6734, %v6751
        %v6753 = vsel %vm6739, %v6750, %v6752
        %v6754 = vshll.u32 %v6714, 8
        %v6755 = vmul.u32.u64.compose %v6754, %v6753
        %v6756 = vextract.low.u32 %v6755
        %v6757 = vextract.high.u32 %v6755
        %v6758 = vmul.u32.u64.compose %v6754, %v6749
        %v6759 = vextract.low.u32 %v6758
        %v6760 = vextract.high.u32 %v6758
        %v6761 = vmul.u32 %v6754, %v6745
        %v6762 = vadd.s32 %v6757, %v6759
        %vm6763 = vc.u32 %v6757, %v6759
        %v6764 = vadd.s32 %v6760, 1
        %v6765 = vsel %vm6763, %v6764, %v6760
        %v6766 = vadd.s32 %v6761, %v6765
        %v6767 = vadd.s32 %v6766, 536870912
        %v6768 = vshrl.u32 %v6767, 30
        %v6769 = vshll.u32 %v6768, 30
        %v6770 = vsub.s32 %v6766, %v6769
        %vm6771 = vcmp.lt.s32.totalorder %v6770, 0
        %v6772 = vsub.s32 0, %v6770
        %v6773 = vsel %vm6771, %v6772, %v6770
        %v6774 = vclz %v6773
        %v6775 = vsub.s32 %v6774, 2
        %vm6776 = vcmp.gt.s32.totalorder 0, %v6775
        %v6777 = vsel %vm6776, 0, %v6775
        %v6778 = vsub.s32 32, %v6777
        %v6779 = vshll.u32 %v6770, %v6777
        %v6780 = vshrl.u32 %v6762, %v6778
        %v6781 = vor.u32 %v6779, %v6780
        %v6782 = vsub.s32 4294967266, %v6777
        %v6783 = vadd.s32 %v6782, 127
        %v6784 = vshll.u32 %v6783, 23
        %v6785 = vor.u32 4788187, %v6784
        %v6786 = vand.u32 2147483647, %v6785
        %v6788 = vcvt.s32.f32 %v6781
        %v6789 = vmul.f32 %v6788, %v6786
        %v6790 = vxor.u32 %v6789, 2147483648
        %v6791 = vsel %vm6708, %v6790, %v6789
        %v6792 = vsub.s32 4, %v6768
        %v6793 = vsel %vm6708, %v6792, %v6768
        %v6794 = vsel %vm6707, %v6589, %v6791
        %v6795 = vsel %vm6707, 0, %v6793
        %v6796 = vcosq.f32.pop %v6794
        %v6797 = vsinq.f32.pop %v6794
        %vm6798 = vweird.f32 %v6589
        %v6799 = vadd.s32 %v6795, 3
        %v6800 = vand.u32 %v6799, 3
        %vm6801 = vcmp.lt.s32.totalorder %v6800, 2
        %vm6802 = vcmp.eq.s32.totalorder %v6800, 0
        %v6803 = vxor.u32 %v6797, 2147483648
        %v6804 = vsel %vm6802, %v6796, %v6803
        %vm6805 = vcmp.eq.s32.totalorder %v6800, 2
        %v6806 = vxor.u32 %v6796, 2147483648
        %v6807 = vsel %vm6805, %v6806, %v6797
        %v6808 = vsel %vm6801, %v6804, %v6807
        %v6809 = vsel %vm6798, nan, %v6808
        %v6810 = vand.u32 2147483647, %v6594
        %vm6811 = vcmp.le.f32.partialorder %v6810, 0.7853982
        %vm6812 = vcmp.lt.s32.totalorder %v6594, 0
        %v6813 = vand.u32 %v6594, 2139095040
        %v6814 = vshrl.u32 %v6813, 23
        %v6815 = vsub.s32 %v6814, 127
        %v6816 = vand.u32 2147483647, %v6594
        %v6817 = vand.u32 %v6816, 8388607
        %v6818 = vor.u32 %v6817, 8388608
        %v6819 = vsub.s32 0, %v6818
        %v6820 = vadd.s32 %v6815, 1
        %vm6821 = vcmp.gt.s32.totalorder %v6820, 0
        %v6822 = vsel %vm6821, %v6820, 0
        %v6823 = vshrl.u32 %v6822, 5
        %v6824 = vand.u32 %v6822, 31
        %v6825 = vsub.s32 32, %v6824
        %v6826 = vshrl.u32 683565275, %v6825
        %v6827 = vshll.u32 683565275, %v6824
        %v6828 = vshrl.u32 2475754826, %v6825
        %v6829 = vor.u32 %v6827, %v6828
        %v6830 = vshll.u32 2475754826, %v6824
        %v6831 = vshrl.u32 2131351028, %v6825
        %v6832 = vor.u32 %v6830, %v6831
        %v6833 = vshll.u32 2131351028, %v6824
        %v6834 = vshrl.u32 2102212464, %v6825
        %v6835 = vor.u32 %v6833, %v6834
        %v6836 = vshll.u32 2102212464, %v6824
        %v6837 = vshrl.u32 920167782, %v6825
        %v6838 = vor.u32 %v6836, %v6837
        %v6839 = vshll.u32 920167782, %v6824
        %v6840 = vshrl.u32 1326507024, %v6825
        %v6841 = vor.u32 %v6839, %v6840
        %vm6842 = vcmp.lt.s32.totalorder %v6823, 1
        %vm6843 = vcmp.lt.s32.totalorder %v6823, 2
        %vm6844 = vcmp.lt.s32.totalorder %v6823, 3
        %vm6845 = vcmp.lt.s32.totalorder %v6823, 4
        %v6846 = vsel %vm6842, %v6826, %v6829
        %v6847 = vsel %vm6845, %v6835, 2102212464
        %v6848 = vsel %vm6844, %v6832, %v6847
        %v6849 = vsel %vm6843, %v6846, %v6848
        %v6850 = vsel %vm6842, %v6829, %v6832
        %v6851 = vsel %vm6845, %v6838, 920167782
        %v6852 = vsel %vm6844, %v6835, %v6851
        %v6853 = vsel %vm6843, %v6850, %v6852
        %v6854 = vsel %vm6842, %v6832, %v6835
        %v6855 = vsel %vm6845, %v6841, 1326507024
        %v6856 = vsel %vm6844, %v6838, %v6855
        %v6857 = vsel %vm6843, %v6854, %v6856
        %v6858 = vshll.u32 %v6818, 8
        %v6859 = vmul.u32.u64.compose %v6858, %v6857
        %v6860 = vextract.low.u32 %v6859
        %v6861 = vextract.high.u32 %v6859
        %v6862 = vmul.u32.u64.compose %v6858, %v6853
        %v6863 = vextract.low.u32 %v6862
        %v6864 = vextract.high.u32 %v6862
        %v6865 = vmul.u32 %v6858, %v6849
        %v6866 = vadd.s32 %v6861, %v6863
        %vm6867 = vc.u32 %v6861, %v6863
        %v6868 = vadd.s32 %v6864, 1
        %v6869 = vsel %vm6867, %v6868, %v6864
        %v6870 = vadd.s32 %v6865, %v6869
        %v6871 = vadd.s32 %v6870, 536870912
        %v6872 = vshrl.u32 %v6871, 30
        %v6873 = vshll.u32 %v6872, 30
        %v6874 = vsub.s32 %v6870, %v6873
        %vm6875 = vcmp.lt.s32.totalorder %v6874, 0
        %v6876 = vsub.s32 0, %v6874
        %v6877 = vsel %vm6875, %v6876, %v6874
        %v6878 = vclz %v6877
        %v6879 = vsub.s32 %v6878, 2
        %vm6880 = vcmp.gt.s32.totalorder 0, %v6879
        %v6881 = vsel %vm6880, 0, %v6879
        %v6882 = vsub.s32 32, %v6881
        %v6883 = vshll.u32 %v6874, %v6881
        %v6884 = vshrl.u32 %v6866, %v6882
        %v6885 = vor.u32 %v6883, %v6884
        %v6886 = vsub.s32 4294967266, %v6881
        %v6887 = vadd.s32 %v6886, 127
        %v6888 = vshll.u32 %v6887, 23
        %v6889 = vor.u32 4788187, %v6888
        %v6890 = vand.u32 2147483647, %v6889
        %v6892 = vcvt.s32.f32 %v6885
        %v6893 = vmul.f32 %v6892, %v6890
        %v6894 = vxor.u32 %v6893, 2147483648
        %v6895 = vsel %vm6812, %v6894, %v6893
        %v6896 = vsub.s32 4, %v6872
        %v6897 = vsel %vm6812, %v6896, %v6872
        %v6898 = vsel %vm6811, %v6594, %v6895
        %v6899 = vsel %vm6811, 0, %v6897
        %v6900 = vcosq.f32.pop %v6898
        %v6901 = vsinq.f32.pop %v6898
        %vm6902 = vweird.f32 %v6594
        %v6903 = vadd.s32 %v6899, 3
        %v6904 = vand.u32 %v6903, 3
        %vm6905 = vcmp.lt.s32.totalorder %v6904, 2
        %vm6906 = vcmp.eq.s32.totalorder %v6904, 0
        %v6907 = vxor.u32 %v6901, 2147483648
        %v6908 = vsel %vm6906, %v6900, %v6907
        %vm6909 = vcmp.eq.s32.totalorder %v6904, 2
        %v6910 = vxor.u32 %v6900, 2147483648
        %v6911 = vsel %vm6909, %v6910, %v6901
        %v6912 = vsel %vm6905, %v6908, %v6911
        %v6913 = vsel %vm6902, nan, %v6912
        %v6914 = vand.u32 2147483647, %v6599
        %vm6915 = vcmp.le.f32.partialorder %v6914, 0.7853982
        %vm6916 = vcmp.lt.s32.totalorder %v6599, 0
        %v6917 = vand.u32 %v6599, 2139095040
        %v6918 = vshrl.u32 %v6917, 23
        %v6919 = vsub.s32 %v6918, 127
        %v6920 = vand.u32 2147483647, %v6599
        %v6921 = vand.u32 %v6920, 8388607
        %v6922 = vor.u32 %v6921, 8388608
        %v6923 = vsub.s32 0, %v6922
        %v6924 = vadd.s32 %v6919, 1
        %vm6925 = vcmp.gt.s32.totalorder %v6924, 0
        %v6926 = vsel %vm6925, %v6924, 0
        %v6927 = vshrl.u32 %v6926, 5
        %v6928 = vand.u32 %v6926, 31
        %v6929 = vsub.s32 32, %v6928
        %v6930 = vshrl.u32 683565275, %v6929
        %v6931 = vshll.u32 683565275, %v6928
        %v6932 = vshrl.u32 2475754826, %v6929
        %v6933 = vor.u32 %v6931, %v6932
        %v6934 = vshll.u32 2475754826, %v6928
        %v6935 = vshrl.u32 2131351028, %v6929
        %v6936 = vor.u32 %v6934, %v6935
        %v6937 = vshll.u32 2131351028, %v6928
        %v6938 = vshrl.u32 2102212464, %v6929
        %v6939 = vor.u32 %v6937, %v6938
        %v6940 = vshll.u32 2102212464, %v6928
        %v6941 = vshrl.u32 920167782, %v6929
        %v6942 = vor.u32 %v6940, %v6941
        %v6943 = vshll.u32 920167782, %v6928
        %v6944 = vshrl.u32 1326507024, %v6929
        %v6945 = vor.u32 %v6943, %v6944
        %vm6946 = vcmp.lt.s32.totalorder %v6927, 1
        %vm6947 = vcmp.lt.s32.totalorder %v6927, 2
        %vm6948 = vcmp.lt.s32.totalorder %v6927, 3
        %vm6949 = vcmp.lt.s32.totalorder %v6927, 4
        %v6950 = vsel %vm6946, %v6930, %v6933
        %v6951 = vsel %vm6949, %v6939, 2102212464
        %v6952 = vsel %vm6948, %v6936, %v6951
        %v6953 = vsel %vm6947, %v6950, %v6952
        %v6954 = vsel %vm6946, %v6933, %v6936
        %v6955 = vsel %vm6949, %v6942, 920167782
        %v6956 = vsel %vm6948, %v6939, %v6955
        %v6957 = vsel %vm6947, %v6954, %v6956
        %v6958 = vsel %vm6946, %v6936, %v6939
        %v6959 = vsel %vm6949, %v6945, 1326507024
        %v6960 = vsel %vm6948, %v6942, %v6959
        %v6961 = vsel %vm6947, %v6958, %v6960
        %v6962 = vshll.u32 %v6922, 8
        %v6963 = vmul.u32.u64.compose %v6962, %v6961
        %v6964 = vextract.low.u32 %v6963
        %v6965 = vextract.high.u32 %v6963
        %v6966 = vmul.u32.u64.compose %v6962, %v6957
        %v6967 = vextract.low.u32 %v6966
        %v6968 = vextract.high.u32 %v6966
        %v6969 = vmul.u32 %v6962, %v6953
        %v6970 = vadd.s32 %v6965, %v6967
        %vm6971 = vc.u32 %v6965, %v6967
        %v6972 = vadd.s32 %v6968, 1
        %v6973 = vsel %vm6971, %v6972, %v6968
        %v6974 = vadd.s32 %v6969, %v6973
        %v6975 = vadd.s32 %v6974, 536870912
        %v6976 = vshrl.u32 %v6975, 30
        %v6977 = vshll.u32 %v6976, 30
        %v6978 = vsub.s32 %v6974, %v6977
        %vm6979 = vcmp.lt.s32.totalorder %v6978, 0
        %v6980 = vsub.s32 0, %v6978
        %v6981 = vsel %vm6979, %v6980, %v6978
        %v6982 = vclz %v6981
        %v6983 = vsub.s32 %v6982, 2
        %vm6984 = vcmp.gt.s32.totalorder 0, %v6983
        %v6985 = vsel %vm6984, 0, %v6983
        %v6986 = vsub.s32 32, %v6985
        %v6987 = vshll.u32 %v6978, %v6985
        %v6988 = vshrl.u32 %v6970, %v6986
        %v6989 = vor.u32 %v6987, %v6988
        %v6990 = vsub.s32 4294967266, %v6985
        %v6991 = vadd.s32 %v6990, 127
        %v6992 = vshll.u32 %v6991, 23
        %v6993 = vor.u32 4788187, %v6992
        %v6994 = vand.u32 2147483647, %v6993
        %v6996 = vcvt.s32.f32 %v6989
        %v6997 = vmul.f32 %v6996, %v6994
        %v6998 = vxor.u32 %v6997, 2147483648
        %v6999 = vsel %vm6916, %v6998, %v6997
        %v7000 = vsub.s32 4, %v6976
        %v7001 = vsel %vm6916, %v7000, %v6976
        %v7002 = vsel %vm6915, %v6599, %v6999
        %v7003 = vsel %vm6915, 0, %v7001
        %v7004 = vcosq.f32.pop %v7002
        %v7005 = vsinq.f32.pop %v7002
        %vm7006 = vweird.f32 %v6599
        %v7007 = vadd.s32 %v7003, 3
        %v7008 = vand.u32 %v7007, 3
        %vm7009 = vcmp.lt.s32.totalorder %v7008, 2
        %vm7010 = vcmp.eq.s32.totalorder %v7008, 0
        %v7011 = vxor.u32 %v7005, 2147483648
        %v7012 = vsel %vm7010, %v7004, %v7011
        %vm7013 = vcmp.eq.s32.totalorder %v7008, 2
        %v7014 = vxor.u32 %v7004, 2147483648
        %v7015 = vsel %vm7013, %v7014, %v7005
        %v7016 = vsel %vm7009, %v7012, %v7015
        %v7017 = vsel %vm7006, nan, %v7016
        %7018 = vmatprep.subr.mxu0 0.0
        %7019 = vmatpush1.msra.mxu0 %v6172
        %7020 = vmatprep.subr.mxu0 0.0
        %7021 = vmatpush1.msra.mxu0 %v6276
        %7022 = vmatprep.subr.mxu0 0.0
        %7023 = vmatpush1.msra.mxu0 %v6380
        %7024 = vmatprep.subr.mxu0 0.0
        %7025 = vmatpush1.msra.mxu0 %v6484
        %7026 = vmatprep.subr.mxu0 0.0
        %7027 = vmatpush1.msra.mxu0 0.0
        %7028 = vmatprep.subr.mxu0 0.0
        %7029 = vmatpush1.msra.mxu0 0.0
        %7030 = vmatprep.subr.mxu0 0.0
        %7031 = vmatpush1.msra.mxu0 0.0
        %7032 = vmatprep.subr.mxu0 0.0
        %7033 = vmatpush1.msra.mxu0 0.0
        %7034 = vmatprep.subr.mxu0 0.0
        %7035 = vmatpush1.msra.mxu0 0.0
        %7036 = vmatprep.subr.mxu0 0.0
        %7037 = vmatpush1.msra.mxu0 0.0
        %7038 = vmatprep.subr.mxu0 0.0
        %7039 = vmatpush1.msra.mxu0 0.0
        %7040 = vmatprep.subr.mxu0 0.0
        %7041 = vmatpush1.msra.mxu0 0.0
        %7042 = vmatprep.subr.mxu0 0.0
        %7043 = vmatpush1.msra.mxu0 0.0
        %7044 = vmatprep.subr.mxu0 0.0
        %7045 = vmatpush1.msra.mxu0 0.0
        %7046 = vmatprep.subr.mxu0 0.0
        %7047 = vmatpush1.msra.mxu0 0.0
        %7048 = vmatprep.subr.mxu0 0.0
        %7049 = vmatpush1.msra.mxu0 0.0
        %7050 = vmatprep.subr.mxu0 0.0
        %7051 = vmatpush1.msra.mxu0 0.0
        %7052 = vmatprep.subr.mxu0 0.0
        %7053 = vmatpush1.msra.mxu0 0.0
        %7054 = vmatprep.subr.mxu0 0.0
        %7055 = vmatpush1.msra.mxu0 0.0
        %7056 = vmatprep.subr.mxu0 0.0
        %7057 = vmatpush1.msra.mxu0 0.0
        %7058 = vmatprep.subr.mxu0 0.0
        %7059 = vmatpush1.msra.mxu0 0.0
        %7060 = vmatprep.subr.mxu0 0.0
        %7061 = vmatpush1.msra.mxu0 0.0
        %7062 = vmatprep.subr.mxu0 0.0
        %7063 = vmatpush1.msra.mxu0 0.0
        %7064 = vmatprep.subr.mxu0 0.0
        %7065 = vmatpush1.msra.mxu0 0.0
        %7066 = vmatprep.subr.mxu0 0.0
        %7067 = vmatpush1.msra.mxu0 0.0
        %7068 = vmatprep.subr.mxu0 0.0
        %7069 = vmatpush1.msra.mxu0 0.0
        %7070 = vmatprep.subr.mxu0 0.0
        %7071 = vmatpush1.msra.mxu0 0.0
        %7072 = vmatprep.subr.mxu0 0.0
        %7073 = vmatpush1.msra.mxu0 0.0
        %7074 = vmatprep.subr.mxu0 0.0
        %7075 = vmatpush1.msra.mxu0 0.0
        %7076 = vmatprep.subr.mxu0 0.0
        %7077 = vmatpush1.msra.mxu0 0.0
        %7078 = vmatprep.subr.mxu0 0.0
        %7079 = vmatpush1.msra.mxu0 0.0
        %7080 = vmatprep.subr.mxu0 0.0
        %7081 = vmatpush1.msra.mxu0 0.0
        %7082 = vmatprep.mubr.f32.mxu0 0.0
        %7083 = vmatmul.mubr.f32.gmra.mrb[0].mxu0 %v6506
        %v7084 = vpop.f32.mrb[0].mxu0
        %v7085 = vadd.f32 %v6488, %v7084
        %v7086 = vpop.f32.mrb[0].mxu0
        %7087 = vmatprep.mubr.f32.mxu0 0.0
        %7088 = vmatmul.mubr.f32.gmra.mrb[0].mxu0 %v6509
        %v7089 = vpop.f32.mrb[0].mxu0
        %v7090 = vadd.f32 %v6493, %v7089
        %v7091 = vpop.f32.mrb[0].mxu0
        %7092 = vmatprep.mubr.f32.mxu0 0.0
        %7093 = vmatmul.mubr.f32.gmra.mrb[0].mxu0 %v6512
        %v7094 = vpop.f32.mrb[0].mxu0
        %v7095 = vadd.f32 %v6498, %v7094
        %v7096 = vpop.f32.mrb[0].mxu0
        %7097 = vmatprep.mubr.f32.mxu0 0.0
        %7098 = vmatmul.mubr.f32.gmra.mrb[0].mxu0 %v6515
        %v7099 = vpop.f32.mrb[0].mxu0
        %v7100 = vadd.f32 %v6503, %v7099
        %v7101 = vpop.f32.mrb[0].mxu0
        %7102 = vdwg.mxu0
        %v7103 = vand.u32 2147483647, %v7085
        %vm7104 = vcmp.le.f32.partialorder %v7103, 0.7853982
        %vm7105 = vcmp.lt.s32.totalorder %v7085, 0
        %v7106 = vand.u32 %v7085, 2139095040
        %v7107 = vshrl.u32 %v7106, 23
        %v7108 = vsub.s32 %v7107, 127
        %v7109 = vand.u32 2147483647, %v7085
        %v7110 = vand.u32 %v7109, 8388607
        %v7111 = vor.u32 %v7110, 8388608
        %v7112 = vsub.s32 0, %v7111
        %v7113 = vadd.s32 %v7108, 1
        %vm7114 = vcmp.gt.s32.totalorder %v7113, 0
        %v7115 = vsel %vm7114, %v7113, 0
        %v7116 = vshrl.u32 %v7115, 5
        %v7117 = vand.u32 %v7115, 31
        %v7118 = vsub.s32 32, %v7117
        %v7119 = vshrl.u32 683565275, %v7118
        %v7120 = vshll.u32 683565275, %v7117
        %v7121 = vshrl.u32 2475754826, %v7118
        %v7122 = vor.u32 %v7120, %v7121
        %v7123 = vshll.u32 2475754826, %v7117
        %v7124 = vshrl.u32 2131351028, %v7118
        %v7125 = vor.u32 %v7123, %v7124
        %v7126 = vshll.u32 2131351028, %v7117
        %v7127 = vshrl.u32 2102212464, %v7118
        %v7128 = vor.u32 %v7126, %v7127
        %v7129 = vshll.u32 2102212464, %v7117
        %v7130 = vshrl.u32 920167782, %v7118
        %v7131 = vor.u32 %v7129, %v7130
        %v7132 = vshll.u32 920167782, %v7117
        %v7133 = vshrl.u32 1326507024, %v7118
        %v7134 = vor.u32 %v7132, %v7133
        %vm7135 = vcmp.lt.s32.totalorder %v7116, 1
        %vm7136 = vcmp.lt.s32.totalorder %v7116, 2
        %vm7137 = vcmp.lt.s32.totalorder %v7116, 3
        %vm7138 = vcmp.lt.s32.totalorder %v7116, 4
        %v7139 = vsel %vm7135, %v7119, %v7122
        %v7140 = vsel %vm7138, %v7128, 2102212464
        %v7141 = vsel %vm7137, %v7125, %v7140
        %v7142 = vsel %vm7136, %v7139, %v7141
        %v7143 = vsel %vm7135, %v7122, %v7125
        %v7144 = vsel %vm7138, %v7131, 920167782
        %v7145 = vsel %vm7137, %v7128, %v7144
        %v7146 = vsel %vm7136, %v7143, %v7145
        %v7147 = vsel %vm7135, %v7125, %v7128
        %v7148 = vsel %vm7138, %v7134, 1326507024
        %v7149 = vsel %vm7137, %v7131, %v7148
        %v7150 = vsel %vm7136, %v7147, %v7149
        %v7151 = vshll.u32 %v7111, 8
        %v7152 = vmul.u32.u64.compose %v7151, %v7150
        %v7153 = vextract.low.u32 %v7152
        %v7154 = vextract.high.u32 %v7152
        %v7155 = vmul.u32.u64.compose %v7151, %v7146
        %v7156 = vextract.low.u32 %v7155
        %v7157 = vextract.high.u32 %v7155
        %v7158 = vmul.u32 %v7151, %v7142
        %v7159 = vadd.s32 %v7154, %v7156
        %vm7160 = vc.u32 %v7154, %v7156
        %v7161 = vadd.s32 %v7157, 1
        %v7162 = vsel %vm7160, %v7161, %v7157
        %v7163 = vadd.s32 %v7158, %v7162
        %v7164 = vadd.s32 %v7163, 536870912
        %v7165 = vshrl.u32 %v7164, 30
        %v7166 = vshll.u32 %v7165, 30
        %v7167 = vsub.s32 %v7163, %v7166
        %vm7168 = vcmp.lt.s32.totalorder %v7167, 0
        %v7169 = vsub.s32 0, %v7167
        %v7170 = vsel %vm7168, %v7169, %v7167
        %v7171 = vclz %v7170
        %v7172 = vsub.s32 %v7171, 2
        %vm7173 = vcmp.gt.s32.totalorder 0, %v7172
        %v7174 = vsel %vm7173, 0, %v7172
        %v7175 = vsub.s32 32, %v7174
        %v7176 = vshll.u32 %v7167, %v7174
        %v7177 = vshrl.u32 %v7159, %v7175
        %v7178 = vor.u32 %v7176, %v7177
        %v7179 = vsub.s32 4294967266, %v7174
        %v7180 = vadd.s32 %v7179, 127
        %v7181 = vshll.u32 %v7180, 23
        %v7182 = vor.u32 4788187, %v7181
        %v7183 = vand.u32 2147483647, %v7182
        %v7185 = vcvt.s32.f32 %v7178
        %v7186 = vmul.f32 %v7185, %v7183
        %v7187 = vxor.u32 %v7186, 2147483648
        %v7188 = vsel %vm7105, %v7187, %v7186
        %v7189 = vsub.s32 4, %v7165
        %v7190 = vsel %vm7105, %v7189, %v7165
        %v7191 = vsel %vm7104, %v7085, %v7188
        %v7192 = vsel %vm7104, 0, %v7190
        %v7193 = vcosq.f32.pop %v7191
        %v7194 = vsinq.f32.pop %v7191
        %vm7195 = vweird.f32 %v7085
        %v7196 = vadd.s32 %v7192, 3
        %v7197 = vand.u32 %v7196, 3
        %vm7198 = vcmp.lt.s32.totalorder %v7197, 2
        %vm7199 = vcmp.eq.s32.totalorder %v7197, 0
        %v7200 = vxor.u32 %v7194, 2147483648
        %v7201 = vsel %vm7199, %v7193, %v7200
        %vm7202 = vcmp.eq.s32.totalorder %v7197, 2
        %v7203 = vxor.u32 %v7193, 2147483648
        %v7204 = vsel %vm7202, %v7203, %v7194
        %v7205 = vsel %vm7198, %v7201, %v7204
        %v7206 = vsel %vm7195, nan, %v7205
        %v7207 = vand.u32 2147483647, %v7090
        %vm7208 = vcmp.le.f32.partialorder %v7207, 0.7853982
        %vm7209 = vcmp.lt.s32.totalorder %v7090, 0
        %v7210 = vand.u32 %v7090, 2139095040
        %v7211 = vshrl.u32 %v7210, 23
        %v7212 = vsub.s32 %v7211, 127
        %v7213 = vand.u32 2147483647, %v7090
        %v7214 = vand.u32 %v7213, 8388607
        %v7215 = vor.u32 %v7214, 8388608
        %v7216 = vsub.s32 0, %v7215
        %v7217 = vadd.s32 %v7212, 1
        %vm7218 = vcmp.gt.s32.totalorder %v7217, 0
        %v7219 = vsel %vm7218, %v7217, 0
        %v7220 = vshrl.u32 %v7219, 5
        %v7221 = vand.u32 %v7219, 31
        %v7222 = vsub.s32 32, %v7221
        %v7223 = vshrl.u32 683565275, %v7222
        %v7224 = vshll.u32 683565275, %v7221
        %v7225 = vshrl.u32 2475754826, %v7222
        %v7226 = vor.u32 %v7224, %v7225
        %v7227 = vshll.u32 2475754826, %v7221
        %v7228 = vshrl.u32 2131351028, %v7222
        %v7229 = vor.u32 %v7227, %v7228
        %v7230 = vshll.u32 2131351028, %v7221
        %v7231 = vshrl.u32 2102212464, %v7222
        %v7232 = vor.u32 %v7230, %v7231
        %v7233 = vshll.u32 2102212464, %v7221
        %v7234 = vshrl.u32 920167782, %v7222
        %v7235 = vor.u32 %v7233, %v7234
        %v7236 = vshll.u32 920167782, %v7221
        %v7237 = vshrl.u32 1326507024, %v7222
        %v7238 = vor.u32 %v7236, %v7237
        %vm7239 = vcmp.lt.s32.totalorder %v7220, 1
        %vm7240 = vcmp.lt.s32.totalorder %v7220, 2
        %vm7241 = vcmp.lt.s32.totalorder %v7220, 3
        %vm7242 = vcmp.lt.s32.totalorder %v7220, 4
        %v7243 = vsel %vm7239, %v7223, %v7226
        %v7244 = vsel %vm7242, %v7232, 2102212464
        %v7245 = vsel %vm7241, %v7229, %v7244
        %v7246 = vsel %vm7240, %v7243, %v7245
        %v7247 = vsel %vm7239, %v7226, %v7229
        %v7248 = vsel %vm7242, %v7235, 920167782
        %v7249 = vsel %vm7241, %v7232, %v7248
        %v7250 = vsel %vm7240, %v7247, %v7249
        %v7251 = vsel %vm7239, %v7229, %v7232
        %v7252 = vsel %vm7242, %v7238, 1326507024
        %v7253 = vsel %vm7241, %v7235, %v7252
        %v7254 = vsel %vm7240, %v7251, %v7253
        %v7255 = vshll.u32 %v7215, 8
        %v7256 = vmul.u32.u64.compose %v7255, %v7254
        %v7257 = vextract.low.u32 %v7256
        %v7258 = vextract.high.u32 %v7256
        %v7259 = vmul.u32.u64.compose %v7255, %v7250
        %v7260 = vextract.low.u32 %v7259
        %v7261 = vextract.high.u32 %v7259
        %v7262 = vmul.u32 %v7255, %v7246
        %v7263 = vadd.s32 %v7258, %v7260
        %vm7264 = vc.u32 %v7258, %v7260
        %v7265 = vadd.s32 %v7261, 1
        %v7266 = vsel %vm7264, %v7265, %v7261
        %v7267 = vadd.s32 %v7262, %v7266
        %v7268 = vadd.s32 %v7267, 536870912
        %v7269 = vshrl.u32 %v7268, 30
        %v7270 = vshll.u32 %v7269, 30
        %v7271 = vsub.s32 %v7267, %v7270
        %vm7272 = vcmp.lt.s32.totalorder %v7271, 0
        %v7273 = vsub.s32 0, %v7271
        %v7274 = vsel %vm7272, %v7273, %v7271
        %v7275 = vclz %v7274
        %v7276 = vsub.s32 %v7275, 2
        %vm7277 = vcmp.gt.s32.totalorder 0, %v7276
        %v7278 = vsel %vm7277, 0, %v7276
        %v7279 = vsub.s32 32, %v7278
        %v7280 = vshll.u32 %v7271, %v7278
        %v7281 = vshrl.u32 %v7263, %v7279
        %v7282 = vor.u32 %v7280, %v7281
        %v7283 = vsub.s32 4294967266, %v7278
        %v7284 = vadd.s32 %v7283, 127
        %v7285 = vshll.u32 %v7284, 23
        %v7286 = vor.u32 4788187, %v7285
        %v7287 = vand.u32 2147483647, %v7286
        %v7289 = vcvt.s32.f32 %v7282
        %v7290 = vmul.f32 %v7289, %v7287
        %v7291 = vxor.u32 %v7290, 2147483648
        %v7292 = vsel %vm7209, %v7291, %v7290
        %v7293 = vsub.s32 4, %v7269
        %v7294 = vsel %vm7209, %v7293, %v7269
        %v7295 = vsel %vm7208, %v7090, %v7292
        %v7296 = vsel %vm7208, 0, %v7294
        %v7297 = vcosq.f32.pop %v7295
        %v7298 = vsinq.f32.pop %v7295
        %vm7299 = vweird.f32 %v7090
        %v7300 = vadd.s32 %v7296, 3
        %v7301 = vand.u32 %v7300, 3
        %vm7302 = vcmp.lt.s32.totalorder %v7301, 2
        %vm7303 = vcmp.eq.s32.totalorder %v7301, 0
        %v7304 = vxor.u32 %v7298, 2147483648
        %v7305 = vsel %vm7303, %v7297, %v7304
        %vm7306 = vcmp.eq.s32.totalorder %v7301, 2
        %v7307 = vxor.u32 %v7297, 2147483648
        %v7308 = vsel %vm7306, %v7307, %v7298
        %v7309 = vsel %vm7302, %v7305, %v7308
        %v7310 = vsel %vm7299, nan, %v7309
        %v7311 = vand.u32 2147483647, %v7095
        %vm7312 = vcmp.le.f32.partialorder %v7311, 0.7853982
        %vm7313 = vcmp.lt.s32.totalorder %v7095, 0
        %v7314 = vand.u32 %v7095, 2139095040
        %v7315 = vshrl.u32 %v7314, 23
        %v7316 = vsub.s32 %v7315, 127
        %v7317 = vand.u32 2147483647, %v7095
        %v7318 = vand.u32 %v7317, 8388607
        %v7319 = vor.u32 %v7318, 8388608
        %v7320 = vsub.s32 0, %v7319
        %v7321 = vadd.s32 %v7316, 1
        %vm7322 = vcmp.gt.s32.totalorder %v7321, 0
        %v7323 = vsel %vm7322, %v7321, 0
        %v7324 = vshrl.u32 %v7323, 5
        %v7325 = vand.u32 %v7323, 31
        %v7326 = vsub.s32 32, %v7325
        %v7327 = vshrl.u32 683565275, %v7326
        %v7328 = vshll.u32 683565275, %v7325
        %v7329 = vshrl.u32 2475754826, %v7326
        %v7330 = vor.u32 %v7328, %v7329
        %v7331 = vshll.u32 2475754826, %v7325
        %v7332 = vshrl.u32 2131351028, %v7326
        %v7333 = vor.u32 %v7331, %v7332
        %v7334 = vshll.u32 2131351028, %v7325
        %v7335 = vshrl.u32 2102212464, %v7326
        %v7336 = vor.u32 %v7334, %v7335
        %v7337 = vshll.u32 2102212464, %v7325
        %v7338 = vshrl.u32 920167782, %v7326
        %v7339 = vor.u32 %v7337, %v7338
        %v7340 = vshll.u32 920167782, %v7325
        %v7341 = vshrl.u32 1326507024, %v7326
        %v7342 = vor.u32 %v7340, %v7341
        %vm7343 = vcmp.lt.s32.totalorder %v7324, 1
        %vm7344 = vcmp.lt.s32.totalorder %v7324, 2
        %vm7345 = vcmp.lt.s32.totalorder %v7324, 3
        %vm7346 = vcmp.lt.s32.totalorder %v7324, 4
        %v7347 = vsel %vm7343, %v7327, %v7330
        %v7348 = vsel %vm7346, %v7336, 2102212464
        %v7349 = vsel %vm7345, %v7333, %v7348
        %v7350 = vsel %vm7344, %v7347, %v7349
        %v7351 = vsel %vm7343, %v7330, %v7333
        %v7352 = vsel %vm7346, %v7339, 920167782
        %v7353 = vsel %vm7345, %v7336, %v7352
        %v7354 = vsel %vm7344, %v7351, %v7353
        %v7355 = vsel %vm7343, %v7333, %v7336
        %v7356 = vsel %vm7346, %v7342, 1326507024
        %v7357 = vsel %vm7345, %v7339, %v7356
        %v7358 = vsel %vm7344, %v7355, %v7357
        %v7359 = vshll.u32 %v7319, 8
        %v7360 = vmul.u32.u64.compose %v7359, %v7358
        %v7361 = vextract.low.u32 %v7360
        %v7362 = vextract.high.u32 %v7360
        %v7363 = vmul.u32.u64.compose %v7359, %v7354
        %v7364 = vextract.low.u32 %v7363
        %v7365 = vextract.high.u32 %v7363
        %v7366 = vmul.u32 %v7359, %v7350
        %v7367 = vadd.s32 %v7362, %v7364
        %vm7368 = vc.u32 %v7362, %v7364
        %v7369 = vadd.s32 %v7365, 1
        %v7370 = vsel %vm7368, %v7369, %v7365
        %v7371 = vadd.s32 %v7366, %v7370
        %v7372 = vadd.s32 %v7371, 536870912
        %v7373 = vshrl.u32 %v7372, 30
        %v7374 = vshll.u32 %v7373, 30
        %v7375 = vsub.s32 %v7371, %v7374
        %vm7376 = vcmp.lt.s32.totalorder %v7375, 0
        %v7377 = vsub.s32 0, %v7375
        %v7378 = vsel %vm7376, %v7377, %v7375
        %v7379 = vclz %v7378
        %v7380 = vsub.s32 %v7379, 2
        %vm7381 = vcmp.gt.s32.totalorder 0, %v7380
        %v7382 = vsel %vm7381, 0, %v7380
        %v7383 = vsub.s32 32, %v7382
        %v7384 = vshll.u32 %v7375, %v7382
        %v7385 = vshrl.u32 %v7367, %v7383
        %v7386 = vor.u32 %v7384, %v7385
        %v7387 = vsub.s32 4294967266, %v7382
        %v7388 = vadd.s32 %v7387, 127
        %v7389 = vshll.u32 %v7388, 23
        %v7390 = vor.u32 4788187, %v7389
        %v7391 = vand.u32 2147483647, %v7390
        %v7393 = vcvt.s32.f32 %v7386
        %v7394 = vmul.f32 %v7393, %v7391
        %v7395 = vxor.u32 %v7394, 2147483648
        %v7396 = vsel %vm7313, %v7395, %v7394
        %v7397 = vsub.s32 4, %v7373
        %v7398 = vsel %vm7313, %v7397, %v7373
        %v7399 = vsel %vm7312, %v7095, %v7396
        %v7400 = vsel %vm7312, 0, %v7398
        %v7401 = vcosq.f32.pop %v7399
        %v7402 = vsinq.f32.pop %v7399
        %vm7403 = vweird.f32 %v7095
        %v7404 = vadd.s32 %v7400, 3
        %v7405 = vand.u32 %v7404, 3
        %vm7406 = vcmp.lt.s32.totalorder %v7405, 2
        %vm7407 = vcmp.eq.s32.totalorder %v7405, 0
        %v7408 = vxor.u32 %v7402, 2147483648
        %v7409 = vsel %vm7407, %v7401, %v7408
        %vm7410 = vcmp.eq.s32.totalorder %v7405, 2
        %v7411 = vxor.u32 %v7401, 2147483648
        %v7412 = vsel %vm7410, %v7411, %v7402
        %v7413 = vsel %vm7406, %v7409, %v7412
        %v7414 = vsel %vm7403, nan, %v7413
        %v7415 = vand.u32 2147483647, %v7100
        %vm7416 = vcmp.le.f32.partialorder %v7415, 0.7853982
        %vm7417 = vcmp.lt.s32.totalorder %v7100, 0
        %v7418 = vand.u32 %v7100, 2139095040
        %v7419 = vshrl.u32 %v7418, 23
        %v7420 = vsub.s32 %v7419, 127
        %v7421 = vand.u32 2147483647, %v7100
        %v7422 = vand.u32 %v7421, 8388607
        %v7423 = vor.u32 %v7422, 8388608
        %v7424 = vsub.s32 0, %v7423
        %v7425 = vadd.s32 %v7420, 1
        %vm7426 = vcmp.gt.s32.totalorder %v7425, 0
        %v7427 = vsel %vm7426, %v7425, 0
        %v7428 = vshrl.u32 %v7427, 5
        %v7429 = vand.u32 %v7427, 31
        %v7430 = vsub.s32 32, %v7429
        %v7431 = vshrl.u32 683565275, %v7430
        %v7432 = vshll.u32 683565275, %v7429
        %v7433 = vshrl.u32 2475754826, %v7430
        %v7434 = vor.u32 %v7432, %v7433
        %v7435 = vshll.u32 2475754826, %v7429
        %v7436 = vshrl.u32 2131351028, %v7430
        %v7437 = vor.u32 %v7435, %v7436
        %v7438 = vshll.u32 2131351028, %v7429
        %v7439 = vshrl.u32 2102212464, %v7430
        %v7440 = vor.u32 %v7438, %v7439
        %v7441 = vshll.u32 2102212464, %v7429
        %v7442 = vshrl.u32 920167782, %v7430
        %v7443 = vor.u32 %v7441, %v7442
        %v7444 = vshll.u32 920167782, %v7429
        %v7445 = vshrl.u32 1326507024, %v7430
        %v7446 = vor.u32 %v7444, %v7445
        %vm7447 = vcmp.lt.s32.totalorder %v7428, 1
        %vm7448 = vcmp.lt.s32.totalorder %v7428, 2
        %vm7449 = vcmp.lt.s32.totalorder %v7428, 3
        %vm7450 = vcmp.lt.s32.totalorder %v7428, 4
        %v7451 = vsel %vm7447, %v7431, %v7434
        %v7452 = vsel %vm7450, %v7440, 2102212464
        %v7453 = vsel %vm7449, %v7437, %v7452
        %v7454 = vsel %vm7448, %v7451, %v7453
        %v7455 = vsel %vm7447, %v7434, %v7437
        %v7456 = vsel %vm7450, %v7443, 920167782
        %v7457 = vsel %vm7449, %v7440, %v7456
        %v7458 = vsel %vm7448, %v7455, %v7457
        %v7459 = vsel %vm7447, %v7437, %v7440
        %v7460 = vsel %vm7450, %v7446, 1326507024
        %v7461 = vsel %vm7449, %v7443, %v7460
        %v7462 = vsel %vm7448, %v7459, %v7461
        %v7463 = vshll.u32 %v7423, 8
        %v7464 = vmul.u32.u64.compose %v7463, %v7462
        %v7465 = vextract.low.u32 %v7464
        %v7466 = vextract.high.u32 %v7464
        %v7467 = vmul.u32.u64.compose %v7463, %v7458
        %v7468 = vextract.low.u32 %v7467
        %v7469 = vextract.high.u32 %v7467
        %v7470 = vmul.u32 %v7463, %v7454
        %v7471 = vadd.s32 %v7466, %v7468
        %vm7472 = vc.u32 %v7466, %v7468
        %v7473 = vadd.s32 %v7469, 1
        %v7474 = vsel %vm7472, %v7473, %v7469
        %v7475 = vadd.s32 %v7470, %v7474
        %v7476 = vadd.s32 %v7475, 536870912
        %v7477 = vshrl.u32 %v7476, 30
        %v7478 = vshll.u32 %v7477, 30
        %v7479 = vsub.s32 %v7475, %v7478
        %vm7480 = vcmp.lt.s32.totalorder %v7479, 0
        %v7481 = vsub.s32 0, %v7479
        %v7482 = vsel %vm7480, %v7481, %v7479
        %v7483 = vclz %v7482
        %v7484 = vsub.s32 %v7483, 2
        %vm7485 = vcmp.gt.s32.totalorder 0, %v7484
        %v7486 = vsel %vm7485, 0, %v7484
        %v7487 = vsub.s32 32, %v7486
        %v7488 = vshll.u32 %v7479, %v7486
        %v7489 = vshrl.u32 %v7471, %v7487
        %v7490 = vor.u32 %v7488, %v7489
        %v7491 = vsub.s32 4294967266, %v7486
        %v7492 = vadd.s32 %v7491, 127
        %v7493 = vshll.u32 %v7492, 23
        %v7494 = vor.u32 4788187, %v7493
        %v7495 = vand.u32 2147483647, %v7494
        %v7497 = vcvt.s32.f32 %v7490
        %v7498 = vmul.f32 %v7497, %v7495
        %v7499 = vxor.u32 %v7498, 2147483648
        %v7500 = vsel %vm7417, %v7499, %v7498
        %v7501 = vsub.s32 4, %v7477
        %v7502 = vsel %vm7417, %v7501, %v7477
        %v7503 = vsel %vm7416, %v7100, %v7500
        %v7504 = vsel %vm7416, 0, %v7502
        %v7505 = vcosq.f32.pop %v7503
        %v7506 = vsinq.f32.pop %v7503
        %vm7507 = vweird.f32 %v7100
        %v7508 = vadd.s32 %v7504, 3
        %v7509 = vand.u32 %v7508, 3
        %vm7510 = vcmp.lt.s32.totalorder %v7509, 2
        %vm7511 = vcmp.eq.s32.totalorder %v7509, 0
        %v7512 = vxor.u32 %v7506, 2147483648
        %v7513 = vsel %vm7511, %v7505, %v7512
        %vm7514 = vcmp.eq.s32.totalorder %v7509, 2
        %v7515 = vxor.u32 %v7505, 2147483648
        %v7516 = vsel %vm7514, %v7515, %v7506
        %v7517 = vsel %vm7510, %v7513, %v7516
        %v7518 = vsel %vm7507, nan, %v7517
        %v7519 = vadd.f32 %v5443, %v6705
        %v7520 = vadd.f32 %v5444, %v6809
        %v7521 = vadd.f32 %v5445, %v6913
        %v7522 = vadd.f32 %v5446, %v7017
        %v7523 = vadd.f32 %v5447, %v7206
        %v7524 = vadd.f32 %v5448, %v7310
        %v7525 = vadd.f32 %v5449, %v7414
        %v7526 = vadd.f32 %v5450, %v7518
        %7527 = vxpose.xlu0.b32.start [1/16] %v339, 128
        %7528 = vxpose.xlu0.b32.cont [2/16] 0.0, 128
        %7529 = vxpose.xlu0.b32.cont [3/16] 0.0, 128
        %7530 = vxpose.xlu0.b32.cont [4/16] 0.0, 128
        %7531 = vxpose.xlu0.b32.cont [5/16] 0.0, 128
        %7532 = vxpose.xlu0.b32.cont [6/16] 0.0, 128
        %7533 = vxpose.xlu0.b32.cont [7/16] 0.0, 128
        %7534 = vxpose.xlu0.b32.cont [8/16] 0.0, 128
        %7535 = vxpose.xlu0.b32.cont [9/16] 0.0, 128
        %7536 = vxpose.xlu0.b32.cont [10/16] 0.0, 128
        %7537 = vxpose.xlu0.b32.cont [11/16] 0.0, 128
        %7538 = vxpose.xlu0.b32.cont [12/16] 0.0, 128
        %7539 = vxpose.xlu0.b32.cont [13/16] 0.0, 128
        %7540 = vxpose.xlu0.b32.cont [14/16] 0.0, 128
        %7541 = vxpose.xlu0.b32.cont [15/16] 0.0, 128
        %7542 = vxpose.xlu0.b32.end [16/16] 0.0, 128
        %v7543 = vpop.trf.xlu0
        %v7544 = vpop.trf.xlu0
        %v7545 = vpop.trf.xlu0
        %v7546 = vpop.trf.xlu0
        %v7547 = vpop.trf.xlu0
        %v7548 = vpop.trf.xlu0
        %v7549 = vpop.trf.xlu0
        %v7550 = vpop.trf.xlu0
        %v7551 = vpop.trf.xlu0
        %v7552 = vpop.trf.xlu0
        %v7553 = vpop.trf.xlu0
        %v7554 = vpop.trf.xlu0
        %v7555 = vpop.trf.xlu0
        %v7556 = vpop.trf.xlu0
        %v7557 = vpop.trf.xlu0
        %v7558 = vpop.trf.xlu0
        %7560 = vset.pattern.permute.xlu0 0
        %7561 = vperm.xlu0 %7560, %v7543
        %v7562 = vpop.permute.xlu0 %7561
        %7565 = vset.pattern.permute.xlu0 0
        %7566 = vperm.xlu0 %7565, %v7544
        %v7567 = vpop.permute.xlu0 %7566
        %7570 = vset.pattern.permute.xlu0 0
        %7571 = vperm.xlu0 %7570, %v7545
        %v7572 = vpop.permute.xlu0 %7571
        %7575 = vset.pattern.permute.xlu0 0
        %7576 = vperm.xlu0 %7575, %v7546
        %v7577 = vpop.permute.xlu0 %7576
        %v7579 = vmul.f32 %v7562, %v7519
        %v7580 = vmul.f32 %v7567, %v7520
        %v7581 = vmul.f32 %v7572, %v7521
        %v7582 = vmul.f32 %v7577, %v7522
        %v7583 = vadd.f32 %v7579, %v7580
        %v7584 = vadd.f32 %v7583, %v7581
        %v7585 = vadd.f32 %v7584, %v7582
        %v7586 = vrot.slane %v7585, 4
        %v7587 = vadd.f32 %v7585, %v7586
        %v7588 = vrot.slane %v7587, 2
        %v7589 = vadd.f32 %v7587, %v7588
        %v7590 = vrot.slane %v7589, 1
        %v7591 = vadd.f32 %v7589, %v7590
        %7593 = vset.pattern.permute.xlu0 0
        %7594 = vperm.xlu0 %7593, %v340
        %v7595 = vpop.permute.xlu0 %7594
        %v7597 = vlaneseq
        %v7598 = vshrl.u32 %v7597, 7
        %v7599 = vsub.s32 0, %v7598
        %v7600 = vrot.slane %v7595, %v7599
        %v7601 = vadd.f32 %v7591, %v7600
        %v7602 = vlaneseq
        %vm7603 = vcmp.ge.s32.totalorder %v7602, 0
        %vm7604 = vcmp.lt.s32.totalorder %v7602, 128
        %vm7605 = vmand %vm7603, %vm7604
        %7606 = vst.msk [vmem:[%s274] sm:$0x1] %vm7605, %v7601
        %v7607 = vmul.f32 %v7562, %v7523
        %v7608 = vmul.f32 %v7567, %v7524
        %v7609 = vmul.f32 %v7572, %v7525
        %v7610 = vmul.f32 %v7577, %v7526
        %v7611 = vadd.f32 %v7607, %v7608
        %v7612 = vadd.f32 %v7611, %v7609
        %v7613 = vadd.f32 %v7612, %v7610
        %v7614 = vrot.slane %v7613, 4
        %v7615 = vadd.f32 %v7613, %v7614
        %v7616 = vrot.slane %v7615, 2
        %v7617 = vadd.f32 %v7615, %v7616
        %v7618 = vrot.slane %v7617, 1
        %v7619 = vadd.f32 %v7617, %v7618
        %v7620 = vadd.f32 %v7619, %v7600
        %7621 = vst.msk [vmem:[%s274 + $0x1] sm:$0x1] %vm7605, %v7620
        %s7622 = sand.u32 %s183, 1
        %s7623 = scalar_lea.sflag [#allocation4], %s7622
        %s7624 = sand.u32 %s183, 1
        %s7625 = smul.addr %s7624, 2
        %s7626 = scalar_lea.vmem [#allocation3], %s7625
        // Predicated region
        $region49: #{tpu_custom_call.1} parent=47 // pred_check
          %p7627 = pneg %p193
        $region50: #{tpu_custom_call.1} parent=47 // pred_check_branch
          %7629 = sbr.rel (%p7627) target = $region52
        $region51: #{tpu_custom_call.1} parent=47 // pred_region
          %s7630 = smul.u32 2, %s23
          %s7632 = ssub.s32 32, 32
          %7633 = vsyncadd %s7623, %s7632
          %s7634 = smul.addr %s7630, 16
          %s7635 = scalar_lea.hbm %s7, %s7634
          %s7637 = sshll.u32 %s7626, 4
          %s7638 = int_to_ptr.vmem [resolvable:$true] %s7637
          %7640 = dma.vmem_to_hbm [thread:$0]  %s7638, 32, %s7635, %s7623
        $region52: #{tpu_custom_call.1} parent=47 // pred_fallthru
          _
      $region48: #{tpu_custom_call.1} parent=5 // pred_fallthru
        _
      %p7641 = scmp.le.s32.totalorder 2, %s18
      // Predicated region
      $region53: #{tpu_custom_call.1} parent=5 // pred_check
        %p7642 = pneg %p7641
      $region54: #{tpu_custom_call.1} parent=5 // pred_check_branch
        %7644 = sbr.rel (%p7642) target = $region56
      $region55: #{tpu_custom_call.1} parent=5 // pred_region
        %s7645 = ssub.s32 %s18, 2
        // Predicated region
        $region57: #{tpu_custom_call.1} parent=55 // pred_check
          %p7646 = pneg %p199
        $region58: #{tpu_custom_call.1} parent=55 // pred_check_branch
          %7648 = sbr.rel (%p7646) target = $region60
        $region59: #{tpu_custom_call.1} parent=55 // pred_region
          %s7649 = sand.u32 %s184, 1
          %s7650 = scalar_lea.sflag [#allocation4], %s7649
          %s7651 = sand.u32 %s184, 1
          %s7652 = smul.addr %s7651, 2
          %s7653 = scalar_lea.vmem [#allocation3], %s7652
          %7654 = dma.done %s7650, 32
        $region60: #{tpu_custom_call.1} parent=55 // pred_fallthru
          _
      $region56: #{tpu_custom_call.1} parent=5 // pred_fallthru
        _
    $region6: #{tpu_custom_call.1} parent=1 // loop_footer
      %s22 = sadd.s32 1, %s18
    $region7: #{tpu_custom_call.1} parent=1 // loop_footer_branch
      %17 = sbr.rel target = $region3
    $region8: #{tpu_custom_call.1} parent=1 // loop_exit
      _
    %7655 = vsyncpa [#allocation4], 1
    %s7656 = scalar_lea.sflag [#allocation4], 1
    %7657 = vsyncpa %s7656, 1

</llo_original>
